<compile_context>
chip_gen: v6e
topology: v6e:2x2x1
jax: 0.10.0
libtpu: 0.0.40
codegen_flags: <defaults>
</compile_context>

<pallas_src>
import jax
import jax.numpy as jnp
from jax.experimental import pallas as pl
from jax.experimental.pallas import tpu as pltpu

DROPOUT_P = 0.666


# ----------------------------------------------------------------------------
# Single fused kernel: GRU layer 1 -> dropout -> GRU layer 2 -> latch hidden
# state at t == len-1 -> Linear head.  Everything lives in VMEM / vregs.
# ----------------------------------------------------------------------------
def _fused_recurrent_kernel(x_ref,      # (Bp, T, D)   padded input, batch-first
                            mask_ref,   # (T, Bp, H)   scaled dropout keep-mask
                            lens_ref,   # (Bp, 1)      int32 sequence lengths
                            wih1_ref,   # (D, 3H)
                            whh1_ref,   # (H, 3H)
                            b1_ref,     # (1, 3H)      b_ih + [b_hr, b_hz, 0]
                            bhn1_ref,   # (1, H)       b_hn
                            wih2_ref,   # (H, 3H)
                            whh2_ref,   # (H, 3H)
                            b2_ref,     # (1, 3H)
                            bhn2_ref,   # (1, H)
                            wv_ref,     # (H, O)
                            bv_ref,     # (1, O)
                            o_ref):     # (Bp, O)
    Bp, T, D = x_ref.shape
    H = whh1_ref.shape[0]

    # --- hoisted layer-1 input projection: one matmul for all time steps -----
    x2d = x_ref[...].reshape(Bp * T, D)
    gx1_all = (jnp.dot(x2d, wih1_ref[...], preferred_element_type=jnp.float32)
               + b1_ref[...]).reshape(Bp, T, 3 * H)

    lens = lens_ref[...]                                   # (Bp, 1) int32

    def gru_cell(gx, h, whh_ref, bhn_ref):
        # PyTorch gate order r, z, n.  gx already includes b_ih (all gates)
        # plus b_hh for the r/z gates; only b_hn is added here.
        gh = jnp.dot(h, whh_ref[...], preferred_element_type=jnp.float32)
        r = jax.nn.sigmoid(gx[:, 0:H] + gh[:, 0:H])
        z = jax.nn.sigmoid(gx[:, H:2 * H] + gh[:, H:2 * H])
        n = jnp.tanh(gx[:, 2 * H:3 * H] + r * (gh[:, 2 * H:3 * H] + bhn_ref[...]))
        return (1.0 - z) * n + z * h

    h1 = jnp.zeros((Bp, H), jnp.float32)
    h2 = jnp.zeros((Bp, H), jnp.float32)
    val = jnp.zeros((Bp, H), jnp.float32)

    # Time recurrence, unrolled at trace time (T is small and static).
    for t in range(T):
        h1 = gru_cell(gx1_all[:, t], h1, whh1_ref, bhn1_ref)
        d = h1 * mask_ref[t]                               # fused dropout
        gx2 = (jnp.dot(d, wih2_ref[...], preferred_element_type=jnp.float32)
               + b2_ref[...])
        h2 = gru_cell(gx2, h2, whh2_ref, bhn2_ref)
        # Latch the layer-2 hidden state at the last valid step per batch row.
        val = jnp.where((lens - 1) == t, h2, val)

    # hid2val Linear head on the latched states.
    o_ref[...] = (jnp.dot(val, wv_ref[...], preferred_element_type=jnp.float32)
                  + bv_ref[...])


# ----------------------------------------------------------------------------
# Parameter init (deterministic, PyTorch-style U(-1/sqrt(H), 1/sqrt(H))).
# Weights are stored pre-transposed: w_ih^T is (D, 3H), w_hh^T is (H, 3H),
# Linear weight^T is (H, O); gate order along the 3H axis is r, z, n.
# ----------------------------------------------------------------------------
def init_params(key, D, H, O):
    k = 1.0 / float(H) ** 0.5
    keys = jax.random.split(key, 10)

    def u(kk, shape):
        return jax.random.uniform(kk, shape, jnp.float32, -k, k)

    return dict(
        wih1=u(keys[0], (D, 3 * H)), whh1=u(keys[1], (H, 3 * H)),
        bih1=u(keys[2], (1, 3 * H)), bhh1=u(keys[3], (1, 3 * H)),
        wih2=u(keys[4], (H, 3 * H)), whh2=u(keys[5], (H, 3 * H)),
        bih2=u(keys[6], (1, 3 * H)), bhh2=u(keys[7], (1, 3 * H)),
        wv=u(keys[8], (H, O)), bv=u(keys[9], (1, O)),
    )


def _round_up(n, m):
    return (n + m - 1) // m * m


@jax.jit
def simple_recurrent_forward(params, padded_input, input_lengths, dropout_key):
    B, T, D = padded_input.shape
    H = params["whh1"].shape[0]
    O = params["wv"].shape[1]
    Bp = _round_up(B, 8)                      # sublane-dense batch (f32 -> 8)

    # Layout plumbing only (cheap, tiny arrays): pad batch rows; padded rows
    # are sliced away from the output below.
    x = jnp.pad(padded_input.astype(jnp.float32), ((0, Bp - B), (0, 0), (0, 0)))
    lens = jnp.pad(input_lengths.astype(jnp.int32).reshape(B, 1),
                   ((0, Bp - B), (0, 0)), constant_values=1)

    # F.dropout(p=0.666, training=True): pre-scaled keep mask, time-major so
    # the kernel indexes it with a cheap leading index.
    # TODO(synk): on real hardware this could be generated in-kernel with
    # pltpu.prng_random_bits, but that primitive has no interpret/CPU lowering,
    # so the mask is drawn with jax.random here and only applied in the kernel.
    keep = 1.0 - DROPOUT_P
    mask = (jax.random.bernoulli(dropout_key, keep, (T, Bp, H))
            .astype(jnp.float32) / keep)

    def fuse_bias(bih, bhh):
        # r/z gates: b_ih + b_hh folded into the input-projection bias.
        # n gate: keep b_in with gx, b_hn separate (lives inside r * (...)).
        b = jnp.concatenate([bih[:, :2 * H] + bhh[:, :2 * H], bih[:, 2 * H:]],
                            axis=1)
        return b, bhh[:, 2 * H:]

    b1, bhn1 = fuse_bias(params["bih1"], params["bhh1"])
    b2, bhn2 = fuse_bias(params["bih2"], params["bhh2"])

    n_inputs = 13
    out = pl.pallas_call(
        _fused_recurrent_kernel,
        out_shape=jax.ShapeDtypeStruct((Bp, O), jnp.float32),
        in_specs=[pl.BlockSpec(memory_space=pltpu.MemorySpace.VMEM)
                  for _ in range(n_inputs)],
        out_specs=pl.BlockSpec(memory_space=pltpu.MemorySpace.VMEM),
    )(x, mask, lens,
      params["wih1"], params["whh1"], b1, bhn1,
      params["wih2"], params["whh2"], b2, bhn2,
      params["wv"], params["bv"])

    return out[:B]


if __name__ == "__main__":
    # batch=2, seq=8, input feats=32, hidden=128 (one 128-lane tile per gate),
    # num_outputs=8.
    B, T, D, H, O = 2, 8, 32, 128, 8
    key = jax.random.PRNGKey(0)
    pkey, xkey, dkey = jax.random.split(key, 3)

    params = init_params(pkey, D, H, O)
    padded_input = jax.random.normal(xkey, (B, T, D), jnp.float32)
    input_lengths = jnp.array([T, T // 2], dtype=jnp.int32)

    out = simple_recurrent_forward(params, padded_input, input_lengths, dkey)
    jax.block_until_ready(out)

    assert out.shape == (B, O), out.shape
    assert bool(jnp.all(jnp.isfinite(out)))
    print("KERNEL_OK")
</pallas_src>

<mosaic_0001>
module attributes {stable_mosaic.version = 11 : i64} {
  func.func @_fused_recurrent_kernel(%arg0: memref<8x8x32xf32, #tpu.memory_space<vmem>>, %arg1: memref<8x8x128xf32, #tpu.memory_space<vmem>>, %arg2: memref<8x1xi32, #tpu.memory_space<vmem>>, %arg3: memref<32x384xf32, #tpu.memory_space<vmem>>, %arg4: memref<128x384xf32, #tpu.memory_space<vmem>>, %arg5: memref<1x384xf32, #tpu.memory_space<vmem>>, %arg6: memref<1x128xf32, #tpu.memory_space<vmem>>, %arg7: memref<128x384xf32, #tpu.memory_space<vmem>>, %arg8: memref<128x384xf32, #tpu.memory_space<vmem>>, %arg9: memref<1x384xf32, #tpu.memory_space<vmem>>, %arg10: memref<1x128xf32, #tpu.memory_space<vmem>>, %arg11: memref<128x8xf32, #tpu.memory_space<vmem>>, %arg12: memref<1x8xf32, #tpu.memory_space<vmem>>, %arg13: memref<8x8xf32, #tpu.memory_space<vmem>>) attributes {dimension_semantics = [], scalar_prefetch = 0 : i64, scratch_operands = 0 : i64, tpu.core_type = #tpu.core_type<tc>} {
    %c0 = arith.constant 0 : index
    %c0_0 = arith.constant 0 : index
    %c0_1 = arith.constant 0 : index
    %0 = vector.load %arg0[%c0, %c0_0, %c0_1] : memref<8x8x32xf32, #tpu.memory_space<vmem>>, vector<8x8x32xf32>
    %1 = vector.shape_cast %0 : vector<8x8x32xf32> to vector<64x32xf32>
    %c0_2 = arith.constant 0 : index
    %c0_3 = arith.constant 0 : index
    %2 = vector.load %arg3[%c0_2, %c0_3] : memref<32x384xf32, #tpu.memory_space<vmem>>, vector<32x384xf32>
    %cst = arith.constant dense<0.000000e+00> : vector<64x384xf32>
    %3 = tpu.matmul %1, %2, %cst {dimension_numbers = #tpu.dot_dimension_numbers<[1], [0], [0], [1], [0, 0, 1, 1], [], []>} : vector<64x32xf32>, vector<32x384xf32>, vector<64x384xf32> -> vector<64x384xf32>
    %c0_4 = arith.constant 0 : index
    %c0_5 = arith.constant 0 : index
    %4 = vector.load %arg5[%c0_4, %c0_5] : memref<1x384xf32, #tpu.memory_space<vmem>>, vector<1x384xf32>
    %5 = vector.broadcast %4 : vector<1x384xf32> to vector<64x384xf32>
    %6 = arith.addf %3, %5 : vector<64x384xf32>
    %7 = vector.shape_cast %6 : vector<64x384xf32> to vector<8x8x384xf32>
    %c0_6 = arith.constant 0 : index
    %c0_7 = arith.constant 0 : index
    %8 = vector.load %arg2[%c0_6, %c0_7] : memref<8x1xi32, #tpu.memory_space<vmem>>, vector<8x1xi32>
    %cst_8 = arith.constant 0.000000e+00 : f32
    %9 = vector.broadcast %cst_8 : f32 to vector<8x128xf32>
    %cst_9 = arith.constant 0.000000e+00 : f32
    %10 = vector.broadcast %cst_9 : f32 to vector<8x128xf32>
    %cst_10 = arith.constant 0.000000e+00 : f32
    %11 = vector.broadcast %cst_10 : f32 to vector<8x128xf32>
    %12 = vector.extract_strided_slice %7 {offsets = [0, 0, 0], sizes = [8, 1, 384], strides = [1, 1, 1]} : vector<8x8x384xf32> to vector<8x1x384xf32>
    %13 = vector.shape_cast %12 : vector<8x1x384xf32> to vector<8x384xf32>
    %c0_11 = arith.constant 0 : index
    %c0_12 = arith.constant 0 : index
    %14 = vector.load %arg4[%c0_11, %c0_12] : memref<128x384xf32, #tpu.memory_space<vmem>>, vector<128x384xf32>
    %cst_13 = arith.constant dense<0.000000e+00> : vector<8x384xf32>
    %15 = tpu.matmul %9, %14, %cst_13 {dimension_numbers = #tpu.dot_dimension_numbers<[1], [0], [0], [1], [0, 0, 1, 1], [], []>} : vector<8x128xf32>, vector<128x384xf32>, vector<8x384xf32> -> vector<8x384xf32>
    %16 = vector.extract_strided_slice %13 {offsets = [0, 0], sizes = [8, 128], strides = [1, 1]} : vector<8x384xf32> to vector<8x128xf32>
    %17 = vector.extract_strided_slice %15 {offsets = [0, 0], sizes = [8, 128], strides = [1, 1]} : vector<8x384xf32> to vector<8x128xf32>
    %18 = arith.addf %16, %17 : vector<8x128xf32>
    %19 = arith.negf %18 : vector<8x128xf32>
    %20 = math.exp %19 : vector<8x128xf32>
    %cst_14 = arith.constant 1.000000e+00 : f32
    %21 = vector.broadcast %cst_14 : f32 to vector<8x128xf32>
    %22 = arith.addf %21, %20 : vector<8x128xf32>
    %23 = arith.divf %21, %22 : vector<8x128xf32>
    %24 = vector.extract_strided_slice %13 {offsets = [0, 128], sizes = [8, 128], strides = [1, 1]} : vector<8x384xf32> to vector<8x128xf32>
    %25 = vector.extract_strided_slice %15 {offsets = [0, 128], sizes = [8, 128], strides = [1, 1]} : vector<8x384xf32> to vector<8x128xf32>
    %26 = arith.addf %24, %25 : vector<8x128xf32>
    %27 = arith.negf %26 : vector<8x128xf32>
    %28 = math.exp %27 : vector<8x128xf32>
    %cst_15 = arith.constant 1.000000e+00 : f32
    %29 = vector.broadcast %cst_15 : f32 to vector<8x128xf32>
    %30 = arith.addf %29, %28 : vector<8x128xf32>
    %31 = arith.divf %29, %30 : vector<8x128xf32>
    %32 = vector.extract_strided_slice %13 {offsets = [0, 256], sizes = [8, 128], strides = [1, 1]} : vector<8x384xf32> to vector<8x128xf32>
    %33 = vector.extract_strided_slice %15 {offsets = [0, 256], sizes = [8, 128], strides = [1, 1]} : vector<8x384xf32> to vector<8x128xf32>
    %c0_16 = arith.constant 0 : index
    %c0_17 = arith.constant 0 : index
    %34 = vector.load %arg6[%c0_16, %c0_17] : memref<1x128xf32, #tpu.memory_space<vmem>>, vector<1x128xf32>
    %35 = vector.broadcast %34 : vector<1x128xf32> to vector<8x128xf32>
    %36 = arith.addf %33, %35 : vector<8x128xf32>
    %37 = arith.mulf %23, %36 : vector<8x128xf32>
    %38 = arith.addf %32, %37 : vector<8x128xf32>
    %39 = math.tanh %38 : vector<8x128xf32>
    %cst_18 = arith.constant 1.000000e+00 : f32
    %40 = vector.broadcast %cst_18 : f32 to vector<8x128xf32>
    %41 = arith.subf %40, %31 : vector<8x128xf32>
    %42 = arith.mulf %41, %39 : vector<8x128xf32>
    %43 = arith.mulf %31, %9 : vector<8x128xf32>
    %44 = arith.addf %42, %43 : vector<8x128xf32>
    %c0_19 = arith.constant 0 : index
    %c0_20 = arith.constant 0 : index
    %c0_21 = arith.constant 0 : index
    %45 = vector.load %arg1[%c0_19, %c0_20, %c0_21] : memref<8x8x128xf32, #tpu.memory_space<vmem>>, vector<1x8x128xf32>
    %46 = vector.shape_cast %45 : vector<1x8x128xf32> to vector<8x128xf32>
    %47 = arith.mulf %44, %46 : vector<8x128xf32>
    %c0_22 = arith.constant 0 : index
    %c0_23 = arith.constant 0 : index
    %48 = vector.load %arg7[%c0_22, %c0_23] : memref<128x384xf32, #tpu.memory_space<vmem>>, vector<128x384xf32>
    %cst_24 = arith.constant dense<0.000000e+00> : vector<8x384xf32>
    %49 = tpu.matmul %47, %48, %cst_24 {dimension_numbers = #tpu.dot_dimension_numbers<[1], [0], [0], [1], [0, 0, 1, 1], [], []>} : vector<8x128xf32>, vector<128x384xf32>, vector<8x384xf32> -> vector<8x384xf32>
    %c0_25 = arith.constant 0 : index
    %c0_26 = arith.constant 0 : index
    %50 = vector.load %arg9[%c0_25, %c0_26] : memref<1x384xf32, #tpu.memory_space<vmem>>, vector<1x384xf32>
    %51 = vector.broadcast %50 : vector<1x384xf32> to vector<8x384xf32>
    %52 = arith.addf %49, %51 : vector<8x384xf32>
    %c0_27 = arith.constant 0 : index
    %c0_28 = arith.constant 0 : index
    %53 = vector.load %arg8[%c0_27, %c0_28] : memref<128x384xf32, #tpu.memory_space<vmem>>, vector<128x384xf32>
    %cst_29 = arith.constant dense<0.000000e+00> : vector<8x384xf32>
    %54 = tpu.matmul %10, %53, %cst_29 {dimension_numbers = #tpu.dot_dimension_numbers<[1], [0], [0], [1], [0, 0, 1, 1], [], []>} : vector<8x128xf32>, vector<128x384xf32>, vector<8x384xf32> -> vector<8x384xf32>
    %55 = vector.extract_strided_slice %52 {offsets = [0, 0], sizes = [8, 128], strides = [1, 1]} : vector<8x384xf32> to vector<8x128xf32>
    %56 = vector.extract_strided_slice %54 {offsets = [0, 0], sizes = [8, 128], strides = [1, 1]} : vector<8x384xf32> to vector<8x128xf32>
    %57 = arith.addf %55, %56 : vector<8x128xf32>
    %58 = arith.negf %57 : vector<8x128xf32>
    %59 = math.exp %58 : vector<8x128xf32>
    %cst_30 = arith.constant 1.000000e+00 : f32
    %60 = vector.broadcast %cst_30 : f32 to vector<8x128xf32>
    %61 = arith.addf %60, %59 : vector<8x128xf32>
    %62 = arith.divf %60, %61 : vector<8x128xf32>
    %63 = vector.extract_strided_slice %52 {offsets = [0, 128], sizes = [8, 128], strides = [1, 1]} : vector<8x384xf32> to vector<8x128xf32>
    %64 = vector.extract_strided_slice %54 {offsets = [0, 128], sizes = [8, 128], strides = [1, 1]} : vector<8x384xf32> to vector<8x128xf32>
    %65 = arith.addf %63, %64 : vector<8x128xf32>
    %66 = arith.negf %65 : vector<8x128xf32>
    %67 = math.exp %66 : vector<8x128xf32>
    %cst_31 = arith.constant 1.000000e+00 : f32
    %68 = vector.broadcast %cst_31 : f32 to vector<8x128xf32>
    %69 = arith.addf %68, %67 : vector<8x128xf32>
    %70 = arith.divf %68, %69 : vector<8x128xf32>
    %71 = vector.extract_strided_slice %52 {offsets = [0, 256], sizes = [8, 128], strides = [1, 1]} : vector<8x384xf32> to vector<8x128xf32>
    %72 = vector.extract_strided_slice %54 {offsets = [0, 256], sizes = [8, 128], strides = [1, 1]} : vector<8x384xf32> to vector<8x128xf32>
    %c0_32 = arith.constant 0 : index
    %c0_33 = arith.constant 0 : index
    %73 = vector.load %arg10[%c0_32, %c0_33] : memref<1x128xf32, #tpu.memory_space<vmem>>, vector<1x128xf32>
    %74 = vector.broadcast %73 : vector<1x128xf32> to vector<8x128xf32>
    %75 = arith.addf %72, %74 : vector<8x128xf32>
    %76 = arith.mulf %62, %75 : vector<8x128xf32>
    %77 = arith.addf %71, %76 : vector<8x128xf32>
    %78 = math.tanh %77 : vector<8x128xf32>
    %cst_34 = arith.constant 1.000000e+00 : f32
    %79 = vector.broadcast %cst_34 : f32 to vector<8x128xf32>
    %80 = arith.subf %79, %70 : vector<8x128xf32>
    %81 = arith.mulf %80, %78 : vector<8x128xf32>
    %82 = arith.mulf %70, %10 : vector<8x128xf32>
    %83 = arith.addf %81, %82 : vector<8x128xf32>
    %c1_i32 = arith.constant 1 : i32
    %84 = vector.broadcast %c1_i32 : i32 to vector<8x1xi32>
    %85 = arith.subi %8, %84 : vector<8x1xi32>
    %c0_i32 = arith.constant 0 : i32
    %86 = vector.broadcast %c0_i32 : i32 to vector<8x1xi32>
    %87 = arith.cmpi eq, %85, %86 : vector<8x1xi32>
    %88 = vector.shape_cast %87 : vector<8x1xi1> to vector<8x1xi1>
    %89 = vector.broadcast %88 : vector<8x1xi1> to vector<8x128xi1>
    %90 = arith.select %89, %83, %11 : vector<8x128xi1>, vector<8x128xf32>
    %91 = vector.extract_strided_slice %7 {offsets = [0, 1, 0], sizes = [8, 1, 384], strides = [1, 1, 1]} : vector<8x8x384xf32> to vector<8x1x384xf32>
    %92 = vector.shape_cast %91 : vector<8x1x384xf32> to vector<8x384xf32>
    %c0_35 = arith.constant 0 : index
    %c0_36 = arith.constant 0 : index
    %93 = vector.load %arg4[%c0_35, %c0_36] : memref<128x384xf32, #tpu.memory_space<vmem>>, vector<128x384xf32>
    %cst_37 = arith.constant dense<0.000000e+00> : vector<8x384xf32>
    %94 = tpu.matmul %44, %93, %cst_37 {dimension_numbers = #tpu.dot_dimension_numbers<[1], [0], [0], [1], [0, 0, 1, 1], [], []>} : vector<8x128xf32>, vector<128x384xf32>, vector<8x384xf32> -> vector<8x384xf32>
    %95 = vector.extract_strided_slice %92 {offsets = [0, 0], sizes = [8, 128], strides = [1, 1]} : vector<8x384xf32> to vector<8x128xf32>
    %96 = vector.extract_strided_slice %94 {offsets = [0, 0], sizes = [8, 128], strides = [1, 1]} : vector<8x384xf32> to vector<8x128xf32>
    %97 = arith.addf %95, %96 : vector<8x128xf32>
    %98 = arith.negf %97 : vector<8x128xf32>
    %99 = math.exp %98 : vector<8x128xf32>
    %cst_38 = arith.constant 1.000000e+00 : f32
    %100 = vector.broadcast %cst_38 : f32 to vector<8x128xf32>
    %101 = arith.addf %100, %99 : vector<8x128xf32>
    %102 = arith.divf %100, %101 : vector<8x128xf32>
    %103 = vector.extract_strided_slice %92 {offsets = [0, 128], sizes = [8, 128], strides = [1, 1]} : vector<8x384xf32> to vector<8x128xf32>
    %104 = vector.extract_strided_slice %94 {offsets = [0, 128], sizes = [8, 128], strides = [1, 1]} : vector<8x384xf32> to vector<8x128xf32>
    %105 = arith.addf %103, %104 : vector<8x128xf32>
    %106 = arith.negf %105 : vector<8x128xf32>
    %107 = math.exp %106 : vector<8x128xf32>
    %cst_39 = arith.constant 1.000000e+00 : f32
    %108 = vector.broadcast %cst_39 : f32 to vector<8x128xf32>
    %109 = arith.addf %108, %107 : vector<8x128xf32>
    %110 = arith.divf %108, %109 : vector<8x128xf32>
    %111 = vector.extract_strided_slice %92 {offsets = [0, 256], sizes = [8, 128], strides = [1, 1]} : vector<8x384xf32> to vector<8x128xf32>
    %112 = vector.extract_strided_slice %94 {offsets = [0, 256], sizes = [8, 128], strides = [1, 1]} : vector<8x384xf32> to vector<8x128xf32>
    %c0_40 = arith.constant 0 : index
    %c0_41 = arith.constant 0 : index
    %113 = vector.load %arg6[%c0_40, %c0_41] : memref<1x128xf32, #tpu.memory_space<vmem>>, vector<1x128xf32>
    %114 = vector.broadcast %113 : vector<1x128xf32> to vector<8x128xf32>
    %115 = arith.addf %112, %114 : vector<8x128xf32>
    %116 = arith.mulf %102, %115 : vector<8x128xf32>
    %117 = arith.addf %111, %116 : vector<8x128xf32>
    %118 = math.tanh %117 : vector<8x128xf32>
    %cst_42 = arith.constant 1.000000e+00 : f32
    %119 = vector.broadcast %cst_42 : f32 to vector<8x128xf32>
    %120 = arith.subf %119, %110 : vector<8x128xf32>
    %121 = arith.mulf %120, %118 : vector<8x128xf32>
    %122 = arith.mulf %110, %44 : vector<8x128xf32>
    %123 = arith.addf %121, %122 : vector<8x128xf32>
    %c1 = arith.constant 1 : index
    %c0_43 = arith.constant 0 : index
    %c0_44 = arith.constant 0 : index
    %124 = vector.load %arg1[%c1, %c0_43, %c0_44] : memref<8x8x128xf32, #tpu.memory_space<vmem>>, vector<1x8x128xf32>
    %125 = vector.shape_cast %124 : vector<1x8x128xf32> to vector<8x128xf32>
    %126 = arith.mulf %123, %125 : vector<8x128xf32>
    %c0_45 = arith.constant 0 : index
    %c0_46 = arith.constant 0 : index
    %127 = vector.load %arg7[%c0_45, %c0_46] : memref<128x384xf32, #tpu.memory_space<vmem>>, vector<128x384xf32>
    %cst_47 = arith.constant dense<0.000000e+00> : vector<8x384xf32>
    %128 = tpu.matmul %126, %127, %cst_47 {dimension_numbers = #tpu.dot_dimension_numbers<[1], [0], [0], [1], [0, 0, 1, 1], [], []>} : vector<8x128xf32>, vector<128x384xf32>, vector<8x384xf32> -> vector<8x384xf32>
    %c0_48 = arith.constant 0 : index
    %c0_49 = arith.constant 0 : index
    %129 = vector.load %arg9[%c0_48, %c0_49] : memref<1x384xf32, #tpu.memory_space<vmem>>, vector<1x384xf32>
    %130 = vector.broadcast %129 : vector<1x384xf32> to vector<8x384xf32>
    %131 = arith.addf %128, %130 : vector<8x384xf32>
    %c0_50 = arith.constant 0 : index
    %c0_51 = arith.constant 0 : index
    %132 = vector.load %arg8[%c0_50, %c0_51] : memref<128x384xf32, #tpu.memory_space<vmem>>, vector<128x384xf32>
    %cst_52 = arith.constant dense<0.000000e+00> : vector<8x384xf32>
    %133 = tpu.matmul %83, %132, %cst_52 {dimension_numbers = #tpu.dot_dimension_numbers<[1], [0], [0], [1], [0, 0, 1, 1], [], []>} : vector<8x128xf32>, vector<128x384xf32>, vector<8x384xf32> -> vector<8x384xf32>
    %134 = vector.extract_strided_slice %131 {offsets = [0, 0], sizes = [8, 128], strides = [1, 1]} : vector<8x384xf32> to vector<8x128xf32>
    %135 = vector.extract_strided_slice %133 {offsets = [0, 0], sizes = [8, 128], strides = [1, 1]} : vector<8x384xf32> to vector<8x128xf32>
    %136 = arith.addf %134, %135 : vector<8x128xf32>
    %137 = arith.negf %136 : vector<8x128xf32>
    %138 = math.exp %137 : vector<8x128xf32>
    %cst_53 = arith.constant 1.000000e+00 : f32
    %139 = vector.broadcast %cst_53 : f32 to vector<8x128xf32>
    %140 = arith.addf %139, %138 : vector<8x128xf32>
    %141 = arith.divf %139, %140 : vector<8x128xf32>
    %142 = vector.extract_strided_slice %131 {offsets = [0, 128], sizes = [8, 128], strides = [1, 1]} : vector<8x384xf32> to vector<8x128xf32>
    %143 = vector.extract_strided_slice %133 {offsets = [0, 128], sizes = [8, 128], strides = [1, 1]} : vector<8x384xf32> to vector<8x128xf32>
    %144 = arith.addf %142, %143 : vector<8x128xf32>
    %145 = arith.negf %144 : vector<8x128xf32>
    %146 = math.exp %145 : vector<8x128xf32>
    %cst_54 = arith.constant 1.000000e+00 : f32
    %147 = vector.broadcast %cst_54 : f32 to vector<8x128xf32>
    %148 = arith.addf %147, %146 : vector<8x128xf32>
    %149 = arith.divf %147, %148 : vector<8x128xf32>
    %150 = vector.extract_strided_slice %131 {offsets = [0, 256], sizes = [8, 128], strides = [1, 1]} : vector<8x384xf32> to vector<8x128xf32>
    %151 = vector.extract_strided_slice %133 {offsets = [0, 256], sizes = [8, 128], strides = [1, 1]} : vector<8x384xf32> to vector<8x128xf32>
    %c0_55 = arith.constant 0 : index
    %c0_56 = arith.constant 0 : index
    %152 = vector.load %arg10[%c0_55, %c0_56] : memref<1x128xf32, #tpu.memory_space<vmem>>, vector<1x128xf32>
    %153 = vector.broadcast %152 : vector<1x128xf32> to vector<8x128xf32>
    %154 = arith.addf %151, %153 : vector<8x128xf32>
    %155 = arith.mulf %141, %154 : vector<8x128xf32>
    %156 = arith.addf %150, %155 : vector<8x128xf32>
    %157 = math.tanh %156 : vector<8x128xf32>
    %cst_57 = arith.constant 1.000000e+00 : f32
    %158 = vector.broadcast %cst_57 : f32 to vector<8x128xf32>
    %159 = arith.subf %158, %149 : vector<8x128xf32>
    %160 = arith.mulf %159, %157 : vector<8x128xf32>
    %161 = arith.mulf %149, %83 : vector<8x128xf32>
    %162 = arith.addf %160, %161 : vector<8x128xf32>
    %c1_i32_58 = arith.constant 1 : i32
    %163 = vector.broadcast %c1_i32_58 : i32 to vector<8x1xi32>
    %164 = arith.subi %8, %163 : vector<8x1xi32>
    %c1_i32_59 = arith.constant 1 : i32
    %165 = vector.broadcast %c1_i32_59 : i32 to vector<8x1xi32>
    %166 = arith.cmpi eq, %164, %165 : vector<8x1xi32>
    %167 = vector.shape_cast %166 : vector<8x1xi1> to vector<8x1xi1>
    %168 = vector.broadcast %167 : vector<8x1xi1> to vector<8x128xi1>
    %169 = arith.select %168, %162, %90 : vector<8x128xi1>, vector<8x128xf32>
    %170 = vector.extract_strided_slice %7 {offsets = [0, 2, 0], sizes = [8, 1, 384], strides = [1, 1, 1]} : vector<8x8x384xf32> to vector<8x1x384xf32>
    %171 = vector.shape_cast %170 : vector<8x1x384xf32> to vector<8x384xf32>
    %c0_60 = arith.constant 0 : index
    %c0_61 = arith.constant 0 : index
    %172 = vector.load %arg4[%c0_60, %c0_61] : memref<128x384xf32, #tpu.memory_space<vmem>>, vector<128x384xf32>
    %cst_62 = arith.constant dense<0.000000e+00> : vector<8x384xf32>
    %173 = tpu.matmul %123, %172, %cst_62 {dimension_numbers = #tpu.dot_dimension_numbers<[1], [0], [0], [1], [0, 0, 1, 1], [], []>} : vector<8x128xf32>, vector<128x384xf32>, vector<8x384xf32> -> vector<8x384xf32>
    %174 = vector.extract_strided_slice %171 {offsets = [0, 0], sizes = [8, 128], strides = [1, 1]} : vector<8x384xf32> to vector<8x128xf32>
    %175 = vector.extract_strided_slice %173 {offsets = [0, 0], sizes = [8, 128], strides = [1, 1]} : vector<8x384xf32> to vector<8x128xf32>
    %176 = arith.addf %174, %175 : vector<8x128xf32>
    %177 = arith.negf %176 : vector<8x128xf32>
    %178 = math.exp %177 : vector<8x128xf32>
    %cst_63 = arith.constant 1.000000e+00 : f32
    %179 = vector.broadcast %cst_63 : f32 to vector<8x128xf32>
    %180 = arith.addf %179, %178 : vector<8x128xf32>
    %181 = arith.divf %179, %180 : vector<8x128xf32>
    %182 = vector.extract_strided_slice %171 {offsets = [0, 128], sizes = [8, 128], strides = [1, 1]} : vector<8x384xf32> to vector<8x128xf32>
    %183 = vector.extract_strided_slice %173 {offsets = [0, 128], sizes = [8, 128], strides = [1, 1]} : vector<8x384xf32> to vector<8x128xf32>
    %184 = arith.addf %182, %183 : vector<8x128xf32>
    %185 = arith.negf %184 : vector<8x128xf32>
    %186 = math.exp %185 : vector<8x128xf32>
    %cst_64 = arith.constant 1.000000e+00 : f32
    %187 = vector.broadcast %cst_64 : f32 to vector<8x128xf32>
    %188 = arith.addf %187, %186 : vector<8x128xf32>
    %189 = arith.divf %187, %188 : vector<8x128xf32>
    %190 = vector.extract_strided_slice %171 {offsets = [0, 256], sizes = [8, 128], strides = [1, 1]} : vector<8x384xf32> to vector<8x128xf32>
    %191 = vector.extract_strided_slice %173 {offsets = [0, 256], sizes = [8, 128], strides = [1, 1]} : vector<8x384xf32> to vector<8x128xf32>
    %c0_65 = arith.constant 0 : index
    %c0_66 = arith.constant 0 : index
    %192 = vector.load %arg6[%c0_65, %c0_66] : memref<1x128xf32, #tpu.memory_space<vmem>>, vector<1x128xf32>
    %193 = vector.broadcast %192 : vector<1x128xf32> to vector<8x128xf32>
    %194 = arith.addf %191, %193 : vector<8x128xf32>
    %195 = arith.mulf %181, %194 : vector<8x128xf32>
    %196 = arith.addf %190, %195 : vector<8x128xf32>
    %197 = math.tanh %196 : vector<8x128xf32>
    %cst_67 = arith.constant 1.000000e+00 : f32
    %198 = vector.broadcast %cst_67 : f32 to vector<8x128xf32>
    %199 = arith.subf %198, %189 : vector<8x128xf32>
    %200 = arith.mulf %199, %197 : vector<8x128xf32>
    %201 = arith.mulf %189, %123 : vector<8x128xf32>
    %202 = arith.addf %200, %201 : vector<8x128xf32>
    %c2 = arith.constant 2 : index
    %c0_68 = arith.constant 0 : index
    %c0_69 = arith.constant 0 : index
    %203 = vector.load %arg1[%c2, %c0_68, %c0_69] : memref<8x8x128xf32, #tpu.memory_space<vmem>>, vector<1x8x128xf32>
    %204 = vector.shape_cast %203 : vector<1x8x128xf32> to vector<8x128xf32>
    %205 = arith.mulf %202, %204 : vector<8x128xf32>
    %c0_70 = arith.constant 0 : index
    %c0_71 = arith.constant 0 : index
    %206 = vector.load %arg7[%c0_70, %c0_71] : memref<128x384xf32, #tpu.memory_space<vmem>>, vector<128x384xf32>
    %cst_72 = arith.constant dense<0.000000e+00> : vector<8x384xf32>
    %207 = tpu.matmul %205, %206, %cst_72 {dimension_numbers = #tpu.dot_dimension_numbers<[1], [0], [0], [1], [0, 0, 1, 1], [], []>} : vector<8x128xf32>, vector<128x384xf32>, vector<8x384xf32> -> vector<8x384xf32>
    %c0_73 = arith.constant 0 : index
    %c0_74 = arith.constant 0 : index
    %208 = vector.load %arg9[%c0_73, %c0_74] : memref<1x384xf32, #tpu.memory_space<vmem>>, vector<1x384xf32>
    %209 = vector.broadcast %208 : vector<1x384xf32> to vector<8x384xf32>
    %210 = arith.addf %207, %209 : vector<8x384xf32>
    %c0_75 = arith.constant 0 : index
    %c0_76 = arith.constant 0 : index
    %211 = vector.load %arg8[%c0_75, %c0_76] : memref<128x384xf32, #tpu.memory_space<vmem>>, vector<128x384xf32>
    %cst_77 = arith.constant dense<0.000000e+00> : vector<8x384xf32>
    %212 = tpu.matmul %162, %211, %cst_77 {dimension_numbers = #tpu.dot_dimension_numbers<[1], [0], [0], [1], [0, 0, 1, 1], [], []>} : vector<8x128xf32>, vector<128x384xf32>, vector<8x384xf32> -> vector<8x384xf32>
    %213 = vector.extract_strided_slice %210 {offsets = [0, 0], sizes = [8, 128], strides = [1, 1]} : vector<8x384xf32> to vector<8x128xf32>
    %214 = vector.extract_strided_slice %212 {offsets = [0, 0], sizes = [8, 128], strides = [1, 1]} : vector<8x384xf32> to vector<8x128xf32>
    %215 = arith.addf %213, %214 : vector<8x128xf32>
    %216 = arith.negf %215 : vector<8x128xf32>
    %217 = math.exp %216 : vector<8x128xf32>
    %cst_78 = arith.constant 1.000000e+00 : f32
    %218 = vector.broadcast %cst_78 : f32 to vector<8x128xf32>
    %219 = arith.addf %218, %217 : vector<8x128xf32>
    %220 = arith.divf %218, %219 : vector<8x128xf32>
    %221 = vector.extract_strided_slice %210 {offsets = [0, 128], sizes = [8, 128], strides = [1, 1]} : vector<8x384xf32> to vector<8x128xf32>
    %222 = vector.extract_strided_slice %212 {offsets = [0, 128], sizes = [8, 128], strides = [1, 1]} : vector<8x384xf32> to vector<8x128xf32>
    %223 = arith.addf %221, %222 : vector<8x128xf32>
    %224 = arith.negf %223 : vector<8x128xf32>
    %225 = math.exp %224 : vector<8x128xf32>
    %cst_79 = arith.constant 1.000000e+00 : f32
    %226 = vector.broadcast %cst_79 : f32 to vector<8x128xf32>
    %227 = arith.addf %226, %225 : vector<8x128xf32>
    %228 = arith.divf %226, %227 : vector<8x128xf32>
    %229 = vector.extract_strided_slice %210 {offsets = [0, 256], sizes = [8, 128], strides = [1, 1]} : vector<8x384xf32> to vector<8x128xf32>
    %230 = vector.extract_strided_slice %212 {offsets = [0, 256], sizes = [8, 128], strides = [1, 1]} : vector<8x384xf32> to vector<8x128xf32>
    %c0_80 = arith.constant 0 : index
    %c0_81 = arith.constant 0 : index
    %231 = vector.load %arg10[%c0_80, %c0_81] : memref<1x128xf32, #tpu.memory_space<vmem>>, vector<1x128xf32>
    %232 = vector.broadcast %231 : vector<1x128xf32> to vector<8x128xf32>
    %233 = arith.addf %230, %232 : vector<8x128xf32>
    %234 = arith.mulf %220, %233 : vector<8x128xf32>
    %235 = arith.addf %229, %234 : vector<8x128xf32>
    %236 = math.tanh %235 : vector<8x128xf32>
    %cst_82 = arith.constant 1.000000e+00 : f32
    %237 = vector.broadcast %cst_82 : f32 to vector<8x128xf32>
    %238 = arith.subf %237, %228 : vector<8x128xf32>
    %239 = arith.mulf %238, %236 : vector<8x128xf32>
    %240 = arith.mulf %228, %162 : vector<8x128xf32>
    %241 = arith.addf %239, %240 : vector<8x128xf32>
    %c1_i32_83 = arith.constant 1 : i32
    %242 = vector.broadcast %c1_i32_83 : i32 to vector<8x1xi32>
    %243 = arith.subi %8, %242 : vector<8x1xi32>
    %c2_i32 = arith.constant 2 : i32
    %244 = vector.broadcast %c2_i32 : i32 to vector<8x1xi32>
    %245 = arith.cmpi eq, %243, %244 : vector<8x1xi32>
    %246 = vector.shape_cast %245 : vector<8x1xi1> to vector<8x1xi1>
    %247 = vector.broadcast %246 : vector<8x1xi1> to vector<8x128xi1>
    %248 = arith.select %247, %241, %169 : vector<8x128xi1>, vector<8x128xf32>
    %249 = vector.extract_strided_slice %7 {offsets = [0, 3, 0], sizes = [8, 1, 384], strides = [1, 1, 1]} : vector<8x8x384xf32> to vector<8x1x384xf32>
    %250 = vector.shape_cast %249 : vector<8x1x384xf32> to vector<8x384xf32>
    %c0_84 = arith.constant 0 : index
    %c0_85 = arith.constant 0 : index
    %251 = vector.load %arg4[%c0_84, %c0_85] : memref<128x384xf32, #tpu.memory_space<vmem>>, vector<128x384xf32>
    %cst_86 = arith.constant dense<0.000000e+00> : vector<8x384xf32>
    %252 = tpu.matmul %202, %251, %cst_86 {dimension_numbers = #tpu.dot_dimension_numbers<[1], [0], [0], [1], [0, 0, 1, 1], [], []>} : vector<8x128xf32>, vector<128x384xf32>, vector<8x384xf32> -> vector<8x384xf32>
    %253 = vector.extract_strided_slice %250 {offsets = [0, 0], sizes = [8, 128], strides = [1, 1]} : vector<8x384xf32> to vector<8x128xf32>
    %254 = vector.extract_strided_slice %252 {offsets = [0, 0], sizes = [8, 128], strides = [1, 1]} : vector<8x384xf32> to vector<8x128xf32>
    %255 = arith.addf %253, %254 : vector<8x128xf32>
    %256 = arith.negf %255 : vector<8x128xf32>
    %257 = math.exp %256 : vector<8x128xf32>
    %cst_87 = arith.constant 1.000000e+00 : f32
    %258 = vector.broadcast %cst_87 : f32 to vector<8x128xf32>
    %259 = arith.addf %258, %257 : vector<8x128xf32>
    %260 = arith.divf %258, %259 : vector<8x128xf32>
    %261 = vector.extract_strided_slice %250 {offsets = [0, 128], sizes = [8, 128], strides = [1, 1]} : vector<8x384xf32> to vector<8x128xf32>
    %262 = vector.extract_strided_slice %252 {offsets = [0, 128], sizes = [8, 128], strides = [1, 1]} : vector<8x384xf32> to vector<8x128xf32>
    %263 = arith.addf %261, %262 : vector<8x128xf32>
    %264 = arith.negf %263 : vector<8x128xf32>
    %265 = math.exp %264 : vector<8x128xf32>
    %cst_88 = arith.constant 1.000000e+00 : f32
    %266 = vector.broadcast %cst_88 : f32 to vector<8x128xf32>
    %267 = arith.addf %266, %265 : vector<8x128xf32>
    %268 = arith.divf %266, %267 : vector<8x128xf32>
    %269 = vector.extract_strided_slice %250 {offsets = [0, 256], sizes = [8, 128], strides = [1, 1]} : vector<8x384xf32> to vector<8x128xf32>
    %270 = vector.extract_strided_slice %252 {offsets = [0, 256], sizes = [8, 128], strides = [1, 1]} : vector<8x384xf32> to vector<8x128xf32>
    %c0_89 = arith.constant 0 : index
    %c0_90 = arith.constant 0 : index
    %271 = vector.load %arg6[%c0_89, %c0_90] : memref<1x128xf32, #tpu.memory_space<vmem>>, vector<1x128xf32>
    %272 = vector.broadcast %271 : vector<1x128xf32> to vector<8x128xf32>
    %273 = arith.addf %270, %272 : vector<8x128xf32>
    %274 = arith.mulf %260, %273 : vector<8x128xf32>
    %275 = arith.addf %269, %274 : vector<8x128xf32>
    %276 = math.tanh %275 : vector<8x128xf32>
    %cst_91 = arith.constant 1.000000e+00 : f32
    %277 = vector.broadcast %cst_91 : f32 to vector<8x128xf32>
    %278 = arith.subf %277, %268 : vector<8x128xf32>
    %279 = arith.mulf %278, %276 : vector<8x128xf32>
    %280 = arith.mulf %268, %202 : vector<8x128xf32>
    %281 = arith.addf %279, %280 : vector<8x128xf32>
    %c3 = arith.constant 3 : index
    %c0_92 = arith.constant 0 : index
    %c0_93 = arith.constant 0 : index
    %282 = vector.load %arg1[%c3, %c0_92, %c0_93] : memref<8x8x128xf32, #tpu.memory_space<vmem>>, vector<1x8x128xf32>
    %283 = vector.shape_cast %282 : vector<1x8x128xf32> to vector<8x128xf32>
    %284 = arith.mulf %281, %283 : vector<8x128xf32>
    %c0_94 = arith.constant 0 : index
    %c0_95 = arith.constant 0 : index
    %285 = vector.load %arg7[%c0_94, %c0_95] : memref<128x384xf32, #tpu.memory_space<vmem>>, vector<128x384xf32>
    %cst_96 = arith.constant dense<0.000000e+00> : vector<8x384xf32>
    %286 = tpu.matmul %284, %285, %cst_96 {dimension_numbers = #tpu.dot_dimension_numbers<[1], [0], [0], [1], [0, 0, 1, 1], [], []>} : vector<8x128xf32>, vector<128x384xf32>, vector<8x384xf32> -> vector<8x384xf32>
    %c0_97 = arith.constant 0 : index
    %c0_98 = arith.constant 0 : index
    %287 = vector.load %arg9[%c0_97, %c0_98] : memref<1x384xf32, #tpu.memory_space<vmem>>, vector<1x384xf32>
    %288 = vector.broadcast %287 : vector<1x384xf32> to vector<8x384xf32>
    %289 = arith.addf %286, %288 : vector<8x384xf32>
    %c0_99 = arith.constant 0 : index
    %c0_100 = arith.constant 0 : index
    %290 = vector.load %arg8[%c0_99, %c0_100] : memref<128x384xf32, #tpu.memory_space<vmem>>, vector<128x384xf32>
    %cst_101 = arith.constant dense<0.000000e+00> : vector<8x384xf32>
    %291 = tpu.matmul %241, %290, %cst_101 {dimension_numbers = #tpu.dot_dimension_numbers<[1], [0], [0], [1], [0, 0, 1, 1], [], []>} : vector<8x128xf32>, vector<128x384xf32>, vector<8x384xf32> -> vector<8x384xf32>
    %292 = vector.extract_strided_slice %289 {offsets = [0, 0], sizes = [8, 128], strides = [1, 1]} : vector<8x384xf32> to vector<8x128xf32>
    %293 = vector.extract_strided_slice %291 {offsets = [0, 0], sizes = [8, 128], strides = [1, 1]} : vector<8x384xf32> to vector<8x128xf32>
    %294 = arith.addf %292, %293 : vector<8x128xf32>
    %295 = arith.negf %294 : vector<8x128xf32>
    %296 = math.exp %295 : vector<8x128xf32>
    %cst_102 = arith.constant 1.000000e+00 : f32
    %297 = vector.broadcast %cst_102 : f32 to vector<8x128xf32>
    %298 = arith.addf %297, %296 : vector<8x128xf32>
    %299 = arith.divf %297, %298 : vector<8x128xf32>
    %300 = vector.extract_strided_slice %289 {offsets = [0, 128], sizes = [8, 128], strides = [1, 1]} : vector<8x384xf32> to vector<8x128xf32>
    %301 = vector.extract_strided_slice %291 {offsets = [0, 128], sizes = [8, 128], strides = [1, 1]} : vector<8x384xf32> to vector<8x128xf32>
    %302 = arith.addf %300, %301 : vector<8x128xf32>
    %303 = arith.negf %302 : vector<8x128xf32>
    %304 = math.exp %303 : vector<8x128xf32>
    %cst_103 = arith.constant 1.000000e+00 : f32
    %305 = vector.broadcast %cst_103 : f32 to vector<8x128xf32>
    %306 = arith.addf %305, %304 : vector<8x128xf32>
    %307 = arith.divf %305, %306 : vector<8x128xf32>
    %308 = vector.extract_strided_slice %289 {offsets = [0, 256], sizes = [8, 128], strides = [1, 1]} : vector<8x384xf32> to vector<8x128xf32>
    %309 = vector.extract_strided_slice %291 {offsets = [0, 256], sizes = [8, 128], strides = [1, 1]} : vector<8x384xf32> to vector<8x128xf32>
    %c0_104 = arith.constant 0 : index
    %c0_105 = arith.constant 0 : index
    %310 = vector.load %arg10[%c0_104, %c0_105] : memref<1x128xf32, #tpu.memory_space<vmem>>, vector<1x128xf32>
    %311 = vector.broadcast %310 : vector<1x128xf32> to vector<8x128xf32>
    %312 = arith.addf %309, %311 : vector<8x128xf32>
    %313 = arith.mulf %299, %312 : vector<8x128xf32>
    %314 = arith.addf %308, %313 : vector<8x128xf32>
    %315 = math.tanh %314 : vector<8x128xf32>
    %cst_106 = arith.constant 1.000000e+00 : f32
    %316 = vector.broadcast %cst_106 : f32 to vector<8x128xf32>
    %317 = arith.subf %316, %307 : vector<8x128xf32>
    %318 = arith.mulf %317, %315 : vector<8x128xf32>
    %319 = arith.mulf %307, %241 : vector<8x128xf32>
    %320 = arith.addf %318, %319 : vector<8x128xf32>
    %c1_i32_107 = arith.constant 1 : i32
    %321 = vector.broadcast %c1_i32_107 : i32 to vector<8x1xi32>
    %322 = arith.subi %8, %321 : vector<8x1xi32>
    %c3_i32 = arith.constant 3 : i32
    %323 = vector.broadcast %c3_i32 : i32 to vector<8x1xi32>
    %324 = arith.cmpi eq, %322, %323 : vector<8x1xi32>
    %325 = vector.shape_cast %324 : vector<8x1xi1> to vector<8x1xi1>
    %326 = vector.broadcast %325 : vector<8x1xi1> to vector<8x128xi1>
    %327 = arith.select %326, %320, %248 : vector<8x128xi1>, vector<8x128xf32>
    %328 = vector.extract_strided_slice %7 {offsets = [0, 4, 0], sizes = [8, 1, 384], strides = [1, 1, 1]} : vector<8x8x384xf32> to vector<8x1x384xf32>
    %329 = vector.shape_cast %328 : vector<8x1x384xf32> to vector<8x384xf32>
    %c0_108 = arith.constant 0 : index
    %c0_109 = arith.constant 0 : index
    %330 = vector.load %arg4[%c0_108, %c0_109] : memref<128x384xf32, #tpu.memory_space<vmem>>, vector<128x384xf32>
    %cst_110 = arith.constant dense<0.000000e+00> : vector<8x384xf32>
    %331 = tpu.matmul %281, %330, %cst_110 {dimension_numbers = #tpu.dot_dimension_numbers<[1], [0], [0], [1], [0, 0, 1, 1], [], []>} : vector<8x128xf32>, vector<128x384xf32>, vector<8x384xf32> -> vector<8x384xf32>
    %332 = vector.extract_strided_slice %329 {offsets = [0, 0], sizes = [8, 128], strides = [1, 1]} : vector<8x384xf32> to vector<8x128xf32>
    %333 = vector.extract_strided_slice %331 {offsets = [0, 0], sizes = [8, 128], strides = [1, 1]} : vector<8x384xf32> to vector<8x128xf32>
    %334 = arith.addf %332, %333 : vector<8x128xf32>
    %335 = arith.negf %334 : vector<8x128xf32>
    %336 = math.exp %335 : vector<8x128xf32>
    %cst_111 = arith.constant 1.000000e+00 : f32
    %337 = vector.broadcast %cst_111 : f32 to vector<8x128xf32>
    %338 = arith.addf %337, %336 : vector<8x128xf32>
    %339 = arith.divf %337, %338 : vector<8x128xf32>
    %340 = vector.extract_strided_slice %329 {offsets = [0, 128], sizes = [8, 128], strides = [1, 1]} : vector<8x384xf32> to vector<8x128xf32>
    %341 = vector.extract_strided_slice %331 {offsets = [0, 128], sizes = [8, 128], strides = [1, 1]} : vector<8x384xf32> to vector<8x128xf32>
    %342 = arith.addf %340, %341 : vector<8x128xf32>
    %343 = arith.negf %342 : vector<8x128xf32>
    %344 = math.exp %343 : vector<8x128xf32>
    %cst_112 = arith.constant 1.000000e+00 : f32
    %345 = vector.broadcast %cst_112 : f32 to vector<8x128xf32>
    %346 = arith.addf %345, %344 : vector<8x128xf32>
    %347 = arith.divf %345, %346 : vector<8x128xf32>
    %348 = vector.extract_strided_slice %329 {offsets = [0, 256], sizes = [8, 128], strides = [1, 1]} : vector<8x384xf32> to vector<8x128xf32>
    %349 = vector.extract_strided_slice %331 {offsets = [0, 256], sizes = [8, 128], strides = [1, 1]} : vector<8x384xf32> to vector<8x128xf32>
    %c0_113 = arith.constant 0 : index
    %c0_114 = arith.constant 0 : index
    %350 = vector.load %arg6[%c0_113, %c0_114] : memref<1x128xf32, #tpu.memory_space<vmem>>, vector<1x128xf32>
    %351 = vector.broadcast %350 : vector<1x128xf32> to vector<8x128xf32>
    %352 = arith.addf %349, %351 : vector<8x128xf32>
    %353 = arith.mulf %339, %352 : vector<8x128xf32>
    %354 = arith.addf %348, %353 : vector<8x128xf32>
    %355 = math.tanh %354 : vector<8x128xf32>
    %cst_115 = arith.constant 1.000000e+00 : f32
    %356 = vector.broadcast %cst_115 : f32 to vector<8x128xf32>
    %357 = arith.subf %356, %347 : vector<8x128xf32>
    %358 = arith.mulf %357, %355 : vector<8x128xf32>
    %359 = arith.mulf %347, %281 : vector<8x128xf32>
    %360 = arith.addf %358, %359 : vector<8x128xf32>
    %c4 = arith.constant 4 : index
    %c0_116 = arith.constant 0 : index
    %c0_117 = arith.constant 0 : index
    %361 = vector.load %arg1[%c4, %c0_116, %c0_117] : memref<8x8x128xf32, #tpu.memory_space<vmem>>, vector<1x8x128xf32>
    %362 = vector.shape_cast %361 : vector<1x8x128xf32> to vector<8x128xf32>
    %363 = arith.mulf %360, %362 : vector<8x128xf32>
    %c0_118 = arith.constant 0 : index
    %c0_119 = arith.constant 0 : index
    %364 = vector.load %arg7[%c0_118, %c0_119] : memref<128x384xf32, #tpu.memory_space<vmem>>, vector<128x384xf32>
    %cst_120 = arith.constant dense<0.000000e+00> : vector<8x384xf32>
    %365 = tpu.matmul %363, %364, %cst_120 {dimension_numbers = #tpu.dot_dimension_numbers<[1], [0], [0], [1], [0, 0, 1, 1], [], []>} : vector<8x128xf32>, vector<128x384xf32>, vector<8x384xf32> -> vector<8x384xf32>
    %c0_121 = arith.constant 0 : index
    %c0_122 = arith.constant 0 : index
    %366 = vector.load %arg9[%c0_121, %c0_122] : memref<1x384xf32, #tpu.memory_space<vmem>>, vector<1x384xf32>
    %367 = vector.broadcast %366 : vector<1x384xf32> to vector<8x384xf32>
    %368 = arith.addf %365, %367 : vector<8x384xf32>
    %c0_123 = arith.constant 0 : index
    %c0_124 = arith.constant 0 : index
    %369 = vector.load %arg8[%c0_123, %c0_124] : memref<128x384xf32, #tpu.memory_space<vmem>>, vector<128x384xf32>
    %cst_125 = arith.constant dense<0.000000e+00> : vector<8x384xf32>
    %370 = tpu.matmul %320, %369, %cst_125 {dimension_numbers = #tpu.dot_dimension_numbers<[1], [0], [0], [1], [0, 0, 1, 1], [], []>} : vector<8x128xf32>, vector<128x384xf32>, vector<8x384xf32> -> vector<8x384xf32>
    %371 = vector.extract_strided_slice %368 {offsets = [0, 0], sizes = [8, 128], strides = [1, 1]} : vector<8x384xf32> to vector<8x128xf32>
    %372 = vector.extract_strided_slice %370 {offsets = [0, 0], sizes = [8, 128], strides = [1, 1]} : vector<8x384xf32> to vector<8x128xf32>
    %373 = arith.addf %371, %372 : vector<8x128xf32>
    %374 = arith.negf %373 : vector<8x128xf32>
    %375 = math.exp %374 : vector<8x128xf32>
    %cst_126 = arith.constant 1.000000e+00 : f32
    %376 = vector.broadcast %cst_126 : f32 to vector<8x128xf32>
    %377 = arith.addf %376, %375 : vector<8x128xf32>
    %378 = arith.divf %376, %377 : vector<8x128xf32>
    %379 = vector.extract_strided_slice %368 {offsets = [0, 128], sizes = [8, 128], strides = [1, 1]} : vector<8x384xf32> to vector<8x128xf32>
    %380 = vector.extract_strided_slice %370 {offsets = [0, 128], sizes = [8, 128], strides = [1, 1]} : vector<8x384xf32> to vector<8x128xf32>
    %381 = arith.addf %379, %380 : vector<8x128xf32>
    %382 = arith.negf %381 : vector<8x128xf32>
    %383 = math.exp %382 : vector<8x128xf32>
    %cst_127 = arith.constant 1.000000e+00 : f32
    %384 = vector.broadcast %cst_127 : f32 to vector<8x128xf32>
    %385 = arith.addf %384, %383 : vector<8x128xf32>
    %386 = arith.divf %384, %385 : vector<8x128xf32>
    %387 = vector.extract_strided_slice %368 {offsets = [0, 256], sizes = [8, 128], strides = [1, 1]} : vector<8x384xf32> to vector<8x128xf32>
    %388 = vector.extract_strided_slice %370 {offsets = [0, 256], sizes = [8, 128], strides = [1, 1]} : vector<8x384xf32> to vector<8x128xf32>
    %c0_128 = arith.constant 0 : index
    %c0_129 = arith.constant 0 : index
    %389 = vector.load %arg10[%c0_128, %c0_129] : memref<1x128xf32, #tpu.memory_space<vmem>>, vector<1x128xf32>
    %390 = vector.broadcast %389 : vector<1x128xf32> to vector<8x128xf32>
    %391 = arith.addf %388, %390 : vector<8x128xf32>
    %392 = arith.mulf %378, %391 : vector<8x128xf32>
    %393 = arith.addf %387, %392 : vector<8x128xf32>
    %394 = math.tanh %393 : vector<8x128xf32>
    %cst_130 = arith.constant 1.000000e+00 : f32
    %395 = vector.broadcast %cst_130 : f32 to vector<8x128xf32>
    %396 = arith.subf %395, %386 : vector<8x128xf32>
    %397 = arith.mulf %396, %394 : vector<8x128xf32>
    %398 = arith.mulf %386, %320 : vector<8x128xf32>
    %399 = arith.addf %397, %398 : vector<8x128xf32>
    %c1_i32_131 = arith.constant 1 : i32
    %400 = vector.broadcast %c1_i32_131 : i32 to vector<8x1xi32>
    %401 = arith.subi %8, %400 : vector<8x1xi32>
    %c4_i32 = arith.constant 4 : i32
    %402 = vector.broadcast %c4_i32 : i32 to vector<8x1xi32>
    %403 = arith.cmpi eq, %401, %402 : vector<8x1xi32>
    %404 = vector.shape_cast %403 : vector<8x1xi1> to vector<8x1xi1>
    %405 = vector.broadcast %404 : vector<8x1xi1> to vector<8x128xi1>
    %406 = arith.select %405, %399, %327 : vector<8x128xi1>, vector<8x128xf32>
    %407 = vector.extract_strided_slice %7 {offsets = [0, 5, 0], sizes = [8, 1, 384], strides = [1, 1, 1]} : vector<8x8x384xf32> to vector<8x1x384xf32>
    %408 = vector.shape_cast %407 : vector<8x1x384xf32> to vector<8x384xf32>
    %c0_132 = arith.constant 0 : index
    %c0_133 = arith.constant 0 : index
    %409 = vector.load %arg4[%c0_132, %c0_133] : memref<128x384xf32, #tpu.memory_space<vmem>>, vector<128x384xf32>
    %cst_134 = arith.constant dense<0.000000e+00> : vector<8x384xf32>
    %410 = tpu.matmul %360, %409, %cst_134 {dimension_numbers = #tpu.dot_dimension_numbers<[1], [0], [0], [1], [0, 0, 1, 1], [], []>} : vector<8x128xf32>, vector<128x384xf32>, vector<8x384xf32> -> vector<8x384xf32>
    %411 = vector.extract_strided_slice %408 {offsets = [0, 0], sizes = [8, 128], strides = [1, 1]} : vector<8x384xf32> to vector<8x128xf32>
    %412 = vector.extract_strided_slice %410 {offsets = [0, 0], sizes = [8, 128], strides = [1, 1]} : vector<8x384xf32> to vector<8x128xf32>
    %413 = arith.addf %411, %412 : vector<8x128xf32>
    %414 = arith.negf %413 : vector<8x128xf32>
    %415 = math.exp %414 : vector<8x128xf32>
    %cst_135 = arith.constant 1.000000e+00 : f32
    %416 = vector.broadcast %cst_135 : f32 to vector<8x128xf32>
    %417 = arith.addf %416, %415 : vector<8x128xf32>
    %418 = arith.divf %416, %417 : vector<8x128xf32>
    %419 = vector.extract_strided_slice %408 {offsets = [0, 128], sizes = [8, 128], strides = [1, 1]} : vector<8x384xf32> to vector<8x128xf32>
    %420 = vector.extract_strided_slice %410 {offsets = [0, 128], sizes = [8, 128], strides = [1, 1]} : vector<8x384xf32> to vector<8x128xf32>
    %421 = arith.addf %419, %420 : vector<8x128xf32>
    %422 = arith.negf %421 : vector<8x128xf32>
    %423 = math.exp %422 : vector<8x128xf32>
    %cst_136 = arith.constant 1.000000e+00 : f32
    %424 = vector.broadcast %cst_136 : f32 to vector<8x128xf32>
    %425 = arith.addf %424, %423 : vector<8x128xf32>
    %426 = arith.divf %424, %425 : vector<8x128xf32>
    %427 = vector.extract_strided_slice %408 {offsets = [0, 256], sizes = [8, 128], strides = [1, 1]} : vector<8x384xf32> to vector<8x128xf32>
    %428 = vector.extract_strided_slice %410 {offsets = [0, 256], sizes = [8, 128], strides = [1, 1]} : vector<8x384xf32> to vector<8x128xf32>
    %c0_137 = arith.constant 0 : index
    %c0_138 = arith.constant 0 : index
    %429 = vector.load %arg6[%c0_137, %c0_138] : memref<1x128xf32, #tpu.memory_space<vmem>>, vector<1x128xf32>
    %430 = vector.broadcast %429 : vector<1x128xf32> to vector<8x128xf32>
    %431 = arith.addf %428, %430 : vector<8x128xf32>
    %432 = arith.mulf %418, %431 : vector<8x128xf32>
    %433 = arith.addf %427, %432 : vector<8x128xf32>
    %434 = math.tanh %433 : vector<8x128xf32>
    %cst_139 = arith.constant 1.000000e+00 : f32
    %435 = vector.broadcast %cst_139 : f32 to vector<8x128xf32>
    %436 = arith.subf %435, %426 : vector<8x128xf32>
    %437 = arith.mulf %436, %434 : vector<8x128xf32>
    %438 = arith.mulf %426, %360 : vector<8x128xf32>
    %439 = arith.addf %437, %438 : vector<8x128xf32>
    %c5 = arith.constant 5 : index
    %c0_140 = arith.constant 0 : index
    %c0_141 = arith.constant 0 : index
    %440 = vector.load %arg1[%c5, %c0_140, %c0_141] : memref<8x8x128xf32, #tpu.memory_space<vmem>>, vector<1x8x128xf32>
    %441 = vector.shape_cast %440 : vector<1x8x128xf32> to vector<8x128xf32>
    %442 = arith.mulf %439, %441 : vector<8x128xf32>
    %c0_142 = arith.constant 0 : index
    %c0_143 = arith.constant 0 : index
    %443 = vector.load %arg7[%c0_142, %c0_143] : memref<128x384xf32, #tpu.memory_space<vmem>>, vector<128x384xf32>
    %cst_144 = arith.constant dense<0.000000e+00> : vector<8x384xf32>
    %444 = tpu.matmul %442, %443, %cst_144 {dimension_numbers = #tpu.dot_dimension_numbers<[1], [0], [0], [1], [0, 0, 1, 1], [], []>} : vector<8x128xf32>, vector<128x384xf32>, vector<8x384xf32> -> vector<8x384xf32>
    %c0_145 = arith.constant 0 : index
    %c0_146 = arith.constant 0 : index
    %445 = vector.load %arg9[%c0_145, %c0_146] : memref<1x384xf32, #tpu.memory_space<vmem>>, vector<1x384xf32>
    %446 = vector.broadcast %445 : vector<1x384xf32> to vector<8x384xf32>
    %447 = arith.addf %444, %446 : vector<8x384xf32>
    %c0_147 = arith.constant 0 : index
    %c0_148 = arith.constant 0 : index
    %448 = vector.load %arg8[%c0_147, %c0_148] : memref<128x384xf32, #tpu.memory_space<vmem>>, vector<128x384xf32>
    %cst_149 = arith.constant dense<0.000000e+00> : vector<8x384xf32>
    %449 = tpu.matmul %399, %448, %cst_149 {dimension_numbers = #tpu.dot_dimension_numbers<[1], [0], [0], [1], [0, 0, 1, 1], [], []>} : vector<8x128xf32>, vector<128x384xf32>, vector<8x384xf32> -> vector<8x384xf32>
    %450 = vector.extract_strided_slice %447 {offsets = [0, 0], sizes = [8, 128], strides = [1, 1]} : vector<8x384xf32> to vector<8x128xf32>
    %451 = vector.extract_strided_slice %449 {offsets = [0, 0], sizes = [8, 128], strides = [1, 1]} : vector<8x384xf32> to vector<8x128xf32>
    %452 = arith.addf %450, %451 : vector<8x128xf32>
    %453 = arith.negf %452 : vector<8x128xf32>
    %454 = math.exp %453 : vector<8x128xf32>
    %cst_150 = arith.constant 1.000000e+00 : f32
    %455 = vector.broadcast %cst_150 : f32 to vector<8x128xf32>
    %456 = arith.addf %455, %454 : vector<8x128xf32>
    %457 = arith.divf %455, %456 : vector<8x128xf32>
    %458 = vector.extract_strided_slice %447 {offsets = [0, 128], sizes = [8, 128], strides = [1, 1]} : vector<8x384xf32> to vector<8x128xf32>
    %459 = vector.extract_strided_slice %449 {offsets = [0, 128], sizes = [8, 128], strides = [1, 1]} : vector<8x384xf32> to vector<8x128xf32>
    %460 = arith.addf %458, %459 : vector<8x128xf32>
    %461 = arith.negf %460 : vector<8x128xf32>
    %462 = math.exp %461 : vector<8x128xf32>
    %cst_151 = arith.constant 1.000000e+00 : f32
    %463 = vector.broadcast %cst_151 : f32 to vector<8x128xf32>
    %464 = arith.addf %463, %462 : vector<8x128xf32>
    %465 = arith.divf %463, %464 : vector<8x128xf32>
    %466 = vector.extract_strided_slice %447 {offsets = [0, 256], sizes = [8, 128], strides = [1, 1]} : vector<8x384xf32> to vector<8x128xf32>
    %467 = vector.extract_strided_slice %449 {offsets = [0, 256], sizes = [8, 128], strides = [1, 1]} : vector<8x384xf32> to vector<8x128xf32>
    %c0_152 = arith.constant 0 : index
    %c0_153 = arith.constant 0 : index
    %468 = vector.load %arg10[%c0_152, %c0_153] : memref<1x128xf32, #tpu.memory_space<vmem>>, vector<1x128xf32>
    %469 = vector.broadcast %468 : vector<1x128xf32> to vector<8x128xf32>
    %470 = arith.addf %467, %469 : vector<8x128xf32>
    %471 = arith.mulf %457, %470 : vector<8x128xf32>
    %472 = arith.addf %466, %471 : vector<8x128xf32>
    %473 = math.tanh %472 : vector<8x128xf32>
    %cst_154 = arith.constant 1.000000e+00 : f32
    %474 = vector.broadcast %cst_154 : f32 to vector<8x128xf32>
    %475 = arith.subf %474, %465 : vector<8x128xf32>
    %476 = arith.mulf %475, %473 : vector<8x128xf32>
    %477 = arith.mulf %465, %399 : vector<8x128xf32>
    %478 = arith.addf %476, %477 : vector<8x128xf32>
    %c1_i32_155 = arith.constant 1 : i32
    %479 = vector.broadcast %c1_i32_155 : i32 to vector<8x1xi32>
    %480 = arith.subi %8, %479 : vector<8x1xi32>
    %c5_i32 = arith.constant 5 : i32
    %481 = vector.broadcast %c5_i32 : i32 to vector<8x1xi32>
    %482 = arith.cmpi eq, %480, %481 : vector<8x1xi32>
    %483 = vector.shape_cast %482 : vector<8x1xi1> to vector<8x1xi1>
    %484 = vector.broadcast %483 : vector<8x1xi1> to vector<8x128xi1>
    %485 = arith.select %484, %478, %406 : vector<8x128xi1>, vector<8x128xf32>
    %486 = vector.extract_strided_slice %7 {offsets = [0, 6, 0], sizes = [8, 1, 384], strides = [1, 1, 1]} : vector<8x8x384xf32> to vector<8x1x384xf32>
    %487 = vector.shape_cast %486 : vector<8x1x384xf32> to vector<8x384xf32>
    %c0_156 = arith.constant 0 : index
    %c0_157 = arith.constant 0 : index
    %488 = vector.load %arg4[%c0_156, %c0_157] : memref<128x384xf32, #tpu.memory_space<vmem>>, vector<128x384xf32>
    %cst_158 = arith.constant dense<0.000000e+00> : vector<8x384xf32>
    %489 = tpu.matmul %439, %488, %cst_158 {dimension_numbers = #tpu.dot_dimension_numbers<[1], [0], [0], [1], [0, 0, 1, 1], [], []>} : vector<8x128xf32>, vector<128x384xf32>, vector<8x384xf32> -> vector<8x384xf32>
    %490 = vector.extract_strided_slice %487 {offsets = [0, 0], sizes = [8, 128], strides = [1, 1]} : vector<8x384xf32> to vector<8x128xf32>
    %491 = vector.extract_strided_slice %489 {offsets = [0, 0], sizes = [8, 128], strides = [1, 1]} : vector<8x384xf32> to vector<8x128xf32>
    %492 = arith.addf %490, %491 : vector<8x128xf32>
    %493 = arith.negf %492 : vector<8x128xf32>
    %494 = math.exp %493 : vector<8x128xf32>
    %cst_159 = arith.constant 1.000000e+00 : f32
    %495 = vector.broadcast %cst_159 : f32 to vector<8x128xf32>
    %496 = arith.addf %495, %494 : vector<8x128xf32>
    %497 = arith.divf %495, %496 : vector<8x128xf32>
    %498 = vector.extract_strided_slice %487 {offsets = [0, 128], sizes = [8, 128], strides = [1, 1]} : vector<8x384xf32> to vector<8x128xf32>
    %499 = vector.extract_strided_slice %489 {offsets = [0, 128], sizes = [8, 128], strides = [1, 1]} : vector<8x384xf32> to vector<8x128xf32>
    %500 = arith.addf %498, %499 : vector<8x128xf32>
    %501 = arith.negf %500 : vector<8x128xf32>
    %502 = math.exp %501 : vector<8x128xf32>
    %cst_160 = arith.constant 1.000000e+00 : f32
    %503 = vector.broadcast %cst_160 : f32 to vector<8x128xf32>
    %504 = arith.addf %503, %502 : vector<8x128xf32>
    %505 = arith.divf %503, %504 : vector<8x128xf32>
    %506 = vector.extract_strided_slice %487 {offsets = [0, 256], sizes = [8, 128], strides = [1, 1]} : vector<8x384xf32> to vector<8x128xf32>
    %507 = vector.extract_strided_slice %489 {offsets = [0, 256], sizes = [8, 128], strides = [1, 1]} : vector<8x384xf32> to vector<8x128xf32>
    %c0_161 = arith.constant 0 : index
    %c0_162 = arith.constant 0 : index
    %508 = vector.load %arg6[%c0_161, %c0_162] : memref<1x128xf32, #tpu.memory_space<vmem>>, vector<1x128xf32>
    %509 = vector.broadcast %508 : vector<1x128xf32> to vector<8x128xf32>
    %510 = arith.addf %507, %509 : vector<8x128xf32>
    %511 = arith.mulf %497, %510 : vector<8x128xf32>
    %512 = arith.addf %506, %511 : vector<8x128xf32>
    %513 = math.tanh %512 : vector<8x128xf32>
    %cst_163 = arith.constant 1.000000e+00 : f32
    %514 = vector.broadcast %cst_163 : f32 to vector<8x128xf32>
    %515 = arith.subf %514, %505 : vector<8x128xf32>
    %516 = arith.mulf %515, %513 : vector<8x128xf32>
    %517 = arith.mulf %505, %439 : vector<8x128xf32>
    %518 = arith.addf %516, %517 : vector<8x128xf32>
    %c6 = arith.constant 6 : index
    %c0_164 = arith.constant 0 : index
    %c0_165 = arith.constant 0 : index
    %519 = vector.load %arg1[%c6, %c0_164, %c0_165] : memref<8x8x128xf32, #tpu.memory_space<vmem>>, vector<1x8x128xf32>
    %520 = vector.shape_cast %519 : vector<1x8x128xf32> to vector<8x128xf32>
    %521 = arith.mulf %518, %520 : vector<8x128xf32>
    %c0_166 = arith.constant 0 : index
    %c0_167 = arith.constant 0 : index
    %522 = vector.load %arg7[%c0_166, %c0_167] : memref<128x384xf32, #tpu.memory_space<vmem>>, vector<128x384xf32>
    %cst_168 = arith.constant dense<0.000000e+00> : vector<8x384xf32>
    %523 = tpu.matmul %521, %522, %cst_168 {dimension_numbers = #tpu.dot_dimension_numbers<[1], [0], [0], [1], [0, 0, 1, 1], [], []>} : vector<8x128xf32>, vector<128x384xf32>, vector<8x384xf32> -> vector<8x384xf32>
    %c0_169 = arith.constant 0 : index
    %c0_170 = arith.constant 0 : index
    %524 = vector.load %arg9[%c0_169, %c0_170] : memref<1x384xf32, #tpu.memory_space<vmem>>, vector<1x384xf32>
    %525 = vector.broadcast %524 : vector<1x384xf32> to vector<8x384xf32>
    %526 = arith.addf %523, %525 : vector<8x384xf32>
    %c0_171 = arith.constant 0 : index
    %c0_172 = arith.constant 0 : index
    %527 = vector.load %arg8[%c0_171, %c0_172] : memref<128x384xf32, #tpu.memory_space<vmem>>, vector<128x384xf32>
    %cst_173 = arith.constant dense<0.000000e+00> : vector<8x384xf32>
    %528 = tpu.matmul %478, %527, %cst_173 {dimension_numbers = #tpu.dot_dimension_numbers<[1], [0], [0], [1], [0, 0, 1, 1], [], []>} : vector<8x128xf32>, vector<128x384xf32>, vector<8x384xf32> -> vector<8x384xf32>
    %529 = vector.extract_strided_slice %526 {offsets = [0, 0], sizes = [8, 128], strides = [1, 1]} : vector<8x384xf32> to vector<8x128xf32>
    %530 = vector.extract_strided_slice %528 {offsets = [0, 0], sizes = [8, 128], strides = [1, 1]} : vector<8x384xf32> to vector<8x128xf32>
    %531 = arith.addf %529, %530 : vector<8x128xf32>
    %532 = arith.negf %531 : vector<8x128xf32>
    %533 = math.exp %532 : vector<8x128xf32>
    %cst_174 = arith.constant 1.000000e+00 : f32
    %534 = vector.broadcast %cst_174 : f32 to vector<8x128xf32>
    %535 = arith.addf %534, %533 : vector<8x128xf32>
    %536 = arith.divf %534, %535 : vector<8x128xf32>
    %537 = vector.extract_strided_slice %526 {offsets = [0, 128], sizes = [8, 128], strides = [1, 1]} : vector<8x384xf32> to vector<8x128xf32>
    %538 = vector.extract_strided_slice %528 {offsets = [0, 128], sizes = [8, 128], strides = [1, 1]} : vector<8x384xf32> to vector<8x128xf32>
    %539 = arith.addf %537, %538 : vector<8x128xf32>
    %540 = arith.negf %539 : vector<8x128xf32>
    %541 = math.exp %540 : vector<8x128xf32>
    %cst_175 = arith.constant 1.000000e+00 : f32
    %542 = vector.broadcast %cst_175 : f32 to vector<8x128xf32>
    %543 = arith.addf %542, %541 : vector<8x128xf32>
    %544 = arith.divf %542, %543 : vector<8x128xf32>
    %545 = vector.extract_strided_slice %526 {offsets = [0, 256], sizes = [8, 128], strides = [1, 1]} : vector<8x384xf32> to vector<8x128xf32>
    %546 = vector.extract_strided_slice %528 {offsets = [0, 256], sizes = [8, 128], strides = [1, 1]} : vector<8x384xf32> to vector<8x128xf32>
    %c0_176 = arith.constant 0 : index
    %c0_177 = arith.constant 0 : index
    %547 = vector.load %arg10[%c0_176, %c0_177] : memref<1x128xf32, #tpu.memory_space<vmem>>, vector<1x128xf32>
    %548 = vector.broadcast %547 : vector<1x128xf32> to vector<8x128xf32>
    %549 = arith.addf %546, %548 : vector<8x128xf32>
    %550 = arith.mulf %536, %549 : vector<8x128xf32>
    %551 = arith.addf %545, %550 : vector<8x128xf32>
    %552 = math.tanh %551 : vector<8x128xf32>
    %cst_178 = arith.constant 1.000000e+00 : f32
    %553 = vector.broadcast %cst_178 : f32 to vector<8x128xf32>
    %554 = arith.subf %553, %544 : vector<8x128xf32>
    %555 = arith.mulf %554, %552 : vector<8x128xf32>
    %556 = arith.mulf %544, %478 : vector<8x128xf32>
    %557 = arith.addf %555, %556 : vector<8x128xf32>
    %c1_i32_179 = arith.constant 1 : i32
    %558 = vector.broadcast %c1_i32_179 : i32 to vector<8x1xi32>
    %559 = arith.subi %8, %558 : vector<8x1xi32>
    %c6_i32 = arith.constant 6 : i32
    %560 = vector.broadcast %c6_i32 : i32 to vector<8x1xi32>
    %561 = arith.cmpi eq, %559, %560 : vector<8x1xi32>
    %562 = vector.shape_cast %561 : vector<8x1xi1> to vector<8x1xi1>
    %563 = vector.broadcast %562 : vector<8x1xi1> to vector<8x128xi1>
    %564 = arith.select %563, %557, %485 : vector<8x128xi1>, vector<8x128xf32>
    %565 = vector.extract_strided_slice %7 {offsets = [0, 7, 0], sizes = [8, 1, 384], strides = [1, 1, 1]} : vector<8x8x384xf32> to vector<8x1x384xf32>
    %566 = vector.shape_cast %565 : vector<8x1x384xf32> to vector<8x384xf32>
    %c0_180 = arith.constant 0 : index
    %c0_181 = arith.constant 0 : index
    %567 = vector.load %arg4[%c0_180, %c0_181] : memref<128x384xf32, #tpu.memory_space<vmem>>, vector<128x384xf32>
    %cst_182 = arith.constant dense<0.000000e+00> : vector<8x384xf32>
    %568 = tpu.matmul %518, %567, %cst_182 {dimension_numbers = #tpu.dot_dimension_numbers<[1], [0], [0], [1], [0, 0, 1, 1], [], []>} : vector<8x128xf32>, vector<128x384xf32>, vector<8x384xf32> -> vector<8x384xf32>
    %569 = vector.extract_strided_slice %566 {offsets = [0, 0], sizes = [8, 128], strides = [1, 1]} : vector<8x384xf32> to vector<8x128xf32>
    %570 = vector.extract_strided_slice %568 {offsets = [0, 0], sizes = [8, 128], strides = [1, 1]} : vector<8x384xf32> to vector<8x128xf32>
    %571 = arith.addf %569, %570 : vector<8x128xf32>
    %572 = arith.negf %571 : vector<8x128xf32>
    %573 = math.exp %572 : vector<8x128xf32>
    %cst_183 = arith.constant 1.000000e+00 : f32
    %574 = vector.broadcast %cst_183 : f32 to vector<8x128xf32>
    %575 = arith.addf %574, %573 : vector<8x128xf32>
    %576 = arith.divf %574, %575 : vector<8x128xf32>
    %577 = vector.extract_strided_slice %566 {offsets = [0, 128], sizes = [8, 128], strides = [1, 1]} : vector<8x384xf32> to vector<8x128xf32>
    %578 = vector.extract_strided_slice %568 {offsets = [0, 128], sizes = [8, 128], strides = [1, 1]} : vector<8x384xf32> to vector<8x128xf32>
    %579 = arith.addf %577, %578 : vector<8x128xf32>
    %580 = arith.negf %579 : vector<8x128xf32>
    %581 = math.exp %580 : vector<8x128xf32>
    %cst_184 = arith.constant 1.000000e+00 : f32
    %582 = vector.broadcast %cst_184 : f32 to vector<8x128xf32>
    %583 = arith.addf %582, %581 : vector<8x128xf32>
    %584 = arith.divf %582, %583 : vector<8x128xf32>
    %585 = vector.extract_strided_slice %566 {offsets = [0, 256], sizes = [8, 128], strides = [1, 1]} : vector<8x384xf32> to vector<8x128xf32>
    %586 = vector.extract_strided_slice %568 {offsets = [0, 256], sizes = [8, 128], strides = [1, 1]} : vector<8x384xf32> to vector<8x128xf32>
    %c0_185 = arith.constant 0 : index
    %c0_186 = arith.constant 0 : index
    %587 = vector.load %arg6[%c0_185, %c0_186] : memref<1x128xf32, #tpu.memory_space<vmem>>, vector<1x128xf32>
    %588 = vector.broadcast %587 : vector<1x128xf32> to vector<8x128xf32>
    %589 = arith.addf %586, %588 : vector<8x128xf32>
    %590 = arith.mulf %576, %589 : vector<8x128xf32>
    %591 = arith.addf %585, %590 : vector<8x128xf32>
    %592 = math.tanh %591 : vector<8x128xf32>
    %cst_187 = arith.constant 1.000000e+00 : f32
    %593 = vector.broadcast %cst_187 : f32 to vector<8x128xf32>
    %594 = arith.subf %593, %584 : vector<8x128xf32>
    %595 = arith.mulf %594, %592 : vector<8x128xf32>
    %596 = arith.mulf %584, %518 : vector<8x128xf32>
    %597 = arith.addf %595, %596 : vector<8x128xf32>
    %c7 = arith.constant 7 : index
    %c0_188 = arith.constant 0 : index
    %c0_189 = arith.constant 0 : index
    %598 = vector.load %arg1[%c7, %c0_188, %c0_189] : memref<8x8x128xf32, #tpu.memory_space<vmem>>, vector<1x8x128xf32>
    %599 = vector.shape_cast %598 : vector<1x8x128xf32> to vector<8x128xf32>
    %600 = arith.mulf %597, %599 : vector<8x128xf32>
    %c0_190 = arith.constant 0 : index
    %c0_191 = arith.constant 0 : index
    %601 = vector.load %arg7[%c0_190, %c0_191] : memref<128x384xf32, #tpu.memory_space<vmem>>, vector<128x384xf32>
    %cst_192 = arith.constant dense<0.000000e+00> : vector<8x384xf32>
    %602 = tpu.matmul %600, %601, %cst_192 {dimension_numbers = #tpu.dot_dimension_numbers<[1], [0], [0], [1], [0, 0, 1, 1], [], []>} : vector<8x128xf32>, vector<128x384xf32>, vector<8x384xf32> -> vector<8x384xf32>
    %c0_193 = arith.constant 0 : index
    %c0_194 = arith.constant 0 : index
    %603 = vector.load %arg9[%c0_193, %c0_194] : memref<1x384xf32, #tpu.memory_space<vmem>>, vector<1x384xf32>
    %604 = vector.broadcast %603 : vector<1x384xf32> to vector<8x384xf32>
    %605 = arith.addf %602, %604 : vector<8x384xf32>
    %c0_195 = arith.constant 0 : index
    %c0_196 = arith.constant 0 : index
    %606 = vector.load %arg8[%c0_195, %c0_196] : memref<128x384xf32, #tpu.memory_space<vmem>>, vector<128x384xf32>
    %cst_197 = arith.constant dense<0.000000e+00> : vector<8x384xf32>
    %607 = tpu.matmul %557, %606, %cst_197 {dimension_numbers = #tpu.dot_dimension_numbers<[1], [0], [0], [1], [0, 0, 1, 1], [], []>} : vector<8x128xf32>, vector<128x384xf32>, vector<8x384xf32> -> vector<8x384xf32>
    %608 = vector.extract_strided_slice %605 {offsets = [0, 0], sizes = [8, 128], strides = [1, 1]} : vector<8x384xf32> to vector<8x128xf32>
    %609 = vector.extract_strided_slice %607 {offsets = [0, 0], sizes = [8, 128], strides = [1, 1]} : vector<8x384xf32> to vector<8x128xf32>
    %610 = arith.addf %608, %609 : vector<8x128xf32>
    %611 = arith.negf %610 : vector<8x128xf32>
    %612 = math.exp %611 : vector<8x128xf32>
    %cst_198 = arith.constant 1.000000e+00 : f32
    %613 = vector.broadcast %cst_198 : f32 to vector<8x128xf32>
    %614 = arith.addf %613, %612 : vector<8x128xf32>
    %615 = arith.divf %613, %614 : vector<8x128xf32>
    %616 = vector.extract_strided_slice %605 {offsets = [0, 128], sizes = [8, 128], strides = [1, 1]} : vector<8x384xf32> to vector<8x128xf32>
    %617 = vector.extract_strided_slice %607 {offsets = [0, 128], sizes = [8, 128], strides = [1, 1]} : vector<8x384xf32> to vector<8x128xf32>
    %618 = arith.addf %616, %617 : vector<8x128xf32>
    %619 = arith.negf %618 : vector<8x128xf32>
    %620 = math.exp %619 : vector<8x128xf32>
    %cst_199 = arith.constant 1.000000e+00 : f32
    %621 = vector.broadcast %cst_199 : f32 to vector<8x128xf32>
    %622 = arith.addf %621, %620 : vector<8x128xf32>
    %623 = arith.divf %621, %622 : vector<8x128xf32>
    %624 = vector.extract_strided_slice %605 {offsets = [0, 256], sizes = [8, 128], strides = [1, 1]} : vector<8x384xf32> to vector<8x128xf32>
    %625 = vector.extract_strided_slice %607 {offsets = [0, 256], sizes = [8, 128], strides = [1, 1]} : vector<8x384xf32> to vector<8x128xf32>
    %c0_200 = arith.constant 0 : index
    %c0_201 = arith.constant 0 : index
    %626 = vector.load %arg10[%c0_200, %c0_201] : memref<1x128xf32, #tpu.memory_space<vmem>>, vector<1x128xf32>
    %627 = vector.broadcast %626 : vector<1x128xf32> to vector<8x128xf32>
    %628 = arith.addf %625, %627 : vector<8x128xf32>
    %629 = arith.mulf %615, %628 : vector<8x128xf32>
    %630 = arith.addf %624, %629 : vector<8x128xf32>
    %631 = math.tanh %630 : vector<8x128xf32>
    %cst_202 = arith.constant 1.000000e+00 : f32
    %632 = vector.broadcast %cst_202 : f32 to vector<8x128xf32>
    %633 = arith.subf %632, %623 : vector<8x128xf32>
    %634 = arith.mulf %633, %631 : vector<8x128xf32>
    %635 = arith.mulf %623, %557 : vector<8x128xf32>
    %636 = arith.addf %634, %635 : vector<8x128xf32>
    %c1_i32_203 = arith.constant 1 : i32
    %637 = vector.broadcast %c1_i32_203 : i32 to vector<8x1xi32>
    %638 = arith.subi %8, %637 : vector<8x1xi32>
    %c7_i32 = arith.constant 7 : i32
    %639 = vector.broadcast %c7_i32 : i32 to vector<8x1xi32>
    %640 = arith.cmpi eq, %638, %639 : vector<8x1xi32>
    %641 = vector.shape_cast %640 : vector<8x1xi1> to vector<8x1xi1>
    %642 = vector.broadcast %641 : vector<8x1xi1> to vector<8x128xi1>
    %643 = arith.select %642, %636, %564 : vector<8x128xi1>, vector<8x128xf32>
    %c0_204 = arith.constant 0 : index
    %c0_205 = arith.constant 0 : index
    %644 = vector.load %arg11[%c0_204, %c0_205] : memref<128x8xf32, #tpu.memory_space<vmem>>, vector<128x8xf32>
    %cst_206 = arith.constant dense<0.000000e+00> : vector<8x8xf32>
    %645 = tpu.matmul %643, %644, %cst_206 {dimension_numbers = #tpu.dot_dimension_numbers<[1], [0], [0], [1], [0, 0, 1, 1], [], []>} : vector<8x128xf32>, vector<128x8xf32>, vector<8x8xf32> -> vector<8x8xf32>
    %c0_207 = arith.constant 0 : index
    %c0_208 = arith.constant 0 : index
    %646 = vector.load %arg12[%c0_207, %c0_208] : memref<1x8xf32, #tpu.memory_space<vmem>>, vector<1x8xf32>
    %647 = vector.broadcast %646 : vector<1x8xf32> to vector<8x8xf32>
    %648 = arith.addf %645, %647 : vector<8x8xf32>
    %c0_209 = arith.constant 0 : index
    %c0_210 = arith.constant 0 : index
    %649 = vector.load %arg13[%c0_209, %c0_210] : memref<8x8xf32, #tpu.memory_space<vmem>>, vector<8x8xf32>
    tpu.vector_store %arg13[%c0_209, %c0_210], %648 {strides = array<i32>} : memref<8x8xf32, #tpu.memory_space<vmem>>, vector<8x8xf32>,
    return
  }
}

</mosaic_0001>

<llo_original>
// kernel: simple_recurrent_forward.1
$region0: #{simple_recurrent_forward.1}
  #allocation0 [shape = 'u32[]', space=smem, size = 0x4, offset = 0x4, fixed_abs, tag = 'smem constant byte address 0x4 - core index']
  #allocation1 [shape = 'u32[144,128]{1,0:T(1,128)}', space=vmem, size = 0x12000, scoped, tag = 'internal scratch']
  %s0 = inlined_call_operand.vmem [shape: f32[8,8,32], index: 0, kind: input, shape index: {}]
  %s1 = inlined_call_operand.vmem [shape: f32[8,8,128], index: 1, kind: input, shape index: {}]
  %s2 = inlined_call_operand.vmem [shape: s32[8,1], index: 2, kind: input, shape index: {}]
  %s3 = inlined_call_operand.vmem [shape: f32[32,384], index: 3, kind: input, shape index: {}]
  %s4 = inlined_call_operand.hbm [shape: f32[128,384], index: 4, kind: input, shape index: {}]
  %s5 = inlined_call_operand.vmem [shape: f32[1,384], index: 5, kind: input, shape index: {}]
  %s6 = inlined_call_operand.vmem [shape: f32[1,128], index: 6, kind: input, shape index: {}]
  %s7 = inlined_call_operand.hbm [shape: f32[128,384], index: 7, kind: input, shape index: {}]
  %s8 = inlined_call_operand.hbm [shape: f32[128,384], index: 8, kind: input, shape index: {}]
  %s9 = inlined_call_operand.vmem [shape: f32[1,384], index: 9, kind: input, shape index: {}]
  %s10 = inlined_call_operand.vmem [shape: f32[1,128], index: 10, kind: input, shape index: {}]
  %s11 = inlined_call_operand.vmem [shape: f32[128,8], index: 11, kind: input, shape index: {}]
  %s12 = inlined_call_operand.vmem [shape: f32[1,8], index: 12, kind: input, shape index: {}]
  %s13 = inlined_call_operand.vmem [shape: f32[8,8], index: 13, kind: output, shape index: {}]
  %s14 = sld [smem:[#allocation0]]
  $region74: #{simple_recurrent_forward.1} parent=0
    _
  %s16 = ssub.s32 1, %s14
  %s17 = scalar_select 0, %s16, %s14
  $region1: #{simple_recurrent_forward.1} parent=0
    #allocation2 [shape = 'u8[196608]{0}', space=vmem, size = 0x30000, scoped, tag = 'input window, operand 4, single buffered']
    #allocation3 [shape = 's32[1]{0}', space=sflag, size = 0x4, scoped, tag = 'scoped memory for simple_recurrent_forward.1']
    #allocation4 [shape = 'u8[196608]{0}', space=vmem, size = 0x30000, scoped, tag = 'input window, operand 7, single buffered']
    #allocation5 [shape = 's32[1]{0}', space=sflag, size = 0x4, scoped, tag = 'scoped memory for simple_recurrent_forward.1']
    #allocation6 [shape = 'u8[196608]{0}', space=vmem, size = 0x30000, scoped, tag = 'input window, operand 8, single buffered']
    %18 = vsyncpa [#allocation3], 0
    %19 = vsyncpa [#allocation5], 0
    // Predicated region
    $region2: #{simple_recurrent_forward.1} parent=1 // pred_check
      _
    $region3: #{simple_recurrent_forward.1} parent=1 // pred_check_branch
      %21 = sbr.rel (0) target = $region5
    $region4: #{simple_recurrent_forward.1} parent=1 // pred_region
      _
    $region5: #{simple_recurrent_forward.1} parent=1 // pred_fallthru
      _
    // Predicated region
    $region6: #{simple_recurrent_forward.1} parent=1 // pred_check
      _
    $region7: #{simple_recurrent_forward.1} parent=1 // pred_check_branch
      %23 = sbr.rel (0) target = $region9
    $region8: #{simple_recurrent_forward.1} parent=1 // pred_region
      _
    $region9: #{simple_recurrent_forward.1} parent=1 // pred_fallthru
      _
    // Predicated region
    $region10: #{simple_recurrent_forward.1} parent=1 // pred_check
      _
    $region11: #{simple_recurrent_forward.1} parent=1 // pred_check_branch
      %25 = sbr.rel (0) target = $region13
    $region12: #{simple_recurrent_forward.1} parent=1 // pred_region
      _
    $region13: #{simple_recurrent_forward.1} parent=1 // pred_fallthru
      _
    // Predicated region
    $region14: #{simple_recurrent_forward.1} parent=1 // pred_check
      _
    $region15: #{simple_recurrent_forward.1} parent=1 // pred_check_branch
      %27 = sbr.rel (0) target = $region17
    $region16: #{simple_recurrent_forward.1} parent=1 // pred_region
      _
    $region17: #{simple_recurrent_forward.1} parent=1 // pred_fallthru
      _
    // Predicated region
    $region18: #{simple_recurrent_forward.1} parent=1 // pred_check
      _
    $region19: #{simple_recurrent_forward.1} parent=1 // pred_check_branch
      %29 = sbr.rel (0) target = $region21
    $region20: #{simple_recurrent_forward.1} parent=1 // pred_region
      %s31 = ssub.s32 6144, 6144
      %32 = vsyncadd [#allocation3], %s31
      %s33 = sshll.u32 [#allocation2], 4
      %s34 = int_to_ptr.vmem [resolvable:$true] %s33
      %39 = dma.hbm_to_vmem [thread:$0]  %s4, 6144, %s34, [#allocation3], 384, 384, 24
    $region21: #{simple_recurrent_forward.1} parent=1 // pred_fallthru
      _
    // Predicated region
    $region22: #{simple_recurrent_forward.1} parent=1 // pred_check
      _
    $region23: #{simple_recurrent_forward.1} parent=1 // pred_check_branch
      %41 = sbr.rel (0) target = $region25
    $region24: #{simple_recurrent_forward.1} parent=1 // pred_region
      _
    $region25: #{simple_recurrent_forward.1} parent=1 // pred_fallthru
      _
    // Predicated region
    $region26: #{simple_recurrent_forward.1} parent=1 // pred_check
      _
    $region27: #{simple_recurrent_forward.1} parent=1 // pred_check_branch
      %43 = sbr.rel (0) target = $region29
    $region28: #{simple_recurrent_forward.1} parent=1 // pred_region
      _
    $region29: #{simple_recurrent_forward.1} parent=1 // pred_fallthru
      _
    // Predicated region
    $region30: #{simple_recurrent_forward.1} parent=1 // pred_check
      _
    $region31: #{simple_recurrent_forward.1} parent=1 // pred_check_branch
      %45 = sbr.rel (0) target = $region33
    $region32: #{simple_recurrent_forward.1} parent=1 // pred_region
      %s47 = ssub.s32 6144, 6144
      %48 = vsyncadd [#allocation5], %s47
      %s49 = sshll.u32 [#allocation4], 4
      %s50 = int_to_ptr.vmem [resolvable:$true] %s49
      %55 = dma.hbm_to_vmem [thread:$0]  %s7, 6144, %s50, [#allocation5], 384, 384, 24
    $region33: #{simple_recurrent_forward.1} parent=1 // pred_fallthru
      _
    // Predicated region
    $region34: #{simple_recurrent_forward.1} parent=1 // pred_check
      _
    $region35: #{simple_recurrent_forward.1} parent=1 // pred_check_branch
      %57 = sbr.rel (0) target = $region37
    $region36: #{simple_recurrent_forward.1} parent=1 // pred_region
      %s59 = ssub.s32 6144, 6144
      %60 = vsyncadd [#allocation5], %s59
      %s61 = sshll.u32 [#allocation6], 4
      %s62 = int_to_ptr.vmem [resolvable:$true] %s61
      %67 = dma.hbm_to_vmem [thread:$0]  %s8, 6144, %s62, [#allocation5], 384, 384, 24
    $region37: #{simple_recurrent_forward.1} parent=1 // pred_fallthru
      _
    // Predicated region
    $region38: #{simple_recurrent_forward.1} parent=1 // pred_check
      _
    $region39: #{simple_recurrent_forward.1} parent=1 // pred_check_branch
      %69 = sbr.rel (0) target = $region41
    $region40: #{simple_recurrent_forward.1} parent=1 // pred_region
      _
    $region41: #{simple_recurrent_forward.1} parent=1 // pred_fallthru
      _
    // Predicated region
    $region42: #{simple_recurrent_forward.1} parent=1 // pred_check
      _
    $region43: #{simple_recurrent_forward.1} parent=1 // pred_check_branch
      %71 = sbr.rel (0) target = $region45
    $region44: #{simple_recurrent_forward.1} parent=1 // pred_region
      _
    $region45: #{simple_recurrent_forward.1} parent=1 // pred_fallthru
      _
    // Predicated region
    $region46: #{simple_recurrent_forward.1} parent=1 // pred_check
      _
    $region47: #{simple_recurrent_forward.1} parent=1 // pred_check_branch
      %73 = sbr.rel (0) target = $region49
    $region48: #{simple_recurrent_forward.1} parent=1 // pred_region
      _
    $region49: #{simple_recurrent_forward.1} parent=1 // pred_fallthru
      _
    // Predicated region
    $region50: #{simple_recurrent_forward.1} parent=1 // pred_check
      _
    $region51: #{simple_recurrent_forward.1} parent=1 // pred_check_branch
      %75 = sbr.rel (0) target = $region53
    $region52: #{simple_recurrent_forward.1} parent=1 // pred_region
      _
    $region53: #{simple_recurrent_forward.1} parent=1 // pred_fallthru
      _
    // Predicated region
    $region54: #{simple_recurrent_forward.1} parent=1 // pred_check
      _
    $region55: #{simple_recurrent_forward.1} parent=1 // pred_check_branch
      %77 = sbr.rel (0) target = $region57
    $region56: #{simple_recurrent_forward.1} parent=1 // pred_region
      %78 = dma.done [#allocation3], 6144
    $region57: #{simple_recurrent_forward.1} parent=1 // pred_fallthru
      _
    // Predicated region
    $region58: #{simple_recurrent_forward.1} parent=1 // pred_check
      _
    $region59: #{simple_recurrent_forward.1} parent=1 // pred_check_branch
      %80 = sbr.rel (0) target = $region61
    $region60: #{simple_recurrent_forward.1} parent=1 // pred_region
      %81 = dma.done [#allocation5], 6144
    $region61: #{simple_recurrent_forward.1} parent=1 // pred_fallthru
      _
    // Predicated region
    $region62: #{simple_recurrent_forward.1} parent=1 // pred_check
      _
    $region63: #{simple_recurrent_forward.1} parent=1 // pred_check_branch
      %83 = sbr.rel (0) target = $region65
    $region64: #{simple_recurrent_forward.1} parent=1 // pred_region
      %84 = dma.done [#allocation5], 6144
    $region65: #{simple_recurrent_forward.1} parent=1 // pred_fallthru
      _
    %v85 = vld [vmem:[%s0] sm:$0xff]
    %v86 = vld [vmem:[%s0 + $0x8] sm:$0xff]
    %v87 = vld [vmem:[%s0 + $0x10] sm:$0xff]
    %v88 = vld [vmem:[%s0 + $0x18] sm:$0xff]
    %v89 = vld [vmem:[%s0 + $0x20] sm:$0xff]
    %v90 = vld [vmem:[%s0 + $0x28] sm:$0xff]
    %v91 = vld [vmem:[%s0 + $0x30] sm:$0xff]
    %v92 = vld [vmem:[%s0 + $0x38] sm:$0xff]
    %v93 = vld [vmem:[%s3] sm:$0xff]
    %v94 = vld [vmem:[%s3 + $0x8] sm:$0xff]
    %v95 = vld [vmem:[%s3 + $0x10] sm:$0xff]
    %v96 = vld [vmem:[%s3 + $0x18] sm:$0xff]
    %v97 = vld [vmem:[%s3 + $0x20] sm:$0xff]
    %v98 = vld [vmem:[%s3 + $0x28] sm:$0xff]
    %v99 = vld [vmem:[%s3 + $0x30] sm:$0xff]
    %v100 = vld [vmem:[%s3 + $0x38] sm:$0xff]
    %v101 = vld [vmem:[%s3 + $0x40] sm:$0xff]
    %v102 = vld [vmem:[%s3 + $0x48] sm:$0xff]
    %v103 = vld [vmem:[%s3 + $0x50] sm:$0xff]
    %v104 = vld [vmem:[%s3 + $0x58] sm:$0xff]
    %v105 = vld [vmem:[%s5] sm:$0x7]
    %v107 = vlaneseq
    %v108 = vshrl.u32 %v107, 7
    %v109 = vsub.s32 0, %v108
    %v110 = vrot.slane %v105, %v109
    %v111 = vlaneseq
    %v112 = vshrl.u32 %v111, 7
    %v113 = vsub.s32 1, %v112
    %v114 = vrot.slane %v105, %v113
    %v115 = vlaneseq
    %v116 = vshrl.u32 %v115, 7
    %v117 = vsub.s32 2, %v116
    %v118 = vrot.slane %v105, %v117
    %vm122 = vcmask 261120
    %v124 = vsel %vm122, %v85, 0
    %v127 = vsel %vm122, %v86, 0
    %v130 = vsel %vm122, %v87, 0
    %v133 = vsel %vm122, %v88, 0
    %v136 = vsel %vm122, %v89, 0
    %v139 = vsel %vm122, %v90, 0
    %v142 = vsel %vm122, %v91, 0
    %v145 = vsel %vm122, %v92, 0
    %147 = vmatprep.subr.mxu0 0.0
    %148 = vmatpush1.msra.mxu0 0.0
    %149 = vmatprep.subr.mxu0 0.0
    %150 = vmatpush1.msra.mxu0 0.0
    %151 = vmatprep.subr.mxu0 0.0
    %152 = vmatpush1.msra.mxu0 0.0
    %153 = vmatprep.subr.mxu0 0.0
    %154 = vmatpush1.msra.mxu0 0.0
    %155 = vmatprep.subr.mxu0 0.0
    %156 = vmatpush1.msra.mxu0 0.0
    %157 = vmatprep.subr.mxu0 0.0
    %158 = vmatpush1.msra.mxu0 0.0
    %159 = vmatprep.subr.mxu0 0.0
    %160 = vmatpush1.msra.mxu0 0.0
    %161 = vmatprep.subr.mxu0 0.0
    %162 = vmatpush1.msra.mxu0 0.0
    %163 = vmatprep.subr.mxu0 0.0
    %164 = vmatpush1.msra.mxu0 0.0
    %165 = vmatprep.subr.mxu0 0.0
    %166 = vmatpush1.msra.mxu0 0.0
    %167 = vmatprep.subr.mxu0 0.0
    %168 = vmatpush1.msra.mxu0 0.0
    %169 = vmatprep.subr.mxu0 0.0
    %170 = vmatpush1.msra.mxu0 0.0
    %171 = vmatprep.subr.mxu0 %v103
    %172 = vmatpush1.msra.mxu0 %v102
    %173 = vmatprep.subr.mxu0 %v100
    %174 = vmatpush1.msra.mxu0 %v99
    %175 = vmatprep.subr.mxu0 %v97
    %176 = vmatpush1.msra.mxu0 %v96
    %177 = vmatprep.subr.mxu0 %v94
    %178 = vmatpush1.msra.mxu0 %v93
    %179 = vmatprep.subr.mxu0 0.0
    %180 = vmatpush2.msra.mxu0 0.0
    %181 = vmatprep.subr.mxu0 0.0
    %182 = vmatpush2.msra.mxu0 0.0
    %183 = vmatprep.subr.mxu0 0.0
    %184 = vmatpush2.msra.mxu0 0.0
    %185 = vmatprep.subr.mxu0 0.0
    %186 = vmatpush2.msra.mxu0 0.0
    %187 = vmatprep.subr.mxu0 0.0
    %188 = vmatpush2.msra.mxu0 0.0
    %189 = vmatprep.subr.mxu0 0.0
    %190 = vmatpush2.msra.mxu0 0.0
    %191 = vmatprep.subr.mxu0 0.0
    %192 = vmatpush2.msra.mxu0 0.0
    %193 = vmatprep.subr.mxu0 0.0
    %194 = vmatpush2.msra.mxu0 0.0
    %195 = vmatprep.subr.mxu0 0.0
    %196 = vmatpush2.msra.mxu0 0.0
    %197 = vmatprep.subr.mxu0 0.0
    %198 = vmatpush2.msra.mxu0 0.0
    %199 = vmatprep.subr.mxu0 0.0
    %200 = vmatpush2.msra.mxu0 0.0
    %201 = vmatprep.subr.mxu0 0.0
    %202 = vmatpush2.msra.mxu0 0.0
    %203 = vmatprep.subr.mxu0 0.0
    %204 = vmatpush2.msra.mxu0 0.0
    %205 = vmatprep.subr.mxu0 0.0
    %206 = vmatpush2.msra.mxu0 0.0
    %207 = vmatprep.subr.mxu0 0.0
    %208 = vmatpush2.msra.mxu0 0.0
    %209 = vmatprep.subr.mxu0 0.0
    %210 = vmatpush2.msra.mxu0 0.0
    %211 = vmatprep.mubr.f32.mxu0 0.0
    %212 = vmatmul.mubr.f32.gmra.mxu0 %v124
    %v213 = vpop.f32.mrf.mxu0
    %v214 = vadd.f32 %v110, %v213
    %v215 = vpop.f32.mrf.mxu0
    %v216 = vadd.f32 %v114, %v215
    %217 = vmatprep.mubr.f32.mxu0 0.0
    %218 = vmatmul.mubr.f32.gmra.mxu0 %v127
    %v219 = vpop.f32.mrf.mxu0
    %v220 = vadd.f32 %v110, %v219
    %v221 = vpop.f32.mrf.mxu0
    %v222 = vadd.f32 %v114, %v221
    %223 = vmatprep.mubr.f32.mxu0 0.0
    %224 = vmatmul.mubr.f32.gmra.mxu0 %v130
    %v225 = vpop.f32.mrf.mxu0
    %v226 = vadd.f32 %v110, %v225
    %v227 = vpop.f32.mrf.mxu0
    %v228 = vadd.f32 %v114, %v227
    %229 = vmatprep.mubr.f32.mxu0 0.0
    %230 = vmatmul.mubr.f32.gmra.mxu0 %v133
    %v231 = vpop.f32.mrf.mxu0
    %v232 = vadd.f32 %v110, %v231
    %v233 = vpop.f32.mrf.mxu0
    %v234 = vadd.f32 %v114, %v233
    %235 = vmatprep.mubr.f32.mxu0 0.0
    %236 = vmatmul.mubr.f32.gmra.mxu0 %v136
    %v237 = vpop.f32.mrf.mxu0
    %v238 = vadd.f32 %v110, %v237
    %v239 = vpop.f32.mrf.mxu0
    %v240 = vadd.f32 %v114, %v239
    %241 = vmatprep.mubr.f32.mxu0 0.0
    %242 = vmatmul.mubr.f32.gmra.mxu0 %v139
    %v243 = vpop.f32.mrf.mxu0
    %v244 = vadd.f32 %v110, %v243
    %v245 = vpop.f32.mrf.mxu0
    %v246 = vadd.f32 %v114, %v245
    %247 = vmatprep.mubr.f32.mxu0 0.0
    %248 = vmatmul.mubr.f32.gmra.mxu0 %v142
    %v249 = vpop.f32.mrf.mxu0
    %v250 = vadd.f32 %v110, %v249
    %v251 = vpop.f32.mrf.mxu0
    %v252 = vadd.f32 %v114, %v251
    %253 = vmatprep.mubr.f32.mxu0 0.0
    %254 = vmatmul.mubr.f32.gmra.mxu0 %v145
    %v255 = vpop.f32.mrf.mxu0
    %v256 = vadd.f32 %v110, %v255
    %v257 = vpop.f32.mrf.mxu0
    %v258 = vadd.f32 %v114, %v257
    %259 = vdwg.mxu0
    %260 = vmatprep.subr.mxu0 0.0
    %261 = vmatpush1.msra.mxu0 0.0
    %262 = vmatprep.subr.mxu0 0.0
    %263 = vmatpush1.msra.mxu0 0.0
    %264 = vmatprep.subr.mxu0 0.0
    %265 = vmatpush1.msra.mxu0 0.0
    %266 = vmatprep.subr.mxu0 0.0
    %267 = vmatpush1.msra.mxu0 0.0
    %268 = vmatprep.subr.mxu0 0.0
    %269 = vmatpush1.msra.mxu0 0.0
    %270 = vmatprep.subr.mxu0 0.0
    %271 = vmatpush1.msra.mxu0 0.0
    %272 = vmatprep.subr.mxu0 0.0
    %273 = vmatpush1.msra.mxu0 0.0
    %274 = vmatprep.subr.mxu0 0.0
    %275 = vmatpush1.msra.mxu0 0.0
    %276 = vmatprep.subr.mxu0 0.0
    %277 = vmatpush1.msra.mxu0 0.0
    %278 = vmatprep.subr.mxu0 0.0
    %279 = vmatpush1.msra.mxu0 0.0
    %280 = vmatprep.subr.mxu0 0.0
    %281 = vmatpush1.msra.mxu0 0.0
    %282 = vmatprep.subr.mxu0 0.0
    %283 = vmatpush1.msra.mxu0 0.0
    %284 = vmatprep.subr.mxu0 0.0
    %285 = vmatpush1.msra.mxu0 %v104
    %286 = vmatprep.subr.mxu0 0.0
    %287 = vmatpush1.msra.mxu0 %v101
    %288 = vmatprep.subr.mxu0 0.0
    %289 = vmatpush1.msra.mxu0 %v98
    %290 = vmatprep.subr.mxu0 0.0
    %291 = vmatpush1.msra.mxu0 %v95
    %292 = vmatprep.subr.mxu0 0.0
    %293 = vmatpush2.msra.mxu0 0.0
    %294 = vmatprep.subr.mxu0 0.0
    %295 = vmatpush2.msra.mxu0 0.0
    %296 = vmatprep.subr.mxu0 0.0
    %297 = vmatpush2.msra.mxu0 0.0
    %298 = vmatprep.subr.mxu0 0.0
    %299 = vmatpush2.msra.mxu0 0.0
    %300 = vmatprep.subr.mxu0 0.0
    %301 = vmatpush2.msra.mxu0 0.0
    %302 = vmatprep.subr.mxu0 0.0
    %303 = vmatpush2.msra.mxu0 0.0
    %304 = vmatprep.subr.mxu0 0.0
    %305 = vmatpush2.msra.mxu0 0.0
    %306 = vmatprep.subr.mxu0 0.0
    %307 = vmatpush2.msra.mxu0 0.0
    %308 = vmatprep.subr.mxu0 0.0
    %309 = vmatpush2.msra.mxu0 0.0
    %310 = vmatprep.subr.mxu0 0.0
    %311 = vmatpush2.msra.mxu0 0.0
    %312 = vmatprep.subr.mxu0 0.0
    %313 = vmatpush2.msra.mxu0 0.0
    %314 = vmatprep.subr.mxu0 0.0
    %315 = vmatpush2.msra.mxu0 0.0
    %316 = vmatprep.subr.mxu0 0.0
    %317 = vmatpush2.msra.mxu0 0.0
    %318 = vmatprep.subr.mxu0 0.0
    %319 = vmatpush2.msra.mxu0 0.0
    %320 = vmatprep.subr.mxu0 0.0
    %321 = vmatpush2.msra.mxu0 0.0
    %322 = vmatprep.subr.mxu0 0.0
    %323 = vmatpush2.msra.mxu0 0.0
    %324 = vmatprep.mubr.f32.mxu0 0.0
    %325 = vmatmul.mubr.f32.gmra.mxu0 %v124
    %v326 = vpop.f32.mrf.mxu0
    %v327 = vadd.f32 %v118, %v326
    %v328 = vpop.f32.mrf.mxu0
    %329 = vmatprep.mubr.f32.mxu0 0.0
    %330 = vmatmul.mubr.f32.gmra.mxu0 %v127
    %v331 = vpop.f32.mrf.mxu0
    %v332 = vadd.f32 %v118, %v331
    %v333 = vpop.f32.mrf.mxu0
    %334 = vmatprep.mubr.f32.mxu0 0.0
    %335 = vmatmul.mubr.f32.gmra.mxu0 %v130
    %v336 = vpop.f32.mrf.mxu0
    %v337 = vadd.f32 %v118, %v336
    %v338 = vpop.f32.mrf.mxu0
    %339 = vmatprep.mubr.f32.mxu0 0.0
    %340 = vmatmul.mubr.f32.gmra.mxu0 %v133
    %v341 = vpop.f32.mrf.mxu0
    %v342 = vadd.f32 %v118, %v341
    %v343 = vpop.f32.mrf.mxu0
    %344 = vmatprep.mubr.f32.mxu0 0.0
    %345 = vmatmul.mubr.f32.gmra.mxu0 %v136
    %v346 = vpop.f32.mrf.mxu0
    %v347 = vadd.f32 %v118, %v346
    %v348 = vpop.f32.mrf.mxu0
    %349 = vmatprep.mubr.f32.mxu0 0.0
    %350 = vmatmul.mubr.f32.gmra.mxu0 %v139
    %v351 = vpop.f32.mrf.mxu0
    %v352 = vadd.f32 %v118, %v351
    %v353 = vpop.f32.mrf.mxu0
    %354 = vmatprep.mubr.f32.mxu0 0.0
    %355 = vmatmul.mubr.f32.gmra.mxu0 %v142
    %v356 = vpop.f32.mrf.mxu0
    %v357 = vadd.f32 %v118, %v356
    %v358 = vpop.f32.mrf.mxu0
    %359 = vmatprep.mubr.f32.mxu0 0.0
    %360 = vmatmul.mubr.f32.gmra.mxu0 %v145
    %v361 = vpop.f32.mrf.mxu0
    %v362 = vadd.f32 %v118, %v361
    %v363 = vpop.f32.mrf.mxu0
    %364 = vdwg.mxu0
    %v365 = vld [vmem:[%s2] sm:$0xff]
    %v366 = vld [vmem:[#allocation2] sm:$0xff]
    %v367 = vld [vmem:[#allocation2 + $0x8] sm:$0xff]
    %v368 = vld [vmem:[#allocation2 + $0x10] sm:$0xff]
    %v369 = vld [vmem:[#allocation2 + $0x18] sm:$0xff]
    %v370 = vld [vmem:[#allocation2 + $0x20] sm:$0xff]
    %v371 = vld [vmem:[#allocation2 + $0x28] sm:$0xff]
    %v372 = vld [vmem:[#allocation2 + $0x30] sm:$0xff]
    %v373 = vld [vmem:[#allocation2 + $0x38] sm:$0xff]
    %v374 = vld [vmem:[#allocation2 + $0x40] sm:$0xff]
    %v375 = vld [vmem:[#allocation2 + $0x48] sm:$0xff]
    %v376 = vld [vmem:[#allocation2 + $0x50] sm:$0xff]
    %v377 = vld [vmem:[#allocation2 + $0x58] sm:$0xff]
    %v378 = vld [vmem:[#allocation2 + $0x60] sm:$0xff]
    %v379 = vld [vmem:[#allocation2 + $0x68] sm:$0xff]
    %v380 = vld [vmem:[#allocation2 + $0x70] sm:$0xff]
    %v381 = vld [vmem:[#allocation2 + $0x78] sm:$0xff]
    %v382 = vld [vmem:[#allocation2 + $0x80] sm:$0xff]
    %v383 = vld [vmem:[#allocation2 + $0x88] sm:$0xff]
    %v384 = vld [vmem:[#allocation2 + $0x90] sm:$0xff]
    %v385 = vld [vmem:[#allocation2 + $0x98] sm:$0xff]
    %v386 = vld [vmem:[#allocation2 + $0xa0] sm:$0xff]
    %v387 = vld [vmem:[#allocation2 + $0xa8] sm:$0xff]
    %v388 = vld [vmem:[#allocation2 + $0xb0] sm:$0xff]
    %v389 = vld [vmem:[#allocation2 + $0xb8] sm:$0xff]
    %v390 = vld [vmem:[#allocation2 + $0xc0] sm:$0xff]
    %v391 = vld [vmem:[#allocation2 + $0xc8] sm:$0xff]
    %v392 = vld [vmem:[#allocation2 + $0xd0] sm:$0xff]
    %v393 = vld [vmem:[#allocation2 + $0xd8] sm:$0xff]
    %v394 = vld [vmem:[#allocation2 + $0xe0] sm:$0xff]
    %v395 = vld [vmem:[#allocation2 + $0xe8] sm:$0xff]
    %v396 = vld [vmem:[#allocation2 + $0xf0] sm:$0xff]
    %v397 = vld [vmem:[#allocation2 + $0xf8] sm:$0xff]
    %v398 = vld [vmem:[#allocation2 + $0x100] sm:$0xff]
    %v399 = vld [vmem:[#allocation2 + $0x108] sm:$0xff]
    %v400 = vld [vmem:[#allocation2 + $0x110] sm:$0xff]
    %v401 = vld [vmem:[#allocation2 + $0x118] sm:$0xff]
    %v402 = vld [vmem:[#allocation2 + $0x120] sm:$0xff]
    %v403 = vld [vmem:[#allocation2 + $0x128] sm:$0xff]
    %v404 = vld [vmem:[#allocation2 + $0x130] sm:$0xff]
    %v405 = vld [vmem:[#allocation2 + $0x138] sm:$0xff]
    %v406 = vld [vmem:[#allocation2 + $0x140] sm:$0xff]
    %v407 = vld [vmem:[#allocation2 + $0x148] sm:$0xff]
    %v408 = vld [vmem:[#allocation2 + $0x150] sm:$0xff]
    %v409 = vld [vmem:[#allocation2 + $0x158] sm:$0xff]
    %v410 = vld [vmem:[#allocation2 + $0x160] sm:$0xff]
    %v411 = vld [vmem:[#allocation2 + $0x168] sm:$0xff]
    %v412 = vld [vmem:[#allocation2 + $0x170] sm:$0xff]
    %v413 = vld [vmem:[#allocation2 + $0x178] sm:$0xff]
    %414 = vmatprep.subr.mxu0 %v412
    %415 = vmatpush1.msra.mxu0 %v411
    %416 = vmatprep.subr.mxu0 %v409
    %417 = vmatpush1.msra.mxu0 %v408
    %418 = vmatprep.subr.mxu0 %v406
    %419 = vmatpush1.msra.mxu0 %v405
    %420 = vmatprep.subr.mxu0 %v403
    %421 = vmatpush1.msra.mxu0 %v402
    %422 = vmatprep.subr.mxu0 %v400
    %423 = vmatpush1.msra.mxu0 %v399
    %424 = vmatprep.subr.mxu0 %v397
    %425 = vmatpush1.msra.mxu0 %v396
    %426 = vmatprep.subr.mxu0 %v394
    %427 = vmatpush1.msra.mxu0 %v393
    %428 = vmatprep.subr.mxu0 %v391
    %429 = vmatpush1.msra.mxu0 %v390
    %430 = vmatprep.subr.mxu0 %v388
    %431 = vmatpush1.msra.mxu0 %v387
    %432 = vmatprep.subr.mxu0 %v385
    %433 = vmatpush1.msra.mxu0 %v384
    %434 = vmatprep.subr.mxu0 %v382
    %435 = vmatpush1.msra.mxu0 %v381
    %436 = vmatprep.subr.mxu0 %v379
    %437 = vmatpush1.msra.mxu0 %v378
    %438 = vmatprep.subr.mxu0 %v376
    %439 = vmatpush1.msra.mxu0 %v375
    %440 = vmatprep.subr.mxu0 %v373
    %441 = vmatpush1.msra.mxu0 %v372
    %442 = vmatprep.subr.mxu0 %v370
    %443 = vmatpush1.msra.mxu0 %v369
    %444 = vmatprep.subr.mxu0 %v367
    %445 = vmatpush1.msra.mxu0 %v366
    %446 = vmatprep.subr.mxu0 0.0
    %447 = vmatpush2.msra.mxu0 0.0
    %448 = vmatprep.subr.mxu0 0.0
    %449 = vmatpush2.msra.mxu0 0.0
    %450 = vmatprep.subr.mxu0 0.0
    %451 = vmatpush2.msra.mxu0 0.0
    %452 = vmatprep.subr.mxu0 0.0
    %453 = vmatpush2.msra.mxu0 0.0
    %454 = vmatprep.subr.mxu0 0.0
    %455 = vmatpush2.msra.mxu0 0.0
    %456 = vmatprep.subr.mxu0 0.0
    %457 = vmatpush2.msra.mxu0 0.0
    %458 = vmatprep.subr.mxu0 0.0
    %459 = vmatpush2.msra.mxu0 0.0
    %460 = vmatprep.subr.mxu0 0.0
    %461 = vmatpush2.msra.mxu0 0.0
    %462 = vmatprep.subr.mxu0 0.0
    %463 = vmatpush2.msra.mxu0 0.0
    %464 = vmatprep.subr.mxu0 0.0
    %465 = vmatpush2.msra.mxu0 0.0
    %466 = vmatprep.subr.mxu0 0.0
    %467 = vmatpush2.msra.mxu0 0.0
    %468 = vmatprep.subr.mxu0 0.0
    %469 = vmatpush2.msra.mxu0 0.0
    %470 = vmatprep.subr.mxu0 0.0
    %471 = vmatpush2.msra.mxu0 0.0
    %472 = vmatprep.subr.mxu0 0.0
    %473 = vmatpush2.msra.mxu0 0.0
    %474 = vmatprep.subr.mxu0 0.0
    %475 = vmatpush2.msra.mxu0 0.0
    %476 = vmatprep.subr.mxu0 0.0
    %477 = vmatpush2.msra.mxu0 0.0
    %478 = vmatprep.mubr.f32.mxu0 0.0
    %479 = vmatmul.mubr.f32.gmra.mxu0 0.0
    %v480 = vpop.f32.mrf.mxu0
    %v481 = vadd.f32 0.0, %v480
    %v482 = vpop.f32.mrf.mxu0
    %v483 = vadd.f32 0.0, %v482
    %484 = vdwg.mxu0
    %485 = vmatprep.subr.mxu0 0.0
    %486 = vmatpush1.msra.mxu0 %v413
    %487 = vmatprep.subr.mxu0 0.0
    %488 = vmatpush1.msra.mxu0 %v410
    %489 = vmatprep.subr.mxu0 0.0
    %490 = vmatpush1.msra.mxu0 %v407
    %491 = vmatprep.subr.mxu0 0.0
    %492 = vmatpush1.msra.mxu0 %v404
    %493 = vmatprep.subr.mxu0 0.0
    %494 = vmatpush1.msra.mxu0 %v401
    %495 = vmatprep.subr.mxu0 0.0
    %496 = vmatpush1.msra.mxu0 %v398
    %497 = vmatprep.subr.mxu0 0.0
    %498 = vmatpush1.msra.mxu0 %v395
    %499 = vmatprep.subr.mxu0 0.0
    %500 = vmatpush1.msra.mxu0 %v392
    %501 = vmatprep.subr.mxu0 0.0
    %502 = vmatpush1.msra.mxu0 %v389
    %503 = vmatprep.subr.mxu0 0.0
    %504 = vmatpush1.msra.mxu0 %v386
    %505 = vmatprep.subr.mxu0 0.0
    %506 = vmatpush1.msra.mxu0 %v383
    %507 = vmatprep.subr.mxu0 0.0
    %508 = vmatpush1.msra.mxu0 %v380
    %509 = vmatprep.subr.mxu0 0.0
    %510 = vmatpush1.msra.mxu0 %v377
    %511 = vmatprep.subr.mxu0 0.0
    %512 = vmatpush1.msra.mxu0 %v374
    %513 = vmatprep.subr.mxu0 0.0
    %514 = vmatpush1.msra.mxu0 %v371
    %515 = vmatprep.subr.mxu0 0.0
    %516 = vmatpush1.msra.mxu0 %v368
    %517 = vmatprep.subr.mxu0 0.0
    %518 = vmatpush2.msra.mxu0 0.0
    %519 = vmatprep.subr.mxu0 0.0
    %520 = vmatpush2.msra.mxu0 0.0
    %521 = vmatprep.subr.mxu0 0.0
    %522 = vmatpush2.msra.mxu0 0.0
    %523 = vmatprep.subr.mxu0 0.0
    %524 = vmatpush2.msra.mxu0 0.0
    %525 = vmatprep.subr.mxu0 0.0
    %526 = vmatpush2.msra.mxu0 0.0
    %527 = vmatprep.subr.mxu0 0.0
    %528 = vmatpush2.msra.mxu0 0.0
    %529 = vmatprep.subr.mxu0 0.0
    %530 = vmatpush2.msra.mxu0 0.0
    %531 = vmatprep.subr.mxu0 0.0
    %532 = vmatpush2.msra.mxu0 0.0
    %533 = vmatprep.subr.mxu0 0.0
    %534 = vmatpush2.msra.mxu0 0.0
    %535 = vmatprep.subr.mxu0 0.0
    %536 = vmatpush2.msra.mxu0 0.0
    %537 = vmatprep.subr.mxu0 0.0
    %538 = vmatpush2.msra.mxu0 0.0
    %539 = vmatprep.subr.mxu0 0.0
    %540 = vmatpush2.msra.mxu0 0.0
    %541 = vmatprep.subr.mxu0 0.0
    %542 = vmatpush2.msra.mxu0 0.0
    %543 = vmatprep.subr.mxu0 0.0
    %544 = vmatpush2.msra.mxu0 0.0
    %545 = vmatprep.subr.mxu0 0.0
    %546 = vmatpush2.msra.mxu0 0.0
    %547 = vmatprep.subr.mxu0 0.0
    %548 = vmatpush2.msra.mxu0 0.0
    %549 = vmatprep.mubr.f32.mxu0 0.0
    %550 = vmatmul.mubr.f32.gmra.mxu0 0.0
    %v551 = vpop.f32.mrf.mxu0
    %v552 = vadd.f32 0.0, %v551
    %v553 = vpop.f32.mrf.mxu0
    %554 = vdwg.mxu0
    %v556 = vrot.slane %v481, 1
    %v557 = vrot.slane %v481, 2
    %v558 = vrot.slane %v481, 3
    %v559 = vrot.slane %v481, 4
    %v560 = vrot.slane %v481, 5
    %v561 = vrot.slane %v481, 6
    %v562 = vrot.slane %v481, 7
    %v571 = vadd.f32 %v214, %v481
    %v572 = vadd.f32 %v220, %v556
    %v573 = vadd.f32 %v226, %v557
    %v574 = vadd.f32 %v232, %v558
    %v575 = vadd.f32 %v238, %v559
    %v576 = vadd.f32 %v244, %v560
    %v577 = vadd.f32 %v250, %v561
    %v578 = vadd.f32 %v256, %v562
    %v579 = vxor.u32 %v571, 2147483648
    %v580 = vxor.u32 %v572, 2147483648
    %v581 = vxor.u32 %v573, 2147483648
    %v582 = vxor.u32 %v574, 2147483648
    %v583 = vxor.u32 %v575, 2147483648
    %v584 = vxor.u32 %v576, 2147483648
    %v585 = vxor.u32 %v577, 2147483648
    %v586 = vxor.u32 %v578, 2147483648
    %v587 = vmul.f32 %v579, 1.442695
    %v588 = vpow.pop %v587
    %v589 = vmul.f32 %v580, 1.442695
    %v590 = vpow.pop %v589
    %v591 = vmul.f32 %v581, 1.442695
    %v592 = vpow.pop %v591
    %v593 = vmul.f32 %v582, 1.442695
    %v594 = vpow.pop %v593
    %v595 = vmul.f32 %v583, 1.442695
    %v596 = vpow.pop %v595
    %v597 = vmul.f32 %v584, 1.442695
    %v598 = vpow.pop %v597
    %v599 = vmul.f32 %v585, 1.442695
    %v600 = vpow.pop %v599
    %v601 = vmul.f32 %v586, 1.442695
    %v602 = vpow.pop %v601
    %v603 = vadd.f32 %v588, 1.0
    %v604 = vadd.f32 %v590, 1.0
    %v605 = vadd.f32 %v592, 1.0
    %v606 = vadd.f32 %v594, 1.0
    %v607 = vadd.f32 %v596, 1.0
    %v608 = vadd.f32 %v598, 1.0
    %v609 = vadd.f32 %v600, 1.0
    %v610 = vadd.f32 %v602, 1.0
    %v611 = vrcp.pop %v603
    %v612 = vmul.f32 1.0, %v611
    %v613 = vrcp.pop %v604
    %v614 = vmul.f32 1.0, %v613
    %v615 = vrcp.pop %v605
    %v616 = vmul.f32 1.0, %v615
    %v617 = vrcp.pop %v606
    %v618 = vmul.f32 1.0, %v617
    %v619 = vrcp.pop %v607
    %v620 = vmul.f32 1.0, %v619
    %v621 = vrcp.pop %v608
    %v622 = vmul.f32 1.0, %v621
    %v623 = vrcp.pop %v609
    %v624 = vmul.f32 1.0, %v623
    %v625 = vrcp.pop %v610
    %v626 = vmul.f32 1.0, %v625
    %v628 = vrot.slane %v483, 1
    %v629 = vrot.slane %v483, 2
    %v630 = vrot.slane %v483, 3
    %v631 = vrot.slane %v483, 4
    %v632 = vrot.slane %v483, 5
    %v633 = vrot.slane %v483, 6
    %v634 = vrot.slane %v483, 7
    %v643 = vadd.f32 %v216, %v483
    %v644 = vadd.f32 %v222, %v628
    %v645 = vadd.f32 %v228, %v629
    %v646 = vadd.f32 %v234, %v630
    %v647 = vadd.f32 %v240, %v631
    %v648 = vadd.f32 %v246, %v632
    %v649 = vadd.f32 %v252, %v633
    %v650 = vadd.f32 %v258, %v634
    %v651 = vxor.u32 %v643, 2147483648
    %v652 = vxor.u32 %v644, 2147483648
    %v653 = vxor.u32 %v645, 2147483648
    %v654 = vxor.u32 %v646, 2147483648
    %v655 = vxor.u32 %v647, 2147483648
    %v656 = vxor.u32 %v648, 2147483648
    %v657 = vxor.u32 %v649, 2147483648
    %v658 = vxor.u32 %v650, 2147483648
    %v659 = vmul.f32 %v651, 1.442695
    %v660 = vpow.pop %v659
    %v661 = vmul.f32 %v652, 1.442695
    %v662 = vpow.pop %v661
    %v663 = vmul.f32 %v653, 1.442695
    %v664 = vpow.pop %v663
    %v665 = vmul.f32 %v654, 1.442695
    %v666 = vpow.pop %v665
    %v667 = vmul.f32 %v655, 1.442695
    %v668 = vpow.pop %v667
    %v669 = vmul.f32 %v656, 1.442695
    %v670 = vpow.pop %v669
    %v671 = vmul.f32 %v657, 1.442695
    %v672 = vpow.pop %v671
    %v673 = vmul.f32 %v658, 1.442695
    %v674 = vpow.pop %v673
    %v675 = vadd.f32 %v660, 1.0
    %v676 = vadd.f32 %v662, 1.0
    %v677 = vadd.f32 %v664, 1.0
    %v678 = vadd.f32 %v666, 1.0
    %v679 = vadd.f32 %v668, 1.0
    %v680 = vadd.f32 %v670, 1.0
    %v681 = vadd.f32 %v672, 1.0
    %v682 = vadd.f32 %v674, 1.0
    %v683 = vrcp.pop %v675
    %v684 = vmul.f32 1.0, %v683
    %v685 = vrcp.pop %v676
    %v686 = vmul.f32 1.0, %v685
    %v687 = vrcp.pop %v677
    %v688 = vmul.f32 1.0, %v687
    %v689 = vrcp.pop %v678
    %v690 = vmul.f32 1.0, %v689
    %v691 = vrcp.pop %v679
    %v692 = vmul.f32 1.0, %v691
    %v693 = vrcp.pop %v680
    %v694 = vmul.f32 1.0, %v693
    %v695 = vrcp.pop %v681
    %v696 = vmul.f32 1.0, %v695
    %v697 = vrcp.pop %v682
    %v698 = vmul.f32 1.0, %v697
    %v699 = vld [vmem:[%s6] sm:$0x1]
    %v701 = vlaneseq
    %v702 = vshrl.u32 %v701, 7
    %v703 = vsub.s32 0, %v702
    %v704 = vrot.slane %v699, %v703
    %v706 = vadd.f32 %v552, %v704
    %v708 = vrot.slane %v706, 1
    %v709 = vrot.slane %v706, 2
    %v710 = vrot.slane %v706, 3
    %v711 = vrot.slane %v706, 4
    %v712 = vrot.slane %v706, 5
    %v713 = vrot.slane %v706, 6
    %v714 = vrot.slane %v706, 7
    %v723 = vmul.f32 %v612, %v706
    %v724 = vmul.f32 %v614, %v708
    %v725 = vmul.f32 %v616, %v709
    %v726 = vmul.f32 %v618, %v710
    %v727 = vmul.f32 %v620, %v711
    %v728 = vmul.f32 %v622, %v712
    %v729 = vmul.f32 %v624, %v713
    %v730 = vmul.f32 %v626, %v714
    %v731 = vadd.f32 %v327, %v723
    %v732 = vadd.f32 %v332, %v724
    %v733 = vadd.f32 %v337, %v725
    %v734 = vadd.f32 %v342, %v726
    %v735 = vadd.f32 %v347, %v727
    %v736 = vadd.f32 %v352, %v728
    %v737 = vadd.f32 %v357, %v729
    %v738 = vadd.f32 %v362, %v730
    %v739 = vtanh.pop %v731
    %v740 = vtanh.pop %v732
    %v741 = vtanh.pop %v733
    %v742 = vtanh.pop %v734
    %v743 = vtanh.pop %v735
    %v744 = vtanh.pop %v736
    %v745 = vtanh.pop %v737
    %v746 = vtanh.pop %v738
    %v747 = vsub.f32 1.0, %v684
    %v748 = vsub.f32 1.0, %v686
    %v749 = vsub.f32 1.0, %v688
    %v750 = vsub.f32 1.0, %v690
    %v751 = vsub.f32 1.0, %v692
    %v752 = vsub.f32 1.0, %v694
    %v753 = vsub.f32 1.0, %v696
    %v754 = vsub.f32 1.0, %v698
    %v755 = vmul.f32 %v747, %v739
    %v756 = vmul.f32 %v748, %v740
    %v757 = vmul.f32 %v749, %v741
    %v758 = vmul.f32 %v750, %v742
    %v759 = vmul.f32 %v751, %v743
    %v760 = vmul.f32 %v752, %v744
    %v761 = vmul.f32 %v753, %v745
    %v762 = vmul.f32 %v754, %v746
    %v763 = vmul.f32 %v684, 0.0
    %v764 = vmul.f32 %v686, 0.0
    %v765 = vmul.f32 %v688, 0.0
    %v766 = vmul.f32 %v690, 0.0
    %v767 = vmul.f32 %v692, 0.0
    %v768 = vmul.f32 %v694, 0.0
    %v769 = vmul.f32 %v696, 0.0
    %v770 = vmul.f32 %v698, 0.0
    %v771 = vadd.f32 %v755, %v763
    %v772 = vadd.f32 %v756, %v764
    %v773 = vadd.f32 %v757, %v765
    %v774 = vadd.f32 %v758, %v766
    %v775 = vadd.f32 %v759, %v767
    %v776 = vadd.f32 %v760, %v768
    %v777 = vadd.f32 %v761, %v769
    %v778 = vadd.f32 %v762, %v770
    %v779 = vld [vmem:[%s1] sm:$0xff]
    %v781 = vrot.slane %v779, 1
    %v782 = vrot.slane %v779, 2
    %v783 = vrot.slane %v779, 3
    %v784 = vrot.slane %v779, 4
    %v785 = vrot.slane %v779, 5
    %v786 = vrot.slane %v779, 6
    %v787 = vrot.slane %v779, 7
    %v796 = vmul.f32 %v771, %v779
    %v797 = vmul.f32 %v772, %v781
    %v798 = vmul.f32 %v773, %v782
    %v799 = vmul.f32 %v774, %v783
    %v800 = vmul.f32 %v775, %v784
    %v801 = vmul.f32 %v776, %v785
    %v802 = vmul.f32 %v777, %v786
    %v803 = vmul.f32 %v778, %v787
    %v804 = vld [vmem:[#allocation4] sm:$0xff]
    %v805 = vld [vmem:[#allocation4 + $0x8] sm:$0xff]
    %v806 = vld [vmem:[#allocation4 + $0x10] sm:$0xff]
    %v807 = vld [vmem:[#allocation4 + $0x18] sm:$0xff]
    %v808 = vld [vmem:[#allocation4 + $0x20] sm:$0xff]
    %v809 = vld [vmem:[#allocation4 + $0x28] sm:$0xff]
    %v810 = vld [vmem:[#allocation4 + $0x30] sm:$0xff]
    %v811 = vld [vmem:[#allocation4 + $0x38] sm:$0xff]
    %v812 = vld [vmem:[#allocation4 + $0x40] sm:$0xff]
    %v813 = vld [vmem:[#allocation4 + $0x48] sm:$0xff]
    %v814 = vld [vmem:[#allocation4 + $0x50] sm:$0xff]
    %v815 = vld [vmem:[#allocation4 + $0x58] sm:$0xff]
    %v816 = vld [vmem:[#allocation4 + $0x60] sm:$0xff]
    %v817 = vld [vmem:[#allocation4 + $0x68] sm:$0xff]
    %v818 = vld [vmem:[#allocation4 + $0x70] sm:$0xff]
    %v819 = vld [vmem:[#allocation4 + $0x78] sm:$0xff]
    %v820 = vld [vmem:[#allocation4 + $0x80] sm:$0xff]
    %v821 = vld [vmem:[#allocation4 + $0x88] sm:$0xff]
    %v822 = vld [vmem:[#allocation4 + $0x90] sm:$0xff]
    %v823 = vld [vmem:[#allocation4 + $0x98] sm:$0xff]
    %v824 = vld [vmem:[#allocation4 + $0xa0] sm:$0xff]
    %v825 = vld [vmem:[#allocation4 + $0xa8] sm:$0xff]
    %v826 = vld [vmem:[#allocation4 + $0xb0] sm:$0xff]
    %v827 = vld [vmem:[#allocation4 + $0xb8] sm:$0xff]
    %v828 = vld [vmem:[#allocation4 + $0xc0] sm:$0xff]
    %v829 = vld [vmem:[#allocation4 + $0xc8] sm:$0xff]
    %v830 = vld [vmem:[#allocation4 + $0xd0] sm:$0xff]
    %v831 = vld [vmem:[#allocation4 + $0xd8] sm:$0xff]
    %v832 = vld [vmem:[#allocation4 + $0xe0] sm:$0xff]
    %v833 = vld [vmem:[#allocation4 + $0xe8] sm:$0xff]
    %v834 = vld [vmem:[#allocation4 + $0xf0] sm:$0xff]
    %v835 = vld [vmem:[#allocation4 + $0xf8] sm:$0xff]
    %v836 = vld [vmem:[#allocation4 + $0x100] sm:$0xff]
    %v837 = vld [vmem:[#allocation4 + $0x108] sm:$0xff]
    %v838 = vld [vmem:[#allocation4 + $0x110] sm:$0xff]
    %v839 = vld [vmem:[#allocation4 + $0x118] sm:$0xff]
    %v840 = vld [vmem:[#allocation4 + $0x120] sm:$0xff]
    %v841 = vld [vmem:[#allocation4 + $0x128] sm:$0xff]
    %v842 = vld [vmem:[#allocation4 + $0x130] sm:$0xff]
    %v843 = vld [vmem:[#allocation4 + $0x138] sm:$0xff]
    %v844 = vld [vmem:[#allocation4 + $0x140] sm:$0xff]
    %v845 = vld [vmem:[#allocation4 + $0x148] sm:$0xff]
    %v846 = vld [vmem:[#allocation4 + $0x150] sm:$0xff]
    %v847 = vld [vmem:[#allocation4 + $0x158] sm:$0xff]
    %v848 = vld [vmem:[#allocation4 + $0x160] sm:$0xff]
    %v849 = vld [vmem:[#allocation4 + $0x168] sm:$0xff]
    %v850 = vld [vmem:[#allocation4 + $0x170] sm:$0xff]
    %v851 = vld [vmem:[#allocation4 + $0x178] sm:$0xff]
    %v852 = vld [vmem:[%s9] sm:$0x7]
    %v854 = vlaneseq
    %v855 = vshrl.u32 %v854, 7
    %v856 = vsub.s32 0, %v855
    %v857 = vrot.slane %v852, %v856
    %v858 = vlaneseq
    %v859 = vshrl.u32 %v858, 7
    %v860 = vsub.s32 1, %v859
    %v861 = vrot.slane %v852, %v860
    %v862 = vlaneseq
    %v863 = vshrl.u32 %v862, 7
    %v864 = vsub.s32 2, %v863
    %v865 = vrot.slane %v852, %v864
    %v877 = vrot.slane %v797, 7
    %vm878 = vcmask 1041409
    %v879 = vsel %vm878, %v877, %v796
    %v880 = vrot.slane %v798, 6
    %vm881 = vcmask 1042434
    %v882 = vsel %vm881, %v880, %v879
    %v883 = vrot.slane %v799, 5
    %vm884 = vcmask 1043459
    %v885 = vsel %vm884, %v883, %v882
    %v886 = vrot.slane %v800, 4
    %vm887 = vcmask 1044484
    %v888 = vsel %vm887, %v886, %v885
    %v889 = vrot.slane %v801, 3
    %vm890 = vcmask 1045509
    %v891 = vsel %vm890, %v889, %v888
    %v892 = vrot.slane %v802, 2
    %vm893 = vcmask 1046534
    %v894 = vsel %vm893, %v892, %v891
    %v895 = vrot.slane %v803, 1
    %vm896 = vcmask 1047559
    %v897 = vsel %vm896, %v895, %v894
    %899 = vmatprep.subr.mxu0 %v850
    %900 = vmatpush1.msra.mxu0 %v849
    %901 = vmatprep.subr.mxu0 %v847
    %902 = vmatpush1.msra.mxu0 %v846
    %903 = vmatprep.subr.mxu0 %v844
    %904 = vmatpush1.msra.mxu0 %v843
    %905 = vmatprep.subr.mxu0 %v841
    %906 = vmatpush1.msra.mxu0 %v840
    %907 = vmatprep.subr.mxu0 %v838
    %908 = vmatpush1.msra.mxu0 %v837
    %909 = vmatprep.subr.mxu0 %v835
    %910 = vmatpush1.msra.mxu0 %v834
    %911 = vmatprep.subr.mxu0 %v832
    %912 = vmatpush1.msra.mxu0 %v831
    %913 = vmatprep.subr.mxu0 %v829
    %914 = vmatpush1.msra.mxu0 %v828
    %915 = vmatprep.subr.mxu0 %v826
    %916 = vmatpush1.msra.mxu0 %v825
    %917 = vmatprep.subr.mxu0 %v823
    %918 = vmatpush1.msra.mxu0 %v822
    %919 = vmatprep.subr.mxu0 %v820
    %920 = vmatpush1.msra.mxu0 %v819
    %921 = vmatprep.subr.mxu0 %v817
    %922 = vmatpush1.msra.mxu0 %v816
    %923 = vmatprep.subr.mxu0 %v814
    %924 = vmatpush1.msra.mxu0 %v813
    %925 = vmatprep.subr.mxu0 %v811
    %926 = vmatpush1.msra.mxu0 %v810
    %927 = vmatprep.subr.mxu0 %v808
    %928 = vmatpush1.msra.mxu0 %v807
    %929 = vmatprep.subr.mxu0 %v805
    %930 = vmatpush1.msra.mxu0 %v804
    %931 = vmatprep.subr.mxu0 0.0
    %932 = vmatpush2.msra.mxu0 0.0
    %933 = vmatprep.subr.mxu0 0.0
    %934 = vmatpush2.msra.mxu0 0.0
    %935 = vmatprep.subr.mxu0 0.0
    %936 = vmatpush2.msra.mxu0 0.0
    %937 = vmatprep.subr.mxu0 0.0
    %938 = vmatpush2.msra.mxu0 0.0
    %939 = vmatprep.subr.mxu0 0.0
    %940 = vmatpush2.msra.mxu0 0.0
    %941 = vmatprep.subr.mxu0 0.0
    %942 = vmatpush2.msra.mxu0 0.0
    %943 = vmatprep.subr.mxu0 0.0
    %944 = vmatpush2.msra.mxu0 0.0
    %945 = vmatprep.subr.mxu0 0.0
    %946 = vmatpush2.msra.mxu0 0.0
    %947 = vmatprep.subr.mxu0 0.0
    %948 = vmatpush2.msra.mxu0 0.0
    %949 = vmatprep.subr.mxu0 0.0
    %950 = vmatpush2.msra.mxu0 0.0
    %951 = vmatprep.subr.mxu0 0.0
    %952 = vmatpush2.msra.mxu0 0.0
    %953 = vmatprep.subr.mxu0 0.0
    %954 = vmatpush2.msra.mxu0 0.0
    %955 = vmatprep.subr.mxu0 0.0
    %956 = vmatpush2.msra.mxu0 0.0
    %957 = vmatprep.subr.mxu0 0.0
    %958 = vmatpush2.msra.mxu0 0.0
    %959 = vmatprep.subr.mxu0 0.0
    %960 = vmatpush2.msra.mxu0 0.0
    %961 = vmatprep.subr.mxu0 0.0
    %962 = vmatpush2.msra.mxu0 0.0
    %963 = vmatprep.mubr.f32.mxu0 0.0
    %964 = vmatmul.mubr.f32.gmra.mxu0 %v897
    %v965 = vpop.f32.mrf.mxu0
    %v966 = vadd.f32 %v857, %v965
    %v967 = vpop.f32.mrf.mxu0
    %v968 = vadd.f32 %v861, %v967
    %969 = vdwg.mxu0
    %970 = vmatprep.subr.mxu0 0.0
    %971 = vmatpush1.msra.mxu0 %v851
    %972 = vmatprep.subr.mxu0 0.0
    %973 = vmatpush1.msra.mxu0 %v848
    %974 = vmatprep.subr.mxu0 0.0
    %975 = vmatpush1.msra.mxu0 %v845
    %976 = vmatprep.subr.mxu0 0.0
    %977 = vmatpush1.msra.mxu0 %v842
    %978 = vmatprep.subr.mxu0 0.0
    %979 = vmatpush1.msra.mxu0 %v839
    %980 = vmatprep.subr.mxu0 0.0
    %981 = vmatpush1.msra.mxu0 %v836
    %982 = vmatprep.subr.mxu0 0.0
    %983 = vmatpush1.msra.mxu0 %v833
    %984 = vmatprep.subr.mxu0 0.0
    %985 = vmatpush1.msra.mxu0 %v830
    %986 = vmatprep.subr.mxu0 0.0
    %987 = vmatpush1.msra.mxu0 %v827
    %988 = vmatprep.subr.mxu0 0.0
    %989 = vmatpush1.msra.mxu0 %v824
    %990 = vmatprep.subr.mxu0 0.0
    %991 = vmatpush1.msra.mxu0 %v821
    %992 = vmatprep.subr.mxu0 0.0
    %993 = vmatpush1.msra.mxu0 %v818
    %994 = vmatprep.subr.mxu0 0.0
    %995 = vmatpush1.msra.mxu0 %v815
    %996 = vmatprep.subr.mxu0 0.0
    %997 = vmatpush1.msra.mxu0 %v812
    %998 = vmatprep.subr.mxu0 0.0
    %999 = vmatpush1.msra.mxu0 %v809
    %1000 = vmatprep.subr.mxu0 0.0
    %1001 = vmatpush1.msra.mxu0 %v806
    %1002 = vmatprep.subr.mxu0 0.0
    %1003 = vmatpush2.msra.mxu0 0.0
    %1004 = vmatprep.subr.mxu0 0.0
    %1005 = vmatpush2.msra.mxu0 0.0
    %1006 = vmatprep.subr.mxu0 0.0
    %1007 = vmatpush2.msra.mxu0 0.0
    %1008 = vmatprep.subr.mxu0 0.0
    %1009 = vmatpush2.msra.mxu0 0.0
    %1010 = vmatprep.subr.mxu0 0.0
    %1011 = vmatpush2.msra.mxu0 0.0
    %1012 = vmatprep.subr.mxu0 0.0
    %1013 = vmatpush2.msra.mxu0 0.0
    %1014 = vmatprep.subr.mxu0 0.0
    %1015 = vmatpush2.msra.mxu0 0.0
    %1016 = vmatprep.subr.mxu0 0.0
    %1017 = vmatpush2.msra.mxu0 0.0
    %1018 = vmatprep.subr.mxu0 0.0
    %1019 = vmatpush2.msra.mxu0 0.0
    %1020 = vmatprep.subr.mxu0 0.0
    %1021 = vmatpush2.msra.mxu0 0.0
    %1022 = vmatprep.subr.mxu0 0.0
    %1023 = vmatpush2.msra.mxu0 0.0
    %1024 = vmatprep.subr.mxu0 0.0
    %1025 = vmatpush2.msra.mxu0 0.0
    %1026 = vmatprep.subr.mxu0 0.0
    %1027 = vmatpush2.msra.mxu0 0.0
    %1028 = vmatprep.subr.mxu0 0.0
    %1029 = vmatpush2.msra.mxu0 0.0
    %1030 = vmatprep.subr.mxu0 0.0
    %1031 = vmatpush2.msra.mxu0 0.0
    %1032 = vmatprep.subr.mxu0 0.0
    %1033 = vmatpush2.msra.mxu0 0.0
    %1034 = vmatprep.mubr.f32.mxu0 0.0
    %1035 = vmatmul.mubr.f32.gmra.mxu0 %v897
    %v1036 = vpop.f32.mrf.mxu0
    %v1037 = vadd.f32 %v865, %v1036
    %v1038 = vpop.f32.mrf.mxu0
    %1039 = vdwg.mxu0
    %v1040 = vld [vmem:[#allocation6] sm:$0xff]
    %v1041 = vld [vmem:[#allocation6 + $0x8] sm:$0xff]
    %v1042 = vld [vmem:[#allocation6 + $0x10] sm:$0xff]
    %v1043 = vld [vmem:[#allocation6 + $0x18] sm:$0xff]
    %v1044 = vld [vmem:[#allocation6 + $0x20] sm:$0xff]
    %v1045 = vld [vmem:[#allocation6 + $0x28] sm:$0xff]
    %v1046 = vld [vmem:[#allocation6 + $0x30] sm:$0xff]
    %v1047 = vld [vmem:[#allocation6 + $0x38] sm:$0xff]
    %v1048 = vld [vmem:[#allocation6 + $0x40] sm:$0xff]
    %v1049 = vld [vmem:[#allocation6 + $0x48] sm:$0xff]
    %v1050 = vld [vmem:[#allocation6 + $0x50] sm:$0xff]
    %v1051 = vld [vmem:[#allocation6 + $0x58] sm:$0xff]
    %v1052 = vld [vmem:[#allocation6 + $0x60] sm:$0xff]
    %v1053 = vld [vmem:[#allocation6 + $0x68] sm:$0xff]
    %v1054 = vld [vmem:[#allocation6 + $0x70] sm:$0xff]
    %v1055 = vld [vmem:[#allocation6 + $0x78] sm:$0xff]
    %v1056 = vld [vmem:[#allocation6 + $0x80] sm:$0xff]
    %v1057 = vld [vmem:[#allocation6 + $0x88] sm:$0xff]
    %v1058 = vld [vmem:[#allocation6 + $0x90] sm:$0xff]
    %v1059 = vld [vmem:[#allocation6 + $0x98] sm:$0xff]
    %v1060 = vld [vmem:[#allocation6 + $0xa0] sm:$0xff]
    %v1061 = vld [vmem:[#allocation6 + $0xa8] sm:$0xff]
    %v1062 = vld [vmem:[#allocation6 + $0xb0] sm:$0xff]
    %v1063 = vld [vmem:[#allocation6 + $0xb8] sm:$0xff]
    %v1064 = vld [vmem:[#allocation6 + $0xc0] sm:$0xff]
    %v1065 = vld [vmem:[#allocation6 + $0xc8] sm:$0xff]
    %v1066 = vld [vmem:[#allocation6 + $0xd0] sm:$0xff]
    %v1067 = vld [vmem:[#allocation6 + $0xd8] sm:$0xff]
    %v1068 = vld [vmem:[#allocation6 + $0xe0] sm:$0xff]
    %v1069 = vld [vmem:[#allocation6 + $0xe8] sm:$0xff]
    %v1070 = vld [vmem:[#allocation6 + $0xf0] sm:$0xff]
    %v1071 = vld [vmem:[#allocation6 + $0xf8] sm:$0xff]
    %v1072 = vld [vmem:[#allocation6 + $0x100] sm:$0xff]
    %v1073 = vld [vmem:[#allocation6 + $0x108] sm:$0xff]
    %v1074 = vld [vmem:[#allocation6 + $0x110] sm:$0xff]
    %v1075 = vld [vmem:[#allocation6 + $0x118] sm:$0xff]
    %v1076 = vld [vmem:[#allocation6 + $0x120] sm:$0xff]
    %v1077 = vld [vmem:[#allocation6 + $0x128] sm:$0xff]
    %v1078 = vld [vmem:[#allocation6 + $0x130] sm:$0xff]
    %v1079 = vld [vmem:[#allocation6 + $0x138] sm:$0xff]
    %v1080 = vld [vmem:[#allocation6 + $0x140] sm:$0xff]
    %v1081 = vld [vmem:[#allocation6 + $0x148] sm:$0xff]
    %v1082 = vld [vmem:[#allocation6 + $0x150] sm:$0xff]
    %v1083 = vld [vmem:[#allocation6 + $0x158] sm:$0xff]
    %v1084 = vld [vmem:[#allocation6 + $0x160] sm:$0xff]
    %v1085 = vld [vmem:[#allocation6 + $0x168] sm:$0xff]
    %v1086 = vld [vmem:[#allocation6 + $0x170] sm:$0xff]
    %v1087 = vld [vmem:[#allocation6 + $0x178] sm:$0xff]
    %1088 = vmatprep.subr.mxu0 %v1086
    %1089 = vmatpush1.msra.mxu0 %v1085
    %1090 = vmatprep.subr.mxu0 %v1083
    %1091 = vmatpush1.msra.mxu0 %v1082
    %1092 = vmatprep.subr.mxu0 %v1080
    %1093 = vmatpush1.msra.mxu0 %v1079
    %1094 = vmatprep.subr.mxu0 %v1077
    %1095 = vmatpush1.msra.mxu0 %v1076
    %1096 = vmatprep.subr.mxu0 %v1074
    %1097 = vmatpush1.msra.mxu0 %v1073
    %1098 = vmatprep.subr.mxu0 %v1071
    %1099 = vmatpush1.msra.mxu0 %v1070
    %1100 = vmatprep.subr.mxu0 %v1068
    %1101 = vmatpush1.msra.mxu0 %v1067
    %1102 = vmatprep.subr.mxu0 %v1065
    %1103 = vmatpush1.msra.mxu0 %v1064
    %1104 = vmatprep.subr.mxu0 %v1062
    %1105 = vmatpush1.msra.mxu0 %v1061
    %1106 = vmatprep.subr.mxu0 %v1059
    %1107 = vmatpush1.msra.mxu0 %v1058
    %1108 = vmatprep.subr.mxu0 %v1056
    %1109 = vmatpush1.msra.mxu0 %v1055
    %1110 = vmatprep.subr.mxu0 %v1053
    %1111 = vmatpush1.msra.mxu0 %v1052
    %1112 = vmatprep.subr.mxu0 %v1050
    %1113 = vmatpush1.msra.mxu0 %v1049
    %1114 = vmatprep.subr.mxu0 %v1047
    %1115 = vmatpush1.msra.mxu0 %v1046
    %1116 = vmatprep.subr.mxu0 %v1044
    %1117 = vmatpush1.msra.mxu0 %v1043
    %1118 = vmatprep.subr.mxu0 %v1041
    %1119 = vmatpush1.msra.mxu0 %v1040
    %1120 = vmatprep.subr.mxu0 0.0
    %1121 = vmatpush2.msra.mxu0 0.0
    %1122 = vmatprep.subr.mxu0 0.0
    %1123 = vmatpush2.msra.mxu0 0.0
    %1124 = vmatprep.subr.mxu0 0.0
    %1125 = vmatpush2.msra.mxu0 0.0
    %1126 = vmatprep.subr.mxu0 0.0
    %1127 = vmatpush2.msra.mxu0 0.0
    %1128 = vmatprep.subr.mxu0 0.0
    %1129 = vmatpush2.msra.mxu0 0.0
    %1130 = vmatprep.subr.mxu0 0.0
    %1131 = vmatpush2.msra.mxu0 0.0
    %1132 = vmatprep.subr.mxu0 0.0
    %1133 = vmatpush2.msra.mxu0 0.0
    %1134 = vmatprep.subr.mxu0 0.0
    %1135 = vmatpush2.msra.mxu0 0.0
    %1136 = vmatprep.subr.mxu0 0.0
    %1137 = vmatpush2.msra.mxu0 0.0
    %1138 = vmatprep.subr.mxu0 0.0
    %1139 = vmatpush2.msra.mxu0 0.0
    %1140 = vmatprep.subr.mxu0 0.0
    %1141 = vmatpush2.msra.mxu0 0.0
    %1142 = vmatprep.subr.mxu0 0.0
    %1143 = vmatpush2.msra.mxu0 0.0
    %1144 = vmatprep.subr.mxu0 0.0
    %1145 = vmatpush2.msra.mxu0 0.0
    %1146 = vmatprep.subr.mxu0 0.0
    %1147 = vmatpush2.msra.mxu0 0.0
    %1148 = vmatprep.subr.mxu0 0.0
    %1149 = vmatpush2.msra.mxu0 0.0
    %1150 = vmatprep.subr.mxu0 0.0
    %1151 = vmatpush2.msra.mxu0 0.0
    %1152 = vmatprep.mubr.f32.mxu0 0.0
    %1153 = vmatmul.mubr.f32.gmra.mxu0 0.0
    %v1154 = vpop.f32.mrf.mxu0
    %v1155 = vadd.f32 0.0, %v1154
    %v1156 = vpop.f32.mrf.mxu0
    %v1157 = vadd.f32 0.0, %v1156
    %1158 = vdwg.mxu0
    %1159 = vmatprep.subr.mxu0 0.0
    %1160 = vmatpush1.msra.mxu0 %v1087
    %1161 = vmatprep.subr.mxu0 0.0
    %1162 = vmatpush1.msra.mxu0 %v1084
    %1163 = vmatprep.subr.mxu0 0.0
    %1164 = vmatpush1.msra.mxu0 %v1081
    %1165 = vmatprep.subr.mxu0 0.0
    %1166 = vmatpush1.msra.mxu0 %v1078
    %1167 = vmatprep.subr.mxu0 0.0
    %1168 = vmatpush1.msra.mxu0 %v1075
    %1169 = vmatprep.subr.mxu0 0.0
    %1170 = vmatpush1.msra.mxu0 %v1072
    %1171 = vmatprep.subr.mxu0 0.0
    %1172 = vmatpush1.msra.mxu0 %v1069
    %1173 = vmatprep.subr.mxu0 0.0
    %1174 = vmatpush1.msra.mxu0 %v1066
    %1175 = vmatprep.subr.mxu0 0.0
    %1176 = vmatpush1.msra.mxu0 %v1063
    %1177 = vmatprep.subr.mxu0 0.0
    %1178 = vmatpush1.msra.mxu0 %v1060
    %1179 = vmatprep.subr.mxu0 0.0
    %1180 = vmatpush1.msra.mxu0 %v1057
    %1181 = vmatprep.subr.mxu0 0.0
    %1182 = vmatpush1.msra.mxu0 %v1054
    %1183 = vmatprep.subr.mxu0 0.0
    %1184 = vmatpush1.msra.mxu0 %v1051
    %1185 = vmatprep.subr.mxu0 0.0
    %1186 = vmatpush1.msra.mxu0 %v1048
    %1187 = vmatprep.subr.mxu0 0.0
    %1188 = vmatpush1.msra.mxu0 %v1045
    %1189 = vmatprep.subr.mxu0 0.0
    %1190 = vmatpush1.msra.mxu0 %v1042
    %1191 = vmatprep.subr.mxu0 0.0
    %1192 = vmatpush2.msra.mxu0 0.0
    %1193 = vmatprep.subr.mxu0 0.0
    %1194 = vmatpush2.msra.mxu0 0.0
    %1195 = vmatprep.subr.mxu0 0.0
    %1196 = vmatpush2.msra.mxu0 0.0
    %1197 = vmatprep.subr.mxu0 0.0
    %1198 = vmatpush2.msra.mxu0 0.0
    %1199 = vmatprep.subr.mxu0 0.0
    %1200 = vmatpush2.msra.mxu0 0.0
    %1201 = vmatprep.subr.mxu0 0.0
    %1202 = vmatpush2.msra.mxu0 0.0
    %1203 = vmatprep.subr.mxu0 0.0
    %1204 = vmatpush2.msra.mxu0 0.0
    %1205 = vmatprep.subr.mxu0 0.0
    %1206 = vmatpush2.msra.mxu0 0.0
    %1207 = vmatprep.subr.mxu0 0.0
    %1208 = vmatpush2.msra.mxu0 0.0
    %1209 = vmatprep.subr.mxu0 0.0
    %1210 = vmatpush2.msra.mxu0 0.0
    %1211 = vmatprep.subr.mxu0 0.0
    %1212 = vmatpush2.msra.mxu0 0.0
    %1213 = vmatprep.subr.mxu0 0.0
    %1214 = vmatpush2.msra.mxu0 0.0
    %1215 = vmatprep.subr.mxu0 0.0
    %1216 = vmatpush2.msra.mxu0 0.0
    %1217 = vmatprep.subr.mxu0 0.0
    %1218 = vmatpush2.msra.mxu0 0.0
    %1219 = vmatprep.subr.mxu0 0.0
    %1220 = vmatpush2.msra.mxu0 0.0
    %1221 = vmatprep.subr.mxu0 0.0
    %1222 = vmatpush2.msra.mxu0 0.0
    %1223 = vmatprep.mubr.f32.mxu0 0.0
    %1224 = vmatmul.mubr.f32.gmra.mxu0 0.0
    %v1225 = vpop.f32.mrf.mxu0
    %v1226 = vadd.f32 0.0, %v1225
    %v1227 = vpop.f32.mrf.mxu0
    %1228 = vdwg.mxu0
    %v1229 = vadd.f32 %v966, %v1155
    %v1230 = vxor.u32 %v1229, 2147483648
    %v1231 = vmul.f32 %v1230, 1.442695
    %v1232 = vpow.pop %v1231
    %v1233 = vadd.f32 %v1232, 1.0
    %v1234 = vrcp.pop %v1233
    %v1235 = vmul.f32 1.0, %v1234
    %v1236 = vadd.f32 %v968, %v1157
    %v1237 = vxor.u32 %v1236, 2147483648
    %v1238 = vmul.f32 %v1237, 1.442695
    %v1239 = vpow.pop %v1238
    %v1240 = vadd.f32 %v1239, 1.0
    %v1241 = vrcp.pop %v1240
    %v1242 = vmul.f32 1.0, %v1241
    %v1243 = vld [vmem:[%s10] sm:$0x1]
    %v1245 = vlaneseq
    %v1246 = vshrl.u32 %v1245, 7
    %v1247 = vsub.s32 0, %v1246
    %v1248 = vrot.slane %v1243, %v1247
    %v1250 = vadd.f32 %v1226, %v1248
    %v1251 = vmul.f32 %v1235, %v1250
    %v1252 = vadd.f32 %v1037, %v1251
    %v1253 = vtanh.pop %v1252
    %v1254 = vsub.f32 1.0, %v1242
    %v1255 = vmul.f32 %v1254, %v1253
    %v1256 = vmul.f32 %v1242, 0.0
    %v1257 = vadd.f32 %v1255, %v1256
    %v1258 = vsub.s32 %v365, 1
    %vm1259 = vcmp.eq.s32.totalorder %v1258, 0
    %v1260 = vsel %vm1259, 1, 0
    %1261 = vset.pattern.permute.xlu0 0
    %1262 = vperm.xlu0 %1261, %v1260
    %v1263 = vpop.permute.xlu0 %1262
    %vm1264 = vcmp.eq.s32.totalorder %v1263, 1
    %v1265 = vsel %vm1264, %v1257, 0.0
    %v1274 = vrot.slane %v772, 7
    %v1275 = vsel %vm878, %v1274, %v771
    %v1276 = vrot.slane %v773, 6
    %v1277 = vsel %vm881, %v1276, %v1275
    %v1278 = vrot.slane %v774, 5
    %v1279 = vsel %vm884, %v1278, %v1277
    %v1280 = vrot.slane %v775, 4
    %v1281 = vsel %vm887, %v1280, %v1279
    %v1282 = vrot.slane %v776, 3
    %v1283 = vsel %vm890, %v1282, %v1281
    %v1284 = vrot.slane %v777, 2
    %v1285 = vsel %vm893, %v1284, %v1283
    %v1286 = vrot.slane %v778, 1
    %v1287 = vsel %vm896, %v1286, %v1285
    %1289 = vmatprep.subr.mxu0 %v412
    %1290 = vmatpush1.msra.mxu0 %v411
    %1291 = vmatprep.subr.mxu0 %v409
    %1292 = vmatpush1.msra.mxu0 %v408
    %1293 = vmatprep.subr.mxu0 %v406
    %1294 = vmatpush1.msra.mxu0 %v405
    %1295 = vmatprep.subr.mxu0 %v403
    %1296 = vmatpush1.msra.mxu0 %v402
    %1297 = vmatprep.subr.mxu0 %v400
    %1298 = vmatpush1.msra.mxu0 %v399
    %1299 = vmatprep.subr.mxu0 %v397
    %1300 = vmatpush1.msra.mxu0 %v396
    %1301 = vmatprep.subr.mxu0 %v394
    %1302 = vmatpush1.msra.mxu0 %v393
    %1303 = vmatprep.subr.mxu0 %v391
    %1304 = vmatpush1.msra.mxu0 %v390
    %1305 = vmatprep.subr.mxu0 %v388
    %1306 = vmatpush1.msra.mxu0 %v387
    %1307 = vmatprep.subr.mxu0 %v385
    %1308 = vmatpush1.msra.mxu0 %v384
    %1309 = vmatprep.subr.mxu0 %v382
    %1310 = vmatpush1.msra.mxu0 %v381
    %1311 = vmatprep.subr.mxu0 %v379
    %1312 = vmatpush1.msra.mxu0 %v378
    %1313 = vmatprep.subr.mxu0 %v376
    %1314 = vmatpush1.msra.mxu0 %v375
    %1315 = vmatprep.subr.mxu0 %v373
    %1316 = vmatpush1.msra.mxu0 %v372
    %1317 = vmatprep.subr.mxu0 %v370
    %1318 = vmatpush1.msra.mxu0 %v369
    %1319 = vmatprep.subr.mxu0 %v367
    %1320 = vmatpush1.msra.mxu0 %v366
    %1321 = vmatprep.subr.mxu0 0.0
    %1322 = vmatpush2.msra.mxu0 0.0
    %1323 = vmatprep.subr.mxu0 0.0
    %1324 = vmatpush2.msra.mxu0 0.0
    %1325 = vmatprep.subr.mxu0 0.0
    %1326 = vmatpush2.msra.mxu0 0.0
    %1327 = vmatprep.subr.mxu0 0.0
    %1328 = vmatpush2.msra.mxu0 0.0
    %1329 = vmatprep.subr.mxu0 0.0
    %1330 = vmatpush2.msra.mxu0 0.0
    %1331 = vmatprep.subr.mxu0 0.0
    %1332 = vmatpush2.msra.mxu0 0.0
    %1333 = vmatprep.subr.mxu0 0.0
    %1334 = vmatpush2.msra.mxu0 0.0
    %1335 = vmatprep.subr.mxu0 0.0
    %1336 = vmatpush2.msra.mxu0 0.0
    %1337 = vmatprep.subr.mxu0 0.0
    %1338 = vmatpush2.msra.mxu0 0.0
    %1339 = vmatprep.subr.mxu0 0.0
    %1340 = vmatpush2.msra.mxu0 0.0
    %1341 = vmatprep.subr.mxu0 0.0
    %1342 = vmatpush2.msra.mxu0 0.0
    %1343 = vmatprep.subr.mxu0 0.0
    %1344 = vmatpush2.msra.mxu0 0.0
    %1345 = vmatprep.subr.mxu0 0.0
    %1346 = vmatpush2.msra.mxu0 0.0
    %1347 = vmatprep.subr.mxu0 0.0
    %1348 = vmatpush2.msra.mxu0 0.0
    %1349 = vmatprep.subr.mxu0 0.0
    %1350 = vmatpush2.msra.mxu0 0.0
    %1351 = vmatprep.subr.mxu0 0.0
    %1352 = vmatpush2.msra.mxu0 0.0
    %1353 = vmatprep.mubr.f32.mxu0 0.0
    %1354 = vmatmul.mubr.f32.gmra.mxu0 %v1287
    %v1355 = vpop.f32.mrf.mxu0
    %v1356 = vadd.f32 0.0, %v1355
    %v1357 = vpop.f32.mrf.mxu0
    %v1358 = vadd.f32 0.0, %v1357
    %1359 = vdwg.mxu0
    %1360 = vmatprep.subr.mxu0 0.0
    %1361 = vmatpush1.msra.mxu0 %v413
    %1362 = vmatprep.subr.mxu0 0.0
    %1363 = vmatpush1.msra.mxu0 %v410
    %1364 = vmatprep.subr.mxu0 0.0
    %1365 = vmatpush1.msra.mxu0 %v407
    %1366 = vmatprep.subr.mxu0 0.0
    %1367 = vmatpush1.msra.mxu0 %v404
    %1368 = vmatprep.subr.mxu0 0.0
    %1369 = vmatpush1.msra.mxu0 %v401
    %1370 = vmatprep.subr.mxu0 0.0
    %1371 = vmatpush1.msra.mxu0 %v398
    %1372 = vmatprep.subr.mxu0 0.0
    %1373 = vmatpush1.msra.mxu0 %v395
    %1374 = vmatprep.subr.mxu0 0.0
    %1375 = vmatpush1.msra.mxu0 %v392
    %1376 = vmatprep.subr.mxu0 0.0
    %1377 = vmatpush1.msra.mxu0 %v389
    %1378 = vmatprep.subr.mxu0 0.0
    %1379 = vmatpush1.msra.mxu0 %v386
    %1380 = vmatprep.subr.mxu0 0.0
    %1381 = vmatpush1.msra.mxu0 %v383
    %1382 = vmatprep.subr.mxu0 0.0
    %1383 = vmatpush1.msra.mxu0 %v380
    %1384 = vmatprep.subr.mxu0 0.0
    %1385 = vmatpush1.msra.mxu0 %v377
    %1386 = vmatprep.subr.mxu0 0.0
    %1387 = vmatpush1.msra.mxu0 %v374
    %1388 = vmatprep.subr.mxu0 0.0
    %1389 = vmatpush1.msra.mxu0 %v371
    %1390 = vmatprep.subr.mxu0 0.0
    %1391 = vmatpush1.msra.mxu0 %v368
    %1392 = vmatprep.subr.mxu0 0.0
    %1393 = vmatpush2.msra.mxu0 0.0
    %1394 = vmatprep.subr.mxu0 0.0
    %1395 = vmatpush2.msra.mxu0 0.0
    %1396 = vmatprep.subr.mxu0 0.0
    %1397 = vmatpush2.msra.mxu0 0.0
    %1398 = vmatprep.subr.mxu0 0.0
    %1399 = vmatpush2.msra.mxu0 0.0
    %1400 = vmatprep.subr.mxu0 0.0
    %1401 = vmatpush2.msra.mxu0 0.0
    %1402 = vmatprep.subr.mxu0 0.0
    %1403 = vmatpush2.msra.mxu0 0.0
    %1404 = vmatprep.subr.mxu0 0.0
    %1405 = vmatpush2.msra.mxu0 0.0
    %1406 = vmatprep.subr.mxu0 0.0
    %1407 = vmatpush2.msra.mxu0 0.0
    %1408 = vmatprep.subr.mxu0 0.0
    %1409 = vmatpush2.msra.mxu0 0.0
    %1410 = vmatprep.subr.mxu0 0.0
    %1411 = vmatpush2.msra.mxu0 0.0
    %1412 = vmatprep.subr.mxu0 0.0
    %1413 = vmatpush2.msra.mxu0 0.0
    %1414 = vmatprep.subr.mxu0 0.0
    %1415 = vmatpush2.msra.mxu0 0.0
    %1416 = vmatprep.subr.mxu0 0.0
    %1417 = vmatpush2.msra.mxu0 0.0
    %1418 = vmatprep.subr.mxu0 0.0
    %1419 = vmatpush2.msra.mxu0 0.0
    %1420 = vmatprep.subr.mxu0 0.0
    %1421 = vmatpush2.msra.mxu0 0.0
    %1422 = vmatprep.subr.mxu0 0.0
    %1423 = vmatpush2.msra.mxu0 0.0
    %1424 = vmatprep.mubr.f32.mxu0 0.0
    %1425 = vmatmul.mubr.f32.gmra.mxu0 %v1287
    %v1426 = vpop.f32.mrf.mxu0
    %v1427 = vadd.f32 0.0, %v1426
    %v1428 = vpop.f32.mrf.mxu0
    %1429 = vdwg.mxu0
    %v1431 = vrot.slane %v1356, 7
    %v1432 = vrot.slane %v1356, 1
    %v1433 = vrot.slane %v1356, 2
    %v1434 = vrot.slane %v1356, 3
    %v1435 = vrot.slane %v1356, 4
    %v1436 = vrot.slane %v1356, 5
    %v1437 = vrot.slane %v1356, 6
    %v1446 = vadd.f32 %v214, %v1431
    %v1447 = vadd.f32 %v220, %v1356
    %v1448 = vadd.f32 %v226, %v1432
    %v1449 = vadd.f32 %v232, %v1433
    %v1450 = vadd.f32 %v238, %v1434
    %v1451 = vadd.f32 %v244, %v1435
    %v1452 = vadd.f32 %v250, %v1436
    %v1453 = vadd.f32 %v256, %v1437
    %v1454 = vxor.u32 %v1446, 2147483648
    %v1455 = vxor.u32 %v1447, 2147483648
    %v1456 = vxor.u32 %v1448, 2147483648
    %v1457 = vxor.u32 %v1449, 2147483648
    %v1458 = vxor.u32 %v1450, 2147483648
    %v1459 = vxor.u32 %v1451, 2147483648
    %v1460 = vxor.u32 %v1452, 2147483648
    %v1461 = vxor.u32 %v1453, 2147483648
    %v1462 = vmul.f32 %v1454, 1.442695
    %v1463 = vpow.pop %v1462
    %v1464 = vmul.f32 %v1455, 1.442695
    %v1465 = vpow.pop %v1464
    %v1466 = vmul.f32 %v1456, 1.442695
    %v1467 = vpow.pop %v1466
    %v1468 = vmul.f32 %v1457, 1.442695
    %v1469 = vpow.pop %v1468
    %v1470 = vmul.f32 %v1458, 1.442695
    %v1471 = vpow.pop %v1470
    %v1472 = vmul.f32 %v1459, 1.442695
    %v1473 = vpow.pop %v1472
    %v1474 = vmul.f32 %v1460, 1.442695
    %v1475 = vpow.pop %v1474
    %v1476 = vmul.f32 %v1461, 1.442695
    %v1477 = vpow.pop %v1476
    %v1478 = vadd.f32 %v1463, 1.0
    %v1479 = vadd.f32 %v1465, 1.0
    %v1480 = vadd.f32 %v1467, 1.0
    %v1481 = vadd.f32 %v1469, 1.0
    %v1482 = vadd.f32 %v1471, 1.0
    %v1483 = vadd.f32 %v1473, 1.0
    %v1484 = vadd.f32 %v1475, 1.0
    %v1485 = vadd.f32 %v1477, 1.0
    %v1486 = vrcp.pop %v1478
    %v1487 = vmul.f32 1.0, %v1486
    %v1488 = vrcp.pop %v1479
    %v1489 = vmul.f32 1.0, %v1488
    %v1490 = vrcp.pop %v1480
    %v1491 = vmul.f32 1.0, %v1490
    %v1492 = vrcp.pop %v1481
    %v1493 = vmul.f32 1.0, %v1492
    %v1494 = vrcp.pop %v1482
    %v1495 = vmul.f32 1.0, %v1494
    %v1496 = vrcp.pop %v1483
    %v1497 = vmul.f32 1.0, %v1496
    %v1498 = vrcp.pop %v1484
    %v1499 = vmul.f32 1.0, %v1498
    %v1500 = vrcp.pop %v1485
    %v1501 = vmul.f32 1.0, %v1500
    %v1503 = vrot.slane %v1358, 7
    %v1504 = vrot.slane %v1358, 1
    %v1505 = vrot.slane %v1358, 2
    %v1506 = vrot.slane %v1358, 3
    %v1507 = vrot.slane %v1358, 4
    %v1508 = vrot.slane %v1358, 5
    %v1509 = vrot.slane %v1358, 6
    %v1518 = vadd.f32 %v216, %v1503
    %v1519 = vadd.f32 %v222, %v1358
    %v1520 = vadd.f32 %v228, %v1504
    %v1521 = vadd.f32 %v234, %v1505
    %v1522 = vadd.f32 %v240, %v1506
    %v1523 = vadd.f32 %v246, %v1507
    %v1524 = vadd.f32 %v252, %v1508
    %v1525 = vadd.f32 %v258, %v1509
    %v1526 = vxor.u32 %v1518, 2147483648
    %v1527 = vxor.u32 %v1519, 2147483648
    %v1528 = vxor.u32 %v1520, 2147483648
    %v1529 = vxor.u32 %v1521, 2147483648
    %v1530 = vxor.u32 %v1522, 2147483648
    %v1531 = vxor.u32 %v1523, 2147483648
    %v1532 = vxor.u32 %v1524, 2147483648
    %v1533 = vxor.u32 %v1525, 2147483648
    %v1534 = vmul.f32 %v1526, 1.442695
    %v1535 = vpow.pop %v1534
    %v1536 = vmul.f32 %v1527, 1.442695
    %v1537 = vpow.pop %v1536
    %v1538 = vmul.f32 %v1528, 1.442695
    %v1539 = vpow.pop %v1538
    %v1540 = vmul.f32 %v1529, 1.442695
    %v1541 = vpow.pop %v1540
    %v1542 = vmul.f32 %v1530, 1.442695
    %v1543 = vpow.pop %v1542
    %v1544 = vmul.f32 %v1531, 1.442695
    %v1545 = vpow.pop %v1544
    %v1546 = vmul.f32 %v1532, 1.442695
    %v1547 = vpow.pop %v1546
    %v1548 = vmul.f32 %v1533, 1.442695
    %v1549 = vpow.pop %v1548
    %v1550 = vadd.f32 %v1535, 1.0
    %v1551 = vadd.f32 %v1537, 1.0
    %v1552 = vadd.f32 %v1539, 1.0
    %v1553 = vadd.f32 %v1541, 1.0
    %v1554 = vadd.f32 %v1543, 1.0
    %v1555 = vadd.f32 %v1545, 1.0
    %v1556 = vadd.f32 %v1547, 1.0
    %v1557 = vadd.f32 %v1549, 1.0
    %v1558 = vrcp.pop %v1550
    %v1559 = vmul.f32 1.0, %v1558
    %v1560 = vrcp.pop %v1551
    %v1561 = vmul.f32 1.0, %v1560
    %v1562 = vrcp.pop %v1552
    %v1563 = vmul.f32 1.0, %v1562
    %v1564 = vrcp.pop %v1553
    %v1565 = vmul.f32 1.0, %v1564
    %v1566 = vrcp.pop %v1554
    %v1567 = vmul.f32 1.0, %v1566
    %v1568 = vrcp.pop %v1555
    %v1569 = vmul.f32 1.0, %v1568
    %v1570 = vrcp.pop %v1556
    %v1571 = vmul.f32 1.0, %v1570
    %v1572 = vrcp.pop %v1557
    %v1573 = vmul.f32 1.0, %v1572
    %v1574 = vadd.f32 %v1427, %v704
    %v1576 = vrot.slane %v1574, 7
    %v1577 = vrot.slane %v1574, 1
    %v1578 = vrot.slane %v1574, 2
    %v1579 = vrot.slane %v1574, 3
    %v1580 = vrot.slane %v1574, 4
    %v1581 = vrot.slane %v1574, 5
    %v1582 = vrot.slane %v1574, 6
    %v1591 = vmul.f32 %v1487, %v1576
    %v1592 = vmul.f32 %v1489, %v1574
    %v1593 = vmul.f32 %v1491, %v1577
    %v1594 = vmul.f32 %v1493, %v1578
    %v1595 = vmul.f32 %v1495, %v1579
    %v1596 = vmul.f32 %v1497, %v1580
    %v1597 = vmul.f32 %v1499, %v1581
    %v1598 = vmul.f32 %v1501, %v1582
    %v1599 = vadd.f32 %v327, %v1591
    %v1600 = vadd.f32 %v332, %v1592
    %v1601 = vadd.f32 %v337, %v1593
    %v1602 = vadd.f32 %v342, %v1594
    %v1603 = vadd.f32 %v347, %v1595
    %v1604 = vadd.f32 %v352, %v1596
    %v1605 = vadd.f32 %v357, %v1597
    %v1606 = vadd.f32 %v362, %v1598
    %v1607 = vtanh.pop %v1599
    %v1608 = vtanh.pop %v1600
    %v1609 = vtanh.pop %v1601
    %v1610 = vtanh.pop %v1602
    %v1611 = vtanh.pop %v1603
    %v1612 = vtanh.pop %v1604
    %v1613 = vtanh.pop %v1605
    %v1614 = vtanh.pop %v1606
    %v1615 = vsub.f32 1.0, %v1559
    %v1616 = vsub.f32 1.0, %v1561
    %v1617 = vsub.f32 1.0, %v1563
    %v1618 = vsub.f32 1.0, %v1565
    %v1619 = vsub.f32 1.0, %v1567
    %v1620 = vsub.f32 1.0, %v1569
    %v1621 = vsub.f32 1.0, %v1571
    %v1622 = vsub.f32 1.0, %v1573
    %v1623 = vmul.f32 %v1615, %v1607
    %v1624 = vmul.f32 %v1616, %v1608
    %v1625 = vmul.f32 %v1617, %v1609
    %v1626 = vmul.f32 %v1618, %v1610
    %v1627 = vmul.f32 %v1619, %v1611
    %v1628 = vmul.f32 %v1620, %v1612
    %v1629 = vmul.f32 %v1621, %v1613
    %v1630 = vmul.f32 %v1622, %v1614
    %v1631 = vrot.slane %v771, 7
    %v1632 = vrot.slane %v773, 7
    %v1633 = vrot.slane %v774, 7
    %v1634 = vrot.slane %v775, 7
    %v1635 = vrot.slane %v776, 7
    %v1636 = vrot.slane %v777, 7
    %v1637 = vrot.slane %v778, 7
    %v1646 = vmul.f32 %v1559, %v1631
    %v1647 = vmul.f32 %v1561, %v1274
    %v1648 = vmul.f32 %v1563, %v1632
    %v1649 = vmul.f32 %v1565, %v1633
    %v1650 = vmul.f32 %v1567, %v1634
    %v1651 = vmul.f32 %v1569, %v1635
    %v1652 = vmul.f32 %v1571, %v1636
    %v1653 = vmul.f32 %v1573, %v1637
    %v1654 = vadd.f32 %v1623, %v1646
    %v1655 = vadd.f32 %v1624, %v1647
    %v1656 = vadd.f32 %v1625, %v1648
    %v1657 = vadd.f32 %v1626, %v1649
    %v1658 = vadd.f32 %v1627, %v1650
    %v1659 = vadd.f32 %v1628, %v1651
    %v1660 = vadd.f32 %v1629, %v1652
    %v1661 = vadd.f32 %v1630, %v1653
    %s1662 = scalar_lea.vmem %s1, 8
    %v1663 = vld [vmem:[%s1662] sm:$0xff]
    %v1665 = vrot.slane %v1663, 7
    %v1666 = vrot.slane %v1663, 1
    %v1667 = vrot.slane %v1663, 2
    %v1668 = vrot.slane %v1663, 3
    %v1669 = vrot.slane %v1663, 4
    %v1670 = vrot.slane %v1663, 5
    %v1671 = vrot.slane %v1663, 6
    %v1680 = vmul.f32 %v1654, %v1665
    %v1681 = vmul.f32 %v1655, %v1663
    %v1682 = vmul.f32 %v1656, %v1666
    %v1683 = vmul.f32 %v1657, %v1667
    %v1684 = vmul.f32 %v1658, %v1668
    %v1685 = vmul.f32 %v1659, %v1669
    %v1686 = vmul.f32 %v1660, %v1670
    %v1687 = vmul.f32 %v1661, %v1671
    %v1696 = vrot.slane %v1680, 1
    %v1697 = vsel %vm878, %v1681, %v1696
    %v1698 = vrot.slane %v1682, 7
    %v1699 = vsel %vm881, %v1698, %v1697
    %v1700 = vrot.slane %v1683, 6
    %v1701 = vsel %vm884, %v1700, %v1699
    %v1702 = vrot.slane %v1684, 5
    %v1703 = vsel %vm887, %v1702, %v1701
    %v1704 = vrot.slane %v1685, 4
    %v1705 = vsel %vm890, %v1704, %v1703
    %v1706 = vrot.slane %v1686, 3
    %v1707 = vsel %vm893, %v1706, %v1705
    %v1708 = vrot.slane %v1687, 2
    %v1709 = vsel %vm896, %v1708, %v1707
    %1711 = vmatprep.subr.mxu0 %v850
    %1712 = vmatpush1.msra.mxu0 %v849
    %1713 = vmatprep.subr.mxu0 %v847
    %1714 = vmatpush1.msra.mxu0 %v846
    %1715 = vmatprep.subr.mxu0 %v844
    %1716 = vmatpush1.msra.mxu0 %v843
    %1717 = vmatprep.subr.mxu0 %v841
    %1718 = vmatpush1.msra.mxu0 %v840
    %1719 = vmatprep.subr.mxu0 %v838
    %1720 = vmatpush1.msra.mxu0 %v837
    %1721 = vmatprep.subr.mxu0 %v835
    %1722 = vmatpush1.msra.mxu0 %v834
    %1723 = vmatprep.subr.mxu0 %v832
    %1724 = vmatpush1.msra.mxu0 %v831
    %1725 = vmatprep.subr.mxu0 %v829
    %1726 = vmatpush1.msra.mxu0 %v828
    %1727 = vmatprep.subr.mxu0 %v826
    %1728 = vmatpush1.msra.mxu0 %v825
    %1729 = vmatprep.subr.mxu0 %v823
    %1730 = vmatpush1.msra.mxu0 %v822
    %1731 = vmatprep.subr.mxu0 %v820
    %1732 = vmatpush1.msra.mxu0 %v819
    %1733 = vmatprep.subr.mxu0 %v817
    %1734 = vmatpush1.msra.mxu0 %v816
    %1735 = vmatprep.subr.mxu0 %v814
    %1736 = vmatpush1.msra.mxu0 %v813
    %1737 = vmatprep.subr.mxu0 %v811
    %1738 = vmatpush1.msra.mxu0 %v810
    %1739 = vmatprep.subr.mxu0 %v808
    %1740 = vmatpush1.msra.mxu0 %v807
    %1741 = vmatprep.subr.mxu0 %v805
    %1742 = vmatpush1.msra.mxu0 %v804
    %1743 = vmatprep.subr.mxu0 0.0
    %1744 = vmatpush2.msra.mxu0 0.0
    %1745 = vmatprep.subr.mxu0 0.0
    %1746 = vmatpush2.msra.mxu0 0.0
    %1747 = vmatprep.subr.mxu0 0.0
    %1748 = vmatpush2.msra.mxu0 0.0
    %1749 = vmatprep.subr.mxu0 0.0
    %1750 = vmatpush2.msra.mxu0 0.0
    %1751 = vmatprep.subr.mxu0 0.0
    %1752 = vmatpush2.msra.mxu0 0.0
    %1753 = vmatprep.subr.mxu0 0.0
    %1754 = vmatpush2.msra.mxu0 0.0
    %1755 = vmatprep.subr.mxu0 0.0
    %1756 = vmatpush2.msra.mxu0 0.0
    %1757 = vmatprep.subr.mxu0 0.0
    %1758 = vmatpush2.msra.mxu0 0.0
    %1759 = vmatprep.subr.mxu0 0.0
    %1760 = vmatpush2.msra.mxu0 0.0
    %1761 = vmatprep.subr.mxu0 0.0
    %1762 = vmatpush2.msra.mxu0 0.0
    %1763 = vmatprep.subr.mxu0 0.0
    %1764 = vmatpush2.msra.mxu0 0.0
    %1765 = vmatprep.subr.mxu0 0.0
    %1766 = vmatpush2.msra.mxu0 0.0
    %1767 = vmatprep.subr.mxu0 0.0
    %1768 = vmatpush2.msra.mxu0 0.0
    %1769 = vmatprep.subr.mxu0 0.0
    %1770 = vmatpush2.msra.mxu0 0.0
    %1771 = vmatprep.subr.mxu0 0.0
    %1772 = vmatpush2.msra.mxu0 0.0
    %1773 = vmatprep.subr.mxu0 0.0
    %1774 = vmatpush2.msra.mxu0 0.0
    %1775 = vmatprep.mubr.f32.mxu0 0.0
    %1776 = vmatmul.mubr.f32.gmra.mxu0 %v1709
    %v1777 = vpop.f32.mrf.mxu0
    %v1778 = vadd.f32 %v857, %v1777
    %v1779 = vpop.f32.mrf.mxu0
    %v1780 = vadd.f32 %v861, %v1779
    %1781 = vdwg.mxu0
    %1782 = vmatprep.subr.mxu0 0.0
    %1783 = vmatpush1.msra.mxu0 %v851
    %1784 = vmatprep.subr.mxu0 0.0
    %1785 = vmatpush1.msra.mxu0 %v848
    %1786 = vmatprep.subr.mxu0 0.0
    %1787 = vmatpush1.msra.mxu0 %v845
    %1788 = vmatprep.subr.mxu0 0.0
    %1789 = vmatpush1.msra.mxu0 %v842
    %1790 = vmatprep.subr.mxu0 0.0
    %1791 = vmatpush1.msra.mxu0 %v839
    %1792 = vmatprep.subr.mxu0 0.0
    %1793 = vmatpush1.msra.mxu0 %v836
    %1794 = vmatprep.subr.mxu0 0.0
    %1795 = vmatpush1.msra.mxu0 %v833
    %1796 = vmatprep.subr.mxu0 0.0
    %1797 = vmatpush1.msra.mxu0 %v830
    %1798 = vmatprep.subr.mxu0 0.0
    %1799 = vmatpush1.msra.mxu0 %v827
    %1800 = vmatprep.subr.mxu0 0.0
    %1801 = vmatpush1.msra.mxu0 %v824
    %1802 = vmatprep.subr.mxu0 0.0
    %1803 = vmatpush1.msra.mxu0 %v821
    %1804 = vmatprep.subr.mxu0 0.0
    %1805 = vmatpush1.msra.mxu0 %v818
    %1806 = vmatprep.subr.mxu0 0.0
    %1807 = vmatpush1.msra.mxu0 %v815
    %1808 = vmatprep.subr.mxu0 0.0
    %1809 = vmatpush1.msra.mxu0 %v812
    %1810 = vmatprep.subr.mxu0 0.0
    %1811 = vmatpush1.msra.mxu0 %v809
    %1812 = vmatprep.subr.mxu0 0.0
    %1813 = vmatpush1.msra.mxu0 %v806
    %1814 = vmatprep.subr.mxu0 0.0
    %1815 = vmatpush2.msra.mxu0 0.0
    %1816 = vmatprep.subr.mxu0 0.0
    %1817 = vmatpush2.msra.mxu0 0.0
    %1818 = vmatprep.subr.mxu0 0.0
    %1819 = vmatpush2.msra.mxu0 0.0
    %1820 = vmatprep.subr.mxu0 0.0
    %1821 = vmatpush2.msra.mxu0 0.0
    %1822 = vmatprep.subr.mxu0 0.0
    %1823 = vmatpush2.msra.mxu0 0.0
    %1824 = vmatprep.subr.mxu0 0.0
    %1825 = vmatpush2.msra.mxu0 0.0
    %1826 = vmatprep.subr.mxu0 0.0
    %1827 = vmatpush2.msra.mxu0 0.0
    %1828 = vmatprep.subr.mxu0 0.0
    %1829 = vmatpush2.msra.mxu0 0.0
    %1830 = vmatprep.subr.mxu0 0.0
    %1831 = vmatpush2.msra.mxu0 0.0
    %1832 = vmatprep.subr.mxu0 0.0
    %1833 = vmatpush2.msra.mxu0 0.0
    %1834 = vmatprep.subr.mxu0 0.0
    %1835 = vmatpush2.msra.mxu0 0.0
    %1836 = vmatprep.subr.mxu0 0.0
    %1837 = vmatpush2.msra.mxu0 0.0
    %1838 = vmatprep.subr.mxu0 0.0
    %1839 = vmatpush2.msra.mxu0 0.0
    %1840 = vmatprep.subr.mxu0 0.0
    %1841 = vmatpush2.msra.mxu0 0.0
    %1842 = vmatprep.subr.mxu0 0.0
    %1843 = vmatpush2.msra.mxu0 0.0
    %1844 = vmatprep.subr.mxu0 0.0
    %1845 = vmatpush2.msra.mxu0 0.0
    %1846 = vmatprep.mubr.f32.mxu0 0.0
    %1847 = vmatmul.mubr.f32.gmra.mxu0 %v1709
    %v1848 = vpop.f32.mrf.mxu0
    %v1849 = vadd.f32 %v865, %v1848
    %v1850 = vpop.f32.mrf.mxu0
    %1851 = vdwg.mxu0
    %1852 = vmatprep.subr.mxu0 %v1086
    %1853 = vmatpush1.msra.mxu0 %v1085
    %1854 = vmatprep.subr.mxu0 %v1083
    %1855 = vmatpush1.msra.mxu0 %v1082
    %1856 = vmatprep.subr.mxu0 %v1080
    %1857 = vmatpush1.msra.mxu0 %v1079
    %1858 = vmatprep.subr.mxu0 %v1077
    %1859 = vmatpush1.msra.mxu0 %v1076
    %1860 = vmatprep.subr.mxu0 %v1074
    %1861 = vmatpush1.msra.mxu0 %v1073
    %1862 = vmatprep.subr.mxu0 %v1071
    %1863 = vmatpush1.msra.mxu0 %v1070
    %1864 = vmatprep.subr.mxu0 %v1068
    %1865 = vmatpush1.msra.mxu0 %v1067
    %1866 = vmatprep.subr.mxu0 %v1065
    %1867 = vmatpush1.msra.mxu0 %v1064
    %1868 = vmatprep.subr.mxu0 %v1062
    %1869 = vmatpush1.msra.mxu0 %v1061
    %1870 = vmatprep.subr.mxu0 %v1059
    %1871 = vmatpush1.msra.mxu0 %v1058
    %1872 = vmatprep.subr.mxu0 %v1056
    %1873 = vmatpush1.msra.mxu0 %v1055
    %1874 = vmatprep.subr.mxu0 %v1053
    %1875 = vmatpush1.msra.mxu0 %v1052
    %1876 = vmatprep.subr.mxu0 %v1050
    %1877 = vmatpush1.msra.mxu0 %v1049
    %1878 = vmatprep.subr.mxu0 %v1047
    %1879 = vmatpush1.msra.mxu0 %v1046
    %1880 = vmatprep.subr.mxu0 %v1044
    %1881 = vmatpush1.msra.mxu0 %v1043
    %1882 = vmatprep.subr.mxu0 %v1041
    %1883 = vmatpush1.msra.mxu0 %v1040
    %1884 = vmatprep.subr.mxu0 0.0
    %1885 = vmatpush2.msra.mxu0 0.0
    %1886 = vmatprep.subr.mxu0 0.0
    %1887 = vmatpush2.msra.mxu0 0.0
    %1888 = vmatprep.subr.mxu0 0.0
    %1889 = vmatpush2.msra.mxu0 0.0
    %1890 = vmatprep.subr.mxu0 0.0
    %1891 = vmatpush2.msra.mxu0 0.0
    %1892 = vmatprep.subr.mxu0 0.0
    %1893 = vmatpush2.msra.mxu0 0.0
    %1894 = vmatprep.subr.mxu0 0.0
    %1895 = vmatpush2.msra.mxu0 0.0
    %1896 = vmatprep.subr.mxu0 0.0
    %1897 = vmatpush2.msra.mxu0 0.0
    %1898 = vmatprep.subr.mxu0 0.0
    %1899 = vmatpush2.msra.mxu0 0.0
    %1900 = vmatprep.subr.mxu0 0.0
    %1901 = vmatpush2.msra.mxu0 0.0
    %1902 = vmatprep.subr.mxu0 0.0
    %1903 = vmatpush2.msra.mxu0 0.0
    %1904 = vmatprep.subr.mxu0 0.0
    %1905 = vmatpush2.msra.mxu0 0.0
    %1906 = vmatprep.subr.mxu0 0.0
    %1907 = vmatpush2.msra.mxu0 0.0
    %1908 = vmatprep.subr.mxu0 0.0
    %1909 = vmatpush2.msra.mxu0 0.0
    %1910 = vmatprep.subr.mxu0 0.0
    %1911 = vmatpush2.msra.mxu0 0.0
    %1912 = vmatprep.subr.mxu0 0.0
    %1913 = vmatpush2.msra.mxu0 0.0
    %1914 = vmatprep.subr.mxu0 0.0
    %1915 = vmatpush2.msra.mxu0 0.0
    %1916 = vmatprep.mubr.f32.mxu0 0.0
    %1917 = vmatmul.mubr.f32.gmra.mxu0 %v1257
    %v1918 = vpop.f32.mrf.mxu0
    %v1919 = vadd.f32 0.0, %v1918
    %v1920 = vpop.f32.mrf.mxu0
    %v1921 = vadd.f32 0.0, %v1920
    %1922 = vdwg.mxu0
    %1923 = vmatprep.subr.mxu0 0.0
    %1924 = vmatpush1.msra.mxu0 %v1087
    %1925 = vmatprep.subr.mxu0 0.0
    %1926 = vmatpush1.msra.mxu0 %v1084
    %1927 = vmatprep.subr.mxu0 0.0
    %1928 = vmatpush1.msra.mxu0 %v1081
    %1929 = vmatprep.subr.mxu0 0.0
    %1930 = vmatpush1.msra.mxu0 %v1078
    %1931 = vmatprep.subr.mxu0 0.0
    %1932 = vmatpush1.msra.mxu0 %v1075
    %1933 = vmatprep.subr.mxu0 0.0
    %1934 = vmatpush1.msra.mxu0 %v1072
    %1935 = vmatprep.subr.mxu0 0.0
    %1936 = vmatpush1.msra.mxu0 %v1069
    %1937 = vmatprep.subr.mxu0 0.0
    %1938 = vmatpush1.msra.mxu0 %v1066
    %1939 = vmatprep.subr.mxu0 0.0
    %1940 = vmatpush1.msra.mxu0 %v1063
    %1941 = vmatprep.subr.mxu0 0.0
    %1942 = vmatpush1.msra.mxu0 %v1060
    %1943 = vmatprep.subr.mxu0 0.0
    %1944 = vmatpush1.msra.mxu0 %v1057
    %1945 = vmatprep.subr.mxu0 0.0
    %1946 = vmatpush1.msra.mxu0 %v1054
    %1947 = vmatprep.subr.mxu0 0.0
    %1948 = vmatpush1.msra.mxu0 %v1051
    %1949 = vmatprep.subr.mxu0 0.0
    %1950 = vmatpush1.msra.mxu0 %v1048
    %1951 = vmatprep.subr.mxu0 0.0
    %1952 = vmatpush1.msra.mxu0 %v1045
    %1953 = vmatprep.subr.mxu0 0.0
    %1954 = vmatpush1.msra.mxu0 %v1042
    %1955 = vmatprep.subr.mxu0 0.0
    %1956 = vmatpush2.msra.mxu0 0.0
    %1957 = vmatprep.subr.mxu0 0.0
    %1958 = vmatpush2.msra.mxu0 0.0
    %1959 = vmatprep.subr.mxu0 0.0
    %1960 = vmatpush2.msra.mxu0 0.0
    %1961 = vmatprep.subr.mxu0 0.0
    %1962 = vmatpush2.msra.mxu0 0.0
    %1963 = vmatprep.subr.mxu0 0.0
    %1964 = vmatpush2.msra.mxu0 0.0
    %1965 = vmatprep.subr.mxu0 0.0
    %1966 = vmatpush2.msra.mxu0 0.0
    %1967 = vmatprep.subr.mxu0 0.0
    %1968 = vmatpush2.msra.mxu0 0.0
    %1969 = vmatprep.subr.mxu0 0.0
    %1970 = vmatpush2.msra.mxu0 0.0
    %1971 = vmatprep.subr.mxu0 0.0
    %1972 = vmatpush2.msra.mxu0 0.0
    %1973 = vmatprep.subr.mxu0 0.0
    %1974 = vmatpush2.msra.mxu0 0.0
    %1975 = vmatprep.subr.mxu0 0.0
    %1976 = vmatpush2.msra.mxu0 0.0
    %1977 = vmatprep.subr.mxu0 0.0
    %1978 = vmatpush2.msra.mxu0 0.0
    %1979 = vmatprep.subr.mxu0 0.0
    %1980 = vmatpush2.msra.mxu0 0.0
    %1981 = vmatprep.subr.mxu0 0.0
    %1982 = vmatpush2.msra.mxu0 0.0
    %1983 = vmatprep.subr.mxu0 0.0
    %1984 = vmatpush2.msra.mxu0 0.0
    %1985 = vmatprep.subr.mxu0 0.0
    %1986 = vmatpush2.msra.mxu0 0.0
    %1987 = vmatprep.mubr.f32.mxu0 0.0
    %1988 = vmatmul.mubr.f32.gmra.mxu0 %v1257
    %v1989 = vpop.f32.mrf.mxu0
    %v1990 = vadd.f32 0.0, %v1989
    %v1991 = vpop.f32.mrf.mxu0
    %1992 = vdwg.mxu0
    %v1993 = vadd.f32 %v1778, %v1919
    %v1994 = vxor.u32 %v1993, 2147483648
    %v1995 = vmul.f32 %v1994, 1.442695
    %v1996 = vpow.pop %v1995
    %v1997 = vadd.f32 %v1996, 1.0
    %v1998 = vrcp.pop %v1997
    %v1999 = vmul.f32 1.0, %v1998
    %v2000 = vadd.f32 %v1780, %v1921
    %v2001 = vxor.u32 %v2000, 2147483648
    %v2002 = vmul.f32 %v2001, 1.442695
    %v2003 = vpow.pop %v2002
    %v2004 = vadd.f32 %v2003, 1.0
    %v2005 = vrcp.pop %v2004
    %v2006 = vmul.f32 1.0, %v2005
    %v2007 = vadd.f32 %v1990, %v1248
    %v2008 = vmul.f32 %v1999, %v2007
    %v2009 = vadd.f32 %v1849, %v2008
    %v2010 = vtanh.pop %v2009
    %v2011 = vsub.f32 1.0, %v2006
    %v2012 = vmul.f32 %v2011, %v2010
    %v2013 = vmul.f32 %v2006, %v1257
    %v2014 = vadd.f32 %v2012, %v2013
    %vm2015 = vcmp.eq.s32.totalorder %v1258, 1
    %v2016 = vsel %vm2015, 1, 0
    %2017 = vset.pattern.permute.xlu0 0
    %2018 = vperm.xlu0 %2017, %v2016
    %v2019 = vpop.permute.xlu0 %2018
    %vm2020 = vcmp.eq.s32.totalorder %v2019, 1
    %v2021 = vsel %vm2020, %v2014, %v1265
    %v2030 = vrot.slane %v1654, 1
    %v2031 = vsel %vm878, %v1655, %v2030
    %v2032 = vrot.slane %v1656, 7
    %v2033 = vsel %vm881, %v2032, %v2031
    %v2034 = vrot.slane %v1657, 6
    %v2035 = vsel %vm884, %v2034, %v2033
    %v2036 = vrot.slane %v1658, 5
    %v2037 = vsel %vm887, %v2036, %v2035
    %v2038 = vrot.slane %v1659, 4
    %v2039 = vsel %vm890, %v2038, %v2037
    %v2040 = vrot.slane %v1660, 3
    %v2041 = vsel %vm893, %v2040, %v2039
    %v2042 = vrot.slane %v1661, 2
    %v2043 = vsel %vm896, %v2042, %v2041
    %2045 = vmatprep.subr.mxu0 %v412
    %2046 = vmatpush1.msra.mxu0 %v411
    %2047 = vmatprep.subr.mxu0 %v409
    %2048 = vmatpush1.msra.mxu0 %v408
    %2049 = vmatprep.subr.mxu0 %v406
    %2050 = vmatpush1.msra.mxu0 %v405
    %2051 = vmatprep.subr.mxu0 %v403
    %2052 = vmatpush1.msra.mxu0 %v402
    %2053 = vmatprep.subr.mxu0 %v400
    %2054 = vmatpush1.msra.mxu0 %v399
    %2055 = vmatprep.subr.mxu0 %v397
    %2056 = vmatpush1.msra.mxu0 %v396
    %2057 = vmatprep.subr.mxu0 %v394
    %2058 = vmatpush1.msra.mxu0 %v393
    %2059 = vmatprep.subr.mxu0 %v391
    %2060 = vmatpush1.msra.mxu0 %v390
    %2061 = vmatprep.subr.mxu0 %v388
    %2062 = vmatpush1.msra.mxu0 %v387
    %2063 = vmatprep.subr.mxu0 %v385
    %2064 = vmatpush1.msra.mxu0 %v384
    %2065 = vmatprep.subr.mxu0 %v382
    %2066 = vmatpush1.msra.mxu0 %v381
    %2067 = vmatprep.subr.mxu0 %v379
    %2068 = vmatpush1.msra.mxu0 %v378
    %2069 = vmatprep.subr.mxu0 %v376
    %2070 = vmatpush1.msra.mxu0 %v375
    %2071 = vmatprep.subr.mxu0 %v373
    %2072 = vmatpush1.msra.mxu0 %v372
    %2073 = vmatprep.subr.mxu0 %v370
    %2074 = vmatpush1.msra.mxu0 %v369
    %2075 = vmatprep.subr.mxu0 %v367
    %2076 = vmatpush1.msra.mxu0 %v366
    %2077 = vmatprep.subr.mxu0 0.0
    %2078 = vmatpush2.msra.mxu0 0.0
    %2079 = vmatprep.subr.mxu0 0.0
    %2080 = vmatpush2.msra.mxu0 0.0
    %2081 = vmatprep.subr.mxu0 0.0
    %2082 = vmatpush2.msra.mxu0 0.0
    %2083 = vmatprep.subr.mxu0 0.0
    %2084 = vmatpush2.msra.mxu0 0.0
    %2085 = vmatprep.subr.mxu0 0.0
    %2086 = vmatpush2.msra.mxu0 0.0
    %2087 = vmatprep.subr.mxu0 0.0
    %2088 = vmatpush2.msra.mxu0 0.0
    %2089 = vmatprep.subr.mxu0 0.0
    %2090 = vmatpush2.msra.mxu0 0.0
    %2091 = vmatprep.subr.mxu0 0.0
    %2092 = vmatpush2.msra.mxu0 0.0
    %2093 = vmatprep.subr.mxu0 0.0
    %2094 = vmatpush2.msra.mxu0 0.0
    %2095 = vmatprep.subr.mxu0 0.0
    %2096 = vmatpush2.msra.mxu0 0.0
    %2097 = vmatprep.subr.mxu0 0.0
    %2098 = vmatpush2.msra.mxu0 0.0
    %2099 = vmatprep.subr.mxu0 0.0
    %2100 = vmatpush2.msra.mxu0 0.0
    %2101 = vmatprep.subr.mxu0 0.0
    %2102 = vmatpush2.msra.mxu0 0.0
    %2103 = vmatprep.subr.mxu0 0.0
    %2104 = vmatpush2.msra.mxu0 0.0
    %2105 = vmatprep.subr.mxu0 0.0
    %2106 = vmatpush2.msra.mxu0 0.0
    %2107 = vmatprep.subr.mxu0 0.0
    %2108 = vmatpush2.msra.mxu0 0.0
    %2109 = vmatprep.mubr.f32.mxu0 0.0
    %2110 = vmatmul.mubr.f32.gmra.mxu0 %v2043
    %v2111 = vpop.f32.mrf.mxu0
    %v2112 = vadd.f32 0.0, %v2111
    %v2113 = vpop.f32.mrf.mxu0
    %v2114 = vadd.f32 0.0, %v2113
    %2115 = vdwg.mxu0
    %2116 = vmatprep.subr.mxu0 0.0
    %2117 = vmatpush1.msra.mxu0 %v413
    %2118 = vmatprep.subr.mxu0 0.0
    %2119 = vmatpush1.msra.mxu0 %v410
    %2120 = vmatprep.subr.mxu0 0.0
    %2121 = vmatpush1.msra.mxu0 %v407
    %2122 = vmatprep.subr.mxu0 0.0
    %2123 = vmatpush1.msra.mxu0 %v404
    %2124 = vmatprep.subr.mxu0 0.0
    %2125 = vmatpush1.msra.mxu0 %v401
    %2126 = vmatprep.subr.mxu0 0.0
    %2127 = vmatpush1.msra.mxu0 %v398
    %2128 = vmatprep.subr.mxu0 0.0
    %2129 = vmatpush1.msra.mxu0 %v395
    %2130 = vmatprep.subr.mxu0 0.0
    %2131 = vmatpush1.msra.mxu0 %v392
    %2132 = vmatprep.subr.mxu0 0.0
    %2133 = vmatpush1.msra.mxu0 %v389
    %2134 = vmatprep.subr.mxu0 0.0
    %2135 = vmatpush1.msra.mxu0 %v386
    %2136 = vmatprep.subr.mxu0 0.0
    %2137 = vmatpush1.msra.mxu0 %v383
    %2138 = vmatprep.subr.mxu0 0.0
    %2139 = vmatpush1.msra.mxu0 %v380
    %2140 = vmatprep.subr.mxu0 0.0
    %2141 = vmatpush1.msra.mxu0 %v377
    %2142 = vmatprep.subr.mxu0 0.0
    %2143 = vmatpush1.msra.mxu0 %v374
    %2144 = vmatprep.subr.mxu0 0.0
    %2145 = vmatpush1.msra.mxu0 %v371
    %2146 = vmatprep.subr.mxu0 0.0
    %2147 = vmatpush1.msra.mxu0 %v368
    %2148 = vmatprep.subr.mxu0 0.0
    %2149 = vmatpush2.msra.mxu0 0.0
    %2150 = vmatprep.subr.mxu0 0.0
    %2151 = vmatpush2.msra.mxu0 0.0
    %2152 = vmatprep.subr.mxu0 0.0
    %2153 = vmatpush2.msra.mxu0 0.0
    %2154 = vmatprep.subr.mxu0 0.0
    %2155 = vmatpush2.msra.mxu0 0.0
    %2156 = vmatprep.subr.mxu0 0.0
    %2157 = vmatpush2.msra.mxu0 0.0
    %2158 = vmatprep.subr.mxu0 0.0
    %2159 = vmatpush2.msra.mxu0 0.0
    %2160 = vmatprep.subr.mxu0 0.0
    %2161 = vmatpush2.msra.mxu0 0.0
    %2162 = vmatprep.subr.mxu0 0.0
    %2163 = vmatpush2.msra.mxu0 0.0
    %2164 = vmatprep.subr.mxu0 0.0
    %2165 = vmatpush2.msra.mxu0 0.0
    %2166 = vmatprep.subr.mxu0 0.0
    %2167 = vmatpush2.msra.mxu0 0.0
    %2168 = vmatprep.subr.mxu0 0.0
    %2169 = vmatpush2.msra.mxu0 0.0
    %2170 = vmatprep.subr.mxu0 0.0
    %2171 = vmatpush2.msra.mxu0 0.0
    %2172 = vmatprep.subr.mxu0 0.0
    %2173 = vmatpush2.msra.mxu0 0.0
    %2174 = vmatprep.subr.mxu0 0.0
    %2175 = vmatpush2.msra.mxu0 0.0
    %2176 = vmatprep.subr.mxu0 0.0
    %2177 = vmatpush2.msra.mxu0 0.0
    %2178 = vmatprep.subr.mxu0 0.0
    %2179 = vmatpush2.msra.mxu0 0.0
    %2180 = vmatprep.mubr.f32.mxu0 0.0
    %2181 = vmatmul.mubr.f32.gmra.mxu0 %v2043
    %v2182 = vpop.f32.mrf.mxu0
    %v2183 = vadd.f32 0.0, %v2182
    %v2184 = vpop.f32.mrf.mxu0
    %2185 = vdwg.mxu0
    %v2187 = vrot.slane %v2112, 6
    %v2188 = vrot.slane %v2112, 7
    %v2189 = vrot.slane %v2112, 1
    %v2190 = vrot.slane %v2112, 2
    %v2191 = vrot.slane %v2112, 3
    %v2192 = vrot.slane %v2112, 4
    %v2193 = vrot.slane %v2112, 5
    %v2202 = vadd.f32 %v214, %v2187
    %v2203 = vadd.f32 %v220, %v2188
    %v2204 = vadd.f32 %v226, %v2112
    %v2205 = vadd.f32 %v232, %v2189
    %v2206 = vadd.f32 %v238, %v2190
    %v2207 = vadd.f32 %v244, %v2191
    %v2208 = vadd.f32 %v250, %v2192
    %v2209 = vadd.f32 %v256, %v2193
    %v2210 = vxor.u32 %v2202, 2147483648
    %v2211 = vxor.u32 %v2203, 2147483648
    %v2212 = vxor.u32 %v2204, 2147483648
    %v2213 = vxor.u32 %v2205, 2147483648
    %v2214 = vxor.u32 %v2206, 2147483648
    %v2215 = vxor.u32 %v2207, 2147483648
    %v2216 = vxor.u32 %v2208, 2147483648
    %v2217 = vxor.u32 %v2209, 2147483648
    %v2218 = vmul.f32 %v2210, 1.442695
    %v2219 = vpow.pop %v2218
    %v2220 = vmul.f32 %v2211, 1.442695
    %v2221 = vpow.pop %v2220
    %v2222 = vmul.f32 %v2212, 1.442695
    %v2223 = vpow.pop %v2222
    %v2224 = vmul.f32 %v2213, 1.442695
    %v2225 = vpow.pop %v2224
    %v2226 = vmul.f32 %v2214, 1.442695
    %v2227 = vpow.pop %v2226
    %v2228 = vmul.f32 %v2215, 1.442695
    %v2229 = vpow.pop %v2228
    %v2230 = vmul.f32 %v2216, 1.442695
    %v2231 = vpow.pop %v2230
    %v2232 = vmul.f32 %v2217, 1.442695
    %v2233 = vpow.pop %v2232
    %v2234 = vadd.f32 %v2219, 1.0
    %v2235 = vadd.f32 %v2221, 1.0
    %v2236 = vadd.f32 %v2223, 1.0
    %v2237 = vadd.f32 %v2225, 1.0
    %v2238 = vadd.f32 %v2227, 1.0
    %v2239 = vadd.f32 %v2229, 1.0
    %v2240 = vadd.f32 %v2231, 1.0
    %v2241 = vadd.f32 %v2233, 1.0
    %v2242 = vrcp.pop %v2234
    %v2243 = vmul.f32 1.0, %v2242
    %v2244 = vrcp.pop %v2235
    %v2245 = vmul.f32 1.0, %v2244
    %v2246 = vrcp.pop %v2236
    %v2247 = vmul.f32 1.0, %v2246
    %v2248 = vrcp.pop %v2237
    %v2249 = vmul.f32 1.0, %v2248
    %v2250 = vrcp.pop %v2238
    %v2251 = vmul.f32 1.0, %v2250
    %v2252 = vrcp.pop %v2239
    %v2253 = vmul.f32 1.0, %v2252
    %v2254 = vrcp.pop %v2240
    %v2255 = vmul.f32 1.0, %v2254
    %v2256 = vrcp.pop %v2241
    %v2257 = vmul.f32 1.0, %v2256
    %v2259 = vrot.slane %v2114, 6
    %v2260 = vrot.slane %v2114, 7
    %v2261 = vrot.slane %v2114, 1
    %v2262 = vrot.slane %v2114, 2
    %v2263 = vrot.slane %v2114, 3
    %v2264 = vrot.slane %v2114, 4
    %v2265 = vrot.slane %v2114, 5
    %v2274 = vadd.f32 %v216, %v2259
    %v2275 = vadd.f32 %v222, %v2260
    %v2276 = vadd.f32 %v228, %v2114
    %v2277 = vadd.f32 %v234, %v2261
    %v2278 = vadd.f32 %v240, %v2262
    %v2279 = vadd.f32 %v246, %v2263
    %v2280 = vadd.f32 %v252, %v2264
    %v2281 = vadd.f32 %v258, %v2265
    %v2282 = vxor.u32 %v2274, 2147483648
    %v2283 = vxor.u32 %v2275, 2147483648
    %v2284 = vxor.u32 %v2276, 2147483648
    %v2285 = vxor.u32 %v2277, 2147483648
    %v2286 = vxor.u32 %v2278, 2147483648
    %v2287 = vxor.u32 %v2279, 2147483648
    %v2288 = vxor.u32 %v2280, 2147483648
    %v2289 = vxor.u32 %v2281, 2147483648
    %v2290 = vmul.f32 %v2282, 1.442695
    %v2291 = vpow.pop %v2290
    %v2292 = vmul.f32 %v2283, 1.442695
    %v2293 = vpow.pop %v2292
    %v2294 = vmul.f32 %v2284, 1.442695
    %v2295 = vpow.pop %v2294
    %v2296 = vmul.f32 %v2285, 1.442695
    %v2297 = vpow.pop %v2296
    %v2298 = vmul.f32 %v2286, 1.442695
    %v2299 = vpow.pop %v2298
    %v2300 = vmul.f32 %v2287, 1.442695
    %v2301 = vpow.pop %v2300
    %v2302 = vmul.f32 %v2288, 1.442695
    %v2303 = vpow.pop %v2302
    %v2304 = vmul.f32 %v2289, 1.442695
    %v2305 = vpow.pop %v2304
    %v2306 = vadd.f32 %v2291, 1.0
    %v2307 = vadd.f32 %v2293, 1.0
    %v2308 = vadd.f32 %v2295, 1.0
    %v2309 = vadd.f32 %v2297, 1.0
    %v2310 = vadd.f32 %v2299, 1.0
    %v2311 = vadd.f32 %v2301, 1.0
    %v2312 = vadd.f32 %v2303, 1.0
    %v2313 = vadd.f32 %v2305, 1.0
    %v2314 = vrcp.pop %v2306
    %v2315 = vmul.f32 1.0, %v2314
    %v2316 = vrcp.pop %v2307
    %v2317 = vmul.f32 1.0, %v2316
    %v2318 = vrcp.pop %v2308
    %v2319 = vmul.f32 1.0, %v2318
    %v2320 = vrcp.pop %v2309
    %v2321 = vmul.f32 1.0, %v2320
    %v2322 = vrcp.pop %v2310
    %v2323 = vmul.f32 1.0, %v2322
    %v2324 = vrcp.pop %v2311
    %v2325 = vmul.f32 1.0, %v2324
    %v2326 = vrcp.pop %v2312
    %v2327 = vmul.f32 1.0, %v2326
    %v2328 = vrcp.pop %v2313
    %v2329 = vmul.f32 1.0, %v2328
    %v2330 = vadd.f32 %v2183, %v704
    %v2332 = vrot.slane %v2330, 6
    %v2333 = vrot.slane %v2330, 7
    %v2334 = vrot.slane %v2330, 1
    %v2335 = vrot.slane %v2330, 2
    %v2336 = vrot.slane %v2330, 3
    %v2337 = vrot.slane %v2330, 4
    %v2338 = vrot.slane %v2330, 5
    %v2347 = vmul.f32 %v2243, %v2332
    %v2348 = vmul.f32 %v2245, %v2333
    %v2349 = vmul.f32 %v2247, %v2330
    %v2350 = vmul.f32 %v2249, %v2334
    %v2351 = vmul.f32 %v2251, %v2335
    %v2352 = vmul.f32 %v2253, %v2336
    %v2353 = vmul.f32 %v2255, %v2337
    %v2354 = vmul.f32 %v2257, %v2338
    %v2355 = vadd.f32 %v327, %v2347
    %v2356 = vadd.f32 %v332, %v2348
    %v2357 = vadd.f32 %v337, %v2349
    %v2358 = vadd.f32 %v342, %v2350
    %v2359 = vadd.f32 %v347, %v2351
    %v2360 = vadd.f32 %v352, %v2352
    %v2361 = vadd.f32 %v357, %v2353
    %v2362 = vadd.f32 %v362, %v2354
    %v2363 = vtanh.pop %v2355
    %v2364 = vtanh.pop %v2356
    %v2365 = vtanh.pop %v2357
    %v2366 = vtanh.pop %v2358
    %v2367 = vtanh.pop %v2359
    %v2368 = vtanh.pop %v2360
    %v2369 = vtanh.pop %v2361
    %v2370 = vtanh.pop %v2362
    %v2371 = vsub.f32 1.0, %v2315
    %v2372 = vsub.f32 1.0, %v2317
    %v2373 = vsub.f32 1.0, %v2319
    %v2374 = vsub.f32 1.0, %v2321
    %v2375 = vsub.f32 1.0, %v2323
    %v2376 = vsub.f32 1.0, %v2325
    %v2377 = vsub.f32 1.0, %v2327
    %v2378 = vsub.f32 1.0, %v2329
    %v2379 = vmul.f32 %v2371, %v2363
    %v2380 = vmul.f32 %v2372, %v2364
    %v2381 = vmul.f32 %v2373, %v2365
    %v2382 = vmul.f32 %v2374, %v2366
    %v2383 = vmul.f32 %v2375, %v2367
    %v2384 = vmul.f32 %v2376, %v2368
    %v2385 = vmul.f32 %v2377, %v2369
    %v2386 = vmul.f32 %v2378, %v2370
    %v2387 = vrot.slane %v1654, 7
    %v2388 = vrot.slane %v1655, 7
    %v2389 = vrot.slane %v1657, 7
    %v2390 = vrot.slane %v1658, 7
    %v2391 = vrot.slane %v1659, 7
    %v2392 = vrot.slane %v1660, 7
    %v2393 = vrot.slane %v1661, 7
    %v2402 = vmul.f32 %v2315, %v2387
    %v2403 = vmul.f32 %v2317, %v2388
    %v2404 = vmul.f32 %v2319, %v2032
    %v2405 = vmul.f32 %v2321, %v2389
    %v2406 = vmul.f32 %v2323, %v2390
    %v2407 = vmul.f32 %v2325, %v2391
    %v2408 = vmul.f32 %v2327, %v2392
    %v2409 = vmul.f32 %v2329, %v2393
    %v2410 = vadd.f32 %v2379, %v2402
    %v2411 = vadd.f32 %v2380, %v2403
    %v2412 = vadd.f32 %v2381, %v2404
    %v2413 = vadd.f32 %v2382, %v2405
    %v2414 = vadd.f32 %v2383, %v2406
    %v2415 = vadd.f32 %v2384, %v2407
    %v2416 = vadd.f32 %v2385, %v2408
    %v2417 = vadd.f32 %v2386, %v2409
    %s2418 = scalar_lea.vmem %s1, 16
    %v2419 = vld [vmem:[%s2418] sm:$0xff]
    %v2421 = vrot.slane %v2419, 6
    %v2422 = vrot.slane %v2419, 7
    %v2423 = vrot.slane %v2419, 1
    %v2424 = vrot.slane %v2419, 2
    %v2425 = vrot.slane %v2419, 3
    %v2426 = vrot.slane %v2419, 4
    %v2427 = vrot.slane %v2419, 5
    %v2436 = vmul.f32 %v2410, %v2421
    %v2437 = vmul.f32 %v2411, %v2422
    %v2438 = vmul.f32 %v2412, %v2419
    %v2439 = vmul.f32 %v2413, %v2423
    %v2440 = vmul.f32 %v2414, %v2424
    %v2441 = vmul.f32 %v2415, %v2425
    %v2442 = vmul.f32 %v2416, %v2426
    %v2443 = vmul.f32 %v2417, %v2427
    %v2452 = vrot.slane %v2436, 2
    %v2453 = vrot.slane %v2437, 1
    %v2454 = vsel %vm878, %v2453, %v2452
    %v2455 = vsel %vm881, %v2438, %v2454
    %v2456 = vrot.slane %v2439, 7
    %v2457 = vsel %vm884, %v2456, %v2455
    %v2458 = vrot.slane %v2440, 6
    %v2459 = vsel %vm887, %v2458, %v2457
    %v2460 = vrot.slane %v2441, 5
    %v2461 = vsel %vm890, %v2460, %v2459
    %v2462 = vrot.slane %v2442, 4
    %v2463 = vsel %vm893, %v2462, %v2461
    %v2464 = vrot.slane %v2443, 3
    %v2465 = vsel %vm896, %v2464, %v2463
    %2467 = vmatprep.subr.mxu0 %v850
    %2468 = vmatpush1.msra.mxu0 %v849
    %2469 = vmatprep.subr.mxu0 %v847
    %2470 = vmatpush1.msra.mxu0 %v846
    %2471 = vmatprep.subr.mxu0 %v844
    %2472 = vmatpush1.msra.mxu0 %v843
    %2473 = vmatprep.subr.mxu0 %v841
    %2474 = vmatpush1.msra.mxu0 %v840
    %2475 = vmatprep.subr.mxu0 %v838
    %2476 = vmatpush1.msra.mxu0 %v837
    %2477 = vmatprep.subr.mxu0 %v835
    %2478 = vmatpush1.msra.mxu0 %v834
    %2479 = vmatprep.subr.mxu0 %v832
    %2480 = vmatpush1.msra.mxu0 %v831
    %2481 = vmatprep.subr.mxu0 %v829
    %2482 = vmatpush1.msra.mxu0 %v828
    %2483 = vmatprep.subr.mxu0 %v826
    %2484 = vmatpush1.msra.mxu0 %v825
    %2485 = vmatprep.subr.mxu0 %v823
    %2486 = vmatpush1.msra.mxu0 %v822
    %2487 = vmatprep.subr.mxu0 %v820
    %2488 = vmatpush1.msra.mxu0 %v819
    %2489 = vmatprep.subr.mxu0 %v817
    %2490 = vmatpush1.msra.mxu0 %v816
    %2491 = vmatprep.subr.mxu0 %v814
    %2492 = vmatpush1.msra.mxu0 %v813
    %2493 = vmatprep.subr.mxu0 %v811
    %2494 = vmatpush1.msra.mxu0 %v810
    %2495 = vmatprep.subr.mxu0 %v808
    %2496 = vmatpush1.msra.mxu0 %v807
    %2497 = vmatprep.subr.mxu0 %v805
    %2498 = vmatpush1.msra.mxu0 %v804
    %2499 = vmatprep.subr.mxu0 0.0
    %2500 = vmatpush2.msra.mxu0 0.0
    %2501 = vmatprep.subr.mxu0 0.0
    %2502 = vmatpush2.msra.mxu0 0.0
    %2503 = vmatprep.subr.mxu0 0.0
    %2504 = vmatpush2.msra.mxu0 0.0
    %2505 = vmatprep.subr.mxu0 0.0
    %2506 = vmatpush2.msra.mxu0 0.0
    %2507 = vmatprep.subr.mxu0 0.0
    %2508 = vmatpush2.msra.mxu0 0.0
    %2509 = vmatprep.subr.mxu0 0.0
    %2510 = vmatpush2.msra.mxu0 0.0
    %2511 = vmatprep.subr.mxu0 0.0
    %2512 = vmatpush2.msra.mxu0 0.0
    %2513 = vmatprep.subr.mxu0 0.0
    %2514 = vmatpush2.msra.mxu0 0.0
    %2515 = vmatprep.subr.mxu0 0.0
    %2516 = vmatpush2.msra.mxu0 0.0
    %2517 = vmatprep.subr.mxu0 0.0
    %2518 = vmatpush2.msra.mxu0 0.0
    %2519 = vmatprep.subr.mxu0 0.0
    %2520 = vmatpush2.msra.mxu0 0.0
    %2521 = vmatprep.subr.mxu0 0.0
    %2522 = vmatpush2.msra.mxu0 0.0
    %2523 = vmatprep.subr.mxu0 0.0
    %2524 = vmatpush2.msra.mxu0 0.0
    %2525 = vmatprep.subr.mxu0 0.0
    %2526 = vmatpush2.msra.mxu0 0.0
    %2527 = vmatprep.subr.mxu0 0.0
    %2528 = vmatpush2.msra.mxu0 0.0
    %2529 = vmatprep.subr.mxu0 0.0
    %2530 = vmatpush2.msra.mxu0 0.0
    %2531 = vmatprep.mubr.f32.mxu0 0.0
    %2532 = vmatmul.mubr.f32.gmra.mxu0 %v2465
    %v2533 = vpop.f32.mrf.mxu0
    %v2534 = vadd.f32 %v857, %v2533
    %v2535 = vpop.f32.mrf.mxu0
    %v2536 = vadd.f32 %v861, %v2535
    %2537 = vdwg.mxu0
    %2538 = vmatprep.subr.mxu0 0.0
    %2539 = vmatpush1.msra.mxu0 %v851
    %2540 = vmatprep.subr.mxu0 0.0
    %2541 = vmatpush1.msra.mxu0 %v848
    %2542 = vmatprep.subr.mxu0 0.0
    %2543 = vmatpush1.msra.mxu0 %v845
    %2544 = vmatprep.subr.mxu0 0.0
    %2545 = vmatpush1.msra.mxu0 %v842
    %2546 = vmatprep.subr.mxu0 0.0
    %2547 = vmatpush1.msra.mxu0 %v839
    %2548 = vmatprep.subr.mxu0 0.0
    %2549 = vmatpush1.msra.mxu0 %v836
    %2550 = vmatprep.subr.mxu0 0.0
    %2551 = vmatpush1.msra.mxu0 %v833
    %2552 = vmatprep.subr.mxu0 0.0
    %2553 = vmatpush1.msra.mxu0 %v830
    %2554 = vmatprep.subr.mxu0 0.0
    %2555 = vmatpush1.msra.mxu0 %v827
    %2556 = vmatprep.subr.mxu0 0.0
    %2557 = vmatpush1.msra.mxu0 %v824
    %2558 = vmatprep.subr.mxu0 0.0
    %2559 = vmatpush1.msra.mxu0 %v821
    %2560 = vmatprep.subr.mxu0 0.0
    %2561 = vmatpush1.msra.mxu0 %v818
    %2562 = vmatprep.subr.mxu0 0.0
    %2563 = vmatpush1.msra.mxu0 %v815
    %2564 = vmatprep.subr.mxu0 0.0
    %2565 = vmatpush1.msra.mxu0 %v812
    %2566 = vmatprep.subr.mxu0 0.0
    %2567 = vmatpush1.msra.mxu0 %v809
    %2568 = vmatprep.subr.mxu0 0.0
    %2569 = vmatpush1.msra.mxu0 %v806
    %2570 = vmatprep.subr.mxu0 0.0
    %2571 = vmatpush2.msra.mxu0 0.0
    %2572 = vmatprep.subr.mxu0 0.0
    %2573 = vmatpush2.msra.mxu0 0.0
    %2574 = vmatprep.subr.mxu0 0.0
    %2575 = vmatpush2.msra.mxu0 0.0
    %2576 = vmatprep.subr.mxu0 0.0
    %2577 = vmatpush2.msra.mxu0 0.0
    %2578 = vmatprep.subr.mxu0 0.0
    %2579 = vmatpush2.msra.mxu0 0.0
    %2580 = vmatprep.subr.mxu0 0.0
    %2581 = vmatpush2.msra.mxu0 0.0
    %2582 = vmatprep.subr.mxu0 0.0
    %2583 = vmatpush2.msra.mxu0 0.0
    %2584 = vmatprep.subr.mxu0 0.0
    %2585 = vmatpush2.msra.mxu0 0.0
    %2586 = vmatprep.subr.mxu0 0.0
    %2587 = vmatpush2.msra.mxu0 0.0
    %2588 = vmatprep.subr.mxu0 0.0
    %2589 = vmatpush2.msra.mxu0 0.0
    %2590 = vmatprep.subr.mxu0 0.0
    %2591 = vmatpush2.msra.mxu0 0.0
    %2592 = vmatprep.subr.mxu0 0.0
    %2593 = vmatpush2.msra.mxu0 0.0
    %2594 = vmatprep.subr.mxu0 0.0
    %2595 = vmatpush2.msra.mxu0 0.0
    %2596 = vmatprep.subr.mxu0 0.0
    %2597 = vmatpush2.msra.mxu0 0.0
    %2598 = vmatprep.subr.mxu0 0.0
    %2599 = vmatpush2.msra.mxu0 0.0
    %2600 = vmatprep.subr.mxu0 0.0
    %2601 = vmatpush2.msra.mxu0 0.0
    %2602 = vmatprep.mubr.f32.mxu0 0.0
    %2603 = vmatmul.mubr.f32.gmra.mxu0 %v2465
    %v2604 = vpop.f32.mrf.mxu0
    %v2605 = vadd.f32 %v865, %v2604
    %v2606 = vpop.f32.mrf.mxu0
    %2607 = vdwg.mxu0
    %2608 = vmatprep.subr.mxu0 %v1086
    %2609 = vmatpush1.msra.mxu0 %v1085
    %2610 = vmatprep.subr.mxu0 %v1083
    %2611 = vmatpush1.msra.mxu0 %v1082
    %2612 = vmatprep.subr.mxu0 %v1080
    %2613 = vmatpush1.msra.mxu0 %v1079
    %2614 = vmatprep.subr.mxu0 %v1077
    %2615 = vmatpush1.msra.mxu0 %v1076
    %2616 = vmatprep.subr.mxu0 %v1074
    %2617 = vmatpush1.msra.mxu0 %v1073
    %2618 = vmatprep.subr.mxu0 %v1071
    %2619 = vmatpush1.msra.mxu0 %v1070
    %2620 = vmatprep.subr.mxu0 %v1068
    %2621 = vmatpush1.msra.mxu0 %v1067
    %2622 = vmatprep.subr.mxu0 %v1065
    %2623 = vmatpush1.msra.mxu0 %v1064
    %2624 = vmatprep.subr.mxu0 %v1062
    %2625 = vmatpush1.msra.mxu0 %v1061
    %2626 = vmatprep.subr.mxu0 %v1059
    %2627 = vmatpush1.msra.mxu0 %v1058
    %2628 = vmatprep.subr.mxu0 %v1056
    %2629 = vmatpush1.msra.mxu0 %v1055
    %2630 = vmatprep.subr.mxu0 %v1053
    %2631 = vmatpush1.msra.mxu0 %v1052
    %2632 = vmatprep.subr.mxu0 %v1050
    %2633 = vmatpush1.msra.mxu0 %v1049
    %2634 = vmatprep.subr.mxu0 %v1047
    %2635 = vmatpush1.msra.mxu0 %v1046
    %2636 = vmatprep.subr.mxu0 %v1044
    %2637 = vmatpush1.msra.mxu0 %v1043
    %2638 = vmatprep.subr.mxu0 %v1041
    %2639 = vmatpush1.msra.mxu0 %v1040
    %2640 = vmatprep.subr.mxu0 0.0
    %2641 = vmatpush2.msra.mxu0 0.0
    %2642 = vmatprep.subr.mxu0 0.0
    %2643 = vmatpush2.msra.mxu0 0.0
    %2644 = vmatprep.subr.mxu0 0.0
    %2645 = vmatpush2.msra.mxu0 0.0
    %2646 = vmatprep.subr.mxu0 0.0
    %2647 = vmatpush2.msra.mxu0 0.0
    %2648 = vmatprep.subr.mxu0 0.0
    %2649 = vmatpush2.msra.mxu0 0.0
    %2650 = vmatprep.subr.mxu0 0.0
    %2651 = vmatpush2.msra.mxu0 0.0
    %2652 = vmatprep.subr.mxu0 0.0
    %2653 = vmatpush2.msra.mxu0 0.0
    %2654 = vmatprep.subr.mxu0 0.0
    %2655 = vmatpush2.msra.mxu0 0.0
    %2656 = vmatprep.subr.mxu0 0.0
    %2657 = vmatpush2.msra.mxu0 0.0
    %2658 = vmatprep.subr.mxu0 0.0
    %2659 = vmatpush2.msra.mxu0 0.0
    %2660 = vmatprep.subr.mxu0 0.0
    %2661 = vmatpush2.msra.mxu0 0.0
    %2662 = vmatprep.subr.mxu0 0.0
    %2663 = vmatpush2.msra.mxu0 0.0
    %2664 = vmatprep.subr.mxu0 0.0
    %2665 = vmatpush2.msra.mxu0 0.0
    %2666 = vmatprep.subr.mxu0 0.0
    %2667 = vmatpush2.msra.mxu0 0.0
    %2668 = vmatprep.subr.mxu0 0.0
    %2669 = vmatpush2.msra.mxu0 0.0
    %2670 = vmatprep.subr.mxu0 0.0
    %2671 = vmatpush2.msra.mxu0 0.0
    %2672 = vmatprep.mubr.f32.mxu0 0.0
    %2673 = vmatmul.mubr.f32.gmra.mxu0 %v2014
    %v2674 = vpop.f32.mrf.mxu0
    %v2675 = vadd.f32 0.0, %v2674
    %v2676 = vpop.f32.mrf.mxu0
    %v2677 = vadd.f32 0.0, %v2676
    %2678 = vdwg.mxu0
    %2679 = vmatprep.subr.mxu0 0.0
    %2680 = vmatpush1.msra.mxu0 %v1087
    %2681 = vmatprep.subr.mxu0 0.0
    %2682 = vmatpush1.msra.mxu0 %v1084
    %2683 = vmatprep.subr.mxu0 0.0
    %2684 = vmatpush1.msra.mxu0 %v1081
    %2685 = vmatprep.subr.mxu0 0.0
    %2686 = vmatpush1.msra.mxu0 %v1078
    %2687 = vmatprep.subr.mxu0 0.0
    %2688 = vmatpush1.msra.mxu0 %v1075
    %2689 = vmatprep.subr.mxu0 0.0
    %2690 = vmatpush1.msra.mxu0 %v1072
    %2691 = vmatprep.subr.mxu0 0.0
    %2692 = vmatpush1.msra.mxu0 %v1069
    %2693 = vmatprep.subr.mxu0 0.0
    %2694 = vmatpush1.msra.mxu0 %v1066
    %2695 = vmatprep.subr.mxu0 0.0
    %2696 = vmatpush1.msra.mxu0 %v1063
    %2697 = vmatprep.subr.mxu0 0.0
    %2698 = vmatpush1.msra.mxu0 %v1060
    %2699 = vmatprep.subr.mxu0 0.0
    %2700 = vmatpush1.msra.mxu0 %v1057
    %2701 = vmatprep.subr.mxu0 0.0
    %2702 = vmatpush1.msra.mxu0 %v1054
    %2703 = vmatprep.subr.mxu0 0.0
    %2704 = vmatpush1.msra.mxu0 %v1051
    %2705 = vmatprep.subr.mxu0 0.0
    %2706 = vmatpush1.msra.mxu0 %v1048
    %2707 = vmatprep.subr.mxu0 0.0
    %2708 = vmatpush1.msra.mxu0 %v1045
    %2709 = vmatprep.subr.mxu0 0.0
    %2710 = vmatpush1.msra.mxu0 %v1042
    %2711 = vmatprep.subr.mxu0 0.0
    %2712 = vmatpush2.msra.mxu0 0.0
    %2713 = vmatprep.subr.mxu0 0.0
    %2714 = vmatpush2.msra.mxu0 0.0
    %2715 = vmatprep.subr.mxu0 0.0
    %2716 = vmatpush2.msra.mxu0 0.0
    %2717 = vmatprep.subr.mxu0 0.0
    %2718 = vmatpush2.msra.mxu0 0.0
    %2719 = vmatprep.subr.mxu0 0.0
    %2720 = vmatpush2.msra.mxu0 0.0
    %2721 = vmatprep.subr.mxu0 0.0
    %2722 = vmatpush2.msra.mxu0 0.0
    %2723 = vmatprep.subr.mxu0 0.0
    %2724 = vmatpush2.msra.mxu0 0.0
    %2725 = vmatprep.subr.mxu0 0.0
    %2726 = vmatpush2.msra.mxu0 0.0
    %2727 = vmatprep.subr.mxu0 0.0
    %2728 = vmatpush2.msra.mxu0 0.0
    %2729 = vmatprep.subr.mxu0 0.0
    %2730 = vmatpush2.msra.mxu0 0.0
    %2731 = vmatprep.subr.mxu0 0.0
    %2732 = vmatpush2.msra.mxu0 0.0
    %2733 = vmatprep.subr.mxu0 0.0
    %2734 = vmatpush2.msra.mxu0 0.0
    %2735 = vmatprep.subr.mxu0 0.0
    %2736 = vmatpush2.msra.mxu0 0.0
    %2737 = vmatprep.subr.mxu0 0.0
    %2738 = vmatpush2.msra.mxu0 0.0
    %2739 = vmatprep.subr.mxu0 0.0
    %2740 = vmatpush2.msra.mxu0 0.0
    %2741 = vmatprep.subr.mxu0 0.0
    %2742 = vmatpush2.msra.mxu0 0.0
    %2743 = vmatprep.mubr.f32.mxu0 0.0
    %2744 = vmatmul.mubr.f32.gmra.mxu0 %v2014
    %v2745 = vpop.f32.mrf.mxu0
    %v2746 = vadd.f32 0.0, %v2745
    %v2747 = vpop.f32.mrf.mxu0
    %2748 = vdwg.mxu0
    %v2749 = vadd.f32 %v2534, %v2675
    %v2750 = vxor.u32 %v2749, 2147483648
    %v2751 = vmul.f32 %v2750, 1.442695
    %v2752 = vpow.pop %v2751
    %v2753 = vadd.f32 %v2752, 1.0
    %v2754 = vrcp.pop %v2753
    %v2755 = vmul.f32 1.0, %v2754
    %v2756 = vadd.f32 %v2536, %v2677
    %v2757 = vxor.u32 %v2756, 2147483648
    %v2758 = vmul.f32 %v2757, 1.442695
    %v2759 = vpow.pop %v2758
    %v2760 = vadd.f32 %v2759, 1.0
    %v2761 = vrcp.pop %v2760
    %v2762 = vmul.f32 1.0, %v2761
    %v2763 = vadd.f32 %v2746, %v1248
    %v2764 = vmul.f32 %v2755, %v2763
    %v2765 = vadd.f32 %v2605, %v2764
    %v2766 = vtanh.pop %v2765
    %v2767 = vsub.f32 1.0, %v2762
    %v2768 = vmul.f32 %v2767, %v2766
    %v2769 = vmul.f32 %v2762, %v2014
    %v2770 = vadd.f32 %v2768, %v2769
    %vm2771 = vcmp.eq.s32.totalorder %v1258, 2
    %v2772 = vsel %vm2771, 1, 0
    %2773 = vset.pattern.permute.xlu0 0
    %2774 = vperm.xlu0 %2773, %v2772
    %v2775 = vpop.permute.xlu0 %2774
    %vm2776 = vcmp.eq.s32.totalorder %v2775, 1
    %v2777 = vsel %vm2776, %v2770, %v2021
    %v2786 = vrot.slane %v2410, 2
    %v2787 = vrot.slane %v2411, 1
    %v2788 = vsel %vm878, %v2787, %v2786
    %v2789 = vsel %vm881, %v2412, %v2788
    %v2790 = vrot.slane %v2413, 7
    %v2791 = vsel %vm884, %v2790, %v2789
    %v2792 = vrot.slane %v2414, 6
    %v2793 = vsel %vm887, %v2792, %v2791
    %v2794 = vrot.slane %v2415, 5
    %v2795 = vsel %vm890, %v2794, %v2793
    %v2796 = vrot.slane %v2416, 4
    %v2797 = vsel %vm893, %v2796, %v2795
    %v2798 = vrot.slane %v2417, 3
    %v2799 = vsel %vm896, %v2798, %v2797
    %2801 = vmatprep.subr.mxu0 %v412
    %2802 = vmatpush1.msra.mxu0 %v411
    %2803 = vmatprep.subr.mxu0 %v409
    %2804 = vmatpush1.msra.mxu0 %v408
    %2805 = vmatprep.subr.mxu0 %v406
    %2806 = vmatpush1.msra.mxu0 %v405
    %2807 = vmatprep.subr.mxu0 %v403
    %2808 = vmatpush1.msra.mxu0 %v402
    %2809 = vmatprep.subr.mxu0 %v400
    %2810 = vmatpush1.msra.mxu0 %v399
    %2811 = vmatprep.subr.mxu0 %v397
    %2812 = vmatpush1.msra.mxu0 %v396
    %2813 = vmatprep.subr.mxu0 %v394
    %2814 = vmatpush1.msra.mxu0 %v393
    %2815 = vmatprep.subr.mxu0 %v391
    %2816 = vmatpush1.msra.mxu0 %v390
    %2817 = vmatprep.subr.mxu0 %v388
    %2818 = vmatpush1.msra.mxu0 %v387
    %2819 = vmatprep.subr.mxu0 %v385
    %2820 = vmatpush1.msra.mxu0 %v384
    %2821 = vmatprep.subr.mxu0 %v382
    %2822 = vmatpush1.msra.mxu0 %v381
    %2823 = vmatprep.subr.mxu0 %v379
    %2824 = vmatpush1.msra.mxu0 %v378
    %2825 = vmatprep.subr.mxu0 %v376
    %2826 = vmatpush1.msra.mxu0 %v375
    %2827 = vmatprep.subr.mxu0 %v373
    %2828 = vmatpush1.msra.mxu0 %v372
    %2829 = vmatprep.subr.mxu0 %v370
    %2830 = vmatpush1.msra.mxu0 %v369
    %2831 = vmatprep.subr.mxu0 %v367
    %2832 = vmatpush1.msra.mxu0 %v366
    %2833 = vmatprep.subr.mxu0 0.0
    %2834 = vmatpush2.msra.mxu0 0.0
    %2835 = vmatprep.subr.mxu0 0.0
    %2836 = vmatpush2.msra.mxu0 0.0
    %2837 = vmatprep.subr.mxu0 0.0
    %2838 = vmatpush2.msra.mxu0 0.0
    %2839 = vmatprep.subr.mxu0 0.0
    %2840 = vmatpush2.msra.mxu0 0.0
    %2841 = vmatprep.subr.mxu0 0.0
    %2842 = vmatpush2.msra.mxu0 0.0
    %2843 = vmatprep.subr.mxu0 0.0
    %2844 = vmatpush2.msra.mxu0 0.0
    %2845 = vmatprep.subr.mxu0 0.0
    %2846 = vmatpush2.msra.mxu0 0.0
    %2847 = vmatprep.subr.mxu0 0.0
    %2848 = vmatpush2.msra.mxu0 0.0
    %2849 = vmatprep.subr.mxu0 0.0
    %2850 = vmatpush2.msra.mxu0 0.0
    %2851 = vmatprep.subr.mxu0 0.0
    %2852 = vmatpush2.msra.mxu0 0.0
    %2853 = vmatprep.subr.mxu0 0.0
    %2854 = vmatpush2.msra.mxu0 0.0
    %2855 = vmatprep.subr.mxu0 0.0
    %2856 = vmatpush2.msra.mxu0 0.0
    %2857 = vmatprep.subr.mxu0 0.0
    %2858 = vmatpush2.msra.mxu0 0.0
    %2859 = vmatprep.subr.mxu0 0.0
    %2860 = vmatpush2.msra.mxu0 0.0
    %2861 = vmatprep.subr.mxu0 0.0
    %2862 = vmatpush2.msra.mxu0 0.0
    %2863 = vmatprep.subr.mxu0 0.0
    %2864 = vmatpush2.msra.mxu0 0.0
    %2865 = vmatprep.mubr.f32.mxu0 0.0
    %2866 = vmatmul.mubr.f32.gmra.mxu0 %v2799
    %v2867 = vpop.f32.mrf.mxu0
    %v2868 = vadd.f32 0.0, %v2867
    %v2869 = vpop.f32.mrf.mxu0
    %v2870 = vadd.f32 0.0, %v2869
    %2871 = vdwg.mxu0
    %2872 = vmatprep.subr.mxu0 0.0
    %2873 = vmatpush1.msra.mxu0 %v413
    %2874 = vmatprep.subr.mxu0 0.0
    %2875 = vmatpush1.msra.mxu0 %v410
    %2876 = vmatprep.subr.mxu0 0.0
    %2877 = vmatpush1.msra.mxu0 %v407
    %2878 = vmatprep.subr.mxu0 0.0
    %2879 = vmatpush1.msra.mxu0 %v404
    %2880 = vmatprep.subr.mxu0 0.0
    %2881 = vmatpush1.msra.mxu0 %v401
    %2882 = vmatprep.subr.mxu0 0.0
    %2883 = vmatpush1.msra.mxu0 %v398
    %2884 = vmatprep.subr.mxu0 0.0
    %2885 = vmatpush1.msra.mxu0 %v395
    %2886 = vmatprep.subr.mxu0 0.0
    %2887 = vmatpush1.msra.mxu0 %v392
    %2888 = vmatprep.subr.mxu0 0.0
    %2889 = vmatpush1.msra.mxu0 %v389
    %2890 = vmatprep.subr.mxu0 0.0
    %2891 = vmatpush1.msra.mxu0 %v386
    %2892 = vmatprep.subr.mxu0 0.0
    %2893 = vmatpush1.msra.mxu0 %v383
    %2894 = vmatprep.subr.mxu0 0.0
    %2895 = vmatpush1.msra.mxu0 %v380
    %2896 = vmatprep.subr.mxu0 0.0
    %2897 = vmatpush1.msra.mxu0 %v377
    %2898 = vmatprep.subr.mxu0 0.0
    %2899 = vmatpush1.msra.mxu0 %v374
    %2900 = vmatprep.subr.mxu0 0.0
    %2901 = vmatpush1.msra.mxu0 %v371
    %2902 = vmatprep.subr.mxu0 0.0
    %2903 = vmatpush1.msra.mxu0 %v368
    %2904 = vmatprep.subr.mxu0 0.0
    %2905 = vmatpush2.msra.mxu0 0.0
    %2906 = vmatprep.subr.mxu0 0.0
    %2907 = vmatpush2.msra.mxu0 0.0
    %2908 = vmatprep.subr.mxu0 0.0
    %2909 = vmatpush2.msra.mxu0 0.0
    %2910 = vmatprep.subr.mxu0 0.0
    %2911 = vmatpush2.msra.mxu0 0.0
    %2912 = vmatprep.subr.mxu0 0.0
    %2913 = vmatpush2.msra.mxu0 0.0
    %2914 = vmatprep.subr.mxu0 0.0
    %2915 = vmatpush2.msra.mxu0 0.0
    %2916 = vmatprep.subr.mxu0 0.0
    %2917 = vmatpush2.msra.mxu0 0.0
    %2918 = vmatprep.subr.mxu0 0.0
    %2919 = vmatpush2.msra.mxu0 0.0
    %2920 = vmatprep.subr.mxu0 0.0
    %2921 = vmatpush2.msra.mxu0 0.0
    %2922 = vmatprep.subr.mxu0 0.0
    %2923 = vmatpush2.msra.mxu0 0.0
    %2924 = vmatprep.subr.mxu0 0.0
    %2925 = vmatpush2.msra.mxu0 0.0
    %2926 = vmatprep.subr.mxu0 0.0
    %2927 = vmatpush2.msra.mxu0 0.0
    %2928 = vmatprep.subr.mxu0 0.0
    %2929 = vmatpush2.msra.mxu0 0.0
    %2930 = vmatprep.subr.mxu0 0.0
    %2931 = vmatpush2.msra.mxu0 0.0
    %2932 = vmatprep.subr.mxu0 0.0
    %2933 = vmatpush2.msra.mxu0 0.0
    %2934 = vmatprep.subr.mxu0 0.0
    %2935 = vmatpush2.msra.mxu0 0.0
    %2936 = vmatprep.mubr.f32.mxu0 0.0
    %2937 = vmatmul.mubr.f32.gmra.mxu0 %v2799
    %v2938 = vpop.f32.mrf.mxu0
    %v2939 = vadd.f32 0.0, %v2938
    %v2940 = vpop.f32.mrf.mxu0
    %2941 = vdwg.mxu0
    %v2943 = vrot.slane %v2868, 5
    %v2944 = vrot.slane %v2868, 6
    %v2945 = vrot.slane %v2868, 7
    %v2946 = vrot.slane %v2868, 1
    %v2947 = vrot.slane %v2868, 2
    %v2948 = vrot.slane %v2868, 3
    %v2949 = vrot.slane %v2868, 4
    %v2958 = vadd.f32 %v214, %v2943
    %v2959 = vadd.f32 %v220, %v2944
    %v2960 = vadd.f32 %v226, %v2945
    %v2961 = vadd.f32 %v232, %v2868
    %v2962 = vadd.f32 %v238, %v2946
    %v2963 = vadd.f32 %v244, %v2947
    %v2964 = vadd.f32 %v250, %v2948
    %v2965 = vadd.f32 %v256, %v2949
    %v2966 = vxor.u32 %v2958, 2147483648
    %v2967 = vxor.u32 %v2959, 2147483648
    %v2968 = vxor.u32 %v2960, 2147483648
    %v2969 = vxor.u32 %v2961, 2147483648
    %v2970 = vxor.u32 %v2962, 2147483648
    %v2971 = vxor.u32 %v2963, 2147483648
    %v2972 = vxor.u32 %v2964, 2147483648
    %v2973 = vxor.u32 %v2965, 2147483648
    %v2974 = vmul.f32 %v2966, 1.442695
    %v2975 = vpow.pop %v2974
    %v2976 = vmul.f32 %v2967, 1.442695
    %v2977 = vpow.pop %v2976
    %v2978 = vmul.f32 %v2968, 1.442695
    %v2979 = vpow.pop %v2978
    %v2980 = vmul.f32 %v2969, 1.442695
    %v2981 = vpow.pop %v2980
    %v2982 = vmul.f32 %v2970, 1.442695
    %v2983 = vpow.pop %v2982
    %v2984 = vmul.f32 %v2971, 1.442695
    %v2985 = vpow.pop %v2984
    %v2986 = vmul.f32 %v2972, 1.442695
    %v2987 = vpow.pop %v2986
    %v2988 = vmul.f32 %v2973, 1.442695
    %v2989 = vpow.pop %v2988
    %v2990 = vadd.f32 %v2975, 1.0
    %v2991 = vadd.f32 %v2977, 1.0
    %v2992 = vadd.f32 %v2979, 1.0
    %v2993 = vadd.f32 %v2981, 1.0
    %v2994 = vadd.f32 %v2983, 1.0
    %v2995 = vadd.f32 %v2985, 1.0
    %v2996 = vadd.f32 %v2987, 1.0
    %v2997 = vadd.f32 %v2989, 1.0
    %v2998 = vrcp.pop %v2990
    %v2999 = vmul.f32 1.0, %v2998
    %v3000 = vrcp.pop %v2991
    %v3001 = vmul.f32 1.0, %v3000
    %v3002 = vrcp.pop %v2992
    %v3003 = vmul.f32 1.0, %v3002
    %v3004 = vrcp.pop %v2993
    %v3005 = vmul.f32 1.0, %v3004
    %v3006 = vrcp.pop %v2994
    %v3007 = vmul.f32 1.0, %v3006
    %v3008 = vrcp.pop %v2995
    %v3009 = vmul.f32 1.0, %v3008
    %v3010 = vrcp.pop %v2996
    %v3011 = vmul.f32 1.0, %v3010
    %v3012 = vrcp.pop %v2997
    %v3013 = vmul.f32 1.0, %v3012
    %v3015 = vrot.slane %v2870, 5
    %v3016 = vrot.slane %v2870, 6
    %v3017 = vrot.slane %v2870, 7
    %v3018 = vrot.slane %v2870, 1
    %v3019 = vrot.slane %v2870, 2
    %v3020 = vrot.slane %v2870, 3
    %v3021 = vrot.slane %v2870, 4
    %v3030 = vadd.f32 %v216, %v3015
    %v3031 = vadd.f32 %v222, %v3016
    %v3032 = vadd.f32 %v228, %v3017
    %v3033 = vadd.f32 %v234, %v2870
    %v3034 = vadd.f32 %v240, %v3018
    %v3035 = vadd.f32 %v246, %v3019
    %v3036 = vadd.f32 %v252, %v3020
    %v3037 = vadd.f32 %v258, %v3021
    %v3038 = vxor.u32 %v3030, 2147483648
    %v3039 = vxor.u32 %v3031, 2147483648
    %v3040 = vxor.u32 %v3032, 2147483648
    %v3041 = vxor.u32 %v3033, 2147483648
    %v3042 = vxor.u32 %v3034, 2147483648
    %v3043 = vxor.u32 %v3035, 2147483648
    %v3044 = vxor.u32 %v3036, 2147483648
    %v3045 = vxor.u32 %v3037, 2147483648
    %v3046 = vmul.f32 %v3038, 1.442695
    %v3047 = vpow.pop %v3046
    %v3048 = vmul.f32 %v3039, 1.442695
    %v3049 = vpow.pop %v3048
    %v3050 = vmul.f32 %v3040, 1.442695
    %v3051 = vpow.pop %v3050
    %v3052 = vmul.f32 %v3041, 1.442695
    %v3053 = vpow.pop %v3052
    %v3054 = vmul.f32 %v3042, 1.442695
    %v3055 = vpow.pop %v3054
    %v3056 = vmul.f32 %v3043, 1.442695
    %v3057 = vpow.pop %v3056
    %v3058 = vmul.f32 %v3044, 1.442695
    %v3059 = vpow.pop %v3058
    %v3060 = vmul.f32 %v3045, 1.442695
    %v3061 = vpow.pop %v3060
    %v3062 = vadd.f32 %v3047, 1.0
    %v3063 = vadd.f32 %v3049, 1.0
    %v3064 = vadd.f32 %v3051, 1.0
    %v3065 = vadd.f32 %v3053, 1.0
    %v3066 = vadd.f32 %v3055, 1.0
    %v3067 = vadd.f32 %v3057, 1.0
    %v3068 = vadd.f32 %v3059, 1.0
    %v3069 = vadd.f32 %v3061, 1.0
    %v3070 = vrcp.pop %v3062
    %v3071 = vmul.f32 1.0, %v3070
    %v3072 = vrcp.pop %v3063
    %v3073 = vmul.f32 1.0, %v3072
    %v3074 = vrcp.pop %v3064
    %v3075 = vmul.f32 1.0, %v3074
    %v3076 = vrcp.pop %v3065
    %v3077 = vmul.f32 1.0, %v3076
    %v3078 = vrcp.pop %v3066
    %v3079 = vmul.f32 1.0, %v3078
    %v3080 = vrcp.pop %v3067
    %v3081 = vmul.f32 1.0, %v3080
    %v3082 = vrcp.pop %v3068
    %v3083 = vmul.f32 1.0, %v3082
    %v3084 = vrcp.pop %v3069
    %v3085 = vmul.f32 1.0, %v3084
    %v3086 = vadd.f32 %v2939, %v704
    %v3088 = vrot.slane %v3086, 5
    %v3089 = vrot.slane %v3086, 6
    %v3090 = vrot.slane %v3086, 7
    %v3091 = vrot.slane %v3086, 1
    %v3092 = vrot.slane %v3086, 2
    %v3093 = vrot.slane %v3086, 3
    %v3094 = vrot.slane %v3086, 4
    %v3103 = vmul.f32 %v2999, %v3088
    %v3104 = vmul.f32 %v3001, %v3089
    %v3105 = vmul.f32 %v3003, %v3090
    %v3106 = vmul.f32 %v3005, %v3086
    %v3107 = vmul.f32 %v3007, %v3091
    %v3108 = vmul.f32 %v3009, %v3092
    %v3109 = vmul.f32 %v3011, %v3093
    %v3110 = vmul.f32 %v3013, %v3094
    %v3111 = vadd.f32 %v327, %v3103
    %v3112 = vadd.f32 %v332, %v3104
    %v3113 = vadd.f32 %v337, %v3105
    %v3114 = vadd.f32 %v342, %v3106
    %v3115 = vadd.f32 %v347, %v3107
    %v3116 = vadd.f32 %v352, %v3108
    %v3117 = vadd.f32 %v357, %v3109
    %v3118 = vadd.f32 %v362, %v3110
    %v3119 = vtanh.pop %v3111
    %v3120 = vtanh.pop %v3112
    %v3121 = vtanh.pop %v3113
    %v3122 = vtanh.pop %v3114
    %v3123 = vtanh.pop %v3115
    %v3124 = vtanh.pop %v3116
    %v3125 = vtanh.pop %v3117
    %v3126 = vtanh.pop %v3118
    %v3127 = vsub.f32 1.0, %v3071
    %v3128 = vsub.f32 1.0, %v3073
    %v3129 = vsub.f32 1.0, %v3075
    %v3130 = vsub.f32 1.0, %v3077
    %v3131 = vsub.f32 1.0, %v3079
    %v3132 = vsub.f32 1.0, %v3081
    %v3133 = vsub.f32 1.0, %v3083
    %v3134 = vsub.f32 1.0, %v3085
    %v3135 = vmul.f32 %v3127, %v3119
    %v3136 = vmul.f32 %v3128, %v3120
    %v3137 = vmul.f32 %v3129, %v3121
    %v3138 = vmul.f32 %v3130, %v3122
    %v3139 = vmul.f32 %v3131, %v3123
    %v3140 = vmul.f32 %v3132, %v3124
    %v3141 = vmul.f32 %v3133, %v3125
    %v3142 = vmul.f32 %v3134, %v3126
    %v3143 = vrot.slane %v2410, 7
    %v3144 = vrot.slane %v2411, 7
    %v3145 = vrot.slane %v2412, 7
    %v3146 = vrot.slane %v2414, 7
    %v3147 = vrot.slane %v2415, 7
    %v3148 = vrot.slane %v2416, 7
    %v3149 = vrot.slane %v2417, 7
    %v3158 = vmul.f32 %v3071, %v3143
    %v3159 = vmul.f32 %v3073, %v3144
    %v3160 = vmul.f32 %v3075, %v3145
    %v3161 = vmul.f32 %v3077, %v2790
    %v3162 = vmul.f32 %v3079, %v3146
    %v3163 = vmul.f32 %v3081, %v3147
    %v3164 = vmul.f32 %v3083, %v3148
    %v3165 = vmul.f32 %v3085, %v3149
    %v3166 = vadd.f32 %v3135, %v3158
    %v3167 = vadd.f32 %v3136, %v3159
    %v3168 = vadd.f32 %v3137, %v3160
    %v3169 = vadd.f32 %v3138, %v3161
    %v3170 = vadd.f32 %v3139, %v3162
    %v3171 = vadd.f32 %v3140, %v3163
    %v3172 = vadd.f32 %v3141, %v3164
    %v3173 = vadd.f32 %v3142, %v3165
    %s3174 = scalar_lea.vmem %s1, 24
    %v3175 = vld [vmem:[%s3174] sm:$0xff]
    %v3177 = vrot.slane %v3175, 5
    %v3178 = vrot.slane %v3175, 6
    %v3179 = vrot.slane %v3175, 7
    %v3180 = vrot.slane %v3175, 1
    %v3181 = vrot.slane %v3175, 2
    %v3182 = vrot.slane %v3175, 3
    %v3183 = vrot.slane %v3175, 4
    %v3192 = vmul.f32 %v3166, %v3177
    %v3193 = vmul.f32 %v3167, %v3178
    %v3194 = vmul.f32 %v3168, %v3179
    %v3195 = vmul.f32 %v3169, %v3175
    %v3196 = vmul.f32 %v3170, %v3180
    %v3197 = vmul.f32 %v3171, %v3181
    %v3198 = vmul.f32 %v3172, %v3182
    %v3199 = vmul.f32 %v3173, %v3183
    %v3208 = vrot.slane %v3192, 3
    %v3209 = vrot.slane %v3193, 2
    %v3210 = vsel %vm878, %v3209, %v3208
    %v3211 = vrot.slane %v3194, 1
    %v3212 = vsel %vm881, %v3211, %v3210
    %v3213 = vsel %vm884, %v3195, %v3212
    %v3214 = vrot.slane %v3196, 7
    %v3215 = vsel %vm887, %v3214, %v3213
    %v3216 = vrot.slane %v3197, 6
    %v3217 = vsel %vm890, %v3216, %v3215
    %v3218 = vrot.slane %v3198, 5
    %v3219 = vsel %vm893, %v3218, %v3217
    %v3220 = vrot.slane %v3199, 4
    %v3221 = vsel %vm896, %v3220, %v3219
    %3223 = vmatprep.subr.mxu0 %v850
    %3224 = vmatpush1.msra.mxu0 %v849
    %3225 = vmatprep.subr.mxu0 %v847
    %3226 = vmatpush1.msra.mxu0 %v846
    %3227 = vmatprep.subr.mxu0 %v844
    %3228 = vmatpush1.msra.mxu0 %v843
    %3229 = vmatprep.subr.mxu0 %v841
    %3230 = vmatpush1.msra.mxu0 %v840
    %3231 = vmatprep.subr.mxu0 %v838
    %3232 = vmatpush1.msra.mxu0 %v837
    %3233 = vmatprep.subr.mxu0 %v835
    %3234 = vmatpush1.msra.mxu0 %v834
    %3235 = vmatprep.subr.mxu0 %v832
    %3236 = vmatpush1.msra.mxu0 %v831
    %3237 = vmatprep.subr.mxu0 %v829
    %3238 = vmatpush1.msra.mxu0 %v828
    %3239 = vmatprep.subr.mxu0 %v826
    %3240 = vmatpush1.msra.mxu0 %v825
    %3241 = vmatprep.subr.mxu0 %v823
    %3242 = vmatpush1.msra.mxu0 %v822
    %3243 = vmatprep.subr.mxu0 %v820
    %3244 = vmatpush1.msra.mxu0 %v819
    %3245 = vmatprep.subr.mxu0 %v817
    %3246 = vmatpush1.msra.mxu0 %v816
    %3247 = vmatprep.subr.mxu0 %v814
    %3248 = vmatpush1.msra.mxu0 %v813
    %3249 = vmatprep.subr.mxu0 %v811
    %3250 = vmatpush1.msra.mxu0 %v810
    %3251 = vmatprep.subr.mxu0 %v808
    %3252 = vmatpush1.msra.mxu0 %v807
    %3253 = vmatprep.subr.mxu0 %v805
    %3254 = vmatpush1.msra.mxu0 %v804
    %3255 = vmatprep.subr.mxu0 0.0
    %3256 = vmatpush2.msra.mxu0 0.0
    %3257 = vmatprep.subr.mxu0 0.0
    %3258 = vmatpush2.msra.mxu0 0.0
    %3259 = vmatprep.subr.mxu0 0.0
    %3260 = vmatpush2.msra.mxu0 0.0
    %3261 = vmatprep.subr.mxu0 0.0
    %3262 = vmatpush2.msra.mxu0 0.0
    %3263 = vmatprep.subr.mxu0 0.0
    %3264 = vmatpush2.msra.mxu0 0.0
    %3265 = vmatprep.subr.mxu0 0.0
    %3266 = vmatpush2.msra.mxu0 0.0
    %3267 = vmatprep.subr.mxu0 0.0
    %3268 = vmatpush2.msra.mxu0 0.0
    %3269 = vmatprep.subr.mxu0 0.0
    %3270 = vmatpush2.msra.mxu0 0.0
    %3271 = vmatprep.subr.mxu0 0.0
    %3272 = vmatpush2.msra.mxu0 0.0
    %3273 = vmatprep.subr.mxu0 0.0
    %3274 = vmatpush2.msra.mxu0 0.0
    %3275 = vmatprep.subr.mxu0 0.0
    %3276 = vmatpush2.msra.mxu0 0.0
    %3277 = vmatprep.subr.mxu0 0.0
    %3278 = vmatpush2.msra.mxu0 0.0
    %3279 = vmatprep.subr.mxu0 0.0
    %3280 = vmatpush2.msra.mxu0 0.0
    %3281 = vmatprep.subr.mxu0 0.0
    %3282 = vmatpush2.msra.mxu0 0.0
    %3283 = vmatprep.subr.mxu0 0.0
    %3284 = vmatpush2.msra.mxu0 0.0
    %3285 = vmatprep.subr.mxu0 0.0
    %3286 = vmatpush2.msra.mxu0 0.0
    %3287 = vmatprep.mubr.f32.mxu0 0.0
    %3288 = vmatmul.mubr.f32.gmra.mxu0 %v3221
    %v3289 = vpop.f32.mrf.mxu0
    %v3290 = vadd.f32 %v857, %v3289
    %v3291 = vpop.f32.mrf.mxu0
    %v3292 = vadd.f32 %v861, %v3291
    %3293 = vdwg.mxu0
    %3294 = vmatprep.subr.mxu0 0.0
    %3295 = vmatpush1.msra.mxu0 %v851
    %3296 = vmatprep.subr.mxu0 0.0
    %3297 = vmatpush1.msra.mxu0 %v848
    %3298 = vmatprep.subr.mxu0 0.0
    %3299 = vmatpush1.msra.mxu0 %v845
    %3300 = vmatprep.subr.mxu0 0.0
    %3301 = vmatpush1.msra.mxu0 %v842
    %3302 = vmatprep.subr.mxu0 0.0
    %3303 = vmatpush1.msra.mxu0 %v839
    %3304 = vmatprep.subr.mxu0 0.0
    %3305 = vmatpush1.msra.mxu0 %v836
    %3306 = vmatprep.subr.mxu0 0.0
    %3307 = vmatpush1.msra.mxu0 %v833
    %3308 = vmatprep.subr.mxu0 0.0
    %3309 = vmatpush1.msra.mxu0 %v830
    %3310 = vmatprep.subr.mxu0 0.0
    %3311 = vmatpush1.msra.mxu0 %v827
    %3312 = vmatprep.subr.mxu0 0.0
    %3313 = vmatpush1.msra.mxu0 %v824
    %3314 = vmatprep.subr.mxu0 0.0
    %3315 = vmatpush1.msra.mxu0 %v821
    %3316 = vmatprep.subr.mxu0 0.0
    %3317 = vmatpush1.msra.mxu0 %v818
    %3318 = vmatprep.subr.mxu0 0.0
    %3319 = vmatpush1.msra.mxu0 %v815
    %3320 = vmatprep.subr.mxu0 0.0
    %3321 = vmatpush1.msra.mxu0 %v812
    %3322 = vmatprep.subr.mxu0 0.0
    %3323 = vmatpush1.msra.mxu0 %v809
    %3324 = vmatprep.subr.mxu0 0.0
    %3325 = vmatpush1.msra.mxu0 %v806
    %3326 = vmatprep.subr.mxu0 0.0
    %3327 = vmatpush2.msra.mxu0 0.0
    %3328 = vmatprep.subr.mxu0 0.0
    %3329 = vmatpush2.msra.mxu0 0.0
    %3330 = vmatprep.subr.mxu0 0.0
    %3331 = vmatpush2.msra.mxu0 0.0
    %3332 = vmatprep.subr.mxu0 0.0
    %3333 = vmatpush2.msra.mxu0 0.0
    %3334 = vmatprep.subr.mxu0 0.0
    %3335 = vmatpush2.msra.mxu0 0.0
    %3336 = vmatprep.subr.mxu0 0.0
    %3337 = vmatpush2.msra.mxu0 0.0
    %3338 = vmatprep.subr.mxu0 0.0
    %3339 = vmatpush2.msra.mxu0 0.0
    %3340 = vmatprep.subr.mxu0 0.0
    %3341 = vmatpush2.msra.mxu0 0.0
    %3342 = vmatprep.subr.mxu0 0.0
    %3343 = vmatpush2.msra.mxu0 0.0
    %3344 = vmatprep.subr.mxu0 0.0
    %3345 = vmatpush2.msra.mxu0 0.0
    %3346 = vmatprep.subr.mxu0 0.0
    %3347 = vmatpush2.msra.mxu0 0.0
    %3348 = vmatprep.subr.mxu0 0.0
    %3349 = vmatpush2.msra.mxu0 0.0
    %3350 = vmatprep.subr.mxu0 0.0
    %3351 = vmatpush2.msra.mxu0 0.0
    %3352 = vmatprep.subr.mxu0 0.0
    %3353 = vmatpush2.msra.mxu0 0.0
    %3354 = vmatprep.subr.mxu0 0.0
    %3355 = vmatpush2.msra.mxu0 0.0
    %3356 = vmatprep.subr.mxu0 0.0
    %3357 = vmatpush2.msra.mxu0 0.0
    %3358 = vmatprep.mubr.f32.mxu0 0.0
    %3359 = vmatmul.mubr.f32.gmra.mxu0 %v3221
    %v3360 = vpop.f32.mrf.mxu0
    %v3361 = vadd.f32 %v865, %v3360
    %v3362 = vpop.f32.mrf.mxu0
    %3363 = vdwg.mxu0
    %3364 = vmatprep.subr.mxu0 %v1086
    %3365 = vmatpush1.msra.mxu0 %v1085
    %3366 = vmatprep.subr.mxu0 %v1083
    %3367 = vmatpush1.msra.mxu0 %v1082
    %3368 = vmatprep.subr.mxu0 %v1080
    %3369 = vmatpush1.msra.mxu0 %v1079
    %3370 = vmatprep.subr.mxu0 %v1077
    %3371 = vmatpush1.msra.mxu0 %v1076
    %3372 = vmatprep.subr.mxu0 %v1074
    %3373 = vmatpush1.msra.mxu0 %v1073
    %3374 = vmatprep.subr.mxu0 %v1071
    %3375 = vmatpush1.msra.mxu0 %v1070
    %3376 = vmatprep.subr.mxu0 %v1068
    %3377 = vmatpush1.msra.mxu0 %v1067
    %3378 = vmatprep.subr.mxu0 %v1065
    %3379 = vmatpush1.msra.mxu0 %v1064
    %3380 = vmatprep.subr.mxu0 %v1062
    %3381 = vmatpush1.msra.mxu0 %v1061
    %3382 = vmatprep.subr.mxu0 %v1059
    %3383 = vmatpush1.msra.mxu0 %v1058
    %3384 = vmatprep.subr.mxu0 %v1056
    %3385 = vmatpush1.msra.mxu0 %v1055
    %3386 = vmatprep.subr.mxu0 %v1053
    %3387 = vmatpush1.msra.mxu0 %v1052
    %3388 = vmatprep.subr.mxu0 %v1050
    %3389 = vmatpush1.msra.mxu0 %v1049
    %3390 = vmatprep.subr.mxu0 %v1047
    %3391 = vmatpush1.msra.mxu0 %v1046
    %3392 = vmatprep.subr.mxu0 %v1044
    %3393 = vmatpush1.msra.mxu0 %v1043
    %3394 = vmatprep.subr.mxu0 %v1041
    %3395 = vmatpush1.msra.mxu0 %v1040
    %3396 = vmatprep.subr.mxu0 0.0
    %3397 = vmatpush2.msra.mxu0 0.0
    %3398 = vmatprep.subr.mxu0 0.0
    %3399 = vmatpush2.msra.mxu0 0.0
    %3400 = vmatprep.subr.mxu0 0.0
    %3401 = vmatpush2.msra.mxu0 0.0
    %3402 = vmatprep.subr.mxu0 0.0
    %3403 = vmatpush2.msra.mxu0 0.0
    %3404 = vmatprep.subr.mxu0 0.0
    %3405 = vmatpush2.msra.mxu0 0.0
    %3406 = vmatprep.subr.mxu0 0.0
    %3407 = vmatpush2.msra.mxu0 0.0
    %3408 = vmatprep.subr.mxu0 0.0
    %3409 = vmatpush2.msra.mxu0 0.0
    %3410 = vmatprep.subr.mxu0 0.0
    %3411 = vmatpush2.msra.mxu0 0.0
    %3412 = vmatprep.subr.mxu0 0.0
    %3413 = vmatpush2.msra.mxu0 0.0
    %3414 = vmatprep.subr.mxu0 0.0
    %3415 = vmatpush2.msra.mxu0 0.0
    %3416 = vmatprep.subr.mxu0 0.0
    %3417 = vmatpush2.msra.mxu0 0.0
    %3418 = vmatprep.subr.mxu0 0.0
    %3419 = vmatpush2.msra.mxu0 0.0
    %3420 = vmatprep.subr.mxu0 0.0
    %3421 = vmatpush2.msra.mxu0 0.0
    %3422 = vmatprep.subr.mxu0 0.0
    %3423 = vmatpush2.msra.mxu0 0.0
    %3424 = vmatprep.subr.mxu0 0.0
    %3425 = vmatpush2.msra.mxu0 0.0
    %3426 = vmatprep.subr.mxu0 0.0
    %3427 = vmatpush2.msra.mxu0 0.0
    %3428 = vmatprep.mubr.f32.mxu0 0.0
    %3429 = vmatmul.mubr.f32.gmra.mxu0 %v2770
    %v3430 = vpop.f32.mrf.mxu0
    %v3431 = vadd.f32 0.0, %v3430
    %v3432 = vpop.f32.mrf.mxu0
    %v3433 = vadd.f32 0.0, %v3432
    %3434 = vdwg.mxu0
    %3435 = vmatprep.subr.mxu0 0.0
    %3436 = vmatpush1.msra.mxu0 %v1087
    %3437 = vmatprep.subr.mxu0 0.0
    %3438 = vmatpush1.msra.mxu0 %v1084
    %3439 = vmatprep.subr.mxu0 0.0
    %3440 = vmatpush1.msra.mxu0 %v1081
    %3441 = vmatprep.subr.mxu0 0.0
    %3442 = vmatpush1.msra.mxu0 %v1078
    %3443 = vmatprep.subr.mxu0 0.0
    %3444 = vmatpush1.msra.mxu0 %v1075
    %3445 = vmatprep.subr.mxu0 0.0
    %3446 = vmatpush1.msra.mxu0 %v1072
    %3447 = vmatprep.subr.mxu0 0.0
    %3448 = vmatpush1.msra.mxu0 %v1069
    %3449 = vmatprep.subr.mxu0 0.0
    %3450 = vmatpush1.msra.mxu0 %v1066
    %3451 = vmatprep.subr.mxu0 0.0
    %3452 = vmatpush1.msra.mxu0 %v1063
    %3453 = vmatprep.subr.mxu0 0.0
    %3454 = vmatpush1.msra.mxu0 %v1060
    %3455 = vmatprep.subr.mxu0 0.0
    %3456 = vmatpush1.msra.mxu0 %v1057
    %3457 = vmatprep.subr.mxu0 0.0
    %3458 = vmatpush1.msra.mxu0 %v1054
    %3459 = vmatprep.subr.mxu0 0.0
    %3460 = vmatpush1.msra.mxu0 %v1051
    %3461 = vmatprep.subr.mxu0 0.0
    %3462 = vmatpush1.msra.mxu0 %v1048
    %3463 = vmatprep.subr.mxu0 0.0
    %3464 = vmatpush1.msra.mxu0 %v1045
    %3465 = vmatprep.subr.mxu0 0.0
    %3466 = vmatpush1.msra.mxu0 %v1042
    %3467 = vmatprep.subr.mxu0 0.0
    %3468 = vmatpush2.msra.mxu0 0.0
    %3469 = vmatprep.subr.mxu0 0.0
    %3470 = vmatpush2.msra.mxu0 0.0
    %3471 = vmatprep.subr.mxu0 0.0
    %3472 = vmatpush2.msra.mxu0 0.0
    %3473 = vmatprep.subr.mxu0 0.0
    %3474 = vmatpush2.msra.mxu0 0.0
    %3475 = vmatprep.subr.mxu0 0.0
    %3476 = vmatpush2.msra.mxu0 0.0
    %3477 = vmatprep.subr.mxu0 0.0
    %3478 = vmatpush2.msra.mxu0 0.0
    %3479 = vmatprep.subr.mxu0 0.0
    %3480 = vmatpush2.msra.mxu0 0.0
    %3481 = vmatprep.subr.mxu0 0.0
    %3482 = vmatpush2.msra.mxu0 0.0
    %3483 = vmatprep.subr.mxu0 0.0
    %3484 = vmatpush2.msra.mxu0 0.0
    %3485 = vmatprep.subr.mxu0 0.0
    %3486 = vmatpush2.msra.mxu0 0.0
    %3487 = vmatprep.subr.mxu0 0.0
    %3488 = vmatpush2.msra.mxu0 0.0
    %3489 = vmatprep.subr.mxu0 0.0
    %3490 = vmatpush2.msra.mxu0 0.0
    %3491 = vmatprep.subr.mxu0 0.0
    %3492 = vmatpush2.msra.mxu0 0.0
    %3493 = vmatprep.subr.mxu0 0.0
    %3494 = vmatpush2.msra.mxu0 0.0
    %3495 = vmatprep.subr.mxu0 0.0
    %3496 = vmatpush2.msra.mxu0 0.0
    %3497 = vmatprep.subr.mxu0 0.0
    %3498 = vmatpush2.msra.mxu0 0.0
    %3499 = vmatprep.mubr.f32.mxu0 0.0
    %3500 = vmatmul.mubr.f32.gmra.mxu0 %v2770
    %v3501 = vpop.f32.mrf.mxu0
    %v3502 = vadd.f32 0.0, %v3501
    %v3503 = vpop.f32.mrf.mxu0
    %3504 = vdwg.mxu0
    %v3505 = vadd.f32 %v3290, %v3431
    %v3506 = vxor.u32 %v3505, 2147483648
    %v3507 = vmul.f32 %v3506, 1.442695
    %v3508 = vpow.pop %v3507
    %v3509 = vadd.f32 %v3508, 1.0
    %v3510 = vrcp.pop %v3509
    %v3511 = vmul.f32 1.0, %v3510
    %v3512 = vadd.f32 %v3292, %v3433
    %v3513 = vxor.u32 %v3512, 2147483648
    %v3514 = vmul.f32 %v3513, 1.442695
    %v3515 = vpow.pop %v3514
    %v3516 = vadd.f32 %v3515, 1.0
    %v3517 = vrcp.pop %v3516
    %v3518 = vmul.f32 1.0, %v3517
    %v3519 = vadd.f32 %v3502, %v1248
    %v3520 = vmul.f32 %v3511, %v3519
    %v3521 = vadd.f32 %v3361, %v3520
    %v3522 = vtanh.pop %v3521
    %v3523 = vsub.f32 1.0, %v3518
    %v3524 = vmul.f32 %v3523, %v3522
    %v3525 = vmul.f32 %v3518, %v2770
    %v3526 = vadd.f32 %v3524, %v3525
    %vm3527 = vcmp.eq.s32.totalorder %v1258, 3
    %v3528 = vsel %vm3527, 1, 0
    %3529 = vset.pattern.permute.xlu0 0
    %3530 = vperm.xlu0 %3529, %v3528
    %v3531 = vpop.permute.xlu0 %3530
    %vm3532 = vcmp.eq.s32.totalorder %v3531, 1
    %v3533 = vsel %vm3532, %v3526, %v2777
    %v3542 = vrot.slane %v3166, 3
    %v3543 = vrot.slane %v3167, 2
    %v3544 = vsel %vm878, %v3543, %v3542
    %v3545 = vrot.slane %v3168, 1
    %v3546 = vsel %vm881, %v3545, %v3544
    %v3547 = vsel %vm884, %v3169, %v3546
    %v3548 = vrot.slane %v3170, 7
    %v3549 = vsel %vm887, %v3548, %v3547
    %v3550 = vrot.slane %v3171, 6
    %v3551 = vsel %vm890, %v3550, %v3549
    %v3552 = vrot.slane %v3172, 5
    %v3553 = vsel %vm893, %v3552, %v3551
    %v3554 = vrot.slane %v3173, 4
    %v3555 = vsel %vm896, %v3554, %v3553
    %3557 = vmatprep.subr.mxu0 %v412
    %3558 = vmatpush1.msra.mxu0 %v411
    %3559 = vmatprep.subr.mxu0 %v409
    %3560 = vmatpush1.msra.mxu0 %v408
    %3561 = vmatprep.subr.mxu0 %v406
    %3562 = vmatpush1.msra.mxu0 %v405
    %3563 = vmatprep.subr.mxu0 %v403
    %3564 = vmatpush1.msra.mxu0 %v402
    %3565 = vmatprep.subr.mxu0 %v400
    %3566 = vmatpush1.msra.mxu0 %v399
    %3567 = vmatprep.subr.mxu0 %v397
    %3568 = vmatpush1.msra.mxu0 %v396
    %3569 = vmatprep.subr.mxu0 %v394
    %3570 = vmatpush1.msra.mxu0 %v393
    %3571 = vmatprep.subr.mxu0 %v391
    %3572 = vmatpush1.msra.mxu0 %v390
    %3573 = vmatprep.subr.mxu0 %v388
    %3574 = vmatpush1.msra.mxu0 %v387
    %3575 = vmatprep.subr.mxu0 %v385
    %3576 = vmatpush1.msra.mxu0 %v384
    %3577 = vmatprep.subr.mxu0 %v382
    %3578 = vmatpush1.msra.mxu0 %v381
    %3579 = vmatprep.subr.mxu0 %v379
    %3580 = vmatpush1.msra.mxu0 %v378
    %3581 = vmatprep.subr.mxu0 %v376
    %3582 = vmatpush1.msra.mxu0 %v375
    %3583 = vmatprep.subr.mxu0 %v373
    %3584 = vmatpush1.msra.mxu0 %v372
    %3585 = vmatprep.subr.mxu0 %v370
    %3586 = vmatpush1.msra.mxu0 %v369
    %3587 = vmatprep.subr.mxu0 %v367
    %3588 = vmatpush1.msra.mxu0 %v366
    %3589 = vmatprep.subr.mxu0 0.0
    %3590 = vmatpush2.msra.mxu0 0.0
    %3591 = vmatprep.subr.mxu0 0.0
    %3592 = vmatpush2.msra.mxu0 0.0
    %3593 = vmatprep.subr.mxu0 0.0
    %3594 = vmatpush2.msra.mxu0 0.0
    %3595 = vmatprep.subr.mxu0 0.0
    %3596 = vmatpush2.msra.mxu0 0.0
    %3597 = vmatprep.subr.mxu0 0.0
    %3598 = vmatpush2.msra.mxu0 0.0
    %3599 = vmatprep.subr.mxu0 0.0
    %3600 = vmatpush2.msra.mxu0 0.0
    %3601 = vmatprep.subr.mxu0 0.0
    %3602 = vmatpush2.msra.mxu0 0.0
    %3603 = vmatprep.subr.mxu0 0.0
    %3604 = vmatpush2.msra.mxu0 0.0
    %3605 = vmatprep.subr.mxu0 0.0
    %3606 = vmatpush2.msra.mxu0 0.0
    %3607 = vmatprep.subr.mxu0 0.0
    %3608 = vmatpush2.msra.mxu0 0.0
    %3609 = vmatprep.subr.mxu0 0.0
    %3610 = vmatpush2.msra.mxu0 0.0
    %3611 = vmatprep.subr.mxu0 0.0
    %3612 = vmatpush2.msra.mxu0 0.0
    %3613 = vmatprep.subr.mxu0 0.0
    %3614 = vmatpush2.msra.mxu0 0.0
    %3615 = vmatprep.subr.mxu0 0.0
    %3616 = vmatpush2.msra.mxu0 0.0
    %3617 = vmatprep.subr.mxu0 0.0
    %3618 = vmatpush2.msra.mxu0 0.0
    %3619 = vmatprep.subr.mxu0 0.0
    %3620 = vmatpush2.msra.mxu0 0.0
    %3621 = vmatprep.mubr.f32.mxu0 0.0
    %3622 = vmatmul.mubr.f32.gmra.mxu0 %v3555
    %v3623 = vpop.f32.mrf.mxu0
    %v3624 = vadd.f32 0.0, %v3623
    %v3625 = vpop.f32.mrf.mxu0
    %v3626 = vadd.f32 0.0, %v3625
    %3627 = vdwg.mxu0
    %3628 = vmatprep.subr.mxu0 0.0
    %3629 = vmatpush1.msra.mxu0 %v413
    %3630 = vmatprep.subr.mxu0 0.0
    %3631 = vmatpush1.msra.mxu0 %v410
    %3632 = vmatprep.subr.mxu0 0.0
    %3633 = vmatpush1.msra.mxu0 %v407
    %3634 = vmatprep.subr.mxu0 0.0
    %3635 = vmatpush1.msra.mxu0 %v404
    %3636 = vmatprep.subr.mxu0 0.0
    %3637 = vmatpush1.msra.mxu0 %v401
    %3638 = vmatprep.subr.mxu0 0.0
    %3639 = vmatpush1.msra.mxu0 %v398
    %3640 = vmatprep.subr.mxu0 0.0
    %3641 = vmatpush1.msra.mxu0 %v395
    %3642 = vmatprep.subr.mxu0 0.0
    %3643 = vmatpush1.msra.mxu0 %v392
    %3644 = vmatprep.subr.mxu0 0.0
    %3645 = vmatpush1.msra.mxu0 %v389
    %3646 = vmatprep.subr.mxu0 0.0
    %3647 = vmatpush1.msra.mxu0 %v386
    %3648 = vmatprep.subr.mxu0 0.0
    %3649 = vmatpush1.msra.mxu0 %v383
    %3650 = vmatprep.subr.mxu0 0.0
    %3651 = vmatpush1.msra.mxu0 %v380
    %3652 = vmatprep.subr.mxu0 0.0
    %3653 = vmatpush1.msra.mxu0 %v377
    %3654 = vmatprep.subr.mxu0 0.0
    %3655 = vmatpush1.msra.mxu0 %v374
    %3656 = vmatprep.subr.mxu0 0.0
    %3657 = vmatpush1.msra.mxu0 %v371
    %3658 = vmatprep.subr.mxu0 0.0
    %3659 = vmatpush1.msra.mxu0 %v368
    %3660 = vmatprep.subr.mxu0 0.0
    %3661 = vmatpush2.msra.mxu0 0.0
    %3662 = vmatprep.subr.mxu0 0.0
    %3663 = vmatpush2.msra.mxu0 0.0
    %3664 = vmatprep.subr.mxu0 0.0
    %3665 = vmatpush2.msra.mxu0 0.0
    %3666 = vmatprep.subr.mxu0 0.0
    %3667 = vmatpush2.msra.mxu0 0.0
    %3668 = vmatprep.subr.mxu0 0.0
    %3669 = vmatpush2.msra.mxu0 0.0
    %3670 = vmatprep.subr.mxu0 0.0
    %3671 = vmatpush2.msra.mxu0 0.0
    %3672 = vmatprep.subr.mxu0 0.0
    %3673 = vmatpush2.msra.mxu0 0.0
    %3674 = vmatprep.subr.mxu0 0.0
    %3675 = vmatpush2.msra.mxu0 0.0
    %3676 = vmatprep.subr.mxu0 0.0
    %3677 = vmatpush2.msra.mxu0 0.0
    %3678 = vmatprep.subr.mxu0 0.0
    %3679 = vmatpush2.msra.mxu0 0.0
    %3680 = vmatprep.subr.mxu0 0.0
    %3681 = vmatpush2.msra.mxu0 0.0
    %3682 = vmatprep.subr.mxu0 0.0
    %3683 = vmatpush2.msra.mxu0 0.0
    %3684 = vmatprep.subr.mxu0 0.0
    %3685 = vmatpush2.msra.mxu0 0.0
    %3686 = vmatprep.subr.mxu0 0.0
    %3687 = vmatpush2.msra.mxu0 0.0
    %3688 = vmatprep.subr.mxu0 0.0
    %3689 = vmatpush2.msra.mxu0 0.0
    %3690 = vmatprep.subr.mxu0 0.0
    %3691 = vmatpush2.msra.mxu0 0.0
    %3692 = vmatprep.mubr.f32.mxu0 0.0
    %3693 = vmatmul.mubr.f32.gmra.mxu0 %v3555
    %v3694 = vpop.f32.mrf.mxu0
    %v3695 = vadd.f32 0.0, %v3694
    %v3696 = vpop.f32.mrf.mxu0
    %3697 = vdwg.mxu0
    %v3699 = vrot.slane %v3624, 4
    %v3700 = vrot.slane %v3624, 5
    %v3701 = vrot.slane %v3624, 6
    %v3702 = vrot.slane %v3624, 7
    %v3703 = vrot.slane %v3624, 1
    %v3704 = vrot.slane %v3624, 2
    %v3705 = vrot.slane %v3624, 3
    %v3714 = vadd.f32 %v214, %v3699
    %v3715 = vadd.f32 %v220, %v3700
    %v3716 = vadd.f32 %v226, %v3701
    %v3717 = vadd.f32 %v232, %v3702
    %v3718 = vadd.f32 %v238, %v3624
    %v3719 = vadd.f32 %v244, %v3703
    %v3720 = vadd.f32 %v250, %v3704
    %v3721 = vadd.f32 %v256, %v3705
    %v3722 = vxor.u32 %v3714, 2147483648
    %v3723 = vxor.u32 %v3715, 2147483648
    %v3724 = vxor.u32 %v3716, 2147483648
    %v3725 = vxor.u32 %v3717, 2147483648
    %v3726 = vxor.u32 %v3718, 2147483648
    %v3727 = vxor.u32 %v3719, 2147483648
    %v3728 = vxor.u32 %v3720, 2147483648
    %v3729 = vxor.u32 %v3721, 2147483648
    %v3730 = vmul.f32 %v3722, 1.442695
    %v3731 = vpow.pop %v3730
    %v3732 = vmul.f32 %v3723, 1.442695
    %v3733 = vpow.pop %v3732
    %v3734 = vmul.f32 %v3724, 1.442695
    %v3735 = vpow.pop %v3734
    %v3736 = vmul.f32 %v3725, 1.442695
    %v3737 = vpow.pop %v3736
    %v3738 = vmul.f32 %v3726, 1.442695
    %v3739 = vpow.pop %v3738
    %v3740 = vmul.f32 %v3727, 1.442695
    %v3741 = vpow.pop %v3740
    %v3742 = vmul.f32 %v3728, 1.442695
    %v3743 = vpow.pop %v3742
    %v3744 = vmul.f32 %v3729, 1.442695
    %v3745 = vpow.pop %v3744
    %v3746 = vadd.f32 %v3731, 1.0
    %v3747 = vadd.f32 %v3733, 1.0
    %v3748 = vadd.f32 %v3735, 1.0
    %v3749 = vadd.f32 %v3737, 1.0
    %v3750 = vadd.f32 %v3739, 1.0
    %v3751 = vadd.f32 %v3741, 1.0
    %v3752 = vadd.f32 %v3743, 1.0
    %v3753 = vadd.f32 %v3745, 1.0
    %v3754 = vrcp.pop %v3746
    %v3755 = vmul.f32 1.0, %v3754
    %v3756 = vrcp.pop %v3747
    %v3757 = vmul.f32 1.0, %v3756
    %v3758 = vrcp.pop %v3748
    %v3759 = vmul.f32 1.0, %v3758
    %v3760 = vrcp.pop %v3749
    %v3761 = vmul.f32 1.0, %v3760
    %v3762 = vrcp.pop %v3750
    %v3763 = vmul.f32 1.0, %v3762
    %v3764 = vrcp.pop %v3751
    %v3765 = vmul.f32 1.0, %v3764
    %v3766 = vrcp.pop %v3752
    %v3767 = vmul.f32 1.0, %v3766
    %v3768 = vrcp.pop %v3753
    %v3769 = vmul.f32 1.0, %v3768
    %v3771 = vrot.slane %v3626, 4
    %v3772 = vrot.slane %v3626, 5
    %v3773 = vrot.slane %v3626, 6
    %v3774 = vrot.slane %v3626, 7
    %v3775 = vrot.slane %v3626, 1
    %v3776 = vrot.slane %v3626, 2
    %v3777 = vrot.slane %v3626, 3
    %v3786 = vadd.f32 %v216, %v3771
    %v3787 = vadd.f32 %v222, %v3772
    %v3788 = vadd.f32 %v228, %v3773
    %v3789 = vadd.f32 %v234, %v3774
    %v3790 = vadd.f32 %v240, %v3626
    %v3791 = vadd.f32 %v246, %v3775
    %v3792 = vadd.f32 %v252, %v3776
    %v3793 = vadd.f32 %v258, %v3777
    %v3794 = vxor.u32 %v3786, 2147483648
    %v3795 = vxor.u32 %v3787, 2147483648
    %v3796 = vxor.u32 %v3788, 2147483648
    %v3797 = vxor.u32 %v3789, 2147483648
    %v3798 = vxor.u32 %v3790, 2147483648
    %v3799 = vxor.u32 %v3791, 2147483648
    %v3800 = vxor.u32 %v3792, 2147483648
    %v3801 = vxor.u32 %v3793, 2147483648
    %v3802 = vmul.f32 %v3794, 1.442695
    %v3803 = vpow.pop %v3802
    %v3804 = vmul.f32 %v3795, 1.442695
    %v3805 = vpow.pop %v3804
    %v3806 = vmul.f32 %v3796, 1.442695
    %v3807 = vpow.pop %v3806
    %v3808 = vmul.f32 %v3797, 1.442695
    %v3809 = vpow.pop %v3808
    %v3810 = vmul.f32 %v3798, 1.442695
    %v3811 = vpow.pop %v3810
    %v3812 = vmul.f32 %v3799, 1.442695
    %v3813 = vpow.pop %v3812
    %v3814 = vmul.f32 %v3800, 1.442695
    %v3815 = vpow.pop %v3814
    %v3816 = vmul.f32 %v3801, 1.442695
    %v3817 = vpow.pop %v3816
    %v3818 = vadd.f32 %v3803, 1.0
    %v3819 = vadd.f32 %v3805, 1.0
    %v3820 = vadd.f32 %v3807, 1.0
    %v3821 = vadd.f32 %v3809, 1.0
    %v3822 = vadd.f32 %v3811, 1.0
    %v3823 = vadd.f32 %v3813, 1.0
    %v3824 = vadd.f32 %v3815, 1.0
    %v3825 = vadd.f32 %v3817, 1.0
    %v3826 = vrcp.pop %v3818
    %v3827 = vmul.f32 1.0, %v3826
    %v3828 = vrcp.pop %v3819
    %v3829 = vmul.f32 1.0, %v3828
    %v3830 = vrcp.pop %v3820
    %v3831 = vmul.f32 1.0, %v3830
    %v3832 = vrcp.pop %v3821
    %v3833 = vmul.f32 1.0, %v3832
    %v3834 = vrcp.pop %v3822
    %v3835 = vmul.f32 1.0, %v3834
    %v3836 = vrcp.pop %v3823
    %v3837 = vmul.f32 1.0, %v3836
    %v3838 = vrcp.pop %v3824
    %v3839 = vmul.f32 1.0, %v3838
    %v3840 = vrcp.pop %v3825
    %v3841 = vmul.f32 1.0, %v3840
    %v3842 = vadd.f32 %v3695, %v704
    %v3844 = vrot.slane %v3842, 4
    %v3845 = vrot.slane %v3842, 5
    %v3846 = vrot.slane %v3842, 6
    %v3847 = vrot.slane %v3842, 7
    %v3848 = vrot.slane %v3842, 1
    %v3849 = vrot.slane %v3842, 2
    %v3850 = vrot.slane %v3842, 3
    %v3859 = vmul.f32 %v3755, %v3844
    %v3860 = vmul.f32 %v3757, %v3845
    %v3861 = vmul.f32 %v3759, %v3846
    %v3862 = vmul.f32 %v3761, %v3847
    %v3863 = vmul.f32 %v3763, %v3842
    %v3864 = vmul.f32 %v3765, %v3848
    %v3865 = vmul.f32 %v3767, %v3849
    %v3866 = vmul.f32 %v3769, %v3850
    %v3867 = vadd.f32 %v327, %v3859
    %v3868 = vadd.f32 %v332, %v3860
    %v3869 = vadd.f32 %v337, %v3861
    %v3870 = vadd.f32 %v342, %v3862
    %v3871 = vadd.f32 %v347, %v3863
    %v3872 = vadd.f32 %v352, %v3864
    %v3873 = vadd.f32 %v357, %v3865
    %v3874 = vadd.f32 %v362, %v3866
    %v3875 = vtanh.pop %v3867
    %v3876 = vtanh.pop %v3868
    %v3877 = vtanh.pop %v3869
    %v3878 = vtanh.pop %v3870
    %v3879 = vtanh.pop %v3871
    %v3880 = vtanh.pop %v3872
    %v3881 = vtanh.pop %v3873
    %v3882 = vtanh.pop %v3874
    %v3883 = vsub.f32 1.0, %v3827
    %v3884 = vsub.f32 1.0, %v3829
    %v3885 = vsub.f32 1.0, %v3831
    %v3886 = vsub.f32 1.0, %v3833
    %v3887 = vsub.f32 1.0, %v3835
    %v3888 = vsub.f32 1.0, %v3837
    %v3889 = vsub.f32 1.0, %v3839
    %v3890 = vsub.f32 1.0, %v3841
    %v3891 = vmul.f32 %v3883, %v3875
    %v3892 = vmul.f32 %v3884, %v3876
    %v3893 = vmul.f32 %v3885, %v3877
    %v3894 = vmul.f32 %v3886, %v3878
    %v3895 = vmul.f32 %v3887, %v3879
    %v3896 = vmul.f32 %v3888, %v3880
    %v3897 = vmul.f32 %v3889, %v3881
    %v3898 = vmul.f32 %v3890, %v3882
    %v3899 = vrot.slane %v3166, 7
    %v3900 = vrot.slane %v3167, 7
    %v3901 = vrot.slane %v3168, 7
    %v3902 = vrot.slane %v3169, 7
    %v3903 = vrot.slane %v3171, 7
    %v3904 = vrot.slane %v3172, 7
    %v3905 = vrot.slane %v3173, 7
    %v3914 = vmul.f32 %v3827, %v3899
    %v3915 = vmul.f32 %v3829, %v3900
    %v3916 = vmul.f32 %v3831, %v3901
    %v3917 = vmul.f32 %v3833, %v3902
    %v3918 = vmul.f32 %v3835, %v3548
    %v3919 = vmul.f32 %v3837, %v3903
    %v3920 = vmul.f32 %v3839, %v3904
    %v3921 = vmul.f32 %v3841, %v3905
    %v3922 = vadd.f32 %v3891, %v3914
    %v3923 = vadd.f32 %v3892, %v3915
    %v3924 = vadd.f32 %v3893, %v3916
    %v3925 = vadd.f32 %v3894, %v3917
    %v3926 = vadd.f32 %v3895, %v3918
    %v3927 = vadd.f32 %v3896, %v3919
    %v3928 = vadd.f32 %v3897, %v3920
    %v3929 = vadd.f32 %v3898, %v3921
    %s3930 = scalar_lea.vmem %s1, 32
    %v3931 = vld [vmem:[%s3930] sm:$0xff]
    %v3933 = vrot.slane %v3931, 4
    %v3934 = vrot.slane %v3931, 5
    %v3935 = vrot.slane %v3931, 6
    %v3936 = vrot.slane %v3931, 7
    %v3937 = vrot.slane %v3931, 1
    %v3938 = vrot.slane %v3931, 2
    %v3939 = vrot.slane %v3931, 3
    %v3948 = vmul.f32 %v3922, %v3933
    %v3949 = vmul.f32 %v3923, %v3934
    %v3950 = vmul.f32 %v3924, %v3935
    %v3951 = vmul.f32 %v3925, %v3936
    %v3952 = vmul.f32 %v3926, %v3931
    %v3953 = vmul.f32 %v3927, %v3937
    %v3954 = vmul.f32 %v3928, %v3938
    %v3955 = vmul.f32 %v3929, %v3939
    %v3964 = vrot.slane %v3948, 4
    %v3965 = vrot.slane %v3949, 3
    %v3966 = vsel %vm878, %v3965, %v3964
    %v3967 = vrot.slane %v3950, 2
    %v3968 = vsel %vm881, %v3967, %v3966
    %v3969 = vrot.slane %v3951, 1
    %v3970 = vsel %vm884, %v3969, %v3968
    %v3971 = vsel %vm887, %v3952, %v3970
    %v3972 = vrot.slane %v3953, 7
    %v3973 = vsel %vm890, %v3972, %v3971
    %v3974 = vrot.slane %v3954, 6
    %v3975 = vsel %vm893, %v3974, %v3973
    %v3976 = vrot.slane %v3955, 5
    %v3977 = vsel %vm896, %v3976, %v3975
    %3979 = vmatprep.subr.mxu0 %v850
    %3980 = vmatpush1.msra.mxu0 %v849
    %3981 = vmatprep.subr.mxu0 %v847
    %3982 = vmatpush1.msra.mxu0 %v846
    %3983 = vmatprep.subr.mxu0 %v844
    %3984 = vmatpush1.msra.mxu0 %v843
    %3985 = vmatprep.subr.mxu0 %v841
    %3986 = vmatpush1.msra.mxu0 %v840
    %3987 = vmatprep.subr.mxu0 %v838
    %3988 = vmatpush1.msra.mxu0 %v837
    %3989 = vmatprep.subr.mxu0 %v835
    %3990 = vmatpush1.msra.mxu0 %v834
    %3991 = vmatprep.subr.mxu0 %v832
    %3992 = vmatpush1.msra.mxu0 %v831
    %3993 = vmatprep.subr.mxu0 %v829
    %3994 = vmatpush1.msra.mxu0 %v828
    %3995 = vmatprep.subr.mxu0 %v826
    %3996 = vmatpush1.msra.mxu0 %v825
    %3997 = vmatprep.subr.mxu0 %v823
    %3998 = vmatpush1.msra.mxu0 %v822
    %3999 = vmatprep.subr.mxu0 %v820
    %4000 = vmatpush1.msra.mxu0 %v819
    %4001 = vmatprep.subr.mxu0 %v817
    %4002 = vmatpush1.msra.mxu0 %v816
    %4003 = vmatprep.subr.mxu0 %v814
    %4004 = vmatpush1.msra.mxu0 %v813
    %4005 = vmatprep.subr.mxu0 %v811
    %4006 = vmatpush1.msra.mxu0 %v810
    %4007 = vmatprep.subr.mxu0 %v808
    %4008 = vmatpush1.msra.mxu0 %v807
    %4009 = vmatprep.subr.mxu0 %v805
    %4010 = vmatpush1.msra.mxu0 %v804
    %4011 = vmatprep.subr.mxu0 0.0
    %4012 = vmatpush2.msra.mxu0 0.0
    %4013 = vmatprep.subr.mxu0 0.0
    %4014 = vmatpush2.msra.mxu0 0.0
    %4015 = vmatprep.subr.mxu0 0.0
    %4016 = vmatpush2.msra.mxu0 0.0
    %4017 = vmatprep.subr.mxu0 0.0
    %4018 = vmatpush2.msra.mxu0 0.0
    %4019 = vmatprep.subr.mxu0 0.0
    %4020 = vmatpush2.msra.mxu0 0.0
    %4021 = vmatprep.subr.mxu0 0.0
    %4022 = vmatpush2.msra.mxu0 0.0
    %4023 = vmatprep.subr.mxu0 0.0
    %4024 = vmatpush2.msra.mxu0 0.0
    %4025 = vmatprep.subr.mxu0 0.0
    %4026 = vmatpush2.msra.mxu0 0.0
    %4027 = vmatprep.subr.mxu0 0.0
    %4028 = vmatpush2.msra.mxu0 0.0
    %4029 = vmatprep.subr.mxu0 0.0
    %4030 = vmatpush2.msra.mxu0 0.0
    %4031 = vmatprep.subr.mxu0 0.0
    %4032 = vmatpush2.msra.mxu0 0.0
    %4033 = vmatprep.subr.mxu0 0.0
    %4034 = vmatpush2.msra.mxu0 0.0
    %4035 = vmatprep.subr.mxu0 0.0
    %4036 = vmatpush2.msra.mxu0 0.0
    %4037 = vmatprep.subr.mxu0 0.0
    %4038 = vmatpush2.msra.mxu0 0.0
    %4039 = vmatprep.subr.mxu0 0.0
    %4040 = vmatpush2.msra.mxu0 0.0
    %4041 = vmatprep.subr.mxu0 0.0
    %4042 = vmatpush2.msra.mxu0 0.0
    %4043 = vmatprep.mubr.f32.mxu0 0.0
    %4044 = vmatmul.mubr.f32.gmra.mxu0 %v3977
    %v4045 = vpop.f32.mrf.mxu0
    %v4046 = vadd.f32 %v857, %v4045
    %v4047 = vpop.f32.mrf.mxu0
    %v4048 = vadd.f32 %v861, %v4047
    %4049 = vdwg.mxu0
    %4050 = vmatprep.subr.mxu0 0.0
    %4051 = vmatpush1.msra.mxu0 %v851
    %4052 = vmatprep.subr.mxu0 0.0
    %4053 = vmatpush1.msra.mxu0 %v848
    %4054 = vmatprep.subr.mxu0 0.0
    %4055 = vmatpush1.msra.mxu0 %v845
    %4056 = vmatprep.subr.mxu0 0.0
    %4057 = vmatpush1.msra.mxu0 %v842
    %4058 = vmatprep.subr.mxu0 0.0
    %4059 = vmatpush1.msra.mxu0 %v839
    %4060 = vmatprep.subr.mxu0 0.0
    %4061 = vmatpush1.msra.mxu0 %v836
    %4062 = vmatprep.subr.mxu0 0.0
    %4063 = vmatpush1.msra.mxu0 %v833
    %4064 = vmatprep.subr.mxu0 0.0
    %4065 = vmatpush1.msra.mxu0 %v830
    %4066 = vmatprep.subr.mxu0 0.0
    %4067 = vmatpush1.msra.mxu0 %v827
    %4068 = vmatprep.subr.mxu0 0.0
    %4069 = vmatpush1.msra.mxu0 %v824
    %4070 = vmatprep.subr.mxu0 0.0
    %4071 = vmatpush1.msra.mxu0 %v821
    %4072 = vmatprep.subr.mxu0 0.0
    %4073 = vmatpush1.msra.mxu0 %v818
    %4074 = vmatprep.subr.mxu0 0.0
    %4075 = vmatpush1.msra.mxu0 %v815
    %4076 = vmatprep.subr.mxu0 0.0
    %4077 = vmatpush1.msra.mxu0 %v812
    %4078 = vmatprep.subr.mxu0 0.0
    %4079 = vmatpush1.msra.mxu0 %v809
    %4080 = vmatprep.subr.mxu0 0.0
    %4081 = vmatpush1.msra.mxu0 %v806
    %4082 = vmatprep.subr.mxu0 0.0
    %4083 = vmatpush2.msra.mxu0 0.0
    %4084 = vmatprep.subr.mxu0 0.0
    %4085 = vmatpush2.msra.mxu0 0.0
    %4086 = vmatprep.subr.mxu0 0.0
    %4087 = vmatpush2.msra.mxu0 0.0
    %4088 = vmatprep.subr.mxu0 0.0
    %4089 = vmatpush2.msra.mxu0 0.0
    %4090 = vmatprep.subr.mxu0 0.0
    %4091 = vmatpush2.msra.mxu0 0.0
    %4092 = vmatprep.subr.mxu0 0.0
    %4093 = vmatpush2.msra.mxu0 0.0
    %4094 = vmatprep.subr.mxu0 0.0
    %4095 = vmatpush2.msra.mxu0 0.0
    %4096 = vmatprep.subr.mxu0 0.0
    %4097 = vmatpush2.msra.mxu0 0.0
    %4098 = vmatprep.subr.mxu0 0.0
    %4099 = vmatpush2.msra.mxu0 0.0
    %4100 = vmatprep.subr.mxu0 0.0
    %4101 = vmatpush2.msra.mxu0 0.0
    %4102 = vmatprep.subr.mxu0 0.0
    %4103 = vmatpush2.msra.mxu0 0.0
    %4104 = vmatprep.subr.mxu0 0.0
    %4105 = vmatpush2.msra.mxu0 0.0
    %4106 = vmatprep.subr.mxu0 0.0
    %4107 = vmatpush2.msra.mxu0 0.0
    %4108 = vmatprep.subr.mxu0 0.0
    %4109 = vmatpush2.msra.mxu0 0.0
    %4110 = vmatprep.subr.mxu0 0.0
    %4111 = vmatpush2.msra.mxu0 0.0
    %4112 = vmatprep.subr.mxu0 0.0
    %4113 = vmatpush2.msra.mxu0 0.0
    %4114 = vmatprep.mubr.f32.mxu0 0.0
    %4115 = vmatmul.mubr.f32.gmra.mxu0 %v3977
    %v4116 = vpop.f32.mrf.mxu0
    %v4117 = vadd.f32 %v865, %v4116
    %v4118 = vpop.f32.mrf.mxu0
    %4119 = vdwg.mxu0
    %4120 = vmatprep.subr.mxu0 %v1086
    %4121 = vmatpush1.msra.mxu0 %v1085
    %4122 = vmatprep.subr.mxu0 %v1083
    %4123 = vmatpush1.msra.mxu0 %v1082
    %4124 = vmatprep.subr.mxu0 %v1080
    %4125 = vmatpush1.msra.mxu0 %v1079
    %4126 = vmatprep.subr.mxu0 %v1077
    %4127 = vmatpush1.msra.mxu0 %v1076
    %4128 = vmatprep.subr.mxu0 %v1074
    %4129 = vmatpush1.msra.mxu0 %v1073
    %4130 = vmatprep.subr.mxu0 %v1071
    %4131 = vmatpush1.msra.mxu0 %v1070
    %4132 = vmatprep.subr.mxu0 %v1068
    %4133 = vmatpush1.msra.mxu0 %v1067
    %4134 = vmatprep.subr.mxu0 %v1065
    %4135 = vmatpush1.msra.mxu0 %v1064
    %4136 = vmatprep.subr.mxu0 %v1062
    %4137 = vmatpush1.msra.mxu0 %v1061
    %4138 = vmatprep.subr.mxu0 %v1059
    %4139 = vmatpush1.msra.mxu0 %v1058
    %4140 = vmatprep.subr.mxu0 %v1056
    %4141 = vmatpush1.msra.mxu0 %v1055
    %4142 = vmatprep.subr.mxu0 %v1053
    %4143 = vmatpush1.msra.mxu0 %v1052
    %4144 = vmatprep.subr.mxu0 %v1050
    %4145 = vmatpush1.msra.mxu0 %v1049
    %4146 = vmatprep.subr.mxu0 %v1047
    %4147 = vmatpush1.msra.mxu0 %v1046
    %4148 = vmatprep.subr.mxu0 %v1044
    %4149 = vmatpush1.msra.mxu0 %v1043
    %4150 = vmatprep.subr.mxu0 %v1041
    %4151 = vmatpush1.msra.mxu0 %v1040
    %4152 = vmatprep.subr.mxu0 0.0
    %4153 = vmatpush2.msra.mxu0 0.0
    %4154 = vmatprep.subr.mxu0 0.0
    %4155 = vmatpush2.msra.mxu0 0.0
    %4156 = vmatprep.subr.mxu0 0.0
    %4157 = vmatpush2.msra.mxu0 0.0
    %4158 = vmatprep.subr.mxu0 0.0
    %4159 = vmatpush2.msra.mxu0 0.0
    %4160 = vmatprep.subr.mxu0 0.0
    %4161 = vmatpush2.msra.mxu0 0.0
    %4162 = vmatprep.subr.mxu0 0.0
    %4163 = vmatpush2.msra.mxu0 0.0
    %4164 = vmatprep.subr.mxu0 0.0
    %4165 = vmatpush2.msra.mxu0 0.0
    %4166 = vmatprep.subr.mxu0 0.0
    %4167 = vmatpush2.msra.mxu0 0.0
    %4168 = vmatprep.subr.mxu0 0.0
    %4169 = vmatpush2.msra.mxu0 0.0
    %4170 = vmatprep.subr.mxu0 0.0
    %4171 = vmatpush2.msra.mxu0 0.0
    %4172 = vmatprep.subr.mxu0 0.0
    %4173 = vmatpush2.msra.mxu0 0.0
    %4174 = vmatprep.subr.mxu0 0.0
    %4175 = vmatpush2.msra.mxu0 0.0
    %4176 = vmatprep.subr.mxu0 0.0
    %4177 = vmatpush2.msra.mxu0 0.0
    %4178 = vmatprep.subr.mxu0 0.0
    %4179 = vmatpush2.msra.mxu0 0.0
    %4180 = vmatprep.subr.mxu0 0.0
    %4181 = vmatpush2.msra.mxu0 0.0
    %4182 = vmatprep.subr.mxu0 0.0
    %4183 = vmatpush2.msra.mxu0 0.0
    %4184 = vmatprep.mubr.f32.mxu0 0.0
    %4185 = vmatmul.mubr.f32.gmra.mxu0 %v3526
    %v4186 = vpop.f32.mrf.mxu0
    %v4187 = vadd.f32 0.0, %v4186
    %v4188 = vpop.f32.mrf.mxu0
    %v4189 = vadd.f32 0.0, %v4188
    %4190 = vdwg.mxu0
    %4191 = vmatprep.subr.mxu0 0.0
    %4192 = vmatpush1.msra.mxu0 %v1087
    %4193 = vmatprep.subr.mxu0 0.0
    %4194 = vmatpush1.msra.mxu0 %v1084
    %4195 = vmatprep.subr.mxu0 0.0
    %4196 = vmatpush1.msra.mxu0 %v1081
    %4197 = vmatprep.subr.mxu0 0.0
    %4198 = vmatpush1.msra.mxu0 %v1078
    %4199 = vmatprep.subr.mxu0 0.0
    %4200 = vmatpush1.msra.mxu0 %v1075
    %4201 = vmatprep.subr.mxu0 0.0
    %4202 = vmatpush1.msra.mxu0 %v1072
    %4203 = vmatprep.subr.mxu0 0.0
    %4204 = vmatpush1.msra.mxu0 %v1069
    %4205 = vmatprep.subr.mxu0 0.0
    %4206 = vmatpush1.msra.mxu0 %v1066
    %4207 = vmatprep.subr.mxu0 0.0
    %4208 = vmatpush1.msra.mxu0 %v1063
    %4209 = vmatprep.subr.mxu0 0.0
    %4210 = vmatpush1.msra.mxu0 %v1060
    %4211 = vmatprep.subr.mxu0 0.0
    %4212 = vmatpush1.msra.mxu0 %v1057
    %4213 = vmatprep.subr.mxu0 0.0
    %4214 = vmatpush1.msra.mxu0 %v1054
    %4215 = vmatprep.subr.mxu0 0.0
    %4216 = vmatpush1.msra.mxu0 %v1051
    %4217 = vmatprep.subr.mxu0 0.0
    %4218 = vmatpush1.msra.mxu0 %v1048
    %4219 = vmatprep.subr.mxu0 0.0
    %4220 = vmatpush1.msra.mxu0 %v1045
    %4221 = vmatprep.subr.mxu0 0.0
    %4222 = vmatpush1.msra.mxu0 %v1042
    %4223 = vmatprep.subr.mxu0 0.0
    %4224 = vmatpush2.msra.mxu0 0.0
    %4225 = vmatprep.subr.mxu0 0.0
    %4226 = vmatpush2.msra.mxu0 0.0
    %4227 = vmatprep.subr.mxu0 0.0
    %4228 = vmatpush2.msra.mxu0 0.0
    %4229 = vmatprep.subr.mxu0 0.0
    %4230 = vmatpush2.msra.mxu0 0.0
    %4231 = vmatprep.subr.mxu0 0.0
    %4232 = vmatpush2.msra.mxu0 0.0
    %4233 = vmatprep.subr.mxu0 0.0
    %4234 = vmatpush2.msra.mxu0 0.0
    %4235 = vmatprep.subr.mxu0 0.0
    %4236 = vmatpush2.msra.mxu0 0.0
    %4237 = vmatprep.subr.mxu0 0.0
    %4238 = vmatpush2.msra.mxu0 0.0
    %4239 = vmatprep.subr.mxu0 0.0
    %4240 = vmatpush2.msra.mxu0 0.0
    %4241 = vmatprep.subr.mxu0 0.0
    %4242 = vmatpush2.msra.mxu0 0.0
    %4243 = vmatprep.subr.mxu0 0.0
    %4244 = vmatpush2.msra.mxu0 0.0
    %4245 = vmatprep.subr.mxu0 0.0
    %4246 = vmatpush2.msra.mxu0 0.0
    %4247 = vmatprep.subr.mxu0 0.0
    %4248 = vmatpush2.msra.mxu0 0.0
    %4249 = vmatprep.subr.mxu0 0.0
    %4250 = vmatpush2.msra.mxu0 0.0
    %4251 = vmatprep.subr.mxu0 0.0
    %4252 = vmatpush2.msra.mxu0 0.0
    %4253 = vmatprep.subr.mxu0 0.0
    %4254 = vmatpush2.msra.mxu0 0.0
    %4255 = vmatprep.mubr.f32.mxu0 0.0
    %4256 = vmatmul.mubr.f32.gmra.mxu0 %v3526
    %v4257 = vpop.f32.mrf.mxu0
    %v4258 = vadd.f32 0.0, %v4257
    %v4259 = vpop.f32.mrf.mxu0
    %4260 = vdwg.mxu0
    %v4261 = vadd.f32 %v4046, %v4187
    %v4262 = vxor.u32 %v4261, 2147483648
    %v4263 = vmul.f32 %v4262, 1.442695
    %v4264 = vpow.pop %v4263
    %v4265 = vadd.f32 %v4264, 1.0
    %v4266 = vrcp.pop %v4265
    %v4267 = vmul.f32 1.0, %v4266
    %v4268 = vadd.f32 %v4048, %v4189
    %v4269 = vxor.u32 %v4268, 2147483648
    %v4270 = vmul.f32 %v4269, 1.442695
    %v4271 = vpow.pop %v4270
    %v4272 = vadd.f32 %v4271, 1.0
    %v4273 = vrcp.pop %v4272
    %v4274 = vmul.f32 1.0, %v4273
    %v4275 = vadd.f32 %v4258, %v1248
    %v4276 = vmul.f32 %v4267, %v4275
    %v4277 = vadd.f32 %v4117, %v4276
    %v4278 = vtanh.pop %v4277
    %v4279 = vsub.f32 1.0, %v4274
    %v4280 = vmul.f32 %v4279, %v4278
    %v4281 = vmul.f32 %v4274, %v3526
    %v4282 = vadd.f32 %v4280, %v4281
    %vm4283 = vcmp.eq.s32.totalorder %v1258, 4
    %v4284 = vsel %vm4283, 1, 0
    %4285 = vset.pattern.permute.xlu0 0
    %4286 = vperm.xlu0 %4285, %v4284
    %v4287 = vpop.permute.xlu0 %4286
    %vm4288 = vcmp.eq.s32.totalorder %v4287, 1
    %v4289 = vsel %vm4288, %v4282, %v3533
    %v4298 = vrot.slane %v3922, 4
    %v4299 = vrot.slane %v3923, 3
    %v4300 = vsel %vm878, %v4299, %v4298
    %v4301 = vrot.slane %v3924, 2
    %v4302 = vsel %vm881, %v4301, %v4300
    %v4303 = vrot.slane %v3925, 1
    %v4304 = vsel %vm884, %v4303, %v4302
    %v4305 = vsel %vm887, %v3926, %v4304
    %v4306 = vrot.slane %v3927, 7
    %v4307 = vsel %vm890, %v4306, %v4305
    %v4308 = vrot.slane %v3928, 6
    %v4309 = vsel %vm893, %v4308, %v4307
    %v4310 = vrot.slane %v3929, 5
    %v4311 = vsel %vm896, %v4310, %v4309
    %4313 = vmatprep.subr.mxu0 %v412
    %4314 = vmatpush1.msra.mxu0 %v411
    %4315 = vmatprep.subr.mxu0 %v409
    %4316 = vmatpush1.msra.mxu0 %v408
    %4317 = vmatprep.subr.mxu0 %v406
    %4318 = vmatpush1.msra.mxu0 %v405
    %4319 = vmatprep.subr.mxu0 %v403
    %4320 = vmatpush1.msra.mxu0 %v402
    %4321 = vmatprep.subr.mxu0 %v400
    %4322 = vmatpush1.msra.mxu0 %v399
    %4323 = vmatprep.subr.mxu0 %v397
    %4324 = vmatpush1.msra.mxu0 %v396
    %4325 = vmatprep.subr.mxu0 %v394
    %4326 = vmatpush1.msra.mxu0 %v393
    %4327 = vmatprep.subr.mxu0 %v391
    %4328 = vmatpush1.msra.mxu0 %v390
    %4329 = vmatprep.subr.mxu0 %v388
    %4330 = vmatpush1.msra.mxu0 %v387
    %4331 = vmatprep.subr.mxu0 %v385
    %4332 = vmatpush1.msra.mxu0 %v384
    %4333 = vmatprep.subr.mxu0 %v382
    %4334 = vmatpush1.msra.mxu0 %v381
    %4335 = vmatprep.subr.mxu0 %v379
    %4336 = vmatpush1.msra.mxu0 %v378
    %4337 = vmatprep.subr.mxu0 %v376
    %4338 = vmatpush1.msra.mxu0 %v375
    %4339 = vmatprep.subr.mxu0 %v373
    %4340 = vmatpush1.msra.mxu0 %v372
    %4341 = vmatprep.subr.mxu0 %v370
    %4342 = vmatpush1.msra.mxu0 %v369
    %4343 = vmatprep.subr.mxu0 %v367
    %4344 = vmatpush1.msra.mxu0 %v366
    %4345 = vmatprep.subr.mxu0 0.0
    %4346 = vmatpush2.msra.mxu0 0.0
    %4347 = vmatprep.subr.mxu0 0.0
    %4348 = vmatpush2.msra.mxu0 0.0
    %4349 = vmatprep.subr.mxu0 0.0
    %4350 = vmatpush2.msra.mxu0 0.0
    %4351 = vmatprep.subr.mxu0 0.0
    %4352 = vmatpush2.msra.mxu0 0.0
    %4353 = vmatprep.subr.mxu0 0.0
    %4354 = vmatpush2.msra.mxu0 0.0
    %4355 = vmatprep.subr.mxu0 0.0
    %4356 = vmatpush2.msra.mxu0 0.0
    %4357 = vmatprep.subr.mxu0 0.0
    %4358 = vmatpush2.msra.mxu0 0.0
    %4359 = vmatprep.subr.mxu0 0.0
    %4360 = vmatpush2.msra.mxu0 0.0
    %4361 = vmatprep.subr.mxu0 0.0
    %4362 = vmatpush2.msra.mxu0 0.0
    %4363 = vmatprep.subr.mxu0 0.0
    %4364 = vmatpush2.msra.mxu0 0.0
    %4365 = vmatprep.subr.mxu0 0.0
    %4366 = vmatpush2.msra.mxu0 0.0
    %4367 = vmatprep.subr.mxu0 0.0
    %4368 = vmatpush2.msra.mxu0 0.0
    %4369 = vmatprep.subr.mxu0 0.0
    %4370 = vmatpush2.msra.mxu0 0.0
    %4371 = vmatprep.subr.mxu0 0.0
    %4372 = vmatpush2.msra.mxu0 0.0
    %4373 = vmatprep.subr.mxu0 0.0
    %4374 = vmatpush2.msra.mxu0 0.0
    %4375 = vmatprep.subr.mxu0 0.0
    %4376 = vmatpush2.msra.mxu0 0.0
    %4377 = vmatprep.mubr.f32.mxu0 0.0
    %4378 = vmatmul.mubr.f32.gmra.mxu0 %v4311
    %v4379 = vpop.f32.mrf.mxu0
    %v4380 = vadd.f32 0.0, %v4379
    %v4381 = vpop.f32.mrf.mxu0
    %v4382 = vadd.f32 0.0, %v4381
    %4383 = vdwg.mxu0
    %4384 = vmatprep.subr.mxu0 0.0
    %4385 = vmatpush1.msra.mxu0 %v413
    %4386 = vmatprep.subr.mxu0 0.0
    %4387 = vmatpush1.msra.mxu0 %v410
    %4388 = vmatprep.subr.mxu0 0.0
    %4389 = vmatpush1.msra.mxu0 %v407
    %4390 = vmatprep.subr.mxu0 0.0
    %4391 = vmatpush1.msra.mxu0 %v404
    %4392 = vmatprep.subr.mxu0 0.0
    %4393 = vmatpush1.msra.mxu0 %v401
    %4394 = vmatprep.subr.mxu0 0.0
    %4395 = vmatpush1.msra.mxu0 %v398
    %4396 = vmatprep.subr.mxu0 0.0
    %4397 = vmatpush1.msra.mxu0 %v395
    %4398 = vmatprep.subr.mxu0 0.0
    %4399 = vmatpush1.msra.mxu0 %v392
    %4400 = vmatprep.subr.mxu0 0.0
    %4401 = vmatpush1.msra.mxu0 %v389
    %4402 = vmatprep.subr.mxu0 0.0
    %4403 = vmatpush1.msra.mxu0 %v386
    %4404 = vmatprep.subr.mxu0 0.0
    %4405 = vmatpush1.msra.mxu0 %v383
    %4406 = vmatprep.subr.mxu0 0.0
    %4407 = vmatpush1.msra.mxu0 %v380
    %4408 = vmatprep.subr.mxu0 0.0
    %4409 = vmatpush1.msra.mxu0 %v377
    %4410 = vmatprep.subr.mxu0 0.0
    %4411 = vmatpush1.msra.mxu0 %v374
    %4412 = vmatprep.subr.mxu0 0.0
    %4413 = vmatpush1.msra.mxu0 %v371
    %4414 = vmatprep.subr.mxu0 0.0
    %4415 = vmatpush1.msra.mxu0 %v368
    %4416 = vmatprep.subr.mxu0 0.0
    %4417 = vmatpush2.msra.mxu0 0.0
    %4418 = vmatprep.subr.mxu0 0.0
    %4419 = vmatpush2.msra.mxu0 0.0
    %4420 = vmatprep.subr.mxu0 0.0
    %4421 = vmatpush2.msra.mxu0 0.0
    %4422 = vmatprep.subr.mxu0 0.0
    %4423 = vmatpush2.msra.mxu0 0.0
    %4424 = vmatprep.subr.mxu0 0.0
    %4425 = vmatpush2.msra.mxu0 0.0
    %4426 = vmatprep.subr.mxu0 0.0
    %4427 = vmatpush2.msra.mxu0 0.0
    %4428 = vmatprep.subr.mxu0 0.0
    %4429 = vmatpush2.msra.mxu0 0.0
    %4430 = vmatprep.subr.mxu0 0.0
    %4431 = vmatpush2.msra.mxu0 0.0
    %4432 = vmatprep.subr.mxu0 0.0
    %4433 = vmatpush2.msra.mxu0 0.0
    %4434 = vmatprep.subr.mxu0 0.0
    %4435 = vmatpush2.msra.mxu0 0.0
    %4436 = vmatprep.subr.mxu0 0.0
    %4437 = vmatpush2.msra.mxu0 0.0
    %4438 = vmatprep.subr.mxu0 0.0
    %4439 = vmatpush2.msra.mxu0 0.0
    %4440 = vmatprep.subr.mxu0 0.0
    %4441 = vmatpush2.msra.mxu0 0.0
    %4442 = vmatprep.subr.mxu0 0.0
    %4443 = vmatpush2.msra.mxu0 0.0
    %4444 = vmatprep.subr.mxu0 0.0
    %4445 = vmatpush2.msra.mxu0 0.0
    %4446 = vmatprep.subr.mxu0 0.0
    %4447 = vmatpush2.msra.mxu0 0.0
    %4448 = vmatprep.mubr.f32.mxu0 0.0
    %4449 = vmatmul.mubr.f32.gmra.mxu0 %v4311
    %v4450 = vpop.f32.mrf.mxu0
    %v4451 = vadd.f32 0.0, %v4450
    %v4452 = vpop.f32.mrf.mxu0
    %4453 = vdwg.mxu0
    %v4455 = vrot.slane %v4380, 3
    %v4456 = vrot.slane %v4380, 4
    %v4457 = vrot.slane %v4380, 5
    %v4458 = vrot.slane %v4380, 6
    %v4459 = vrot.slane %v4380, 7
    %v4460 = vrot.slane %v4380, 1
    %v4461 = vrot.slane %v4380, 2
    %v4470 = vadd.f32 %v214, %v4455
    %v4471 = vadd.f32 %v220, %v4456
    %v4472 = vadd.f32 %v226, %v4457
    %v4473 = vadd.f32 %v232, %v4458
    %v4474 = vadd.f32 %v238, %v4459
    %v4475 = vadd.f32 %v244, %v4380
    %v4476 = vadd.f32 %v250, %v4460
    %v4477 = vadd.f32 %v256, %v4461
    %v4478 = vxor.u32 %v4470, 2147483648
    %v4479 = vxor.u32 %v4471, 2147483648
    %v4480 = vxor.u32 %v4472, 2147483648
    %v4481 = vxor.u32 %v4473, 2147483648
    %v4482 = vxor.u32 %v4474, 2147483648
    %v4483 = vxor.u32 %v4475, 2147483648
    %v4484 = vxor.u32 %v4476, 2147483648
    %v4485 = vxor.u32 %v4477, 2147483648
    %v4486 = vmul.f32 %v4478, 1.442695
    %v4487 = vpow.pop %v4486
    %v4488 = vmul.f32 %v4479, 1.442695
    %v4489 = vpow.pop %v4488
    %v4490 = vmul.f32 %v4480, 1.442695
    %v4491 = vpow.pop %v4490
    %v4492 = vmul.f32 %v4481, 1.442695
    %v4493 = vpow.pop %v4492
    %v4494 = vmul.f32 %v4482, 1.442695
    %v4495 = vpow.pop %v4494
    %v4496 = vmul.f32 %v4483, 1.442695
    %v4497 = vpow.pop %v4496
    %v4498 = vmul.f32 %v4484, 1.442695
    %v4499 = vpow.pop %v4498
    %v4500 = vmul.f32 %v4485, 1.442695
    %v4501 = vpow.pop %v4500
    %v4502 = vadd.f32 %v4487, 1.0
    %v4503 = vadd.f32 %v4489, 1.0
    %v4504 = vadd.f32 %v4491, 1.0
    %v4505 = vadd.f32 %v4493, 1.0
    %v4506 = vadd.f32 %v4495, 1.0
    %v4507 = vadd.f32 %v4497, 1.0
    %v4508 = vadd.f32 %v4499, 1.0
    %v4509 = vadd.f32 %v4501, 1.0
    %v4510 = vrcp.pop %v4502
    %v4511 = vmul.f32 1.0, %v4510
    %v4512 = vrcp.pop %v4503
    %v4513 = vmul.f32 1.0, %v4512
    %v4514 = vrcp.pop %v4504
    %v4515 = vmul.f32 1.0, %v4514
    %v4516 = vrcp.pop %v4505
    %v4517 = vmul.f32 1.0, %v4516
    %v4518 = vrcp.pop %v4506
    %v4519 = vmul.f32 1.0, %v4518
    %v4520 = vrcp.pop %v4507
    %v4521 = vmul.f32 1.0, %v4520
    %v4522 = vrcp.pop %v4508
    %v4523 = vmul.f32 1.0, %v4522
    %v4524 = vrcp.pop %v4509
    %v4525 = vmul.f32 1.0, %v4524
    %v4527 = vrot.slane %v4382, 3
    %v4528 = vrot.slane %v4382, 4
    %v4529 = vrot.slane %v4382, 5
    %v4530 = vrot.slane %v4382, 6
    %v4531 = vrot.slane %v4382, 7
    %v4532 = vrot.slane %v4382, 1
    %v4533 = vrot.slane %v4382, 2
    %v4542 = vadd.f32 %v216, %v4527
    %v4543 = vadd.f32 %v222, %v4528
    %v4544 = vadd.f32 %v228, %v4529
    %v4545 = vadd.f32 %v234, %v4530
    %v4546 = vadd.f32 %v240, %v4531
    %v4547 = vadd.f32 %v246, %v4382
    %v4548 = vadd.f32 %v252, %v4532
    %v4549 = vadd.f32 %v258, %v4533
    %v4550 = vxor.u32 %v4542, 2147483648
    %v4551 = vxor.u32 %v4543, 2147483648
    %v4552 = vxor.u32 %v4544, 2147483648
    %v4553 = vxor.u32 %v4545, 2147483648
    %v4554 = vxor.u32 %v4546, 2147483648
    %v4555 = vxor.u32 %v4547, 2147483648
    %v4556 = vxor.u32 %v4548, 2147483648
    %v4557 = vxor.u32 %v4549, 2147483648
    %v4558 = vmul.f32 %v4550, 1.442695
    %v4559 = vpow.pop %v4558
    %v4560 = vmul.f32 %v4551, 1.442695
    %v4561 = vpow.pop %v4560
    %v4562 = vmul.f32 %v4552, 1.442695
    %v4563 = vpow.pop %v4562
    %v4564 = vmul.f32 %v4553, 1.442695
    %v4565 = vpow.pop %v4564
    %v4566 = vmul.f32 %v4554, 1.442695
    %v4567 = vpow.pop %v4566
    %v4568 = vmul.f32 %v4555, 1.442695
    %v4569 = vpow.pop %v4568
    %v4570 = vmul.f32 %v4556, 1.442695
    %v4571 = vpow.pop %v4570
    %v4572 = vmul.f32 %v4557, 1.442695
    %v4573 = vpow.pop %v4572
    %v4574 = vadd.f32 %v4559, 1.0
    %v4575 = vadd.f32 %v4561, 1.0
    %v4576 = vadd.f32 %v4563, 1.0
    %v4577 = vadd.f32 %v4565, 1.0
    %v4578 = vadd.f32 %v4567, 1.0
    %v4579 = vadd.f32 %v4569, 1.0
    %v4580 = vadd.f32 %v4571, 1.0
    %v4581 = vadd.f32 %v4573, 1.0
    %v4582 = vrcp.pop %v4574
    %v4583 = vmul.f32 1.0, %v4582
    %v4584 = vrcp.pop %v4575
    %v4585 = vmul.f32 1.0, %v4584
    %v4586 = vrcp.pop %v4576
    %v4587 = vmul.f32 1.0, %v4586
    %v4588 = vrcp.pop %v4577
    %v4589 = vmul.f32 1.0, %v4588
    %v4590 = vrcp.pop %v4578
    %v4591 = vmul.f32 1.0, %v4590
    %v4592 = vrcp.pop %v4579
    %v4593 = vmul.f32 1.0, %v4592
    %v4594 = vrcp.pop %v4580
    %v4595 = vmul.f32 1.0, %v4594
    %v4596 = vrcp.pop %v4581
    %v4597 = vmul.f32 1.0, %v4596
    %v4598 = vadd.f32 %v4451, %v704
    %v4600 = vrot.slane %v4598, 3
    %v4601 = vrot.slane %v4598, 4
    %v4602 = vrot.slane %v4598, 5
    %v4603 = vrot.slane %v4598, 6
    %v4604 = vrot.slane %v4598, 7
    %v4605 = vrot.slane %v4598, 1
    %v4606 = vrot.slane %v4598, 2
    %v4615 = vmul.f32 %v4511, %v4600
    %v4616 = vmul.f32 %v4513, %v4601
    %v4617 = vmul.f32 %v4515, %v4602
    %v4618 = vmul.f32 %v4517, %v4603
    %v4619 = vmul.f32 %v4519, %v4604
    %v4620 = vmul.f32 %v4521, %v4598
    %v4621 = vmul.f32 %v4523, %v4605
    %v4622 = vmul.f32 %v4525, %v4606
    %v4623 = vadd.f32 %v327, %v4615
    %v4624 = vadd.f32 %v332, %v4616
    %v4625 = vadd.f32 %v337, %v4617
    %v4626 = vadd.f32 %v342, %v4618
    %v4627 = vadd.f32 %v347, %v4619
    %v4628 = vadd.f32 %v352, %v4620
    %v4629 = vadd.f32 %v357, %v4621
    %v4630 = vadd.f32 %v362, %v4622
    %v4631 = vtanh.pop %v4623
    %v4632 = vtanh.pop %v4624
    %v4633 = vtanh.pop %v4625
    %v4634 = vtanh.pop %v4626
    %v4635 = vtanh.pop %v4627
    %v4636 = vtanh.pop %v4628
    %v4637 = vtanh.pop %v4629
    %v4638 = vtanh.pop %v4630
    %v4639 = vsub.f32 1.0, %v4583
    %v4640 = vsub.f32 1.0, %v4585
    %v4641 = vsub.f32 1.0, %v4587
    %v4642 = vsub.f32 1.0, %v4589
    %v4643 = vsub.f32 1.0, %v4591
    %v4644 = vsub.f32 1.0, %v4593
    %v4645 = vsub.f32 1.0, %v4595
    %v4646 = vsub.f32 1.0, %v4597
    %v4647 = vmul.f32 %v4639, %v4631
    %v4648 = vmul.f32 %v4640, %v4632
    %v4649 = vmul.f32 %v4641, %v4633
    %v4650 = vmul.f32 %v4642, %v4634
    %v4651 = vmul.f32 %v4643, %v4635
    %v4652 = vmul.f32 %v4644, %v4636
    %v4653 = vmul.f32 %v4645, %v4637
    %v4654 = vmul.f32 %v4646, %v4638
    %v4655 = vrot.slane %v3922, 7
    %v4656 = vrot.slane %v3923, 7
    %v4657 = vrot.slane %v3924, 7
    %v4658 = vrot.slane %v3925, 7
    %v4659 = vrot.slane %v3926, 7
    %v4660 = vrot.slane %v3928, 7
    %v4661 = vrot.slane %v3929, 7
    %v4670 = vmul.f32 %v4583, %v4655
    %v4671 = vmul.f32 %v4585, %v4656
    %v4672 = vmul.f32 %v4587, %v4657
    %v4673 = vmul.f32 %v4589, %v4658
    %v4674 = vmul.f32 %v4591, %v4659
    %v4675 = vmul.f32 %v4593, %v4306
    %v4676 = vmul.f32 %v4595, %v4660
    %v4677 = vmul.f32 %v4597, %v4661
    %v4678 = vadd.f32 %v4647, %v4670
    %v4679 = vadd.f32 %v4648, %v4671
    %v4680 = vadd.f32 %v4649, %v4672
    %v4681 = vadd.f32 %v4650, %v4673
    %v4682 = vadd.f32 %v4651, %v4674
    %v4683 = vadd.f32 %v4652, %v4675
    %v4684 = vadd.f32 %v4653, %v4676
    %v4685 = vadd.f32 %v4654, %v4677
    %s4686 = scalar_lea.vmem %s1, 40
    %v4687 = vld [vmem:[%s4686] sm:$0xff]
    %v4689 = vrot.slane %v4687, 3
    %v4690 = vrot.slane %v4687, 4
    %v4691 = vrot.slane %v4687, 5
    %v4692 = vrot.slane %v4687, 6
    %v4693 = vrot.slane %v4687, 7
    %v4694 = vrot.slane %v4687, 1
    %v4695 = vrot.slane %v4687, 2
    %v4704 = vmul.f32 %v4678, %v4689
    %v4705 = vmul.f32 %v4679, %v4690
    %v4706 = vmul.f32 %v4680, %v4691
    %v4707 = vmul.f32 %v4681, %v4692
    %v4708 = vmul.f32 %v4682, %v4693
    %v4709 = vmul.f32 %v4683, %v4687
    %v4710 = vmul.f32 %v4684, %v4694
    %v4711 = vmul.f32 %v4685, %v4695
    %v4720 = vrot.slane %v4704, 5
    %v4721 = vrot.slane %v4705, 4
    %v4722 = vsel %vm878, %v4721, %v4720
    %v4723 = vrot.slane %v4706, 3
    %v4724 = vsel %vm881, %v4723, %v4722
    %v4725 = vrot.slane %v4707, 2
    %v4726 = vsel %vm884, %v4725, %v4724
    %v4727 = vrot.slane %v4708, 1
    %v4728 = vsel %vm887, %v4727, %v4726
    %v4729 = vsel %vm890, %v4709, %v4728
    %v4730 = vrot.slane %v4710, 7
    %v4731 = vsel %vm893, %v4730, %v4729
    %v4732 = vrot.slane %v4711, 6
    %v4733 = vsel %vm896, %v4732, %v4731
    %4735 = vmatprep.subr.mxu0 %v850
    %4736 = vmatpush1.msra.mxu0 %v849
    %4737 = vmatprep.subr.mxu0 %v847
    %4738 = vmatpush1.msra.mxu0 %v846
    %4739 = vmatprep.subr.mxu0 %v844
    %4740 = vmatpush1.msra.mxu0 %v843
    %4741 = vmatprep.subr.mxu0 %v841
    %4742 = vmatpush1.msra.mxu0 %v840
    %4743 = vmatprep.subr.mxu0 %v838
    %4744 = vmatpush1.msra.mxu0 %v837
    %4745 = vmatprep.subr.mxu0 %v835
    %4746 = vmatpush1.msra.mxu0 %v834
    %4747 = vmatprep.subr.mxu0 %v832
    %4748 = vmatpush1.msra.mxu0 %v831
    %4749 = vmatprep.subr.mxu0 %v829
    %4750 = vmatpush1.msra.mxu0 %v828
    %4751 = vmatprep.subr.mxu0 %v826
    %4752 = vmatpush1.msra.mxu0 %v825
    %4753 = vmatprep.subr.mxu0 %v823
    %4754 = vmatpush1.msra.mxu0 %v822
    %4755 = vmatprep.subr.mxu0 %v820
    %4756 = vmatpush1.msra.mxu0 %v819
    %4757 = vmatprep.subr.mxu0 %v817
    %4758 = vmatpush1.msra.mxu0 %v816
    %4759 = vmatprep.subr.mxu0 %v814
    %4760 = vmatpush1.msra.mxu0 %v813
    %4761 = vmatprep.subr.mxu0 %v811
    %4762 = vmatpush1.msra.mxu0 %v810
    %4763 = vmatprep.subr.mxu0 %v808
    %4764 = vmatpush1.msra.mxu0 %v807
    %4765 = vmatprep.subr.mxu0 %v805
    %4766 = vmatpush1.msra.mxu0 %v804
    %4767 = vmatprep.subr.mxu0 0.0
    %4768 = vmatpush2.msra.mxu0 0.0
    %4769 = vmatprep.subr.mxu0 0.0
    %4770 = vmatpush2.msra.mxu0 0.0
    %4771 = vmatprep.subr.mxu0 0.0
    %4772 = vmatpush2.msra.mxu0 0.0
    %4773 = vmatprep.subr.mxu0 0.0
    %4774 = vmatpush2.msra.mxu0 0.0
    %4775 = vmatprep.subr.mxu0 0.0
    %4776 = vmatpush2.msra.mxu0 0.0
    %4777 = vmatprep.subr.mxu0 0.0
    %4778 = vmatpush2.msra.mxu0 0.0
    %4779 = vmatprep.subr.mxu0 0.0
    %4780 = vmatpush2.msra.mxu0 0.0
    %4781 = vmatprep.subr.mxu0 0.0
    %4782 = vmatpush2.msra.mxu0 0.0
    %4783 = vmatprep.subr.mxu0 0.0
    %4784 = vmatpush2.msra.mxu0 0.0
    %4785 = vmatprep.subr.mxu0 0.0
    %4786 = vmatpush2.msra.mxu0 0.0
    %4787 = vmatprep.subr.mxu0 0.0
    %4788 = vmatpush2.msra.mxu0 0.0
    %4789 = vmatprep.subr.mxu0 0.0
    %4790 = vmatpush2.msra.mxu0 0.0
    %4791 = vmatprep.subr.mxu0 0.0
    %4792 = vmatpush2.msra.mxu0 0.0
    %4793 = vmatprep.subr.mxu0 0.0
    %4794 = vmatpush2.msra.mxu0 0.0
    %4795 = vmatprep.subr.mxu0 0.0
    %4796 = vmatpush2.msra.mxu0 0.0
    %4797 = vmatprep.subr.mxu0 0.0
    %4798 = vmatpush2.msra.mxu0 0.0
    %4799 = vmatprep.mubr.f32.mxu0 0.0
    %4800 = vmatmul.mubr.f32.gmra.mxu0 %v4733
    %v4801 = vpop.f32.mrf.mxu0
    %v4802 = vadd.f32 %v857, %v4801
    %v4803 = vpop.f32.mrf.mxu0
    %v4804 = vadd.f32 %v861, %v4803
    %4805 = vdwg.mxu0
    %4806 = vmatprep.subr.mxu0 0.0
    %4807 = vmatpush1.msra.mxu0 %v851
    %4808 = vmatprep.subr.mxu0 0.0
    %4809 = vmatpush1.msra.mxu0 %v848
    %4810 = vmatprep.subr.mxu0 0.0
    %4811 = vmatpush1.msra.mxu0 %v845
    %4812 = vmatprep.subr.mxu0 0.0
    %4813 = vmatpush1.msra.mxu0 %v842
    %4814 = vmatprep.subr.mxu0 0.0
    %4815 = vmatpush1.msra.mxu0 %v839
    %4816 = vmatprep.subr.mxu0 0.0
    %4817 = vmatpush1.msra.mxu0 %v836
    %4818 = vmatprep.subr.mxu0 0.0
    %4819 = vmatpush1.msra.mxu0 %v833
    %4820 = vmatprep.subr.mxu0 0.0
    %4821 = vmatpush1.msra.mxu0 %v830
    %4822 = vmatprep.subr.mxu0 0.0
    %4823 = vmatpush1.msra.mxu0 %v827
    %4824 = vmatprep.subr.mxu0 0.0
    %4825 = vmatpush1.msra.mxu0 %v824
    %4826 = vmatprep.subr.mxu0 0.0
    %4827 = vmatpush1.msra.mxu0 %v821
    %4828 = vmatprep.subr.mxu0 0.0
    %4829 = vmatpush1.msra.mxu0 %v818
    %4830 = vmatprep.subr.mxu0 0.0
    %4831 = vmatpush1.msra.mxu0 %v815
    %4832 = vmatprep.subr.mxu0 0.0
    %4833 = vmatpush1.msra.mxu0 %v812
    %4834 = vmatprep.subr.mxu0 0.0
    %4835 = vmatpush1.msra.mxu0 %v809
    %4836 = vmatprep.subr.mxu0 0.0
    %4837 = vmatpush1.msra.mxu0 %v806
    %4838 = vmatprep.subr.mxu0 0.0
    %4839 = vmatpush2.msra.mxu0 0.0
    %4840 = vmatprep.subr.mxu0 0.0
    %4841 = vmatpush2.msra.mxu0 0.0
    %4842 = vmatprep.subr.mxu0 0.0
    %4843 = vmatpush2.msra.mxu0 0.0
    %4844 = vmatprep.subr.mxu0 0.0
    %4845 = vmatpush2.msra.mxu0 0.0
    %4846 = vmatprep.subr.mxu0 0.0
    %4847 = vmatpush2.msra.mxu0 0.0
    %4848 = vmatprep.subr.mxu0 0.0
    %4849 = vmatpush2.msra.mxu0 0.0
    %4850 = vmatprep.subr.mxu0 0.0
    %4851 = vmatpush2.msra.mxu0 0.0
    %4852 = vmatprep.subr.mxu0 0.0
    %4853 = vmatpush2.msra.mxu0 0.0
    %4854 = vmatprep.subr.mxu0 0.0
    %4855 = vmatpush2.msra.mxu0 0.0
    %4856 = vmatprep.subr.mxu0 0.0
    %4857 = vmatpush2.msra.mxu0 0.0
    %4858 = vmatprep.subr.mxu0 0.0
    %4859 = vmatpush2.msra.mxu0 0.0
    %4860 = vmatprep.subr.mxu0 0.0
    %4861 = vmatpush2.msra.mxu0 0.0
    %4862 = vmatprep.subr.mxu0 0.0
    %4863 = vmatpush2.msra.mxu0 0.0
    %4864 = vmatprep.subr.mxu0 0.0
    %4865 = vmatpush2.msra.mxu0 0.0
    %4866 = vmatprep.subr.mxu0 0.0
    %4867 = vmatpush2.msra.mxu0 0.0
    %4868 = vmatprep.subr.mxu0 0.0
    %4869 = vmatpush2.msra.mxu0 0.0
    %4870 = vmatprep.mubr.f32.mxu0 0.0
    %4871 = vmatmul.mubr.f32.gmra.mxu0 %v4733
    %v4872 = vpop.f32.mrf.mxu0
    %v4873 = vadd.f32 %v865, %v4872
    %v4874 = vpop.f32.mrf.mxu0
    %4875 = vdwg.mxu0
    %4876 = vmatprep.subr.mxu0 %v1086
    %4877 = vmatpush1.msra.mxu0 %v1085
    %4878 = vmatprep.subr.mxu0 %v1083
    %4879 = vmatpush1.msra.mxu0 %v1082
    %4880 = vmatprep.subr.mxu0 %v1080
    %4881 = vmatpush1.msra.mxu0 %v1079
    %4882 = vmatprep.subr.mxu0 %v1077
    %4883 = vmatpush1.msra.mxu0 %v1076
    %4884 = vmatprep.subr.mxu0 %v1074
    %4885 = vmatpush1.msra.mxu0 %v1073
    %4886 = vmatprep.subr.mxu0 %v1071
    %4887 = vmatpush1.msra.mxu0 %v1070
    %4888 = vmatprep.subr.mxu0 %v1068
    %4889 = vmatpush1.msra.mxu0 %v1067
    %4890 = vmatprep.subr.mxu0 %v1065
    %4891 = vmatpush1.msra.mxu0 %v1064
    %4892 = vmatprep.subr.mxu0 %v1062
    %4893 = vmatpush1.msra.mxu0 %v1061
    %4894 = vmatprep.subr.mxu0 %v1059
    %4895 = vmatpush1.msra.mxu0 %v1058
    %4896 = vmatprep.subr.mxu0 %v1056
    %4897 = vmatpush1.msra.mxu0 %v1055
    %4898 = vmatprep.subr.mxu0 %v1053
    %4899 = vmatpush1.msra.mxu0 %v1052
    %4900 = vmatprep.subr.mxu0 %v1050
    %4901 = vmatpush1.msra.mxu0 %v1049
    %4902 = vmatprep.subr.mxu0 %v1047
    %4903 = vmatpush1.msra.mxu0 %v1046
    %4904 = vmatprep.subr.mxu0 %v1044
    %4905 = vmatpush1.msra.mxu0 %v1043
    %4906 = vmatprep.subr.mxu0 %v1041
    %4907 = vmatpush1.msra.mxu0 %v1040
    %4908 = vmatprep.subr.mxu0 0.0
    %4909 = vmatpush2.msra.mxu0 0.0
    %4910 = vmatprep.subr.mxu0 0.0
    %4911 = vmatpush2.msra.mxu0 0.0
    %4912 = vmatprep.subr.mxu0 0.0
    %4913 = vmatpush2.msra.mxu0 0.0
    %4914 = vmatprep.subr.mxu0 0.0
    %4915 = vmatpush2.msra.mxu0 0.0
    %4916 = vmatprep.subr.mxu0 0.0
    %4917 = vmatpush2.msra.mxu0 0.0
    %4918 = vmatprep.subr.mxu0 0.0
    %4919 = vmatpush2.msra.mxu0 0.0
    %4920 = vmatprep.subr.mxu0 0.0
    %4921 = vmatpush2.msra.mxu0 0.0
    %4922 = vmatprep.subr.mxu0 0.0
    %4923 = vmatpush2.msra.mxu0 0.0
    %4924 = vmatprep.subr.mxu0 0.0
    %4925 = vmatpush2.msra.mxu0 0.0
    %4926 = vmatprep.subr.mxu0 0.0
    %4927 = vmatpush2.msra.mxu0 0.0
    %4928 = vmatprep.subr.mxu0 0.0
    %4929 = vmatpush2.msra.mxu0 0.0
    %4930 = vmatprep.subr.mxu0 0.0
    %4931 = vmatpush2.msra.mxu0 0.0
    %4932 = vmatprep.subr.mxu0 0.0
    %4933 = vmatpush2.msra.mxu0 0.0
    %4934 = vmatprep.subr.mxu0 0.0
    %4935 = vmatpush2.msra.mxu0 0.0
    %4936 = vmatprep.subr.mxu0 0.0
    %4937 = vmatpush2.msra.mxu0 0.0
    %4938 = vmatprep.subr.mxu0 0.0
    %4939 = vmatpush2.msra.mxu0 0.0
    %4940 = vmatprep.mubr.f32.mxu0 0.0
    %4941 = vmatmul.mubr.f32.gmra.mxu0 %v4282
    %v4942 = vpop.f32.mrf.mxu0
    %v4943 = vadd.f32 0.0, %v4942
    %v4944 = vpop.f32.mrf.mxu0
    %v4945 = vadd.f32 0.0, %v4944
    %4946 = vdwg.mxu0
    %4947 = vmatprep.subr.mxu0 0.0
    %4948 = vmatpush1.msra.mxu0 %v1087
    %4949 = vmatprep.subr.mxu0 0.0
    %4950 = vmatpush1.msra.mxu0 %v1084
    %4951 = vmatprep.subr.mxu0 0.0
    %4952 = vmatpush1.msra.mxu0 %v1081
    %4953 = vmatprep.subr.mxu0 0.0
    %4954 = vmatpush1.msra.mxu0 %v1078
    %4955 = vmatprep.subr.mxu0 0.0
    %4956 = vmatpush1.msra.mxu0 %v1075
    %4957 = vmatprep.subr.mxu0 0.0
    %4958 = vmatpush1.msra.mxu0 %v1072
    %4959 = vmatprep.subr.mxu0 0.0
    %4960 = vmatpush1.msra.mxu0 %v1069
    %4961 = vmatprep.subr.mxu0 0.0
    %4962 = vmatpush1.msra.mxu0 %v1066
    %4963 = vmatprep.subr.mxu0 0.0
    %4964 = vmatpush1.msra.mxu0 %v1063
    %4965 = vmatprep.subr.mxu0 0.0
    %4966 = vmatpush1.msra.mxu0 %v1060
    %4967 = vmatprep.subr.mxu0 0.0
    %4968 = vmatpush1.msra.mxu0 %v1057
    %4969 = vmatprep.subr.mxu0 0.0
    %4970 = vmatpush1.msra.mxu0 %v1054
    %4971 = vmatprep.subr.mxu0 0.0
    %4972 = vmatpush1.msra.mxu0 %v1051
    %4973 = vmatprep.subr.mxu0 0.0
    %4974 = vmatpush1.msra.mxu0 %v1048
    %4975 = vmatprep.subr.mxu0 0.0
    %4976 = vmatpush1.msra.mxu0 %v1045
    %4977 = vmatprep.subr.mxu0 0.0
    %4978 = vmatpush1.msra.mxu0 %v1042
    %4979 = vmatprep.subr.mxu0 0.0
    %4980 = vmatpush2.msra.mxu0 0.0
    %4981 = vmatprep.subr.mxu0 0.0
    %4982 = vmatpush2.msra.mxu0 0.0
    %4983 = vmatprep.subr.mxu0 0.0
    %4984 = vmatpush2.msra.mxu0 0.0
    %4985 = vmatprep.subr.mxu0 0.0
    %4986 = vmatpush2.msra.mxu0 0.0
    %4987 = vmatprep.subr.mxu0 0.0
    %4988 = vmatpush2.msra.mxu0 0.0
    %4989 = vmatprep.subr.mxu0 0.0
    %4990 = vmatpush2.msra.mxu0 0.0
    %4991 = vmatprep.subr.mxu0 0.0
    %4992 = vmatpush2.msra.mxu0 0.0
    %4993 = vmatprep.subr.mxu0 0.0
    %4994 = vmatpush2.msra.mxu0 0.0
    %4995 = vmatprep.subr.mxu0 0.0
    %4996 = vmatpush2.msra.mxu0 0.0
    %4997 = vmatprep.subr.mxu0 0.0
    %4998 = vmatpush2.msra.mxu0 0.0
    %4999 = vmatprep.subr.mxu0 0.0
    %5000 = vmatpush2.msra.mxu0 0.0
    %5001 = vmatprep.subr.mxu0 0.0
    %5002 = vmatpush2.msra.mxu0 0.0
    %5003 = vmatprep.subr.mxu0 0.0
    %5004 = vmatpush2.msra.mxu0 0.0
    %5005 = vmatprep.subr.mxu0 0.0
    %5006 = vmatpush2.msra.mxu0 0.0
    %5007 = vmatprep.subr.mxu0 0.0
    %5008 = vmatpush2.msra.mxu0 0.0
    %5009 = vmatprep.subr.mxu0 0.0
    %5010 = vmatpush2.msra.mxu0 0.0
    %5011 = vmatprep.mubr.f32.mxu0 0.0
    %5012 = vmatmul.mubr.f32.gmra.mxu0 %v4282
    %v5013 = vpop.f32.mrf.mxu0
    %v5014 = vadd.f32 0.0, %v5013
    %v5015 = vpop.f32.mrf.mxu0
    %5016 = vdwg.mxu0
    %v5017 = vadd.f32 %v4802, %v4943
    %v5018 = vxor.u32 %v5017, 2147483648
    %v5019 = vmul.f32 %v5018, 1.442695
    %v5020 = vpow.pop %v5019
    %v5021 = vadd.f32 %v5020, 1.0
    %v5022 = vrcp.pop %v5021
    %v5023 = vmul.f32 1.0, %v5022
    %v5024 = vadd.f32 %v4804, %v4945
    %v5025 = vxor.u32 %v5024, 2147483648
    %v5026 = vmul.f32 %v5025, 1.442695
    %v5027 = vpow.pop %v5026
    %v5028 = vadd.f32 %v5027, 1.0
    %v5029 = vrcp.pop %v5028
    %v5030 = vmul.f32 1.0, %v5029
    %v5031 = vadd.f32 %v5014, %v1248
    %v5032 = vmul.f32 %v5023, %v5031
    %v5033 = vadd.f32 %v4873, %v5032
    %v5034 = vtanh.pop %v5033
    %v5035 = vsub.f32 1.0, %v5030
    %v5036 = vmul.f32 %v5035, %v5034
    %v5037 = vmul.f32 %v5030, %v4282
    %v5038 = vadd.f32 %v5036, %v5037
    %vm5039 = vcmp.eq.s32.totalorder %v1258, 5
    %v5040 = vsel %vm5039, 1, 0
    %5041 = vset.pattern.permute.xlu0 0
    %5042 = vperm.xlu0 %5041, %v5040
    %v5043 = vpop.permute.xlu0 %5042
    %vm5044 = vcmp.eq.s32.totalorder %v5043, 1
    %v5045 = vsel %vm5044, %v5038, %v4289
    %v5054 = vrot.slane %v4678, 5
    %v5055 = vrot.slane %v4679, 4
    %v5056 = vsel %vm878, %v5055, %v5054
    %v5057 = vrot.slane %v4680, 3
    %v5058 = vsel %vm881, %v5057, %v5056
    %v5059 = vrot.slane %v4681, 2
    %v5060 = vsel %vm884, %v5059, %v5058
    %v5061 = vrot.slane %v4682, 1
    %v5062 = vsel %vm887, %v5061, %v5060
    %v5063 = vsel %vm890, %v4683, %v5062
    %v5064 = vrot.slane %v4684, 7
    %v5065 = vsel %vm893, %v5064, %v5063
    %v5066 = vrot.slane %v4685, 6
    %v5067 = vsel %vm896, %v5066, %v5065
    %5069 = vmatprep.subr.mxu0 %v412
    %5070 = vmatpush1.msra.mxu0 %v411
    %5071 = vmatprep.subr.mxu0 %v409
    %5072 = vmatpush1.msra.mxu0 %v408
    %5073 = vmatprep.subr.mxu0 %v406
    %5074 = vmatpush1.msra.mxu0 %v405
    %5075 = vmatprep.subr.mxu0 %v403
    %5076 = vmatpush1.msra.mxu0 %v402
    %5077 = vmatprep.subr.mxu0 %v400
    %5078 = vmatpush1.msra.mxu0 %v399
    %5079 = vmatprep.subr.mxu0 %v397
    %5080 = vmatpush1.msra.mxu0 %v396
    %5081 = vmatprep.subr.mxu0 %v394
    %5082 = vmatpush1.msra.mxu0 %v393
    %5083 = vmatprep.subr.mxu0 %v391
    %5084 = vmatpush1.msra.mxu0 %v390
    %5085 = vmatprep.subr.mxu0 %v388
    %5086 = vmatpush1.msra.mxu0 %v387
    %5087 = vmatprep.subr.mxu0 %v385
    %5088 = vmatpush1.msra.mxu0 %v384
    %5089 = vmatprep.subr.mxu0 %v382
    %5090 = vmatpush1.msra.mxu0 %v381
    %5091 = vmatprep.subr.mxu0 %v379
    %5092 = vmatpush1.msra.mxu0 %v378
    %5093 = vmatprep.subr.mxu0 %v376
    %5094 = vmatpush1.msra.mxu0 %v375
    %5095 = vmatprep.subr.mxu0 %v373
    %5096 = vmatpush1.msra.mxu0 %v372
    %5097 = vmatprep.subr.mxu0 %v370
    %5098 = vmatpush1.msra.mxu0 %v369
    %5099 = vmatprep.subr.mxu0 %v367
    %5100 = vmatpush1.msra.mxu0 %v366
    %5101 = vmatprep.subr.mxu0 0.0
    %5102 = vmatpush2.msra.mxu0 0.0
    %5103 = vmatprep.subr.mxu0 0.0
    %5104 = vmatpush2.msra.mxu0 0.0
    %5105 = vmatprep.subr.mxu0 0.0
    %5106 = vmatpush2.msra.mxu0 0.0
    %5107 = vmatprep.subr.mxu0 0.0
    %5108 = vmatpush2.msra.mxu0 0.0
    %5109 = vmatprep.subr.mxu0 0.0
    %5110 = vmatpush2.msra.mxu0 0.0
    %5111 = vmatprep.subr.mxu0 0.0
    %5112 = vmatpush2.msra.mxu0 0.0
    %5113 = vmatprep.subr.mxu0 0.0
    %5114 = vmatpush2.msra.mxu0 0.0
    %5115 = vmatprep.subr.mxu0 0.0
    %5116 = vmatpush2.msra.mxu0 0.0
    %5117 = vmatprep.subr.mxu0 0.0
    %5118 = vmatpush2.msra.mxu0 0.0
    %5119 = vmatprep.subr.mxu0 0.0
    %5120 = vmatpush2.msra.mxu0 0.0
    %5121 = vmatprep.subr.mxu0 0.0
    %5122 = vmatpush2.msra.mxu0 0.0
    %5123 = vmatprep.subr.mxu0 0.0
    %5124 = vmatpush2.msra.mxu0 0.0
    %5125 = vmatprep.subr.mxu0 0.0
    %5126 = vmatpush2.msra.mxu0 0.0
    %5127 = vmatprep.subr.mxu0 0.0
    %5128 = vmatpush2.msra.mxu0 0.0
    %5129 = vmatprep.subr.mxu0 0.0
    %5130 = vmatpush2.msra.mxu0 0.0
    %5131 = vmatprep.subr.mxu0 0.0
    %5132 = vmatpush2.msra.mxu0 0.0
    %5133 = vmatprep.mubr.f32.mxu0 0.0
    %5134 = vmatmul.mubr.f32.gmra.mxu0 %v5067
    %v5135 = vpop.f32.mrf.mxu0
    %v5136 = vadd.f32 0.0, %v5135
    %v5137 = vpop.f32.mrf.mxu0
    %v5138 = vadd.f32 0.0, %v5137
    %5139 = vdwg.mxu0
    %5140 = vmatprep.subr.mxu0 0.0
    %5141 = vmatpush1.msra.mxu0 %v413
    %5142 = vmatprep.subr.mxu0 0.0
    %5143 = vmatpush1.msra.mxu0 %v410
    %5144 = vmatprep.subr.mxu0 0.0
    %5145 = vmatpush1.msra.mxu0 %v407
    %5146 = vmatprep.subr.mxu0 0.0
    %5147 = vmatpush1.msra.mxu0 %v404
    %5148 = vmatprep.subr.mxu0 0.0
    %5149 = vmatpush1.msra.mxu0 %v401
    %5150 = vmatprep.subr.mxu0 0.0
    %5151 = vmatpush1.msra.mxu0 %v398
    %5152 = vmatprep.subr.mxu0 0.0
    %5153 = vmatpush1.msra.mxu0 %v395
    %5154 = vmatprep.subr.mxu0 0.0
    %5155 = vmatpush1.msra.mxu0 %v392
    %5156 = vmatprep.subr.mxu0 0.0
    %5157 = vmatpush1.msra.mxu0 %v389
    %5158 = vmatprep.subr.mxu0 0.0
    %5159 = vmatpush1.msra.mxu0 %v386
    %5160 = vmatprep.subr.mxu0 0.0
    %5161 = vmatpush1.msra.mxu0 %v383
    %5162 = vmatprep.subr.mxu0 0.0
    %5163 = vmatpush1.msra.mxu0 %v380
    %5164 = vmatprep.subr.mxu0 0.0
    %5165 = vmatpush1.msra.mxu0 %v377
    %5166 = vmatprep.subr.mxu0 0.0
    %5167 = vmatpush1.msra.mxu0 %v374
    %5168 = vmatprep.subr.mxu0 0.0
    %5169 = vmatpush1.msra.mxu0 %v371
    %5170 = vmatprep.subr.mxu0 0.0
    %5171 = vmatpush1.msra.mxu0 %v368
    %5172 = vmatprep.subr.mxu0 0.0
    %5173 = vmatpush2.msra.mxu0 0.0
    %5174 = vmatprep.subr.mxu0 0.0
    %5175 = vmatpush2.msra.mxu0 0.0
    %5176 = vmatprep.subr.mxu0 0.0
    %5177 = vmatpush2.msra.mxu0 0.0
    %5178 = vmatprep.subr.mxu0 0.0
    %5179 = vmatpush2.msra.mxu0 0.0
    %5180 = vmatprep.subr.mxu0 0.0
    %5181 = vmatpush2.msra.mxu0 0.0
    %5182 = vmatprep.subr.mxu0 0.0
    %5183 = vmatpush2.msra.mxu0 0.0
    %5184 = vmatprep.subr.mxu0 0.0
    %5185 = vmatpush2.msra.mxu0 0.0
    %5186 = vmatprep.subr.mxu0 0.0
    %5187 = vmatpush2.msra.mxu0 0.0
    %5188 = vmatprep.subr.mxu0 0.0
    %5189 = vmatpush2.msra.mxu0 0.0
    %5190 = vmatprep.subr.mxu0 0.0
    %5191 = vmatpush2.msra.mxu0 0.0
    %5192 = vmatprep.subr.mxu0 0.0
    %5193 = vmatpush2.msra.mxu0 0.0
    %5194 = vmatprep.subr.mxu0 0.0
    %5195 = vmatpush2.msra.mxu0 0.0
    %5196 = vmatprep.subr.mxu0 0.0
    %5197 = vmatpush2.msra.mxu0 0.0
    %5198 = vmatprep.subr.mxu0 0.0
    %5199 = vmatpush2.msra.mxu0 0.0
    %5200 = vmatprep.subr.mxu0 0.0
    %5201 = vmatpush2.msra.mxu0 0.0
    %5202 = vmatprep.subr.mxu0 0.0
    %5203 = vmatpush2.msra.mxu0 0.0
    %5204 = vmatprep.mubr.f32.mxu0 0.0
    %5205 = vmatmul.mubr.f32.gmra.mxu0 %v5067
    %v5206 = vpop.f32.mrf.mxu0
    %v5207 = vadd.f32 0.0, %v5206
    %v5208 = vpop.f32.mrf.mxu0
    %5209 = vdwg.mxu0
    %v5211 = vrot.slane %v5136, 2
    %v5212 = vrot.slane %v5136, 3
    %v5213 = vrot.slane %v5136, 4
    %v5214 = vrot.slane %v5136, 5
    %v5215 = vrot.slane %v5136, 6
    %v5216 = vrot.slane %v5136, 7
    %v5217 = vrot.slane %v5136, 1
    %v5226 = vadd.f32 %v214, %v5211
    %v5227 = vadd.f32 %v220, %v5212
    %v5228 = vadd.f32 %v226, %v5213
    %v5229 = vadd.f32 %v232, %v5214
    %v5230 = vadd.f32 %v238, %v5215
    %v5231 = vadd.f32 %v244, %v5216
    %v5232 = vadd.f32 %v250, %v5136
    %v5233 = vadd.f32 %v256, %v5217
    %v5234 = vxor.u32 %v5226, 2147483648
    %v5235 = vxor.u32 %v5227, 2147483648
    %v5236 = vxor.u32 %v5228, 2147483648
    %v5237 = vxor.u32 %v5229, 2147483648
    %v5238 = vxor.u32 %v5230, 2147483648
    %v5239 = vxor.u32 %v5231, 2147483648
    %v5240 = vxor.u32 %v5232, 2147483648
    %v5241 = vxor.u32 %v5233, 2147483648
    %v5242 = vmul.f32 %v5234, 1.442695
    %v5243 = vpow.pop %v5242
    %v5244 = vmul.f32 %v5235, 1.442695
    %v5245 = vpow.pop %v5244
    %v5246 = vmul.f32 %v5236, 1.442695
    %v5247 = vpow.pop %v5246
    %v5248 = vmul.f32 %v5237, 1.442695
    %v5249 = vpow.pop %v5248
    %v5250 = vmul.f32 %v5238, 1.442695
    %v5251 = vpow.pop %v5250
    %v5252 = vmul.f32 %v5239, 1.442695
    %v5253 = vpow.pop %v5252
    %v5254 = vmul.f32 %v5240, 1.442695
    %v5255 = vpow.pop %v5254
    %v5256 = vmul.f32 %v5241, 1.442695
    %v5257 = vpow.pop %v5256
    %v5258 = vadd.f32 %v5243, 1.0
    %v5259 = vadd.f32 %v5245, 1.0
    %v5260 = vadd.f32 %v5247, 1.0
    %v5261 = vadd.f32 %v5249, 1.0
    %v5262 = vadd.f32 %v5251, 1.0
    %v5263 = vadd.f32 %v5253, 1.0
    %v5264 = vadd.f32 %v5255, 1.0
    %v5265 = vadd.f32 %v5257, 1.0
    %v5266 = vrcp.pop %v5258
    %v5267 = vmul.f32 1.0, %v5266
    %v5268 = vrcp.pop %v5259
    %v5269 = vmul.f32 1.0, %v5268
    %v5270 = vrcp.pop %v5260
    %v5271 = vmul.f32 1.0, %v5270
    %v5272 = vrcp.pop %v5261
    %v5273 = vmul.f32 1.0, %v5272
    %v5274 = vrcp.pop %v5262
    %v5275 = vmul.f32 1.0, %v5274
    %v5276 = vrcp.pop %v5263
    %v5277 = vmul.f32 1.0, %v5276
    %v5278 = vrcp.pop %v5264
    %v5279 = vmul.f32 1.0, %v5278
    %v5280 = vrcp.pop %v5265
    %v5281 = vmul.f32 1.0, %v5280
    %v5283 = vrot.slane %v5138, 2
    %v5284 = vrot.slane %v5138, 3
    %v5285 = vrot.slane %v5138, 4
    %v5286 = vrot.slane %v5138, 5
    %v5287 = vrot.slane %v5138, 6
    %v5288 = vrot.slane %v5138, 7
    %v5289 = vrot.slane %v5138, 1
    %v5298 = vadd.f32 %v216, %v5283
    %v5299 = vadd.f32 %v222, %v5284
    %v5300 = vadd.f32 %v228, %v5285
    %v5301 = vadd.f32 %v234, %v5286
    %v5302 = vadd.f32 %v240, %v5287
    %v5303 = vadd.f32 %v246, %v5288
    %v5304 = vadd.f32 %v252, %v5138
    %v5305 = vadd.f32 %v258, %v5289
    %v5306 = vxor.u32 %v5298, 2147483648
    %v5307 = vxor.u32 %v5299, 2147483648
    %v5308 = vxor.u32 %v5300, 2147483648
    %v5309 = vxor.u32 %v5301, 2147483648
    %v5310 = vxor.u32 %v5302, 2147483648
    %v5311 = vxor.u32 %v5303, 2147483648
    %v5312 = vxor.u32 %v5304, 2147483648
    %v5313 = vxor.u32 %v5305, 2147483648
    %v5314 = vmul.f32 %v5306, 1.442695
    %v5315 = vpow.pop %v5314
    %v5316 = vmul.f32 %v5307, 1.442695
    %v5317 = vpow.pop %v5316
    %v5318 = vmul.f32 %v5308, 1.442695
    %v5319 = vpow.pop %v5318
    %v5320 = vmul.f32 %v5309, 1.442695
    %v5321 = vpow.pop %v5320
    %v5322 = vmul.f32 %v5310, 1.442695
    %v5323 = vpow.pop %v5322
    %v5324 = vmul.f32 %v5311, 1.442695
    %v5325 = vpow.pop %v5324
    %v5326 = vmul.f32 %v5312, 1.442695
    %v5327 = vpow.pop %v5326
    %v5328 = vmul.f32 %v5313, 1.442695
    %v5329 = vpow.pop %v5328
    %v5330 = vadd.f32 %v5315, 1.0
    %v5331 = vadd.f32 %v5317, 1.0
    %v5332 = vadd.f32 %v5319, 1.0
    %v5333 = vadd.f32 %v5321, 1.0
    %v5334 = vadd.f32 %v5323, 1.0
    %v5335 = vadd.f32 %v5325, 1.0
    %v5336 = vadd.f32 %v5327, 1.0
    %v5337 = vadd.f32 %v5329, 1.0
    %v5338 = vrcp.pop %v5330
    %v5339 = vmul.f32 1.0, %v5338
    %v5340 = vrcp.pop %v5331
    %v5341 = vmul.f32 1.0, %v5340
    %v5342 = vrcp.pop %v5332
    %v5343 = vmul.f32 1.0, %v5342
    %v5344 = vrcp.pop %v5333
    %v5345 = vmul.f32 1.0, %v5344
    %v5346 = vrcp.pop %v5334
    %v5347 = vmul.f32 1.0, %v5346
    %v5348 = vrcp.pop %v5335
    %v5349 = vmul.f32 1.0, %v5348
    %v5350 = vrcp.pop %v5336
    %v5351 = vmul.f32 1.0, %v5350
    %v5352 = vrcp.pop %v5337
    %v5353 = vmul.f32 1.0, %v5352
    %v5354 = vadd.f32 %v5207, %v704
    %v5356 = vrot.slane %v5354, 2
    %v5357 = vrot.slane %v5354, 3
    %v5358 = vrot.slane %v5354, 4
    %v5359 = vrot.slane %v5354, 5
    %v5360 = vrot.slane %v5354, 6
    %v5361 = vrot.slane %v5354, 7
    %v5362 = vrot.slane %v5354, 1
    %v5371 = vmul.f32 %v5267, %v5356
    %v5372 = vmul.f32 %v5269, %v5357
    %v5373 = vmul.f32 %v5271, %v5358
    %v5374 = vmul.f32 %v5273, %v5359
    %v5375 = vmul.f32 %v5275, %v5360
    %v5376 = vmul.f32 %v5277, %v5361
    %v5377 = vmul.f32 %v5279, %v5354
    %v5378 = vmul.f32 %v5281, %v5362
    %v5379 = vadd.f32 %v327, %v5371
    %v5380 = vadd.f32 %v332, %v5372
    %v5381 = vadd.f32 %v337, %v5373
    %v5382 = vadd.f32 %v342, %v5374
    %v5383 = vadd.f32 %v347, %v5375
    %v5384 = vadd.f32 %v352, %v5376
    %v5385 = vadd.f32 %v357, %v5377
    %v5386 = vadd.f32 %v362, %v5378
    %v5387 = vtanh.pop %v5379
    %v5388 = vtanh.pop %v5380
    %v5389 = vtanh.pop %v5381
    %v5390 = vtanh.pop %v5382
    %v5391 = vtanh.pop %v5383
    %v5392 = vtanh.pop %v5384
    %v5393 = vtanh.pop %v5385
    %v5394 = vtanh.pop %v5386
    %v5395 = vsub.f32 1.0, %v5339
    %v5396 = vsub.f32 1.0, %v5341
    %v5397 = vsub.f32 1.0, %v5343
    %v5398 = vsub.f32 1.0, %v5345
    %v5399 = vsub.f32 1.0, %v5347
    %v5400 = vsub.f32 1.0, %v5349
    %v5401 = vsub.f32 1.0, %v5351
    %v5402 = vsub.f32 1.0, %v5353
    %v5403 = vmul.f32 %v5395, %v5387
    %v5404 = vmul.f32 %v5396, %v5388
    %v5405 = vmul.f32 %v5397, %v5389
    %v5406 = vmul.f32 %v5398, %v5390
    %v5407 = vmul.f32 %v5399, %v5391
    %v5408 = vmul.f32 %v5400, %v5392
    %v5409 = vmul.f32 %v5401, %v5393
    %v5410 = vmul.f32 %v5402, %v5394
    %v5411 = vrot.slane %v4678, 7
    %v5412 = vrot.slane %v4679, 7
    %v5413 = vrot.slane %v4680, 7
    %v5414 = vrot.slane %v4681, 7
    %v5415 = vrot.slane %v4682, 7
    %v5416 = vrot.slane %v4683, 7
    %v5417 = vrot.slane %v4685, 7
    %v5426 = vmul.f32 %v5339, %v5411
    %v5427 = vmul.f32 %v5341, %v5412
    %v5428 = vmul.f32 %v5343, %v5413
    %v5429 = vmul.f32 %v5345, %v5414
    %v5430 = vmul.f32 %v5347, %v5415
    %v5431 = vmul.f32 %v5349, %v5416
    %v5432 = vmul.f32 %v5351, %v5064
    %v5433 = vmul.f32 %v5353, %v5417
    %v5434 = vadd.f32 %v5403, %v5426
    %v5435 = vadd.f32 %v5404, %v5427
    %v5436 = vadd.f32 %v5405, %v5428
    %v5437 = vadd.f32 %v5406, %v5429
    %v5438 = vadd.f32 %v5407, %v5430
    %v5439 = vadd.f32 %v5408, %v5431
    %v5440 = vadd.f32 %v5409, %v5432
    %v5441 = vadd.f32 %v5410, %v5433
    %s5442 = scalar_lea.vmem %s1, 48
    %v5443 = vld [vmem:[%s5442] sm:$0xff]
    %v5445 = vrot.slane %v5443, 2
    %v5446 = vrot.slane %v5443, 3
    %v5447 = vrot.slane %v5443, 4
    %v5448 = vrot.slane %v5443, 5
    %v5449 = vrot.slane %v5443, 6
    %v5450 = vrot.slane %v5443, 7
    %v5451 = vrot.slane %v5443, 1
    %v5460 = vmul.f32 %v5434, %v5445
    %v5461 = vmul.f32 %v5435, %v5446
    %v5462 = vmul.f32 %v5436, %v5447
    %v5463 = vmul.f32 %v5437, %v5448
    %v5464 = vmul.f32 %v5438, %v5449
    %v5465 = vmul.f32 %v5439, %v5450
    %v5466 = vmul.f32 %v5440, %v5443
    %v5467 = vmul.f32 %v5441, %v5451
    %v5476 = vrot.slane %v5460, 6
    %v5477 = vrot.slane %v5461, 5
    %v5478 = vsel %vm878, %v5477, %v5476
    %v5479 = vrot.slane %v5462, 4
    %v5480 = vsel %vm881, %v5479, %v5478
    %v5481 = vrot.slane %v5463, 3
    %v5482 = vsel %vm884, %v5481, %v5480
    %v5483 = vrot.slane %v5464, 2
    %v5484 = vsel %vm887, %v5483, %v5482
    %v5485 = vrot.slane %v5465, 1
    %v5486 = vsel %vm890, %v5485, %v5484
    %v5487 = vsel %vm893, %v5466, %v5486
    %v5488 = vrot.slane %v5467, 7
    %v5489 = vsel %vm896, %v5488, %v5487
    %5491 = vmatprep.subr.mxu0 %v850
    %5492 = vmatpush1.msra.mxu0 %v849
    %5493 = vmatprep.subr.mxu0 %v847
    %5494 = vmatpush1.msra.mxu0 %v846
    %5495 = vmatprep.subr.mxu0 %v844
    %5496 = vmatpush1.msra.mxu0 %v843
    %5497 = vmatprep.subr.mxu0 %v841
    %5498 = vmatpush1.msra.mxu0 %v840
    %5499 = vmatprep.subr.mxu0 %v838
    %5500 = vmatpush1.msra.mxu0 %v837
    %5501 = vmatprep.subr.mxu0 %v835
    %5502 = vmatpush1.msra.mxu0 %v834
    %5503 = vmatprep.subr.mxu0 %v832
    %5504 = vmatpush1.msra.mxu0 %v831
    %5505 = vmatprep.subr.mxu0 %v829
    %5506 = vmatpush1.msra.mxu0 %v828
    %5507 = vmatprep.subr.mxu0 %v826
    %5508 = vmatpush1.msra.mxu0 %v825
    %5509 = vmatprep.subr.mxu0 %v823
    %5510 = vmatpush1.msra.mxu0 %v822
    %5511 = vmatprep.subr.mxu0 %v820
    %5512 = vmatpush1.msra.mxu0 %v819
    %5513 = vmatprep.subr.mxu0 %v817
    %5514 = vmatpush1.msra.mxu0 %v816
    %5515 = vmatprep.subr.mxu0 %v814
    %5516 = vmatpush1.msra.mxu0 %v813
    %5517 = vmatprep.subr.mxu0 %v811
    %5518 = vmatpush1.msra.mxu0 %v810
    %5519 = vmatprep.subr.mxu0 %v808
    %5520 = vmatpush1.msra.mxu0 %v807
    %5521 = vmatprep.subr.mxu0 %v805
    %5522 = vmatpush1.msra.mxu0 %v804
    %5523 = vmatprep.subr.mxu0 0.0
    %5524 = vmatpush2.msra.mxu0 0.0
    %5525 = vmatprep.subr.mxu0 0.0
    %5526 = vmatpush2.msra.mxu0 0.0
    %5527 = vmatprep.subr.mxu0 0.0
    %5528 = vmatpush2.msra.mxu0 0.0
    %5529 = vmatprep.subr.mxu0 0.0
    %5530 = vmatpush2.msra.mxu0 0.0
    %5531 = vmatprep.subr.mxu0 0.0
    %5532 = vmatpush2.msra.mxu0 0.0
    %5533 = vmatprep.subr.mxu0 0.0
    %5534 = vmatpush2.msra.mxu0 0.0
    %5535 = vmatprep.subr.mxu0 0.0
    %5536 = vmatpush2.msra.mxu0 0.0
    %5537 = vmatprep.subr.mxu0 0.0
    %5538 = vmatpush2.msra.mxu0 0.0
    %5539 = vmatprep.subr.mxu0 0.0
    %5540 = vmatpush2.msra.mxu0 0.0
    %5541 = vmatprep.subr.mxu0 0.0
    %5542 = vmatpush2.msra.mxu0 0.0
    %5543 = vmatprep.subr.mxu0 0.0
    %5544 = vmatpush2.msra.mxu0 0.0
    %5545 = vmatprep.subr.mxu0 0.0
    %5546 = vmatpush2.msra.mxu0 0.0
    %5547 = vmatprep.subr.mxu0 0.0
    %5548 = vmatpush2.msra.mxu0 0.0
    %5549 = vmatprep.subr.mxu0 0.0
    %5550 = vmatpush2.msra.mxu0 0.0
    %5551 = vmatprep.subr.mxu0 0.0
    %5552 = vmatpush2.msra.mxu0 0.0
    %5553 = vmatprep.subr.mxu0 0.0
    %5554 = vmatpush2.msra.mxu0 0.0
    %5555 = vmatprep.mubr.f32.mxu0 0.0
    %5556 = vmatmul.mubr.f32.gmra.mxu0 %v5489
    %v5557 = vpop.f32.mrf.mxu0
    %v5558 = vadd.f32 %v857, %v5557
    %v5559 = vpop.f32.mrf.mxu0
    %v5560 = vadd.f32 %v861, %v5559
    %5561 = vdwg.mxu0
    %5562 = vmatprep.subr.mxu0 0.0
    %5563 = vmatpush1.msra.mxu0 %v851
    %5564 = vmatprep.subr.mxu0 0.0
    %5565 = vmatpush1.msra.mxu0 %v848
    %5566 = vmatprep.subr.mxu0 0.0
    %5567 = vmatpush1.msra.mxu0 %v845
    %5568 = vmatprep.subr.mxu0 0.0
    %5569 = vmatpush1.msra.mxu0 %v842
    %5570 = vmatprep.subr.mxu0 0.0
    %5571 = vmatpush1.msra.mxu0 %v839
    %5572 = vmatprep.subr.mxu0 0.0
    %5573 = vmatpush1.msra.mxu0 %v836
    %5574 = vmatprep.subr.mxu0 0.0
    %5575 = vmatpush1.msra.mxu0 %v833
    %5576 = vmatprep.subr.mxu0 0.0
    %5577 = vmatpush1.msra.mxu0 %v830
    %5578 = vmatprep.subr.mxu0 0.0
    %5579 = vmatpush1.msra.mxu0 %v827
    %5580 = vmatprep.subr.mxu0 0.0
    %5581 = vmatpush1.msra.mxu0 %v824
    %5582 = vmatprep.subr.mxu0 0.0
    %5583 = vmatpush1.msra.mxu0 %v821
    %5584 = vmatprep.subr.mxu0 0.0
    %5585 = vmatpush1.msra.mxu0 %v818
    %5586 = vmatprep.subr.mxu0 0.0
    %5587 = vmatpush1.msra.mxu0 %v815
    %5588 = vmatprep.subr.mxu0 0.0
    %5589 = vmatpush1.msra.mxu0 %v812
    %5590 = vmatprep.subr.mxu0 0.0
    %5591 = vmatpush1.msra.mxu0 %v809
    %5592 = vmatprep.subr.mxu0 0.0
    %5593 = vmatpush1.msra.mxu0 %v806
    %5594 = vmatprep.subr.mxu0 0.0
    %5595 = vmatpush2.msra.mxu0 0.0
    %5596 = vmatprep.subr.mxu0 0.0
    %5597 = vmatpush2.msra.mxu0 0.0
    %5598 = vmatprep.subr.mxu0 0.0
    %5599 = vmatpush2.msra.mxu0 0.0
    %5600 = vmatprep.subr.mxu0 0.0
    %5601 = vmatpush2.msra.mxu0 0.0
    %5602 = vmatprep.subr.mxu0 0.0
    %5603 = vmatpush2.msra.mxu0 0.0
    %5604 = vmatprep.subr.mxu0 0.0
    %5605 = vmatpush2.msra.mxu0 0.0
    %5606 = vmatprep.subr.mxu0 0.0
    %5607 = vmatpush2.msra.mxu0 0.0
    %5608 = vmatprep.subr.mxu0 0.0
    %5609 = vmatpush2.msra.mxu0 0.0
    %5610 = vmatprep.subr.mxu0 0.0
    %5611 = vmatpush2.msra.mxu0 0.0
    %5612 = vmatprep.subr.mxu0 0.0
    %5613 = vmatpush2.msra.mxu0 0.0
    %5614 = vmatprep.subr.mxu0 0.0
    %5615 = vmatpush2.msra.mxu0 0.0
    %5616 = vmatprep.subr.mxu0 0.0
    %5617 = vmatpush2.msra.mxu0 0.0
    %5618 = vmatprep.subr.mxu0 0.0
    %5619 = vmatpush2.msra.mxu0 0.0
    %5620 = vmatprep.subr.mxu0 0.0
    %5621 = vmatpush2.msra.mxu0 0.0
    %5622 = vmatprep.subr.mxu0 0.0
    %5623 = vmatpush2.msra.mxu0 0.0
    %5624 = vmatprep.subr.mxu0 0.0
    %5625 = vmatpush2.msra.mxu0 0.0
    %5626 = vmatprep.mubr.f32.mxu0 0.0
    %5627 = vmatmul.mubr.f32.gmra.mxu0 %v5489
    %v5628 = vpop.f32.mrf.mxu0
    %v5629 = vadd.f32 %v865, %v5628
    %v5630 = vpop.f32.mrf.mxu0
    %5631 = vdwg.mxu0
    %5632 = vmatprep.subr.mxu0 %v1086
    %5633 = vmatpush1.msra.mxu0 %v1085
    %5634 = vmatprep.subr.mxu0 %v1083
    %5635 = vmatpush1.msra.mxu0 %v1082
    %5636 = vmatprep.subr.mxu0 %v1080
    %5637 = vmatpush1.msra.mxu0 %v1079
    %5638 = vmatprep.subr.mxu0 %v1077
    %5639 = vmatpush1.msra.mxu0 %v1076
    %5640 = vmatprep.subr.mxu0 %v1074
    %5641 = vmatpush1.msra.mxu0 %v1073
    %5642 = vmatprep.subr.mxu0 %v1071
    %5643 = vmatpush1.msra.mxu0 %v1070
    %5644 = vmatprep.subr.mxu0 %v1068
    %5645 = vmatpush1.msra.mxu0 %v1067
    %5646 = vmatprep.subr.mxu0 %v1065
    %5647 = vmatpush1.msra.mxu0 %v1064
    %5648 = vmatprep.subr.mxu0 %v1062
    %5649 = vmatpush1.msra.mxu0 %v1061
    %5650 = vmatprep.subr.mxu0 %v1059
    %5651 = vmatpush1.msra.mxu0 %v1058
    %5652 = vmatprep.subr.mxu0 %v1056
    %5653 = vmatpush1.msra.mxu0 %v1055
    %5654 = vmatprep.subr.mxu0 %v1053
    %5655 = vmatpush1.msra.mxu0 %v1052
    %5656 = vmatprep.subr.mxu0 %v1050
    %5657 = vmatpush1.msra.mxu0 %v1049
    %5658 = vmatprep.subr.mxu0 %v1047
    %5659 = vmatpush1.msra.mxu0 %v1046
    %5660 = vmatprep.subr.mxu0 %v1044
    %5661 = vmatpush1.msra.mxu0 %v1043
    %5662 = vmatprep.subr.mxu0 %v1041
    %5663 = vmatpush1.msra.mxu0 %v1040
    %5664 = vmatprep.subr.mxu0 0.0
    %5665 = vmatpush2.msra.mxu0 0.0
    %5666 = vmatprep.subr.mxu0 0.0
    %5667 = vmatpush2.msra.mxu0 0.0
    %5668 = vmatprep.subr.mxu0 0.0
    %5669 = vmatpush2.msra.mxu0 0.0
    %5670 = vmatprep.subr.mxu0 0.0
    %5671 = vmatpush2.msra.mxu0 0.0
    %5672 = vmatprep.subr.mxu0 0.0
    %5673 = vmatpush2.msra.mxu0 0.0
    %5674 = vmatprep.subr.mxu0 0.0
    %5675 = vmatpush2.msra.mxu0 0.0
    %5676 = vmatprep.subr.mxu0 0.0
    %5677 = vmatpush2.msra.mxu0 0.0
    %5678 = vmatprep.subr.mxu0 0.0
    %5679 = vmatpush2.msra.mxu0 0.0
    %5680 = vmatprep.subr.mxu0 0.0
    %5681 = vmatpush2.msra.mxu0 0.0
    %5682 = vmatprep.subr.mxu0 0.0
    %5683 = vmatpush2.msra.mxu0 0.0
    %5684 = vmatprep.subr.mxu0 0.0
    %5685 = vmatpush2.msra.mxu0 0.0
    %5686 = vmatprep.subr.mxu0 0.0
    %5687 = vmatpush2.msra.mxu0 0.0
    %5688 = vmatprep.subr.mxu0 0.0
    %5689 = vmatpush2.msra.mxu0 0.0
    %5690 = vmatprep.subr.mxu0 0.0
    %5691 = vmatpush2.msra.mxu0 0.0
    %5692 = vmatprep.subr.mxu0 0.0
    %5693 = vmatpush2.msra.mxu0 0.0
    %5694 = vmatprep.subr.mxu0 0.0
    %5695 = vmatpush2.msra.mxu0 0.0
    %5696 = vmatprep.mubr.f32.mxu0 0.0
    %5697 = vmatmul.mubr.f32.gmra.mxu0 %v5038
    %v5698 = vpop.f32.mrf.mxu0
    %v5699 = vadd.f32 0.0, %v5698
    %v5700 = vpop.f32.mrf.mxu0
    %v5701 = vadd.f32 0.0, %v5700
    %5702 = vdwg.mxu0
    %5703 = vmatprep.subr.mxu0 0.0
    %5704 = vmatpush1.msra.mxu0 %v1087
    %5705 = vmatprep.subr.mxu0 0.0
    %5706 = vmatpush1.msra.mxu0 %v1084
    %5707 = vmatprep.subr.mxu0 0.0
    %5708 = vmatpush1.msra.mxu0 %v1081
    %5709 = vmatprep.subr.mxu0 0.0
    %5710 = vmatpush1.msra.mxu0 %v1078
    %5711 = vmatprep.subr.mxu0 0.0
    %5712 = vmatpush1.msra.mxu0 %v1075
    %5713 = vmatprep.subr.mxu0 0.0
    %5714 = vmatpush1.msra.mxu0 %v1072
    %5715 = vmatprep.subr.mxu0 0.0
    %5716 = vmatpush1.msra.mxu0 %v1069
    %5717 = vmatprep.subr.mxu0 0.0
    %5718 = vmatpush1.msra.mxu0 %v1066
    %5719 = vmatprep.subr.mxu0 0.0
    %5720 = vmatpush1.msra.mxu0 %v1063
    %5721 = vmatprep.subr.mxu0 0.0
    %5722 = vmatpush1.msra.mxu0 %v1060
    %5723 = vmatprep.subr.mxu0 0.0
    %5724 = vmatpush1.msra.mxu0 %v1057
    %5725 = vmatprep.subr.mxu0 0.0
    %5726 = vmatpush1.msra.mxu0 %v1054
    %5727 = vmatprep.subr.mxu0 0.0
    %5728 = vmatpush1.msra.mxu0 %v1051
    %5729 = vmatprep.subr.mxu0 0.0
    %5730 = vmatpush1.msra.mxu0 %v1048
    %5731 = vmatprep.subr.mxu0 0.0
    %5732 = vmatpush1.msra.mxu0 %v1045
    %5733 = vmatprep.subr.mxu0 0.0
    %5734 = vmatpush1.msra.mxu0 %v1042
    %5735 = vmatprep.subr.mxu0 0.0
    %5736 = vmatpush2.msra.mxu0 0.0
    %5737 = vmatprep.subr.mxu0 0.0
    %5738 = vmatpush2.msra.mxu0 0.0
    %5739 = vmatprep.subr.mxu0 0.0
    %5740 = vmatpush2.msra.mxu0 0.0
    %5741 = vmatprep.subr.mxu0 0.0
    %5742 = vmatpush2.msra.mxu0 0.0
    %5743 = vmatprep.subr.mxu0 0.0
    %5744 = vmatpush2.msra.mxu0 0.0
    %5745 = vmatprep.subr.mxu0 0.0
    %5746 = vmatpush2.msra.mxu0 0.0
    %5747 = vmatprep.subr.mxu0 0.0
    %5748 = vmatpush2.msra.mxu0 0.0
    %5749 = vmatprep.subr.mxu0 0.0
    %5750 = vmatpush2.msra.mxu0 0.0
    %5751 = vmatprep.subr.mxu0 0.0
    %5752 = vmatpush2.msra.mxu0 0.0
    %5753 = vmatprep.subr.mxu0 0.0
    %5754 = vmatpush2.msra.mxu0 0.0
    %5755 = vmatprep.subr.mxu0 0.0
    %5756 = vmatpush2.msra.mxu0 0.0
    %5757 = vmatprep.subr.mxu0 0.0
    %5758 = vmatpush2.msra.mxu0 0.0
    %5759 = vmatprep.subr.mxu0 0.0
    %5760 = vmatpush2.msra.mxu0 0.0
    %5761 = vmatprep.subr.mxu0 0.0
    %5762 = vmatpush2.msra.mxu0 0.0
    %5763 = vmatprep.subr.mxu0 0.0
    %5764 = vmatpush2.msra.mxu0 0.0
    %5765 = vmatprep.subr.mxu0 0.0
    %5766 = vmatpush2.msra.mxu0 0.0
    %5767 = vmatprep.mubr.f32.mxu0 0.0
    %5768 = vmatmul.mubr.f32.gmra.mxu0 %v5038
    %v5769 = vpop.f32.mrf.mxu0
    %v5770 = vadd.f32 0.0, %v5769
    %v5771 = vpop.f32.mrf.mxu0
    %5772 = vdwg.mxu0
    %v5773 = vadd.f32 %v5558, %v5699
    %v5774 = vxor.u32 %v5773, 2147483648
    %v5775 = vmul.f32 %v5774, 1.442695
    %v5776 = vpow.pop %v5775
    %v5777 = vadd.f32 %v5776, 1.0
    %v5778 = vrcp.pop %v5777
    %v5779 = vmul.f32 1.0, %v5778
    %v5780 = vadd.f32 %v5560, %v5701
    %v5781 = vxor.u32 %v5780, 2147483648
    %v5782 = vmul.f32 %v5781, 1.442695
    %v5783 = vpow.pop %v5782
    %v5784 = vadd.f32 %v5783, 1.0
    %v5785 = vrcp.pop %v5784
    %v5786 = vmul.f32 1.0, %v5785
    %v5787 = vadd.f32 %v5770, %v1248
    %v5788 = vmul.f32 %v5779, %v5787
    %v5789 = vadd.f32 %v5629, %v5788
    %v5790 = vtanh.pop %v5789
    %v5791 = vsub.f32 1.0, %v5786
    %v5792 = vmul.f32 %v5791, %v5790
    %v5793 = vmul.f32 %v5786, %v5038
    %v5794 = vadd.f32 %v5792, %v5793
    %vm5795 = vcmp.eq.s32.totalorder %v1258, 6
    %v5796 = vsel %vm5795, 1, 0
    %5797 = vset.pattern.permute.xlu0 0
    %5798 = vperm.xlu0 %5797, %v5796
    %v5799 = vpop.permute.xlu0 %5798
    %vm5800 = vcmp.eq.s32.totalorder %v5799, 1
    %v5801 = vsel %vm5800, %v5794, %v5045
    %v5810 = vrot.slane %v5434, 6
    %v5811 = vrot.slane %v5435, 5
    %v5812 = vsel %vm878, %v5811, %v5810
    %v5813 = vrot.slane %v5436, 4
    %v5814 = vsel %vm881, %v5813, %v5812
    %v5815 = vrot.slane %v5437, 3
    %v5816 = vsel %vm884, %v5815, %v5814
    %v5817 = vrot.slane %v5438, 2
    %v5818 = vsel %vm887, %v5817, %v5816
    %v5819 = vrot.slane %v5439, 1
    %v5820 = vsel %vm890, %v5819, %v5818
    %v5821 = vsel %vm893, %v5440, %v5820
    %v5822 = vrot.slane %v5441, 7
    %v5823 = vsel %vm896, %v5822, %v5821
    %5825 = vmatprep.subr.mxu0 %v412
    %5826 = vmatpush1.msra.mxu0 %v411
    %5827 = vmatprep.subr.mxu0 %v409
    %5828 = vmatpush1.msra.mxu0 %v408
    %5829 = vmatprep.subr.mxu0 %v406
    %5830 = vmatpush1.msra.mxu0 %v405
    %5831 = vmatprep.subr.mxu0 %v403
    %5832 = vmatpush1.msra.mxu0 %v402
    %5833 = vmatprep.subr.mxu0 %v400
    %5834 = vmatpush1.msra.mxu0 %v399
    %5835 = vmatprep.subr.mxu0 %v397
    %5836 = vmatpush1.msra.mxu0 %v396
    %5837 = vmatprep.subr.mxu0 %v394
    %5838 = vmatpush1.msra.mxu0 %v393
    %5839 = vmatprep.subr.mxu0 %v391
    %5840 = vmatpush1.msra.mxu0 %v390
    %5841 = vmatprep.subr.mxu0 %v388
    %5842 = vmatpush1.msra.mxu0 %v387
    %5843 = vmatprep.subr.mxu0 %v385
    %5844 = vmatpush1.msra.mxu0 %v384
    %5845 = vmatprep.subr.mxu0 %v382
    %5846 = vmatpush1.msra.mxu0 %v381
    %5847 = vmatprep.subr.mxu0 %v379
    %5848 = vmatpush1.msra.mxu0 %v378
    %5849 = vmatprep.subr.mxu0 %v376
    %5850 = vmatpush1.msra.mxu0 %v375
    %5851 = vmatprep.subr.mxu0 %v373
    %5852 = vmatpush1.msra.mxu0 %v372
    %5853 = vmatprep.subr.mxu0 %v370
    %5854 = vmatpush1.msra.mxu0 %v369
    %5855 = vmatprep.subr.mxu0 %v367
    %5856 = vmatpush1.msra.mxu0 %v366
    %5857 = vmatprep.subr.mxu0 0.0
    %5858 = vmatpush2.msra.mxu0 0.0
    %5859 = vmatprep.subr.mxu0 0.0
    %5860 = vmatpush2.msra.mxu0 0.0
    %5861 = vmatprep.subr.mxu0 0.0
    %5862 = vmatpush2.msra.mxu0 0.0
    %5863 = vmatprep.subr.mxu0 0.0
    %5864 = vmatpush2.msra.mxu0 0.0
    %5865 = vmatprep.subr.mxu0 0.0
    %5866 = vmatpush2.msra.mxu0 0.0
    %5867 = vmatprep.subr.mxu0 0.0
    %5868 = vmatpush2.msra.mxu0 0.0
    %5869 = vmatprep.subr.mxu0 0.0
    %5870 = vmatpush2.msra.mxu0 0.0
    %5871 = vmatprep.subr.mxu0 0.0
    %5872 = vmatpush2.msra.mxu0 0.0
    %5873 = vmatprep.subr.mxu0 0.0
    %5874 = vmatpush2.msra.mxu0 0.0
    %5875 = vmatprep.subr.mxu0 0.0
    %5876 = vmatpush2.msra.mxu0 0.0
    %5877 = vmatprep.subr.mxu0 0.0
    %5878 = vmatpush2.msra.mxu0 0.0
    %5879 = vmatprep.subr.mxu0 0.0
    %5880 = vmatpush2.msra.mxu0 0.0
    %5881 = vmatprep.subr.mxu0 0.0
    %5882 = vmatpush2.msra.mxu0 0.0
    %5883 = vmatprep.subr.mxu0 0.0
    %5884 = vmatpush2.msra.mxu0 0.0
    %5885 = vmatprep.subr.mxu0 0.0
    %5886 = vmatpush2.msra.mxu0 0.0
    %5887 = vmatprep.subr.mxu0 0.0
    %5888 = vmatpush2.msra.mxu0 0.0
    %5889 = vmatprep.mubr.f32.mxu0 0.0
    %5890 = vmatmul.mubr.f32.gmra.mxu0 %v5823
    %v5891 = vpop.f32.mrf.mxu0
    %v5892 = vadd.f32 0.0, %v5891
    %v5893 = vpop.f32.mrf.mxu0
    %v5894 = vadd.f32 0.0, %v5893
    %5895 = vdwg.mxu0
    %5896 = vmatprep.subr.mxu0 0.0
    %5897 = vmatpush1.msra.mxu0 %v413
    %5898 = vmatprep.subr.mxu0 0.0
    %5899 = vmatpush1.msra.mxu0 %v410
    %5900 = vmatprep.subr.mxu0 0.0
    %5901 = vmatpush1.msra.mxu0 %v407
    %5902 = vmatprep.subr.mxu0 0.0
    %5903 = vmatpush1.msra.mxu0 %v404
    %5904 = vmatprep.subr.mxu0 0.0
    %5905 = vmatpush1.msra.mxu0 %v401
    %5906 = vmatprep.subr.mxu0 0.0
    %5907 = vmatpush1.msra.mxu0 %v398
    %5908 = vmatprep.subr.mxu0 0.0
    %5909 = vmatpush1.msra.mxu0 %v395
    %5910 = vmatprep.subr.mxu0 0.0
    %5911 = vmatpush1.msra.mxu0 %v392
    %5912 = vmatprep.subr.mxu0 0.0
    %5913 = vmatpush1.msra.mxu0 %v389
    %5914 = vmatprep.subr.mxu0 0.0
    %5915 = vmatpush1.msra.mxu0 %v386
    %5916 = vmatprep.subr.mxu0 0.0
    %5917 = vmatpush1.msra.mxu0 %v383
    %5918 = vmatprep.subr.mxu0 0.0
    %5919 = vmatpush1.msra.mxu0 %v380
    %5920 = vmatprep.subr.mxu0 0.0
    %5921 = vmatpush1.msra.mxu0 %v377
    %5922 = vmatprep.subr.mxu0 0.0
    %5923 = vmatpush1.msra.mxu0 %v374
    %5924 = vmatprep.subr.mxu0 0.0
    %5925 = vmatpush1.msra.mxu0 %v371
    %5926 = vmatprep.subr.mxu0 0.0
    %5927 = vmatpush1.msra.mxu0 %v368
    %5928 = vmatprep.subr.mxu0 0.0
    %5929 = vmatpush2.msra.mxu0 0.0
    %5930 = vmatprep.subr.mxu0 0.0
    %5931 = vmatpush2.msra.mxu0 0.0
    %5932 = vmatprep.subr.mxu0 0.0
    %5933 = vmatpush2.msra.mxu0 0.0
    %5934 = vmatprep.subr.mxu0 0.0
    %5935 = vmatpush2.msra.mxu0 0.0
    %5936 = vmatprep.subr.mxu0 0.0
    %5937 = vmatpush2.msra.mxu0 0.0
    %5938 = vmatprep.subr.mxu0 0.0
    %5939 = vmatpush2.msra.mxu0 0.0
    %5940 = vmatprep.subr.mxu0 0.0
    %5941 = vmatpush2.msra.mxu0 0.0
    %5942 = vmatprep.subr.mxu0 0.0
    %5943 = vmatpush2.msra.mxu0 0.0
    %5944 = vmatprep.subr.mxu0 0.0
    %5945 = vmatpush2.msra.mxu0 0.0
    %5946 = vmatprep.subr.mxu0 0.0
    %5947 = vmatpush2.msra.mxu0 0.0
    %5948 = vmatprep.subr.mxu0 0.0
    %5949 = vmatpush2.msra.mxu0 0.0
    %5950 = vmatprep.subr.mxu0 0.0
    %5951 = vmatpush2.msra.mxu0 0.0
    %5952 = vmatprep.subr.mxu0 0.0
    %5953 = vmatpush2.msra.mxu0 0.0
    %5954 = vmatprep.subr.mxu0 0.0
    %5955 = vmatpush2.msra.mxu0 0.0
    %5956 = vmatprep.subr.mxu0 0.0
    %5957 = vmatpush2.msra.mxu0 0.0
    %5958 = vmatprep.subr.mxu0 0.0
    %5959 = vmatpush2.msra.mxu0 0.0
    %5960 = vmatprep.mubr.f32.mxu0 0.0
    %5961 = vmatmul.mubr.f32.gmra.mxu0 %v5823
    %v5962 = vpop.f32.mrf.mxu0
    %v5963 = vadd.f32 0.0, %v5962
    %v5964 = vpop.f32.mrf.mxu0
    %5965 = vdwg.mxu0
    %v5967 = vrot.slane %v5892, 1
    %v5968 = vrot.slane %v5892, 2
    %v5969 = vrot.slane %v5892, 3
    %v5970 = vrot.slane %v5892, 4
    %v5971 = vrot.slane %v5892, 5
    %v5972 = vrot.slane %v5892, 6
    %v5973 = vrot.slane %v5892, 7
    %v5982 = vadd.f32 %v214, %v5967
    %v5983 = vadd.f32 %v220, %v5968
    %v5984 = vadd.f32 %v226, %v5969
    %v5985 = vadd.f32 %v232, %v5970
    %v5986 = vadd.f32 %v238, %v5971
    %v5987 = vadd.f32 %v244, %v5972
    %v5988 = vadd.f32 %v250, %v5973
    %v5989 = vadd.f32 %v256, %v5892
    %v5990 = vxor.u32 %v5982, 2147483648
    %v5991 = vxor.u32 %v5983, 2147483648
    %v5992 = vxor.u32 %v5984, 2147483648
    %v5993 = vxor.u32 %v5985, 2147483648
    %v5994 = vxor.u32 %v5986, 2147483648
    %v5995 = vxor.u32 %v5987, 2147483648
    %v5996 = vxor.u32 %v5988, 2147483648
    %v5997 = vxor.u32 %v5989, 2147483648
    %v5998 = vmul.f32 %v5990, 1.442695
    %v5999 = vpow.pop %v5998
    %v6000 = vmul.f32 %v5991, 1.442695
    %v6001 = vpow.pop %v6000
    %v6002 = vmul.f32 %v5992, 1.442695
    %v6003 = vpow.pop %v6002
    %v6004 = vmul.f32 %v5993, 1.442695
    %v6005 = vpow.pop %v6004
    %v6006 = vmul.f32 %v5994, 1.442695
    %v6007 = vpow.pop %v6006
    %v6008 = vmul.f32 %v5995, 1.442695
    %v6009 = vpow.pop %v6008
    %v6010 = vmul.f32 %v5996, 1.442695
    %v6011 = vpow.pop %v6010
    %v6012 = vmul.f32 %v5997, 1.442695
    %v6013 = vpow.pop %v6012
    %v6014 = vadd.f32 %v5999, 1.0
    %v6015 = vadd.f32 %v6001, 1.0
    %v6016 = vadd.f32 %v6003, 1.0
    %v6017 = vadd.f32 %v6005, 1.0
    %v6018 = vadd.f32 %v6007, 1.0
    %v6019 = vadd.f32 %v6009, 1.0
    %v6020 = vadd.f32 %v6011, 1.0
    %v6021 = vadd.f32 %v6013, 1.0
    %v6022 = vrcp.pop %v6014
    %v6023 = vmul.f32 1.0, %v6022
    %v6024 = vrcp.pop %v6015
    %v6025 = vmul.f32 1.0, %v6024
    %v6026 = vrcp.pop %v6016
    %v6027 = vmul.f32 1.0, %v6026
    %v6028 = vrcp.pop %v6017
    %v6029 = vmul.f32 1.0, %v6028
    %v6030 = vrcp.pop %v6018
    %v6031 = vmul.f32 1.0, %v6030
    %v6032 = vrcp.pop %v6019
    %v6033 = vmul.f32 1.0, %v6032
    %v6034 = vrcp.pop %v6020
    %v6035 = vmul.f32 1.0, %v6034
    %v6036 = vrcp.pop %v6021
    %v6037 = vmul.f32 1.0, %v6036
    %v6039 = vrot.slane %v5894, 1
    %v6040 = vrot.slane %v5894, 2
    %v6041 = vrot.slane %v5894, 3
    %v6042 = vrot.slane %v5894, 4
    %v6043 = vrot.slane %v5894, 5
    %v6044 = vrot.slane %v5894, 6
    %v6045 = vrot.slane %v5894, 7
    %v6054 = vadd.f32 %v216, %v6039
    %v6055 = vadd.f32 %v222, %v6040
    %v6056 = vadd.f32 %v228, %v6041
    %v6057 = vadd.f32 %v234, %v6042
    %v6058 = vadd.f32 %v240, %v6043
    %v6059 = vadd.f32 %v246, %v6044
    %v6060 = vadd.f32 %v252, %v6045
    %v6061 = vadd.f32 %v258, %v5894
    %v6062 = vxor.u32 %v6054, 2147483648
    %v6063 = vxor.u32 %v6055, 2147483648
    %v6064 = vxor.u32 %v6056, 2147483648
    %v6065 = vxor.u32 %v6057, 2147483648
    %v6066 = vxor.u32 %v6058, 2147483648
    %v6067 = vxor.u32 %v6059, 2147483648
    %v6068 = vxor.u32 %v6060, 2147483648
    %v6069 = vxor.u32 %v6061, 2147483648
    %v6070 = vmul.f32 %v6062, 1.442695
    %v6071 = vpow.pop %v6070
    %v6072 = vmul.f32 %v6063, 1.442695
    %v6073 = vpow.pop %v6072
    %v6074 = vmul.f32 %v6064, 1.442695
    %v6075 = vpow.pop %v6074
    %v6076 = vmul.f32 %v6065, 1.442695
    %v6077 = vpow.pop %v6076
    %v6078 = vmul.f32 %v6066, 1.442695
    %v6079 = vpow.pop %v6078
    %v6080 = vmul.f32 %v6067, 1.442695
    %v6081 = vpow.pop %v6080
    %v6082 = vmul.f32 %v6068, 1.442695
    %v6083 = vpow.pop %v6082
    %v6084 = vmul.f32 %v6069, 1.442695
    %v6085 = vpow.pop %v6084
    %v6086 = vadd.f32 %v6071, 1.0
    %v6087 = vadd.f32 %v6073, 1.0
    %v6088 = vadd.f32 %v6075, 1.0
    %v6089 = vadd.f32 %v6077, 1.0
    %v6090 = vadd.f32 %v6079, 1.0
    %v6091 = vadd.f32 %v6081, 1.0
    %v6092 = vadd.f32 %v6083, 1.0
    %v6093 = vadd.f32 %v6085, 1.0
    %v6094 = vrcp.pop %v6086
    %v6095 = vmul.f32 1.0, %v6094
    %v6096 = vrcp.pop %v6087
    %v6097 = vmul.f32 1.0, %v6096
    %v6098 = vrcp.pop %v6088
    %v6099 = vmul.f32 1.0, %v6098
    %v6100 = vrcp.pop %v6089
    %v6101 = vmul.f32 1.0, %v6100
    %v6102 = vrcp.pop %v6090
    %v6103 = vmul.f32 1.0, %v6102
    %v6104 = vrcp.pop %v6091
    %v6105 = vmul.f32 1.0, %v6104
    %v6106 = vrcp.pop %v6092
    %v6107 = vmul.f32 1.0, %v6106
    %v6108 = vrcp.pop %v6093
    %v6109 = vmul.f32 1.0, %v6108
    %v6110 = vadd.f32 %v5963, %v704
    %v6112 = vrot.slane %v6110, 1
    %v6113 = vrot.slane %v6110, 2
    %v6114 = vrot.slane %v6110, 3
    %v6115 = vrot.slane %v6110, 4
    %v6116 = vrot.slane %v6110, 5
    %v6117 = vrot.slane %v6110, 6
    %v6118 = vrot.slane %v6110, 7
    %v6127 = vmul.f32 %v6023, %v6112
    %v6128 = vmul.f32 %v6025, %v6113
    %v6129 = vmul.f32 %v6027, %v6114
    %v6130 = vmul.f32 %v6029, %v6115
    %v6131 = vmul.f32 %v6031, %v6116
    %v6132 = vmul.f32 %v6033, %v6117
    %v6133 = vmul.f32 %v6035, %v6118
    %v6134 = vmul.f32 %v6037, %v6110
    %v6135 = vadd.f32 %v327, %v6127
    %v6136 = vadd.f32 %v332, %v6128
    %v6137 = vadd.f32 %v337, %v6129
    %v6138 = vadd.f32 %v342, %v6130
    %v6139 = vadd.f32 %v347, %v6131
    %v6140 = vadd.f32 %v352, %v6132
    %v6141 = vadd.f32 %v357, %v6133
    %v6142 = vadd.f32 %v362, %v6134
    %v6143 = vtanh.pop %v6135
    %v6144 = vtanh.pop %v6136
    %v6145 = vtanh.pop %v6137
    %v6146 = vtanh.pop %v6138
    %v6147 = vtanh.pop %v6139
    %v6148 = vtanh.pop %v6140
    %v6149 = vtanh.pop %v6141
    %v6150 = vtanh.pop %v6142
    %v6151 = vsub.f32 1.0, %v6095
    %v6152 = vsub.f32 1.0, %v6097
    %v6153 = vsub.f32 1.0, %v6099
    %v6154 = vsub.f32 1.0, %v6101
    %v6155 = vsub.f32 1.0, %v6103
    %v6156 = vsub.f32 1.0, %v6105
    %v6157 = vsub.f32 1.0, %v6107
    %v6158 = vsub.f32 1.0, %v6109
    %v6159 = vmul.f32 %v6151, %v6143
    %v6160 = vmul.f32 %v6152, %v6144
    %v6161 = vmul.f32 %v6153, %v6145
    %v6162 = vmul.f32 %v6154, %v6146
    %v6163 = vmul.f32 %v6155, %v6147
    %v6164 = vmul.f32 %v6156, %v6148
    %v6165 = vmul.f32 %v6157, %v6149
    %v6166 = vmul.f32 %v6158, %v6150
    %v6167 = vrot.slane %v5434, 7
    %v6168 = vrot.slane %v5435, 7
    %v6169 = vrot.slane %v5436, 7
    %v6170 = vrot.slane %v5437, 7
    %v6171 = vrot.slane %v5438, 7
    %v6172 = vrot.slane %v5439, 7
    %v6173 = vrot.slane %v5440, 7
    %v6182 = vmul.f32 %v6095, %v6167
    %v6183 = vmul.f32 %v6097, %v6168
    %v6184 = vmul.f32 %v6099, %v6169
    %v6185 = vmul.f32 %v6101, %v6170
    %v6186 = vmul.f32 %v6103, %v6171
    %v6187 = vmul.f32 %v6105, %v6172
    %v6188 = vmul.f32 %v6107, %v6173
    %v6189 = vmul.f32 %v6109, %v5822
    %v6190 = vadd.f32 %v6159, %v6182
    %v6191 = vadd.f32 %v6160, %v6183
    %v6192 = vadd.f32 %v6161, %v6184
    %v6193 = vadd.f32 %v6162, %v6185
    %v6194 = vadd.f32 %v6163, %v6186
    %v6195 = vadd.f32 %v6164, %v6187
    %v6196 = vadd.f32 %v6165, %v6188
    %v6197 = vadd.f32 %v6166, %v6189
    %s6198 = scalar_lea.vmem %s1, 56
    %v6199 = vld [vmem:[%s6198] sm:$0xff]
    %v6201 = vrot.slane %v6199, 1
    %v6202 = vrot.slane %v6199, 2
    %v6203 = vrot.slane %v6199, 3
    %v6204 = vrot.slane %v6199, 4
    %v6205 = vrot.slane %v6199, 5
    %v6206 = vrot.slane %v6199, 6
    %v6207 = vrot.slane %v6199, 7
    %v6216 = vmul.f32 %v6190, %v6201
    %v6217 = vmul.f32 %v6191, %v6202
    %v6218 = vmul.f32 %v6192, %v6203
    %v6219 = vmul.f32 %v6193, %v6204
    %v6220 = vmul.f32 %v6194, %v6205
    %v6221 = vmul.f32 %v6195, %v6206
    %v6222 = vmul.f32 %v6196, %v6207
    %v6223 = vmul.f32 %v6197, %v6199
    %v6232 = vrot.slane %v6216, 7
    %v6233 = vrot.slane %v6217, 6
    %v6234 = vsel %vm878, %v6233, %v6232
    %v6235 = vrot.slane %v6218, 5
    %v6236 = vsel %vm881, %v6235, %v6234
    %v6237 = vrot.slane %v6219, 4
    %v6238 = vsel %vm884, %v6237, %v6236
    %v6239 = vrot.slane %v6220, 3
    %v6240 = vsel %vm887, %v6239, %v6238
    %v6241 = vrot.slane %v6221, 2
    %v6242 = vsel %vm890, %v6241, %v6240
    %v6243 = vrot.slane %v6222, 1
    %v6244 = vsel %vm893, %v6243, %v6242
    %v6245 = vsel %vm896, %v6223, %v6244
    %6247 = vmatprep.subr.mxu0 %v850
    %6248 = vmatpush1.msra.mxu0 %v849
    %6249 = vmatprep.subr.mxu0 %v847
    %6250 = vmatpush1.msra.mxu0 %v846
    %6251 = vmatprep.subr.mxu0 %v844
    %6252 = vmatpush1.msra.mxu0 %v843
    %6253 = vmatprep.subr.mxu0 %v841
    %6254 = vmatpush1.msra.mxu0 %v840
    %6255 = vmatprep.subr.mxu0 %v838
    %6256 = vmatpush1.msra.mxu0 %v837
    %6257 = vmatprep.subr.mxu0 %v835
    %6258 = vmatpush1.msra.mxu0 %v834
    %6259 = vmatprep.subr.mxu0 %v832
    %6260 = vmatpush1.msra.mxu0 %v831
    %6261 = vmatprep.subr.mxu0 %v829
    %6262 = vmatpush1.msra.mxu0 %v828
    %6263 = vmatprep.subr.mxu0 %v826
    %6264 = vmatpush1.msra.mxu0 %v825
    %6265 = vmatprep.subr.mxu0 %v823
    %6266 = vmatpush1.msra.mxu0 %v822
    %6267 = vmatprep.subr.mxu0 %v820
    %6268 = vmatpush1.msra.mxu0 %v819
    %6269 = vmatprep.subr.mxu0 %v817
    %6270 = vmatpush1.msra.mxu0 %v816
    %6271 = vmatprep.subr.mxu0 %v814
    %6272 = vmatpush1.msra.mxu0 %v813
    %6273 = vmatprep.subr.mxu0 %v811
    %6274 = vmatpush1.msra.mxu0 %v810
    %6275 = vmatprep.subr.mxu0 %v808
    %6276 = vmatpush1.msra.mxu0 %v807
    %6277 = vmatprep.subr.mxu0 %v805
    %6278 = vmatpush1.msra.mxu0 %v804
    %6279 = vmatprep.subr.mxu0 0.0
    %6280 = vmatpush2.msra.mxu0 0.0
    %6281 = vmatprep.subr.mxu0 0.0
    %6282 = vmatpush2.msra.mxu0 0.0
    %6283 = vmatprep.subr.mxu0 0.0
    %6284 = vmatpush2.msra.mxu0 0.0
    %6285 = vmatprep.subr.mxu0 0.0
    %6286 = vmatpush2.msra.mxu0 0.0
    %6287 = vmatprep.subr.mxu0 0.0
    %6288 = vmatpush2.msra.mxu0 0.0
    %6289 = vmatprep.subr.mxu0 0.0
    %6290 = vmatpush2.msra.mxu0 0.0
    %6291 = vmatprep.subr.mxu0 0.0
    %6292 = vmatpush2.msra.mxu0 0.0
    %6293 = vmatprep.subr.mxu0 0.0
    %6294 = vmatpush2.msra.mxu0 0.0
    %6295 = vmatprep.subr.mxu0 0.0
    %6296 = vmatpush2.msra.mxu0 0.0
    %6297 = vmatprep.subr.mxu0 0.0
    %6298 = vmatpush2.msra.mxu0 0.0
    %6299 = vmatprep.subr.mxu0 0.0
    %6300 = vmatpush2.msra.mxu0 0.0
    %6301 = vmatprep.subr.mxu0 0.0
    %6302 = vmatpush2.msra.mxu0 0.0
    %6303 = vmatprep.subr.mxu0 0.0
    %6304 = vmatpush2.msra.mxu0 0.0
    %6305 = vmatprep.subr.mxu0 0.0
    %6306 = vmatpush2.msra.mxu0 0.0
    %6307 = vmatprep.subr.mxu0 0.0
    %6308 = vmatpush2.msra.mxu0 0.0
    %6309 = vmatprep.subr.mxu0 0.0
    %6310 = vmatpush2.msra.mxu0 0.0
    %6311 = vmatprep.mubr.f32.mxu0 0.0
    %6312 = vmatmul.mubr.f32.gmra.mxu0 %v6245
    %v6313 = vpop.f32.mrf.mxu0
    %v6314 = vadd.f32 %v857, %v6313
    %v6315 = vpop.f32.mrf.mxu0
    %v6316 = vadd.f32 %v861, %v6315
    %6317 = vdwg.mxu0
    %6318 = vmatprep.subr.mxu0 0.0
    %6319 = vmatpush1.msra.mxu0 %v851
    %6320 = vmatprep.subr.mxu0 0.0
    %6321 = vmatpush1.msra.mxu0 %v848
    %6322 = vmatprep.subr.mxu0 0.0
    %6323 = vmatpush1.msra.mxu0 %v845
    %6324 = vmatprep.subr.mxu0 0.0
    %6325 = vmatpush1.msra.mxu0 %v842
    %6326 = vmatprep.subr.mxu0 0.0
    %6327 = vmatpush1.msra.mxu0 %v839
    %6328 = vmatprep.subr.mxu0 0.0
    %6329 = vmatpush1.msra.mxu0 %v836
    %6330 = vmatprep.subr.mxu0 0.0
    %6331 = vmatpush1.msra.mxu0 %v833
    %6332 = vmatprep.subr.mxu0 0.0
    %6333 = vmatpush1.msra.mxu0 %v830
    %6334 = vmatprep.subr.mxu0 0.0
    %6335 = vmatpush1.msra.mxu0 %v827
    %6336 = vmatprep.subr.mxu0 0.0
    %6337 = vmatpush1.msra.mxu0 %v824
    %6338 = vmatprep.subr.mxu0 0.0
    %6339 = vmatpush1.msra.mxu0 %v821
    %6340 = vmatprep.subr.mxu0 0.0
    %6341 = vmatpush1.msra.mxu0 %v818
    %6342 = vmatprep.subr.mxu0 0.0
    %6343 = vmatpush1.msra.mxu0 %v815
    %6344 = vmatprep.subr.mxu0 0.0
    %6345 = vmatpush1.msra.mxu0 %v812
    %6346 = vmatprep.subr.mxu0 0.0
    %6347 = vmatpush1.msra.mxu0 %v809
    %6348 = vmatprep.subr.mxu0 0.0
    %6349 = vmatpush1.msra.mxu0 %v806
    %6350 = vmatprep.subr.mxu0 0.0
    %6351 = vmatpush2.msra.mxu0 0.0
    %6352 = vmatprep.subr.mxu0 0.0
    %6353 = vmatpush2.msra.mxu0 0.0
    %6354 = vmatprep.subr.mxu0 0.0
    %6355 = vmatpush2.msra.mxu0 0.0
    %6356 = vmatprep.subr.mxu0 0.0
    %6357 = vmatpush2.msra.mxu0 0.0
    %6358 = vmatprep.subr.mxu0 0.0
    %6359 = vmatpush2.msra.mxu0 0.0
    %6360 = vmatprep.subr.mxu0 0.0
    %6361 = vmatpush2.msra.mxu0 0.0
    %6362 = vmatprep.subr.mxu0 0.0
    %6363 = vmatpush2.msra.mxu0 0.0
    %6364 = vmatprep.subr.mxu0 0.0
    %6365 = vmatpush2.msra.mxu0 0.0
    %6366 = vmatprep.subr.mxu0 0.0
    %6367 = vmatpush2.msra.mxu0 0.0
    %6368 = vmatprep.subr.mxu0 0.0
    %6369 = vmatpush2.msra.mxu0 0.0
    %6370 = vmatprep.subr.mxu0 0.0
    %6371 = vmatpush2.msra.mxu0 0.0
    %6372 = vmatprep.subr.mxu0 0.0
    %6373 = vmatpush2.msra.mxu0 0.0
    %6374 = vmatprep.subr.mxu0 0.0
    %6375 = vmatpush2.msra.mxu0 0.0
    %6376 = vmatprep.subr.mxu0 0.0
    %6377 = vmatpush2.msra.mxu0 0.0
    %6378 = vmatprep.subr.mxu0 0.0
    %6379 = vmatpush2.msra.mxu0 0.0
    %6380 = vmatprep.subr.mxu0 0.0
    %6381 = vmatpush2.msra.mxu0 0.0
    %6382 = vmatprep.mubr.f32.mxu0 0.0
    %6383 = vmatmul.mubr.f32.gmra.mxu0 %v6245
    %v6384 = vpop.f32.mrf.mxu0
    %v6385 = vadd.f32 %v865, %v6384
    %v6386 = vpop.f32.mrf.mxu0
    %6387 = vdwg.mxu0
    %6388 = vmatprep.subr.mxu0 %v1086
    %6389 = vmatpush1.msra.mxu0 %v1085
    %6390 = vmatprep.subr.mxu0 %v1083
    %6391 = vmatpush1.msra.mxu0 %v1082
    %6392 = vmatprep.subr.mxu0 %v1080
    %6393 = vmatpush1.msra.mxu0 %v1079
    %6394 = vmatprep.subr.mxu0 %v1077
    %6395 = vmatpush1.msra.mxu0 %v1076
    %6396 = vmatprep.subr.mxu0 %v1074
    %6397 = vmatpush1.msra.mxu0 %v1073
    %6398 = vmatprep.subr.mxu0 %v1071
    %6399 = vmatpush1.msra.mxu0 %v1070
    %6400 = vmatprep.subr.mxu0 %v1068
    %6401 = vmatpush1.msra.mxu0 %v1067
    %6402 = vmatprep.subr.mxu0 %v1065
    %6403 = vmatpush1.msra.mxu0 %v1064
    %6404 = vmatprep.subr.mxu0 %v1062
    %6405 = vmatpush1.msra.mxu0 %v1061
    %6406 = vmatprep.subr.mxu0 %v1059
    %6407 = vmatpush1.msra.mxu0 %v1058
    %6408 = vmatprep.subr.mxu0 %v1056
    %6409 = vmatpush1.msra.mxu0 %v1055
    %6410 = vmatprep.subr.mxu0 %v1053
    %6411 = vmatpush1.msra.mxu0 %v1052
    %6412 = vmatprep.subr.mxu0 %v1050
    %6413 = vmatpush1.msra.mxu0 %v1049
    %6414 = vmatprep.subr.mxu0 %v1047
    %6415 = vmatpush1.msra.mxu0 %v1046
    %6416 = vmatprep.subr.mxu0 %v1044
    %6417 = vmatpush1.msra.mxu0 %v1043
    %6418 = vmatprep.subr.mxu0 %v1041
    %6419 = vmatpush1.msra.mxu0 %v1040
    %6420 = vmatprep.subr.mxu0 0.0
    %6421 = vmatpush2.msra.mxu0 0.0
    %6422 = vmatprep.subr.mxu0 0.0
    %6423 = vmatpush2.msra.mxu0 0.0
    %6424 = vmatprep.subr.mxu0 0.0
    %6425 = vmatpush2.msra.mxu0 0.0
    %6426 = vmatprep.subr.mxu0 0.0
    %6427 = vmatpush2.msra.mxu0 0.0
    %6428 = vmatprep.subr.mxu0 0.0
    %6429 = vmatpush2.msra.mxu0 0.0
    %6430 = vmatprep.subr.mxu0 0.0
    %6431 = vmatpush2.msra.mxu0 0.0
    %6432 = vmatprep.subr.mxu0 0.0
    %6433 = vmatpush2.msra.mxu0 0.0
    %6434 = vmatprep.subr.mxu0 0.0
    %6435 = vmatpush2.msra.mxu0 0.0
    %6436 = vmatprep.subr.mxu0 0.0
    %6437 = vmatpush2.msra.mxu0 0.0
    %6438 = vmatprep.subr.mxu0 0.0
    %6439 = vmatpush2.msra.mxu0 0.0
    %6440 = vmatprep.subr.mxu0 0.0
    %6441 = vmatpush2.msra.mxu0 0.0
    %6442 = vmatprep.subr.mxu0 0.0
    %6443 = vmatpush2.msra.mxu0 0.0
    %6444 = vmatprep.subr.mxu0 0.0
    %6445 = vmatpush2.msra.mxu0 0.0
    %6446 = vmatprep.subr.mxu0 0.0
    %6447 = vmatpush2.msra.mxu0 0.0
    %6448 = vmatprep.subr.mxu0 0.0
    %6449 = vmatpush2.msra.mxu0 0.0
    %6450 = vmatprep.subr.mxu0 0.0
    %6451 = vmatpush2.msra.mxu0 0.0
    %6452 = vmatprep.mubr.f32.mxu0 0.0
    %6453 = vmatmul.mubr.f32.gmra.mxu0 %v5794
    %v6454 = vpop.f32.mrf.mxu0
    %v6455 = vadd.f32 0.0, %v6454
    %v6456 = vpop.f32.mrf.mxu0
    %v6457 = vadd.f32 0.0, %v6456
    %6458 = vdwg.mxu0
    %6459 = vmatprep.subr.mxu0 0.0
    %6460 = vmatpush1.msra.mxu0 %v1087
    %6461 = vmatprep.subr.mxu0 0.0
    %6462 = vmatpush1.msra.mxu0 %v1084
    %6463 = vmatprep.subr.mxu0 0.0
    %6464 = vmatpush1.msra.mxu0 %v1081
    %6465 = vmatprep.subr.mxu0 0.0
    %6466 = vmatpush1.msra.mxu0 %v1078
    %6467 = vmatprep.subr.mxu0 0.0
    %6468 = vmatpush1.msra.mxu0 %v1075
    %6469 = vmatprep.subr.mxu0 0.0
    %6470 = vmatpush1.msra.mxu0 %v1072
    %6471 = vmatprep.subr.mxu0 0.0
    %6472 = vmatpush1.msra.mxu0 %v1069
    %6473 = vmatprep.subr.mxu0 0.0
    %6474 = vmatpush1.msra.mxu0 %v1066
    %6475 = vmatprep.subr.mxu0 0.0
    %6476 = vmatpush1.msra.mxu0 %v1063
    %6477 = vmatprep.subr.mxu0 0.0
    %6478 = vmatpush1.msra.mxu0 %v1060
    %6479 = vmatprep.subr.mxu0 0.0
    %6480 = vmatpush1.msra.mxu0 %v1057
    %6481 = vmatprep.subr.mxu0 0.0
    %6482 = vmatpush1.msra.mxu0 %v1054
    %6483 = vmatprep.subr.mxu0 0.0
    %6484 = vmatpush1.msra.mxu0 %v1051
    %6485 = vmatprep.subr.mxu0 0.0
    %6486 = vmatpush1.msra.mxu0 %v1048
    %6487 = vmatprep.subr.mxu0 0.0
    %6488 = vmatpush1.msra.mxu0 %v1045
    %6489 = vmatprep.subr.mxu0 0.0
    %6490 = vmatpush1.msra.mxu0 %v1042
    %6491 = vmatprep.subr.mxu0 0.0
    %6492 = vmatpush2.msra.mxu0 0.0
    %6493 = vmatprep.subr.mxu0 0.0
    %6494 = vmatpush2.msra.mxu0 0.0
    %6495 = vmatprep.subr.mxu0 0.0
    %6496 = vmatpush2.msra.mxu0 0.0
    %6497 = vmatprep.subr.mxu0 0.0
    %6498 = vmatpush2.msra.mxu0 0.0
    %6499 = vmatprep.subr.mxu0 0.0
    %6500 = vmatpush2.msra.mxu0 0.0
    %6501 = vmatprep.subr.mxu0 0.0
    %6502 = vmatpush2.msra.mxu0 0.0
    %6503 = vmatprep.subr.mxu0 0.0
    %6504 = vmatpush2.msra.mxu0 0.0
    %6505 = vmatprep.subr.mxu0 0.0
    %6506 = vmatpush2.msra.mxu0 0.0
    %6507 = vmatprep.subr.mxu0 0.0
    %6508 = vmatpush2.msra.mxu0 0.0
    %6509 = vmatprep.subr.mxu0 0.0
    %6510 = vmatpush2.msra.mxu0 0.0
    %6511 = vmatprep.subr.mxu0 0.0
    %6512 = vmatpush2.msra.mxu0 0.0
    %6513 = vmatprep.subr.mxu0 0.0
    %6514 = vmatpush2.msra.mxu0 0.0
    %6515 = vmatprep.subr.mxu0 0.0
    %6516 = vmatpush2.msra.mxu0 0.0
    %6517 = vmatprep.subr.mxu0 0.0
    %6518 = vmatpush2.msra.mxu0 0.0
    %6519 = vmatprep.subr.mxu0 0.0
    %6520 = vmatpush2.msra.mxu0 0.0
    %6521 = vmatprep.subr.mxu0 0.0
    %6522 = vmatpush2.msra.mxu0 0.0
    %6523 = vmatprep.mubr.f32.mxu0 0.0
    %6524 = vmatmul.mubr.f32.gmra.mxu0 %v5794
    %v6525 = vpop.f32.mrf.mxu0
    %v6526 = vadd.f32 0.0, %v6525
    %v6527 = vpop.f32.mrf.mxu0
    %6528 = vdwg.mxu0
    %v6529 = vadd.f32 %v6314, %v6455
    %v6530 = vxor.u32 %v6529, 2147483648
    %v6531 = vmul.f32 %v6530, 1.442695
    %v6532 = vpow.pop %v6531
    %v6533 = vadd.f32 %v6532, 1.0
    %v6534 = vrcp.pop %v6533
    %v6535 = vmul.f32 1.0, %v6534
    %v6536 = vadd.f32 %v6316, %v6457
    %v6537 = vxor.u32 %v6536, 2147483648
    %v6538 = vmul.f32 %v6537, 1.442695
    %v6539 = vpow.pop %v6538
    %v6540 = vadd.f32 %v6539, 1.0
    %v6541 = vrcp.pop %v6540
    %v6542 = vmul.f32 1.0, %v6541
    %v6543 = vadd.f32 %v6526, %v1248
    %v6544 = vmul.f32 %v6535, %v6543
    %v6545 = vadd.f32 %v6385, %v6544
    %v6546 = vtanh.pop %v6545
    %v6547 = vsub.f32 1.0, %v6542
    %v6548 = vmul.f32 %v6547, %v6546
    %v6549 = vmul.f32 %v6542, %v5794
    %v6550 = vadd.f32 %v6548, %v6549
    %vm6551 = vcmp.eq.s32.totalorder %v1258, 7
    %v6552 = vsel %vm6551, 1, 0
    %6553 = vset.pattern.permute.xlu0 0
    %6554 = vperm.xlu0 %6553, %v6552
    %v6555 = vpop.permute.xlu0 %6554
    %vm6556 = vcmp.eq.s32.totalorder %v6555, 1
    %v6557 = vsel %vm6556, %v6550, %v5801
    %v6558 = vld [vmem:[%s11] sm:$0xff]
    %v6559 = vld [vmem:[%s11 + $0x8] sm:$0xff]
    %v6560 = vld [vmem:[%s11 + $0x10] sm:$0xff]
    %v6561 = vld [vmem:[%s11 + $0x18] sm:$0xff]
    %v6562 = vld [vmem:[%s11 + $0x20] sm:$0xff]
    %v6563 = vld [vmem:[%s11 + $0x28] sm:$0xff]
    %v6564 = vld [vmem:[%s11 + $0x30] sm:$0xff]
    %v6565 = vld [vmem:[%s11 + $0x38] sm:$0xff]
    %v6566 = vld [vmem:[%s11 + $0x40] sm:$0xff]
    %v6567 = vld [vmem:[%s11 + $0x48] sm:$0xff]
    %v6568 = vld [vmem:[%s11 + $0x50] sm:$0xff]
    %v6569 = vld [vmem:[%s11 + $0x58] sm:$0xff]
    %v6570 = vld [vmem:[%s11 + $0x60] sm:$0xff]
    %v6571 = vld [vmem:[%s11 + $0x68] sm:$0xff]
    %v6572 = vld [vmem:[%s11 + $0x70] sm:$0xff]
    %v6573 = vld [vmem:[%s11 + $0x78] sm:$0xff]
    %v6574 = vld [vmem:[%s12] sm:$0x1]
    %v6576 = vlaneseq
    %v6577 = vshrl.u32 %v6576, 7
    %v6578 = vsub.s32 0, %v6577
    %v6579 = vrot.slane %v6574, %v6578
    %6581 = vmatprep.subr.mxu0 0.0
    %6582 = vmatpush1.msra.mxu0 %v6573
    %6583 = vmatprep.subr.mxu0 0.0
    %6584 = vmatpush1.msra.mxu0 %v6572
    %6585 = vmatprep.subr.mxu0 0.0
    %6586 = vmatpush1.msra.mxu0 %v6571
    %6587 = vmatprep.subr.mxu0 0.0
    %6588 = vmatpush1.msra.mxu0 %v6570
    %6589 = vmatprep.subr.mxu0 0.0
    %6590 = vmatpush1.msra.mxu0 %v6569
    %6591 = vmatprep.subr.mxu0 0.0
    %6592 = vmatpush1.msra.mxu0 %v6568
    %6593 = vmatprep.subr.mxu0 0.0
    %6594 = vmatpush1.msra.mxu0 %v6567
    %6595 = vmatprep.subr.mxu0 0.0
    %6596 = vmatpush1.msra.mxu0 %v6566
    %6597 = vmatprep.subr.mxu0 0.0
    %6598 = vmatpush1.msra.mxu0 %v6565
    %6599 = vmatprep.subr.mxu0 0.0
    %6600 = vmatpush1.msra.mxu0 %v6564
    %6601 = vmatprep.subr.mxu0 0.0
    %6602 = vmatpush1.msra.mxu0 %v6563
    %6603 = vmatprep.subr.mxu0 0.0
    %6604 = vmatpush1.msra.mxu0 %v6562
    %6605 = vmatprep.subr.mxu0 0.0
    %6606 = vmatpush1.msra.mxu0 %v6561
    %6607 = vmatprep.subr.mxu0 0.0
    %6608 = vmatpush1.msra.mxu0 %v6560
    %6609 = vmatprep.subr.mxu0 0.0
    %6610 = vmatpush1.msra.mxu0 %v6559
    %6611 = vmatprep.subr.mxu0 0.0
    %6612 = vmatpush1.msra.mxu0 %v6558
    %6613 = vmatprep.subr.mxu0 0.0
    %6614 = vmatpush2.msra.mxu0 0.0
    %6615 = vmatprep.subr.mxu0 0.0
    %6616 = vmatpush2.msra.mxu0 0.0
    %6617 = vmatprep.subr.mxu0 0.0
    %6618 = vmatpush2.msra.mxu0 0.0
    %6619 = vmatprep.subr.mxu0 0.0
    %6620 = vmatpush2.msra.mxu0 0.0
    %6621 = vmatprep.subr.mxu0 0.0
    %6622 = vmatpush2.msra.mxu0 0.0
    %6623 = vmatprep.subr.mxu0 0.0
    %6624 = vmatpush2.msra.mxu0 0.0
    %6625 = vmatprep.subr.mxu0 0.0
    %6626 = vmatpush2.msra.mxu0 0.0
    %6627 = vmatprep.subr.mxu0 0.0
    %6628 = vmatpush2.msra.mxu0 0.0
    %6629 = vmatprep.subr.mxu0 0.0
    %6630 = vmatpush2.msra.mxu0 0.0
    %6631 = vmatprep.subr.mxu0 0.0
    %6632 = vmatpush2.msra.mxu0 0.0
    %6633 = vmatprep.subr.mxu0 0.0
    %6634 = vmatpush2.msra.mxu0 0.0
    %6635 = vmatprep.subr.mxu0 0.0
    %6636 = vmatpush2.msra.mxu0 0.0
    %6637 = vmatprep.subr.mxu0 0.0
    %6638 = vmatpush2.msra.mxu0 0.0
    %6639 = vmatprep.subr.mxu0 0.0
    %6640 = vmatpush2.msra.mxu0 0.0
    %6641 = vmatprep.subr.mxu0 0.0
    %6642 = vmatpush2.msra.mxu0 0.0
    %6643 = vmatprep.subr.mxu0 0.0
    %6644 = vmatpush2.msra.mxu0 0.0
    %6645 = vmatprep.mubr.f32.mxu0 0.0
    %6646 = vmatmul.mubr.f32.gmra.mxu0 %v6557
    %v6647 = vpop.f32.mrf.mxu0
    %v6648 = vadd.f32 %v6579, %v6647
    %v6649 = vpop.f32.mrf.mxu0
    %6650 = vdwg.mxu0
    %vm6651 = vcmask 64512
    %6652 = vst.msk [vmem:[%s13] sm:$0xff] %vm6651, %v6648
    // Predicated region
    $region66: #{simple_recurrent_forward.1} parent=1 // pred_check
      _
    $region67: #{simple_recurrent_forward.1} parent=1 // pred_check_branch
      %6654 = sbr.rel (0) target = $region69
    $region68: #{simple_recurrent_forward.1} parent=1 // pred_region
      _
    $region69: #{simple_recurrent_forward.1} parent=1 // pred_fallthru
      _
    // Predicated region
    $region70: #{simple_recurrent_forward.1} parent=1 // pred_check
      _
    $region71: #{simple_recurrent_forward.1} parent=1 // pred_check_branch
      %6656 = sbr.rel (0) target = $region73
    $region72: #{simple_recurrent_forward.1} parent=1 // pred_region
      _
    $region73: #{simple_recurrent_forward.1} parent=1 // pred_fallthru
      _
    %6657 = vsyncpa [#allocation3], 1
    %6658 = vsyncpa [#allocation5], 1

</llo_original>
